<compile_context>
chip_gen: v5e
topology: v5e:2x2
jax: 0.10.0
libtpu: 0.0.40
codegen_flags: <defaults>
</compile_context>

<pallas_src>
import functools

import numpy as np
import jax
import jax.numpy as jnp
from jax import lax
from jax.experimental import pallas as pl
from jax.experimental.pallas import tpu as pltpu


# ----------------------------------------------------------------------------
# Kernel 1: fused triple RNN unroll + action selection.
# ----------------------------------------------------------------------------
def _rnn_select_kernel(obs_m_ref, obs_t_ref, act_ref, nam_ref, msk_ref,
                       w1m_ref, b1m_ref, wihm_ref, bihm_ref, whhm_ref, bhhm_ref,
                       w2m_ref, b2m_ref,
                       w1t_ref, b1t_ref, wiht_ref, biht_ref, whht_ref, bhht_ref,
                       w2t_ref, b2t_ref,
                       chosen_ref, tmax_ref, diag_ref,
                       gxm_r, gxm_z, gxm_n, gxt_r, gxt_z, gxt_n,
                       hm_all, ht_all, *, double_q):
    f32 = jnp.float32
    T, Rp, A = nam_ref.shape
    H = w1m_ref.shape[1]
    RM = 2 * Rp                       # model-stream rows per timestep

    # -- stage 1: hoisted input-side matmuls over ALL timesteps (big-M MXU) ---
    x1m = jnp.maximum(jnp.dot(obs_m_ref[...], w1m_ref[...],
                              preferred_element_type=f32) + b1m_ref[...], 0.0)
    x1t = jnp.maximum(jnp.dot(obs_t_ref[...], w1t_ref[...],
                              preferred_element_type=f32) + b1t_ref[...], 0.0)
    gxm_r[...] = jnp.dot(x1m, wihm_ref[0], preferred_element_type=f32) + bihm_ref[0]
    gxm_z[...] = jnp.dot(x1m, wihm_ref[1], preferred_element_type=f32) + bihm_ref[1]
    gxm_n[...] = jnp.dot(x1m, wihm_ref[2], preferred_element_type=f32) + bihm_ref[2]
    gxt_r[...] = jnp.dot(x1t, wiht_ref[0], preferred_element_type=f32) + biht_ref[0]
    gxt_z[...] = jnp.dot(x1t, wiht_ref[1], preferred_element_type=f32) + biht_ref[1]
    gxt_n[...] = jnp.dot(x1t, wiht_ref[2], preferred_element_type=f32) + biht_ref[2]

    # -- stage 2: serial GRU recurrence (only h @ W_hh stays in the chain) ----
    def gru_step(h, gr, gz, gn, whh_ref, bhh_ref):
        ghr = jnp.dot(h, whh_ref[0], preferred_element_type=f32) + bhh_ref[0]
        ghz = jnp.dot(h, whh_ref[1], preferred_element_type=f32) + bhh_ref[1]
        ghn = jnp.dot(h, whh_ref[2], preferred_element_type=f32) + bhh_ref[2]
        r = jax.nn.sigmoid(gr + ghr)
        z = jax.nn.sigmoid(gz + ghz)
        n = jnp.tanh(gn + r * ghn)
        return (1.0 - z) * n + z * h

    def body(t, carry):
        hm, ht = carry
        om = pl.multiple_of(t * RM, RM)
        ot = pl.multiple_of(t * Rp, Rp)
        hm_new = gru_step(hm,
                          gxm_r[pl.ds(om, RM), :], gxm_z[pl.ds(om, RM), :],
                          gxm_n[pl.ds(om, RM), :], whhm_ref, bhhm_ref)
        ht_new = gru_step(ht,
                          gxt_r[pl.ds(ot, Rp), :], gxt_z[pl.ds(ot, Rp), :],
                          gxt_n[pl.ds(ot, Rp), :], whht_ref, bhht_ref)
        hm_all[pl.ds(om, RM), :] = hm_new
        ht_all[pl.ds(ot, Rp), :] = ht_new
        return hm_new, ht_new

    lax.fori_loop(0, T, body,
                  (jnp.zeros((RM, H), f32), jnp.zeros((Rp, H), f32)),
                  unroll=True)

    # -- stage 3: hoisted output projection (fc2) over ALL timesteps ----------
    qm = (jnp.dot(hm_all[...], w2m_ref[...],
                  preferred_element_type=f32) + b2m_ref[...]).reshape(T, RM, A)
    qt = (jnp.dot(ht_all[...], w2t_ref[...],
                  preferred_element_type=f32) + b2t_ref[...]).reshape(T, Rp, A)

    mac = qm[:, 0:Rp, :]          # model        on obs
    tp1 = qm[:, Rp:2 * Rp, :]     # model        on next_obs
    tgt = qt                      # target model on next_obs

    # -- stage 4: chosen-action gather + (double-)Q target max ---------------
    col = lax.broadcasted_iota(jnp.int32, (T, Rp, A), 2)
    onehot = col == act_ref[...][:, :, None]
    chosen = jnp.sum(jnp.where(onehot, mac, 0.0), axis=2)          # [T, Rp]

    ignore = (nam_ref[...] == 0.0) & (msk_ref[...][:, :, None] == 1.0)
    neg = jnp.float32(-jnp.inf)
    tgt_m = jnp.where(ignore, neg, tgt)
    if double_q:
        tp1_m = jnp.where(ignore, neg, tp1)
        rowmax = jnp.max(tp1_m, axis=2, keepdims=True)
        is_max = tp1_m == rowmax
        idx = jnp.min(jnp.where(is_max, col, A), axis=2, keepdims=True)
        tmax = jnp.sum(jnp.where(col == idx, tgt_m, 0.0), axis=2)  # [T, Rp]
    else:
        tmax = jnp.max(tgt_m, axis=2)

    chosen_ref[...] = chosen
    tmax_ref[...] = tmax
    # Min over all rows (padded rows are finite): -inf detector, consumed on
    # the host off the critical path instead of a mid-pipeline .item() sync.
    diag_ref[...] = jnp.ones((1, 1), f32) * jnp.min(tmax)


# ----------------------------------------------------------------------------
# Kernel 2: both QMixer hyper-networks + TD target + masked-MSE loss.
# ----------------------------------------------------------------------------
def _mix_td_kernel(qs_c_ref, qs_t_ref, st_c_ref, st_t_ref,
                   rew_ref, term_ref, msk_ref,
                   hw1_ref, hw1b_ref, hb1_ref, hb1b_ref, hwf_ref, hwfb_ref,
                   vw1_ref, vb1_ref, vw2_ref, vb2_ref,
                   loss_ref, mtd_ref, ctot_ref, tgt_ref, *, n_agents, gamma):
    f32 = jnp.float32

    def mix_one(m, qs_ref, st):
        hidden = jnp.dot(st, hb1_ref[m], preferred_element_type=f32) + hb1b_ref[m]
        for a in range(n_agents):        # per-agent weights on a leading dim
            w1_a = jnp.abs(jnp.dot(st, hw1_ref[m, a], preferred_element_type=f32)
                           + hw1b_ref[m, a])
            hidden = hidden + qs_ref[a] * w1_a
        hidden = jnp.where(hidden > 0.0, hidden, jnp.exp(hidden) - 1.0)  # ELU
        wf = jnp.abs(jnp.dot(st, hwf_ref[m], preferred_element_type=f32)
                     + hwfb_ref[m])
        vh = jnp.maximum(jnp.dot(st, vw1_ref[m], preferred_element_type=f32)
                         + vb1_ref[m], 0.0)
        v = jnp.dot(vh, vw2_ref[m], preferred_element_type=f32) + vb2_ref[m]
        return jnp.sum(hidden * wf, axis=1, keepdims=True) + v       # [N, 1]

    c_tot = mix_one(0, qs_c_ref, st_c_ref[...])
    t_tot = mix_one(1, qs_t_ref, st_t_ref[...])

    targets = rew_ref[...] + gamma * (1.0 - term_ref[...]) * t_tot   # [N, n]
    masked = (c_tot - targets) * msk_ref[...]

    ctot_ref[...] = c_tot
    tgt_ref[...] = targets
    mtd_ref[...] = masked
    loss_ref[...] = jnp.ones((1, 1), f32) * (jnp.sum(masked * masked)
                                             / jnp.sum(msk_ref[...]))


# ----------------------------------------------------------------------------
# host-side parameter re-layout (gate-split GRU weights, agent-split hyper_w1)
# ----------------------------------------------------------------------------
def _prep_rnn_params(p):
    H = p["fc1_w"].shape[0]
    return dict(
        w1=p["fc1_w"].T,                                         # [O, H]
        b1=p["fc1_b"][None, :],                                  # [1, H]
        wih=p["gru_wih"].reshape(3, H, H).transpose(0, 2, 1),    # [3, Hin, Hout]
        bih=p["gru_bih"].reshape(3, 1, H),
        whh=p["gru_whh"].reshape(3, H, H).transpose(0, 2, 1),
        bhh=p["gru_bhh"].reshape(3, 1, H),
        w2=p["fc2_w"].T,                                         # [H, A]
        b2=p["fc2_b"][None, :],                                  # [1, A]
    )


def _prep_mixer_params(p, n_agents):
    E = p["hyper_b1_w"].shape[0]
    S = p["hyper_b1_w"].shape[1]
    return dict(
        hw1=p["hyper_w1_w"].reshape(n_agents, E, S).transpose(0, 2, 1),  # [n,S,E]
        hw1b=p["hyper_w1_b"].reshape(n_agents, 1, E),
        hb1=p["hyper_b1_w"].T, hb1b=p["hyper_b1_b"][None, :],
        hwf=p["hyper_wf_w"].T, hwfb=p["hyper_wf_b"][None, :],
        vw1=p["v_w1"].T, vb1=p["v_b1"][None, :],
        vw2=p["v_w2"].T, vb2=p["v_b2"][None, :],
    )


# ----------------------------------------------------------------------------
# QMixLoss.forward
# ----------------------------------------------------------------------------
def qmix_loss_forward(params, rewards, actions, terminated, mask, obs, next_obs,
                      action_mask, next_action_mask, gamma=0.99, double_q=True):
    del action_mask  # unused by the reference forward pass

    B, T, n, O = obs.shape
    A = params["model"]["fc2_w"].shape[0]
    H = params["model"]["fc1_w"].shape[0]
    R = B * n
    Rp = max(8, ((R + 7) // 8) * 8)       # pad rows to a sublane multiple
    pad = Rp - R

    def rnn_rows(x, pad_val=0):
        # [B, T, n, ...] -> [T, Rp, ...]   (row = b*n + agent, constant padded)
        x = jnp.moveaxis(x, 1, 0)
        x = x.reshape((T, R) + x.shape[3:])
        if pad:
            widths = [(0, 0), (0, pad)] + [(0, 0)] * (x.ndim - 2)
            x = jnp.pad(x, widths, constant_values=pad_val)
        return x

    obs_p = rnn_rows(obs)                                         # [T, Rp, O]
    nobs_p = rnn_rows(next_obs)                                   # [T, Rp, O]
    obs_m = jnp.concatenate([obs_p, nobs_p], axis=1).reshape(T * 2 * Rp, O)
    obs_t = nobs_p.reshape(T * Rp, O)

    act_r = rnn_rows(actions.astype(jnp.int32))                   # [T, Rp]
    nam_r = rnn_rows(next_action_mask, pad_val=1.0)               # [T, Rp, A]
    msk_r = rnn_rows(mask)                                        # [T, Rp]

    pm = _prep_rnn_params(params["model"])
    pt = _prep_rnn_params(params["target_model"])

    chosen_tr, tmax_tr, diag = pl.pallas_call(
        functools.partial(_rnn_select_kernel, double_q=double_q),
        out_shape=(jax.ShapeDtypeStruct((T, Rp), jnp.float32),
                   jax.ShapeDtypeStruct((T, Rp), jnp.float32),
                   jax.ShapeDtypeStruct((1, 1), jnp.float32)),
        scratch_shapes=[
            pltpu.VMEM((T * 2 * Rp, H), jnp.float32),   # gxm_r
            pltpu.VMEM((T * 2 * Rp, H), jnp.float32),   # gxm_z
            pltpu.VMEM((T * 2 * Rp, H), jnp.float32),   # gxm_n
            pltpu.VMEM((T * Rp, H), jnp.float32),       # gxt_r
            pltpu.VMEM((T * Rp, H), jnp.float32),       # gxt_z
            pltpu.VMEM((T * Rp, H), jnp.float32),       # gxt_n
            pltpu.VMEM((T * 2 * Rp, H), jnp.float32),   # hm_all (flat)
            pltpu.VMEM((T * Rp, H), jnp.float32),       # ht_all (flat)
        ],
    )(obs_m, obs_t, act_r, nam_r, msk_r,
      pm["w1"], pm["b1"], pm["wih"], pm["bih"], pm["whh"], pm["bhh"],
      pm["w2"], pm["b2"],
      pt["w1"], pt["b1"], pt["wih"], pt["bih"], pt["whh"], pt["bhh"],
      pt["w2"], pt["b2"])

    chosen = chosen_tr[:, :R].reshape(T, B, n).transpose(1, 0, 2)  # [B, T, n]
    tmax = tmax_tr[:, :R].reshape(T, B, n).transpose(1, 0, 2)

    N = B * T
    S = n * O
    qs_c = chosen.transpose(2, 0, 1).reshape(n, N, 1)             # agent leading
    qs_t = tmax.transpose(2, 0, 1).reshape(n, N, 1)
    st_c = obs.reshape(N, S)
    st_t = next_obs.reshape(N, S)

    m1 = _prep_mixer_params(params["mixer"], n)
    m2 = _prep_mixer_params(params["target_mixer"], n)
    stk = lambda k: jnp.stack([m1[k], m2[k]], axis=0)

    loss, mtd, ctot, tgts = pl.pallas_call(
        functools.partial(_mix_td_kernel, n_agents=n, gamma=gamma),
        out_shape=(jax.ShapeDtypeStruct((1, 1), jnp.float32),
                   jax.ShapeDtypeStruct((N, n), jnp.float32),
                   jax.ShapeDtypeStruct((N, 1), jnp.float32),
                   jax.ShapeDtypeStruct((N, n), jnp.float32)),
    )(qs_c, qs_t, st_c, st_t,
      rewards.reshape(N, n), terminated.reshape(N, n), mask.reshape(N, n),
      stk("hw1"), stk("hw1b"), stk("hb1"), stk("hb1b"), stk("hwf"), stk("hwfb"),
      stk("vw1"), stk("vb1"), stk("vw2"), stk("vb2"))

    # TODO(synk): the original host-side `.item()` assert is replaced by the
    # returned `diag` scalar (min of target_max); check it off the hot path.
    return (loss[0, 0], mask, mtd.reshape(B, T, n), ctot.reshape(B, T, 1),
            tgts.reshape(B, T, n), diag[0, 0])


# ----------------------------------------------------------------------------
# deterministic synthetic parameters
# ----------------------------------------------------------------------------
def init_rnn_params(key, obs_size, hid, n_actions):
    ks = jax.random.split(key, 8)
    s = 0.1
    return dict(
        fc1_w=s * jax.random.normal(ks[0], (hid, obs_size), jnp.float32),
        fc1_b=s * jax.random.normal(ks[1], (hid,), jnp.float32),
        gru_wih=s * jax.random.normal(ks[2], (3 * hid, hid), jnp.float32),
        gru_bih=s * jax.random.normal(ks[3], (3 * hid,), jnp.float32),
        gru_whh=s * jax.random.normal(ks[4], (3 * hid, hid), jnp.float32),
        gru_bhh=s * jax.random.normal(ks[5], (3 * hid,), jnp.float32),
        fc2_w=s * jax.random.normal(ks[6], (n_actions, hid), jnp.float32),
        fc2_b=s * jax.random.normal(ks[7], (n_actions,), jnp.float32),
    )


def init_mixer_params(key, n_agents, state_dim, embed):
    ks = jax.random.split(key, 10)
    s = 0.1
    return dict(
        hyper_w1_w=s * jax.random.normal(ks[0], (embed * n_agents, state_dim), jnp.float32),
        hyper_w1_b=s * jax.random.normal(ks[1], (embed * n_agents,), jnp.float32),
        hyper_b1_w=s * jax.random.normal(ks[2], (embed, state_dim), jnp.float32),
        hyper_b1_b=s * jax.random.normal(ks[3], (embed,), jnp.float32),
        hyper_wf_w=s * jax.random.normal(ks[4], (embed, state_dim), jnp.float32),
        hyper_wf_b=s * jax.random.normal(ks[5], (embed,), jnp.float32),
        v_w1=s * jax.random.normal(ks[6], (embed, state_dim), jnp.float32),
        v_b1=s * jax.random.normal(ks[7], (embed,), jnp.float32),
        v_w2=s * jax.random.normal(ks[8], (1, embed), jnp.float32),
        v_b2=s * jax.random.normal(ks[9], (1,), jnp.float32),
    )


# ----------------------------------------------------------------------------
# pure-JAX reference (mirrors the PyTorch semantics) for a correctness check
# ----------------------------------------------------------------------------
def ref_forward(params, rewards, actions, terminated, mask, obs, next_obs,
                next_action_mask, gamma, double_q):
    def unroll_ref(o, p):
        B, T, n, O = o.shape
        R = B * n
        H = p["fc1_w"].shape[0]
        h = jnp.zeros((R, H), jnp.float32)
        qs = []
        for t in range(T):
            x = o[:, t].reshape(R, O)
            x1 = jax.nn.relu(x @ p["fc1_w"].T + p["fc1_b"])
            gx = x1 @ p["gru_wih"].T + p["gru_bih"]
            gh = h @ p["gru_whh"].T + p["gru_bhh"]
            r = jax.nn.sigmoid(gx[:, :H] + gh[:, :H])
            z = jax.nn.sigmoid(gx[:, H:2 * H] + gh[:, H:2 * H])
            nn_ = jnp.tanh(gx[:, 2 * H:] + r * gh[:, 2 * H:])
            h = (1.0 - z) * nn_ + z * h
            qs.append((h @ p["fc2_w"].T + p["fc2_b"]).reshape(B, n, -1))
        return jnp.stack(qs, axis=1)

    def mix_ref(aq, o, p):
        B, T, n = aq.shape
        N = B * T
        st = o.reshape(N, -1)
        E = p["hyper_b1_w"].shape[0]
        qsr = aq.reshape(N, 1, n)
        w1 = jnp.abs(st @ p["hyper_w1_w"].T + p["hyper_w1_b"]).reshape(N, n, E)
        b1 = (st @ p["hyper_b1_w"].T + p["hyper_b1_b"]).reshape(N, 1, E)
        hidden = jax.nn.elu(jnp.einsum("nij,njk->nik", qsr, w1) + b1)
        wf = jnp.abs(st @ p["hyper_wf_w"].T + p["hyper_wf_b"]).reshape(N, E, 1)
        v = (jax.nn.relu(st @ p["v_w1"].T + p["v_b1"]) @ p["v_w2"].T
             + p["v_b2"]).reshape(N, 1, 1)
        return (jnp.einsum("nij,njk->nik", hidden, wf) + v).reshape(B, T, 1)

    mac_out = unroll_ref(obs, params["model"])
    chosen = jnp.take_along_axis(mac_out, actions[..., None], axis=3)[..., 0]
    target_mac_out = unroll_ref(next_obs, params["target_model"])
    ignore = (next_action_mask == 0) & (mask == 1)[..., None]
    target_mac_out = jnp.where(ignore, -jnp.inf, target_mac_out)
    if double_q:
        tp1 = jnp.where(ignore, -jnp.inf, unroll_ref(next_obs, params["model"]))
        idx = jnp.argmax(tp1, axis=3, keepdims=True)
        tmax = jnp.take_along_axis(target_mac_out, idx, axis=3)[..., 0]
    else:
        tmax = jnp.max(target_mac_out, axis=3)
    chosen_tot = mix_ref(chosen, obs, params["mixer"])
    target_tot = mix_ref(tmax, next_obs, params["target_mixer"])
    targets = rewards + gamma * (1.0 - terminated) * target_tot
    td = chosen_tot - targets
    masked = td * mask
    loss = jnp.sum(masked ** 2) / jnp.sum(mask)
    return loss, mask, masked, chosen_tot, targets


if __name__ == "__main__":
    B, T, NA, OBS, ACT, HID, EMB = 2, 8, 3, 16, 7, 32, 32
    GAMMA, DOUBLE_Q = 0.99, True

    key = jax.random.PRNGKey(0)
    k_par, k_dat = jax.random.split(key)
    kp = jax.random.split(k_par, 4)
    params = dict(
        model=init_rnn_params(kp[0], OBS, HID, ACT),
        target_model=init_rnn_params(kp[1], OBS, HID, ACT),
        mixer=init_mixer_params(kp[2], NA, NA * OBS, EMB),
        target_mixer=init_mixer_params(kp[3], NA, NA * OBS, EMB),
    )

    kd = jax.random.split(k_dat, 8)
    rewards = jax.random.normal(kd[0], (B, T, NA), jnp.float32)
    actions = jax.random.randint(kd[1], (B, T, NA), 0, ACT, jnp.int32)
    terminated = (jax.random.uniform(kd[2], (B, T, NA)) < 0.1).astype(jnp.float32)
    mask = (jax.random.uniform(kd[3], (B, T, NA)) < 0.9).astype(jnp.float32)
    obs = jax.random.normal(kd[4], (B, T, NA, OBS), jnp.float32)
    next_obs = jax.random.normal(kd[5], (B, T, NA, OBS), jnp.float32)
    action_mask = jnp.ones((B, T, NA, ACT), jnp.float32)
    next_action_mask = (jax.random.uniform(kd[6], (B, T, NA, ACT)) < 0.7).astype(jnp.float32)
    next_action_mask = next_action_mask.at[..., 0].set(1.0)  # >=1 valid action

    fwd = jax.jit(functools.partial(qmix_loss_forward,
                                    gamma=GAMMA, double_q=DOUBLE_Q))
    out = fwd(params, rewards, actions, terminated, mask, obs, next_obs,
              action_mask, next_action_mask)
    out = jax.block_until_ready(out)

    ref = ref_forward(params, rewards, actions, terminated, mask, obs, next_obs,
                      next_action_mask, GAMMA, DOUBLE_Q)
    names = ["loss", "mask", "masked_td_error", "chosen_action_qvals", "targets"]
    for nme, a, b in zip(names, out[:5], ref):
        np.testing.assert_allclose(np.asarray(a), np.asarray(b),
                                   rtol=1e-3, atol=1e-3, err_msg=nme)

    # Off-critical-path replacement for the original host-side .item() assert.
    assert float(out[5]) != -np.inf, "target_max_qvals contains a masked action"

    print("KERNEL_OK")
</pallas_src>

<mosaic_0001>
module attributes {stable_mosaic.version = 11 : i64} {
  func.func @_rnn_select_kernel(%arg0: memref<128x16xf32, #tpu.memory_space<vmem>>, %arg1: memref<64x16xf32, #tpu.memory_space<vmem>>, %arg2: memref<8x8xi32, #tpu.memory_space<vmem>>, %arg3: memref<8x8x7xf32, #tpu.memory_space<vmem>>, %arg4: memref<8x8xf32, #tpu.memory_space<vmem>>, %arg5: memref<16x32xf32, #tpu.memory_space<vmem>>, %arg6: memref<1x32xf32, #tpu.memory_space<vmem>>, %arg7: memref<3x32x32xf32, #tpu.memory_space<vmem>>, %arg8: memref<3x1x32xf32, #tpu.memory_space<vmem>>, %arg9: memref<3x32x32xf32, #tpu.memory_space<vmem>>, %arg10: memref<3x1x32xf32, #tpu.memory_space<vmem>>, %arg11: memref<32x7xf32, #tpu.memory_space<vmem>>, %arg12: memref<1x7xf32, #tpu.memory_space<vmem>>, %arg13: memref<16x32xf32, #tpu.memory_space<vmem>>, %arg14: memref<1x32xf32, #tpu.memory_space<vmem>>, %arg15: memref<3x32x32xf32, #tpu.memory_space<vmem>>, %arg16: memref<3x1x32xf32, #tpu.memory_space<vmem>>, %arg17: memref<3x32x32xf32, #tpu.memory_space<vmem>>, %arg18: memref<3x1x32xf32, #tpu.memory_space<vmem>>, %arg19: memref<32x7xf32, #tpu.memory_space<vmem>>, %arg20: memref<1x7xf32, #tpu.memory_space<vmem>>, %arg21: memref<8x8xf32, #tpu.memory_space<vmem>>, %arg22: memref<8x8xf32, #tpu.memory_space<vmem>>, %arg23: memref<1x1xf32, #tpu.memory_space<vmem>>, %arg24: memref<128x32xf32, #tpu.memory_space<vmem>>, %arg25: memref<128x32xf32, #tpu.memory_space<vmem>>, %arg26: memref<128x32xf32, #tpu.memory_space<vmem>>, %arg27: memref<64x32xf32, #tpu.memory_space<vmem>>, %arg28: memref<64x32xf32, #tpu.memory_space<vmem>>, %arg29: memref<64x32xf32, #tpu.memory_space<vmem>>, %arg30: memref<128x32xf32, #tpu.memory_space<vmem>>, %arg31: memref<64x32xf32, #tpu.memory_space<vmem>>) attributes {dimension_semantics = [], scalar_prefetch = 0 : i64, scratch_operands = 8 : i64, tpu.core_type = #tpu.core_type<tc>} {
    %c0 = arith.constant 0 : index
    %c0_0 = arith.constant 0 : index
    %0 = vector.load %arg0[%c0, %c0_0] : memref<128x16xf32, #tpu.memory_space<vmem>>, vector<128x16xf32>
    %c0_1 = arith.constant 0 : index
    %c0_2 = arith.constant 0 : index
    %1 = vector.load %arg5[%c0_1, %c0_2] : memref<16x32xf32, #tpu.memory_space<vmem>>, vector<16x32xf32>
    %cst = arith.constant dense<0.000000e+00> : vector<128x32xf32>
    %2 = tpu.matmul %0, %1, %cst {dimension_numbers = #tpu.dot_dimension_numbers<[1], [0], [0], [1], [0, 0, 1, 1], [], []>} : vector<128x16xf32>, vector<16x32xf32>, vector<128x32xf32> -> vector<128x32xf32>
    %c0_3 = arith.constant 0 : index
    %c0_4 = arith.constant 0 : index
    %3 = vector.load %arg6[%c0_3, %c0_4] : memref<1x32xf32, #tpu.memory_space<vmem>>, vector<1x32xf32>
    %4 = vector.broadcast %3 : vector<1x32xf32> to vector<128x32xf32>
    %5 = arith.addf %2, %4 : vector<128x32xf32>
    %cst_5 = arith.constant 0.000000e+00 : f32
    %6 = vector.broadcast %cst_5 : f32 to vector<128x32xf32>
    %7 = arith.maximumf %5, %6 : vector<128x32xf32>
    %c0_6 = arith.constant 0 : index
    %c0_7 = arith.constant 0 : index
    %8 = vector.load %arg1[%c0_6, %c0_7] : memref<64x16xf32, #tpu.memory_space<vmem>>, vector<64x16xf32>
    %c0_8 = arith.constant 0 : index
    %c0_9 = arith.constant 0 : index
    %9 = vector.load %arg13[%c0_8, %c0_9] : memref<16x32xf32, #tpu.memory_space<vmem>>, vector<16x32xf32>
    %cst_10 = arith.constant dense<0.000000e+00> : vector<64x32xf32>
    %10 = tpu.matmul %8, %9, %cst_10 {dimension_numbers = #tpu.dot_dimension_numbers<[1], [0], [0], [1], [0, 0, 1, 1], [], []>} : vector<64x16xf32>, vector<16x32xf32>, vector<64x32xf32> -> vector<64x32xf32>
    %c0_11 = arith.constant 0 : index
    %c0_12 = arith.constant 0 : index
    %11 = vector.load %arg14[%c0_11, %c0_12] : memref<1x32xf32, #tpu.memory_space<vmem>>, vector<1x32xf32>
    %12 = vector.broadcast %11 : vector<1x32xf32> to vector<64x32xf32>
    %13 = arith.addf %10, %12 : vector<64x32xf32>
    %cst_13 = arith.constant 0.000000e+00 : f32
    %14 = vector.broadcast %cst_13 : f32 to vector<64x32xf32>
    %15 = arith.maximumf %13, %14 : vector<64x32xf32>
    %c0_14 = arith.constant 0 : index
    %c0_15 = arith.constant 0 : index
    %c0_16 = arith.constant 0 : index
    %16 = vector.load %arg7[%c0_14, %c0_15, %c0_16] : memref<3x32x32xf32, #tpu.memory_space<vmem>>, vector<1x32x32xf32>
    %17 = vector.shape_cast %16 : vector<1x32x32xf32> to vector<32x32xf32>
    %cst_17 = arith.constant dense<0.000000e+00> : vector<128x32xf32>
    %18 = tpu.matmul %7, %17, %cst_17 {dimension_numbers = #tpu.dot_dimension_numbers<[1], [0], [0], [1], [0, 0, 1, 1], [], []>} : vector<128x32xf32>, vector<32x32xf32>, vector<128x32xf32> -> vector<128x32xf32>
    %c0_18 = arith.constant 0 : index
    %c0_19 = arith.constant 0 : index
    %c0_20 = arith.constant 0 : index
    %19 = vector.load %arg8[%c0_18, %c0_19, %c0_20] : memref<3x1x32xf32, #tpu.memory_space<vmem>>, vector<1x1x32xf32>
    %20 = vector.shape_cast %19 : vector<1x1x32xf32> to vector<1x32xf32>
    %21 = vector.broadcast %20 : vector<1x32xf32> to vector<128x32xf32>
    %22 = arith.addf %18, %21 : vector<128x32xf32>
    %c0_21 = arith.constant 0 : index
    %c0_22 = arith.constant 0 : index
    %23 = vector.load %arg24[%c0_21, %c0_22] : memref<128x32xf32, #tpu.memory_space<vmem>>, vector<128x32xf32>
    tpu.vector_store %arg24[%c0_21, %c0_22], %22 {strides = array<i32>} : memref<128x32xf32, #tpu.memory_space<vmem>>, vector<128x32xf32>,
    %c1 = arith.constant 1 : index
    %c0_23 = arith.constant 0 : index
    %c0_24 = arith.constant 0 : index
    %24 = vector.load %arg7[%c1, %c0_23, %c0_24] : memref<3x32x32xf32, #tpu.memory_space<vmem>>, vector<1x32x32xf32>
    %25 = vector.shape_cast %24 : vector<1x32x32xf32> to vector<32x32xf32>
    %cst_25 = arith.constant dense<0.000000e+00> : vector<128x32xf32>
    %26 = tpu.matmul %7, %25, %cst_25 {dimension_numbers = #tpu.dot_dimension_numbers<[1], [0], [0], [1], [0, 0, 1, 1], [], []>} : vector<128x32xf32>, vector<32x32xf32>, vector<128x32xf32> -> vector<128x32xf32>
    %c1_26 = arith.constant 1 : index
    %c0_27 = arith.constant 0 : index
    %c0_28 = arith.constant 0 : index
    %27 = vector.load %arg8[%c1_26, %c0_27, %c0_28] : memref<3x1x32xf32, #tpu.memory_space<vmem>>, vector<1x1x32xf32>
    %28 = vector.shape_cast %27 : vector<1x1x32xf32> to vector<1x32xf32>
    %29 = vector.broadcast %28 : vector<1x32xf32> to vector<128x32xf32>
    %30 = arith.addf %26, %29 : vector<128x32xf32>
    %c0_29 = arith.constant 0 : index
    %c0_30 = arith.constant 0 : index
    %31 = vector.load %arg25[%c0_29, %c0_30] : memref<128x32xf32, #tpu.memory_space<vmem>>, vector<128x32xf32>
    tpu.vector_store %arg25[%c0_29, %c0_30], %30 {strides = array<i32>} : memref<128x32xf32, #tpu.memory_space<vmem>>, vector<128x32xf32>,
    %c2 = arith.constant 2 : index
    %c0_31 = arith.constant 0 : index
    %c0_32 = arith.constant 0 : index
    %32 = vector.load %arg7[%c2, %c0_31, %c0_32] : memref<3x32x32xf32, #tpu.memory_space<vmem>>, vector<1x32x32xf32>
    %33 = vector.shape_cast %32 : vector<1x32x32xf32> to vector<32x32xf32>
    %cst_33 = arith.constant dense<0.000000e+00> : vector<128x32xf32>
    %34 = tpu.matmul %7, %33, %cst_33 {dimension_numbers = #tpu.dot_dimension_numbers<[1], [0], [0], [1], [0, 0, 1, 1], [], []>} : vector<128x32xf32>, vector<32x32xf32>, vector<128x32xf32> -> vector<128x32xf32>
    %c2_34 = arith.constant 2 : index
    %c0_35 = arith.constant 0 : index
    %c0_36 = arith.constant 0 : index
    %35 = vector.load %arg8[%c2_34, %c0_35, %c0_36] : memref<3x1x32xf32, #tpu.memory_space<vmem>>, vector<1x1x32xf32>
    %36 = vector.shape_cast %35 : vector<1x1x32xf32> to vector<1x32xf32>
    %37 = vector.broadcast %36 : vector<1x32xf32> to vector<128x32xf32>
    %38 = arith.addf %34, %37 : vector<128x32xf32>
    %c0_37 = arith.constant 0 : index
    %c0_38 = arith.constant 0 : index
    %39 = vector.load %arg26[%c0_37, %c0_38] : memref<128x32xf32, #tpu.memory_space<vmem>>, vector<128x32xf32>
    tpu.vector_store %arg26[%c0_37, %c0_38], %38 {strides = array<i32>} : memref<128x32xf32, #tpu.memory_space<vmem>>, vector<128x32xf32>,
    %c0_39 = arith.constant 0 : index
    %c0_40 = arith.constant 0 : index
    %c0_41 = arith.constant 0 : index
    %40 = vector.load %arg15[%c0_39, %c0_40, %c0_41] : memref<3x32x32xf32, #tpu.memory_space<vmem>>, vector<1x32x32xf32>
    %41 = vector.shape_cast %40 : vector<1x32x32xf32> to vector<32x32xf32>
    %cst_42 = arith.constant dense<0.000000e+00> : vector<64x32xf32>
    %42 = tpu.matmul %15, %41, %cst_42 {dimension_numbers = #tpu.dot_dimension_numbers<[1], [0], [0], [1], [0, 0, 1, 1], [], []>} : vector<64x32xf32>, vector<32x32xf32>, vector<64x32xf32> -> vector<64x32xf32>
    %c0_43 = arith.constant 0 : index
    %c0_44 = arith.constant 0 : index
    %c0_45 = arith.constant 0 : index
    %43 = vector.load %arg16[%c0_43, %c0_44, %c0_45] : memref<3x1x32xf32, #tpu.memory_space<vmem>>, vector<1x1x32xf32>
    %44 = vector.shape_cast %43 : vector<1x1x32xf32> to vector<1x32xf32>
    %45 = vector.broadcast %44 : vector<1x32xf32> to vector<64x32xf32>
    %46 = arith.addf %42, %45 : vector<64x32xf32>
    %c0_46 = arith.constant 0 : index
    %c0_47 = arith.constant 0 : index
    %47 = vector.load %arg27[%c0_46, %c0_47] : memref<64x32xf32, #tpu.memory_space<vmem>>, vector<64x32xf32>
    tpu.vector_store %arg27[%c0_46, %c0_47], %46 {strides = array<i32>} : memref<64x32xf32, #tpu.memory_space<vmem>>, vector<64x32xf32>,
    %c1_48 = arith.constant 1 : index
    %c0_49 = arith.constant 0 : index
    %c0_50 = arith.constant 0 : index
    %48 = vector.load %arg15[%c1_48, %c0_49, %c0_50] : memref<3x32x32xf32, #tpu.memory_space<vmem>>, vector<1x32x32xf32>
    %49 = vector.shape_cast %48 : vector<1x32x32xf32> to vector<32x32xf32>
    %cst_51 = arith.constant dense<0.000000e+00> : vector<64x32xf32>
    %50 = tpu.matmul %15, %49, %cst_51 {dimension_numbers = #tpu.dot_dimension_numbers<[1], [0], [0], [1], [0, 0, 1, 1], [], []>} : vector<64x32xf32>, vector<32x32xf32>, vector<64x32xf32> -> vector<64x32xf32>
    %c1_52 = arith.constant 1 : index
    %c0_53 = arith.constant 0 : index
    %c0_54 = arith.constant 0 : index
    %51 = vector.load %arg16[%c1_52, %c0_53, %c0_54] : memref<3x1x32xf32, #tpu.memory_space<vmem>>, vector<1x1x32xf32>
    %52 = vector.shape_cast %51 : vector<1x1x32xf32> to vector<1x32xf32>
    %53 = vector.broadcast %52 : vector<1x32xf32> to vector<64x32xf32>
    %54 = arith.addf %50, %53 : vector<64x32xf32>
    %c0_55 = arith.constant 0 : index
    %c0_56 = arith.constant 0 : index
    %55 = vector.load %arg28[%c0_55, %c0_56] : memref<64x32xf32, #tpu.memory_space<vmem>>, vector<64x32xf32>
    tpu.vector_store %arg28[%c0_55, %c0_56], %54 {strides = array<i32>} : memref<64x32xf32, #tpu.memory_space<vmem>>, vector<64x32xf32>,
    %c2_57 = arith.constant 2 : index
    %c0_58 = arith.constant 0 : index
    %c0_59 = arith.constant 0 : index
    %56 = vector.load %arg15[%c2_57, %c0_58, %c0_59] : memref<3x32x32xf32, #tpu.memory_space<vmem>>, vector<1x32x32xf32>
    %57 = vector.shape_cast %56 : vector<1x32x32xf32> to vector<32x32xf32>
    %cst_60 = arith.constant dense<0.000000e+00> : vector<64x32xf32>
    %58 = tpu.matmul %15, %57, %cst_60 {dimension_numbers = #tpu.dot_dimension_numbers<[1], [0], [0], [1], [0, 0, 1, 1], [], []>} : vector<64x32xf32>, vector<32x32xf32>, vector<64x32xf32> -> vector<64x32xf32>
    %c2_61 = arith.constant 2 : index
    %c0_62 = arith.constant 0 : index
    %c0_63 = arith.constant 0 : index
    %59 = vector.load %arg16[%c2_61, %c0_62, %c0_63] : memref<3x1x32xf32, #tpu.memory_space<vmem>>, vector<1x1x32xf32>
    %60 = vector.shape_cast %59 : vector<1x1x32xf32> to vector<1x32xf32>
    %61 = vector.broadcast %60 : vector<1x32xf32> to vector<64x32xf32>
    %62 = arith.addf %58, %61 : vector<64x32xf32>
    %c0_64 = arith.constant 0 : index
    %c0_65 = arith.constant 0 : index
    %63 = vector.load %arg29[%c0_64, %c0_65] : memref<64x32xf32, #tpu.memory_space<vmem>>, vector<64x32xf32>
    tpu.vector_store %arg29[%c0_64, %c0_65], %62 {strides = array<i32>} : memref<64x32xf32, #tpu.memory_space<vmem>>, vector<64x32xf32>,
    %cst_66 = arith.constant 0.000000e+00 : f32
    %64 = vector.broadcast %cst_66 : f32 to vector<16x32xf32>
    %cst_67 = arith.constant 0.000000e+00 : f32
    %65 = vector.broadcast %cst_67 : f32 to vector<8x32xf32>
    %c0_i32 = arith.constant 0 : i32
    %c16_i32 = arith.constant 16 : i32
    %66 = arith.muli %c0_i32, %c16_i32 : i32
    %67 = tpu.assume_multiple %66, 16 : i32
    %c8_i32 = arith.constant 8 : i32
    %68 = arith.muli %c0_i32, %c8_i32 : i32
    %69 = tpu.assume_multiple %68, 8 : i32
    %70 = arith.index_cast %67 : i32 to index
    %c0_68 = arith.constant 0 : index
    %71 = vector.load %arg24[%70, %c0_68] : memref<128x32xf32, #tpu.memory_space<vmem>>, vector<16x32xf32>
    %72 = arith.index_cast %67 : i32 to index
    %c0_69 = arith.constant 0 : index
    %73 = vector.load %arg25[%72, %c0_69] : memref<128x32xf32, #tpu.memory_space<vmem>>, vector<16x32xf32>
    %74 = arith.index_cast %67 : i32 to index
    %c0_70 = arith.constant 0 : index
    %75 = vector.load %arg26[%74, %c0_70] : memref<128x32xf32, #tpu.memory_space<vmem>>, vector<16x32xf32>
    %c0_71 = arith.constant 0 : index
    %c0_72 = arith.constant 0 : index
    %c0_73 = arith.constant 0 : index
    %76 = vector.load %arg9[%c0_71, %c0_72, %c0_73] : memref<3x32x32xf32, #tpu.memory_space<vmem>>, vector<1x32x32xf32>
    %77 = vector.shape_cast %76 : vector<1x32x32xf32> to vector<32x32xf32>
    %cst_74 = arith.constant dense<0.000000e+00> : vector<16x32xf32>
    %78 = tpu.matmul %64, %77, %cst_74 {dimension_numbers = #tpu.dot_dimension_numbers<[1], [0], [0], [1], [0, 0, 1, 1], [], []>} : vector<16x32xf32>, vector<32x32xf32>, vector<16x32xf32> -> vector<16x32xf32>
    %c0_75 = arith.constant 0 : index
    %c0_76 = arith.constant 0 : index
    %c0_77 = arith.constant 0 : index
    %79 = vector.load %arg10[%c0_75, %c0_76, %c0_77] : memref<3x1x32xf32, #tpu.memory_space<vmem>>, vector<1x1x32xf32>
    %80 = vector.shape_cast %79 : vector<1x1x32xf32> to vector<1x32xf32>
    %81 = vector.broadcast %80 : vector<1x32xf32> to vector<16x32xf32>
    %82 = arith.addf %78, %81 : vector<16x32xf32>
    %c1_78 = arith.constant 1 : index
    %c0_79 = arith.constant 0 : index
    %c0_80 = arith.constant 0 : index
    %83 = vector.load %arg9[%c1_78, %c0_79, %c0_80] : memref<3x32x32xf32, #tpu.memory_space<vmem>>, vector<1x32x32xf32>
    %84 = vector.shape_cast %83 : vector<1x32x32xf32> to vector<32x32xf32>
    %cst_81 = arith.constant dense<0.000000e+00> : vector<16x32xf32>
    %85 = tpu.matmul %64, %84, %cst_81 {dimension_numbers = #tpu.dot_dimension_numbers<[1], [0], [0], [1], [0, 0, 1, 1], [], []>} : vector<16x32xf32>, vector<32x32xf32>, vector<16x32xf32> -> vector<16x32xf32>
    %c1_82 = arith.constant 1 : index
    %c0_83 = arith.constant 0 : index
    %c0_84 = arith.constant 0 : index
    %86 = vector.load %arg10[%c1_82, %c0_83, %c0_84] : memref<3x1x32xf32, #tpu.memory_space<vmem>>, vector<1x1x32xf32>
    %87 = vector.shape_cast %86 : vector<1x1x32xf32> to vector<1x32xf32>
    %88 = vector.broadcast %87 : vector<1x32xf32> to vector<16x32xf32>
    %89 = arith.addf %85, %88 : vector<16x32xf32>
    %c2_85 = arith.constant 2 : index
    %c0_86 = arith.constant 0 : index
    %c0_87 = arith.constant 0 : index
    %90 = vector.load %arg9[%c2_85, %c0_86, %c0_87] : memref<3x32x32xf32, #tpu.memory_space<vmem>>, vector<1x32x32xf32>
    %91 = vector.shape_cast %90 : vector<1x32x32xf32> to vector<32x32xf32>
    %cst_88 = arith.constant dense<0.000000e+00> : vector<16x32xf32>
    %92 = tpu.matmul %64, %91, %cst_88 {dimension_numbers = #tpu.dot_dimension_numbers<[1], [0], [0], [1], [0, 0, 1, 1], [], []>} : vector<16x32xf32>, vector<32x32xf32>, vector<16x32xf32> -> vector<16x32xf32>
    %c2_89 = arith.constant 2 : index
    %c0_90 = arith.constant 0 : index
    %c0_91 = arith.constant 0 : index
    %93 = vector.load %arg10[%c2_89, %c0_90, %c0_91] : memref<3x1x32xf32, #tpu.memory_space<vmem>>, vector<1x1x32xf32>
    %94 = vector.shape_cast %93 : vector<1x1x32xf32> to vector<1x32xf32>
    %95 = vector.broadcast %94 : vector<1x32xf32> to vector<16x32xf32>
    %96 = arith.addf %92, %95 : vector<16x32xf32>
    %97 = arith.addf %71, %82 : vector<16x32xf32>
    %98 = arith.negf %97 : vector<16x32xf32>
    %99 = math.exp %98 : vector<16x32xf32>
    %cst_92 = arith.constant 1.000000e+00 : f32
    %100 = vector.broadcast %cst_92 : f32 to vector<16x32xf32>
    %101 = arith.addf %100, %99 : vector<16x32xf32>
    %102 = arith.divf %100, %101 : vector<16x32xf32>
    %103 = arith.addf %73, %89 : vector<16x32xf32>
    %104 = arith.negf %103 : vector<16x32xf32>
    %105 = math.exp %104 : vector<16x32xf32>
    %cst_93 = arith.constant 1.000000e+00 : f32
    %106 = vector.broadcast %cst_93 : f32 to vector<16x32xf32>
    %107 = arith.addf %106, %105 : vector<16x32xf32>
    %108 = arith.divf %106, %107 : vector<16x32xf32>
    %109 = arith.mulf %102, %96 : vector<16x32xf32>
    %110 = arith.addf %75, %109 : vector<16x32xf32>
    %111 = math.tanh %110 : vector<16x32xf32>
    %cst_94 = arith.constant 1.000000e+00 : f32
    %112 = vector.broadcast %cst_94 : f32 to vector<16x32xf32>
    %113 = arith.subf %112, %108 : vector<16x32xf32>
    %114 = arith.mulf %113, %111 : vector<16x32xf32>
    %115 = arith.mulf %108, %64 : vector<16x32xf32>
    %116 = arith.addf %114, %115 : vector<16x32xf32>
    %117 = arith.index_cast %69 : i32 to index
    %c0_95 = arith.constant 0 : index
    %118 = vector.load %arg27[%117, %c0_95] : memref<64x32xf32, #tpu.memory_space<vmem>>, vector<8x32xf32>
    %119 = arith.index_cast %69 : i32 to index
    %c0_96 = arith.constant 0 : index
    %120 = vector.load %arg28[%119, %c0_96] : memref<64x32xf32, #tpu.memory_space<vmem>>, vector<8x32xf32>
    %121 = arith.index_cast %69 : i32 to index
    %c0_97 = arith.constant 0 : index
    %122 = vector.load %arg29[%121, %c0_97] : memref<64x32xf32, #tpu.memory_space<vmem>>, vector<8x32xf32>
    %c0_98 = arith.constant 0 : index
    %c0_99 = arith.constant 0 : index
    %c0_100 = arith.constant 0 : index
    %123 = vector.load %arg17[%c0_98, %c0_99, %c0_100] : memref<3x32x32xf32, #tpu.memory_space<vmem>>, vector<1x32x32xf32>
    %124 = vector.shape_cast %123 : vector<1x32x32xf32> to vector<32x32xf32>
    %cst_101 = arith.constant dense<0.000000e+00> : vector<8x32xf32>
    %125 = tpu.matmul %65, %124, %cst_101 {dimension_numbers = #tpu.dot_dimension_numbers<[1], [0], [0], [1], [0, 0, 1, 1], [], []>} : vector<8x32xf32>, vector<32x32xf32>, vector<8x32xf32> -> vector<8x32xf32>
    %c0_102 = arith.constant 0 : index
    %c0_103 = arith.constant 0 : index
    %c0_104 = arith.constant 0 : index
    %126 = vector.load %arg18[%c0_102, %c0_103, %c0_104] : memref<3x1x32xf32, #tpu.memory_space<vmem>>, vector<1x1x32xf32>
    %127 = vector.shape_cast %126 : vector<1x1x32xf32> to vector<1x32xf32>
    %128 = vector.broadcast %127 : vector<1x32xf32> to vector<8x32xf32>
    %129 = arith.addf %125, %128 : vector<8x32xf32>
    %c1_105 = arith.constant 1 : index
    %c0_106 = arith.constant 0 : index
    %c0_107 = arith.constant 0 : index
    %130 = vector.load %arg17[%c1_105, %c0_106, %c0_107] : memref<3x32x32xf32, #tpu.memory_space<vmem>>, vector<1x32x32xf32>
    %131 = vector.shape_cast %130 : vector<1x32x32xf32> to vector<32x32xf32>
    %cst_108 = arith.constant dense<0.000000e+00> : vector<8x32xf32>
    %132 = tpu.matmul %65, %131, %cst_108 {dimension_numbers = #tpu.dot_dimension_numbers<[1], [0], [0], [1], [0, 0, 1, 1], [], []>} : vector<8x32xf32>, vector<32x32xf32>, vector<8x32xf32> -> vector<8x32xf32>
    %c1_109 = arith.constant 1 : index
    %c0_110 = arith.constant 0 : index
    %c0_111 = arith.constant 0 : index
    %133 = vector.load %arg18[%c1_109, %c0_110, %c0_111] : memref<3x1x32xf32, #tpu.memory_space<vmem>>, vector<1x1x32xf32>
    %134 = vector.shape_cast %133 : vector<1x1x32xf32> to vector<1x32xf32>
    %135 = vector.broadcast %134 : vector<1x32xf32> to vector<8x32xf32>
    %136 = arith.addf %132, %135 : vector<8x32xf32>
    %c2_112 = arith.constant 2 : index
    %c0_113 = arith.constant 0 : index
    %c0_114 = arith.constant 0 : index
    %137 = vector.load %arg17[%c2_112, %c0_113, %c0_114] : memref<3x32x32xf32, #tpu.memory_space<vmem>>, vector<1x32x32xf32>
    %138 = vector.shape_cast %137 : vector<1x32x32xf32> to vector<32x32xf32>
    %cst_115 = arith.constant dense<0.000000e+00> : vector<8x32xf32>
    %139 = tpu.matmul %65, %138, %cst_115 {dimension_numbers = #tpu.dot_dimension_numbers<[1], [0], [0], [1], [0, 0, 1, 1], [], []>} : vector<8x32xf32>, vector<32x32xf32>, vector<8x32xf32> -> vector<8x32xf32>
    %c2_116 = arith.constant 2 : index
    %c0_117 = arith.constant 0 : index
    %c0_118 = arith.constant 0 : index
    %140 = vector.load %arg18[%c2_116, %c0_117, %c0_118] : memref<3x1x32xf32, #tpu.memory_space<vmem>>, vector<1x1x32xf32>
    %141 = vector.shape_cast %140 : vector<1x1x32xf32> to vector<1x32xf32>
    %142 = vector.broadcast %141 : vector<1x32xf32> to vector<8x32xf32>
    %143 = arith.addf %139, %142 : vector<8x32xf32>
    %144 = arith.addf %118, %129 : vector<8x32xf32>
    %145 = arith.negf %144 : vector<8x32xf32>
    %146 = math.exp %145 : vector<8x32xf32>
    %cst_119 = arith.constant 1.000000e+00 : f32
    %147 = vector.broadcast %cst_119 : f32 to vector<8x32xf32>
    %148 = arith.addf %147, %146 : vector<8x32xf32>
    %149 = arith.divf %147, %148 : vector<8x32xf32>
    %150 = arith.addf %120, %136 : vector<8x32xf32>
    %151 = arith.negf %150 : vector<8x32xf32>
    %152 = math.exp %151 : vector<8x32xf32>
    %cst_120 = arith.constant 1.000000e+00 : f32
    %153 = vector.broadcast %cst_120 : f32 to vector<8x32xf32>
    %154 = arith.addf %153, %152 : vector<8x32xf32>
    %155 = arith.divf %153, %154 : vector<8x32xf32>
    %156 = arith.mulf %149, %143 : vector<8x32xf32>
    %157 = arith.addf %122, %156 : vector<8x32xf32>
    %158 = math.tanh %157 : vector<8x32xf32>
    %cst_121 = arith.constant 1.000000e+00 : f32
    %159 = vector.broadcast %cst_121 : f32 to vector<8x32xf32>
    %160 = arith.subf %159, %155 : vector<8x32xf32>
    %161 = arith.mulf %160, %158 : vector<8x32xf32>
    %162 = arith.mulf %155, %65 : vector<8x32xf32>
    %163 = arith.addf %161, %162 : vector<8x32xf32>
    %164 = arith.index_cast %67 : i32 to index
    %c0_122 = arith.constant 0 : index
    %165 = vector.load %arg30[%164, %c0_122] : memref<128x32xf32, #tpu.memory_space<vmem>>, vector<16x32xf32>
    tpu.vector_store %arg30[%164, %c0_122], %116 {strides = array<i32>} : memref<128x32xf32, #tpu.memory_space<vmem>>, vector<16x32xf32>,
    %166 = arith.index_cast %69 : i32 to index
    %c0_123 = arith.constant 0 : index
    %167 = vector.load %arg31[%166, %c0_123] : memref<64x32xf32, #tpu.memory_space<vmem>>, vector<8x32xf32>
    tpu.vector_store %arg31[%166, %c0_123], %163 {strides = array<i32>} : memref<64x32xf32, #tpu.memory_space<vmem>>, vector<8x32xf32>,
    %c1_i32 = arith.constant 1 : i32
    %c16_i32_124 = arith.constant 16 : i32
    %168 = arith.muli %c1_i32, %c16_i32_124 : i32
    %169 = tpu.assume_multiple %168, 16 : i32
    %c8_i32_125 = arith.constant 8 : i32
    %170 = arith.muli %c1_i32, %c8_i32_125 : i32
    %171 = tpu.assume_multiple %170, 8 : i32
    %172 = arith.index_cast %169 : i32 to index
    %c0_126 = arith.constant 0 : index
    %173 = vector.load %arg24[%172, %c0_126] : memref<128x32xf32, #tpu.memory_space<vmem>>, vector<16x32xf32>
    %174 = arith.index_cast %169 : i32 to index
    %c0_127 = arith.constant 0 : index
    %175 = vector.load %arg25[%174, %c0_127] : memref<128x32xf32, #tpu.memory_space<vmem>>, vector<16x32xf32>
    %176 = arith.index_cast %169 : i32 to index
    %c0_128 = arith.constant 0 : index
    %177 = vector.load %arg26[%176, %c0_128] : memref<128x32xf32, #tpu.memory_space<vmem>>, vector<16x32xf32>
    %c0_129 = arith.constant 0 : index
    %c0_130 = arith.constant 0 : index
    %c0_131 = arith.constant 0 : index
    %178 = vector.load %arg9[%c0_129, %c0_130, %c0_131] : memref<3x32x32xf32, #tpu.memory_space<vmem>>, vector<1x32x32xf32>
    %179 = vector.shape_cast %178 : vector<1x32x32xf32> to vector<32x32xf32>
    %cst_132 = arith.constant dense<0.000000e+00> : vector<16x32xf32>
    %180 = tpu.matmul %116, %179, %cst_132 {dimension_numbers = #tpu.dot_dimension_numbers<[1], [0], [0], [1], [0, 0, 1, 1], [], []>} : vector<16x32xf32>, vector<32x32xf32>, vector<16x32xf32> -> vector<16x32xf32>
    %c0_133 = arith.constant 0 : index
    %c0_134 = arith.constant 0 : index
    %c0_135 = arith.constant 0 : index
    %181 = vector.load %arg10[%c0_133, %c0_134, %c0_135] : memref<3x1x32xf32, #tpu.memory_space<vmem>>, vector<1x1x32xf32>
    %182 = vector.shape_cast %181 : vector<1x1x32xf32> to vector<1x32xf32>
    %183 = vector.broadcast %182 : vector<1x32xf32> to vector<16x32xf32>
    %184 = arith.addf %180, %183 : vector<16x32xf32>
    %c1_136 = arith.constant 1 : index
    %c0_137 = arith.constant 0 : index
    %c0_138 = arith.constant 0 : index
    %185 = vector.load %arg9[%c1_136, %c0_137, %c0_138] : memref<3x32x32xf32, #tpu.memory_space<vmem>>, vector<1x32x32xf32>
    %186 = vector.shape_cast %185 : vector<1x32x32xf32> to vector<32x32xf32>
    %cst_139 = arith.constant dense<0.000000e+00> : vector<16x32xf32>
    %187 = tpu.matmul %116, %186, %cst_139 {dimension_numbers = #tpu.dot_dimension_numbers<[1], [0], [0], [1], [0, 0, 1, 1], [], []>} : vector<16x32xf32>, vector<32x32xf32>, vector<16x32xf32> -> vector<16x32xf32>
    %c1_140 = arith.constant 1 : index
    %c0_141 = arith.constant 0 : index
    %c0_142 = arith.constant 0 : index
    %188 = vector.load %arg10[%c1_140, %c0_141, %c0_142] : memref<3x1x32xf32, #tpu.memory_space<vmem>>, vector<1x1x32xf32>
    %189 = vector.shape_cast %188 : vector<1x1x32xf32> to vector<1x32xf32>
    %190 = vector.broadcast %189 : vector<1x32xf32> to vector<16x32xf32>
    %191 = arith.addf %187, %190 : vector<16x32xf32>
    %c2_143 = arith.constant 2 : index
    %c0_144 = arith.constant 0 : index
    %c0_145 = arith.constant 0 : index
    %192 = vector.load %arg9[%c2_143, %c0_144, %c0_145] : memref<3x32x32xf32, #tpu.memory_space<vmem>>, vector<1x32x32xf32>
    %193 = vector.shape_cast %192 : vector<1x32x32xf32> to vector<32x32xf32>
    %cst_146 = arith.constant dense<0.000000e+00> : vector<16x32xf32>
    %194 = tpu.matmul %116, %193, %cst_146 {dimension_numbers = #tpu.dot_dimension_numbers<[1], [0], [0], [1], [0, 0, 1, 1], [], []>} : vector<16x32xf32>, vector<32x32xf32>, vector<16x32xf32> -> vector<16x32xf32>
    %c2_147 = arith.constant 2 : index
    %c0_148 = arith.constant 0 : index
    %c0_149 = arith.constant 0 : index
    %195 = vector.load %arg10[%c2_147, %c0_148, %c0_149] : memref<3x1x32xf32, #tpu.memory_space<vmem>>, vector<1x1x32xf32>
    %196 = vector.shape_cast %195 : vector<1x1x32xf32> to vector<1x32xf32>
    %197 = vector.broadcast %196 : vector<1x32xf32> to vector<16x32xf32>
    %198 = arith.addf %194, %197 : vector<16x32xf32>
    %199 = arith.addf %173, %184 : vector<16x32xf32>
    %200 = arith.negf %199 : vector<16x32xf32>
    %201 = math.exp %200 : vector<16x32xf32>
    %cst_150 = arith.constant 1.000000e+00 : f32
    %202 = vector.broadcast %cst_150 : f32 to vector<16x32xf32>
    %203 = arith.addf %202, %201 : vector<16x32xf32>
    %204 = arith.divf %202, %203 : vector<16x32xf32>
    %205 = arith.addf %175, %191 : vector<16x32xf32>
    %206 = arith.negf %205 : vector<16x32xf32>
    %207 = math.exp %206 : vector<16x32xf32>
    %cst_151 = arith.constant 1.000000e+00 : f32
    %208 = vector.broadcast %cst_151 : f32 to vector<16x32xf32>
    %209 = arith.addf %208, %207 : vector<16x32xf32>
    %210 = arith.divf %208, %209 : vector<16x32xf32>
    %211 = arith.mulf %204, %198 : vector<16x32xf32>
    %212 = arith.addf %177, %211 : vector<16x32xf32>
    %213 = math.tanh %212 : vector<16x32xf32>
    %cst_152 = arith.constant 1.000000e+00 : f32
    %214 = vector.broadcast %cst_152 : f32 to vector<16x32xf32>
    %215 = arith.subf %214, %210 : vector<16x32xf32>
    %216 = arith.mulf %215, %213 : vector<16x32xf32>
    %217 = arith.mulf %210, %116 : vector<16x32xf32>
    %218 = arith.addf %216, %217 : vector<16x32xf32>
    %219 = arith.index_cast %171 : i32 to index
    %c0_153 = arith.constant 0 : index
    %220 = vector.load %arg27[%219, %c0_153] : memref<64x32xf32, #tpu.memory_space<vmem>>, vector<8x32xf32>
    %221 = arith.index_cast %171 : i32 to index
    %c0_154 = arith.constant 0 : index
    %222 = vector.load %arg28[%221, %c0_154] : memref<64x32xf32, #tpu.memory_space<vmem>>, vector<8x32xf32>
    %223 = arith.index_cast %171 : i32 to index
    %c0_155 = arith.constant 0 : index
    %224 = vector.load %arg29[%223, %c0_155] : memref<64x32xf32, #tpu.memory_space<vmem>>, vector<8x32xf32>
    %c0_156 = arith.constant 0 : index
    %c0_157 = arith.constant 0 : index
    %c0_158 = arith.constant 0 : index
    %225 = vector.load %arg17[%c0_156, %c0_157, %c0_158] : memref<3x32x32xf32, #tpu.memory_space<vmem>>, vector<1x32x32xf32>
    %226 = vector.shape_cast %225 : vector<1x32x32xf32> to vector<32x32xf32>
    %cst_159 = arith.constant dense<0.000000e+00> : vector<8x32xf32>
    %227 = tpu.matmul %163, %226, %cst_159 {dimension_numbers = #tpu.dot_dimension_numbers<[1], [0], [0], [1], [0, 0, 1, 1], [], []>} : vector<8x32xf32>, vector<32x32xf32>, vector<8x32xf32> -> vector<8x32xf32>
    %c0_160 = arith.constant 0 : index
    %c0_161 = arith.constant 0 : index
    %c0_162 = arith.constant 0 : index
    %228 = vector.load %arg18[%c0_160, %c0_161, %c0_162] : memref<3x1x32xf32, #tpu.memory_space<vmem>>, vector<1x1x32xf32>
    %229 = vector.shape_cast %228 : vector<1x1x32xf32> to vector<1x32xf32>
    %230 = vector.broadcast %229 : vector<1x32xf32> to vector<8x32xf32>
    %231 = arith.addf %227, %230 : vector<8x32xf32>
    %c1_163 = arith.constant 1 : index
    %c0_164 = arith.constant 0 : index
    %c0_165 = arith.constant 0 : index
    %232 = vector.load %arg17[%c1_163, %c0_164, %c0_165] : memref<3x32x32xf32, #tpu.memory_space<vmem>>, vector<1x32x32xf32>
    %233 = vector.shape_cast %232 : vector<1x32x32xf32> to vector<32x32xf32>
    %cst_166 = arith.constant dense<0.000000e+00> : vector<8x32xf32>
    %234 = tpu.matmul %163, %233, %cst_166 {dimension_numbers = #tpu.dot_dimension_numbers<[1], [0], [0], [1], [0, 0, 1, 1], [], []>} : vector<8x32xf32>, vector<32x32xf32>, vector<8x32xf32> -> vector<8x32xf32>
    %c1_167 = arith.constant 1 : index
    %c0_168 = arith.constant 0 : index
    %c0_169 = arith.constant 0 : index
    %235 = vector.load %arg18[%c1_167, %c0_168, %c0_169] : memref<3x1x32xf32, #tpu.memory_space<vmem>>, vector<1x1x32xf32>
    %236 = vector.shape_cast %235 : vector<1x1x32xf32> to vector<1x32xf32>
    %237 = vector.broadcast %236 : vector<1x32xf32> to vector<8x32xf32>
    %238 = arith.addf %234, %237 : vector<8x32xf32>
    %c2_170 = arith.constant 2 : index
    %c0_171 = arith.constant 0 : index
    %c0_172 = arith.constant 0 : index
    %239 = vector.load %arg17[%c2_170, %c0_171, %c0_172] : memref<3x32x32xf32, #tpu.memory_space<vmem>>, vector<1x32x32xf32>
    %240 = vector.shape_cast %239 : vector<1x32x32xf32> to vector<32x32xf32>
    %cst_173 = arith.constant dense<0.000000e+00> : vector<8x32xf32>
    %241 = tpu.matmul %163, %240, %cst_173 {dimension_numbers = #tpu.dot_dimension_numbers<[1], [0], [0], [1], [0, 0, 1, 1], [], []>} : vector<8x32xf32>, vector<32x32xf32>, vector<8x32xf32> -> vector<8x32xf32>
    %c2_174 = arith.constant 2 : index
    %c0_175 = arith.constant 0 : index
    %c0_176 = arith.constant 0 : index
    %242 = vector.load %arg18[%c2_174, %c0_175, %c0_176] : memref<3x1x32xf32, #tpu.memory_space<vmem>>, vector<1x1x32xf32>
    %243 = vector.shape_cast %242 : vector<1x1x32xf32> to vector<1x32xf32>
    %244 = vector.broadcast %243 : vector<1x32xf32> to vector<8x32xf32>
    %245 = arith.addf %241, %244 : vector<8x32xf32>
    %246 = arith.addf %220, %231 : vector<8x32xf32>
    %247 = arith.negf %246 : vector<8x32xf32>
    %248 = math.exp %247 : vector<8x32xf32>
    %cst_177 = arith.constant 1.000000e+00 : f32
    %249 = vector.broadcast %cst_177 : f32 to vector<8x32xf32>
    %250 = arith.addf %249, %248 : vector<8x32xf32>
    %251 = arith.divf %249, %250 : vector<8x32xf32>
    %252 = arith.addf %222, %238 : vector<8x32xf32>
    %253 = arith.negf %252 : vector<8x32xf32>
    %254 = math.exp %253 : vector<8x32xf32>
    %cst_178 = arith.constant 1.000000e+00 : f32
    %255 = vector.broadcast %cst_178 : f32 to vector<8x32xf32>
    %256 = arith.addf %255, %254 : vector<8x32xf32>
    %257 = arith.divf %255, %256 : vector<8x32xf32>
    %258 = arith.mulf %251, %245 : vector<8x32xf32>
    %259 = arith.addf %224, %258 : vector<8x32xf32>
    %260 = math.tanh %259 : vector<8x32xf32>
    %cst_179 = arith.constant 1.000000e+00 : f32
    %261 = vector.broadcast %cst_179 : f32 to vector<8x32xf32>
    %262 = arith.subf %261, %257 : vector<8x32xf32>
    %263 = arith.mulf %262, %260 : vector<8x32xf32>
    %264 = arith.mulf %257, %163 : vector<8x32xf32>
    %265 = arith.addf %263, %264 : vector<8x32xf32>
    %266 = arith.index_cast %169 : i32 to index
    %c0_180 = arith.constant 0 : index
    %267 = vector.load %arg30[%266, %c0_180] : memref<128x32xf32, #tpu.memory_space<vmem>>, vector<16x32xf32>
    tpu.vector_store %arg30[%266, %c0_180], %218 {strides = array<i32>} : memref<128x32xf32, #tpu.memory_space<vmem>>, vector<16x32xf32>,
    %268 = arith.index_cast %171 : i32 to index
    %c0_181 = arith.constant 0 : index
    %269 = vector.load %arg31[%268, %c0_181] : memref<64x32xf32, #tpu.memory_space<vmem>>, vector<8x32xf32>
    tpu.vector_store %arg31[%268, %c0_181], %265 {strides = array<i32>} : memref<64x32xf32, #tpu.memory_space<vmem>>, vector<8x32xf32>,
    %c2_i32 = arith.constant 2 : i32
    %c16_i32_182 = arith.constant 16 : i32
    %270 = arith.muli %c2_i32, %c16_i32_182 : i32
    %271 = tpu.assume_multiple %270, 16 : i32
    %c8_i32_183 = arith.constant 8 : i32
    %272 = arith.muli %c2_i32, %c8_i32_183 : i32
    %273 = tpu.assume_multiple %272, 8 : i32
    %274 = arith.index_cast %271 : i32 to index
    %c0_184 = arith.constant 0 : index
    %275 = vector.load %arg24[%274, %c0_184] : memref<128x32xf32, #tpu.memory_space<vmem>>, vector<16x32xf32>
    %276 = arith.index_cast %271 : i32 to index
    %c0_185 = arith.constant 0 : index
    %277 = vector.load %arg25[%276, %c0_185] : memref<128x32xf32, #tpu.memory_space<vmem>>, vector<16x32xf32>
    %278 = arith.index_cast %271 : i32 to index
    %c0_186 = arith.constant 0 : index
    %279 = vector.load %arg26[%278, %c0_186] : memref<128x32xf32, #tpu.memory_space<vmem>>, vector<16x32xf32>
    %c0_187 = arith.constant 0 : index
    %c0_188 = arith.constant 0 : index
    %c0_189 = arith.constant 0 : index
    %280 = vector.load %arg9[%c0_187, %c0_188, %c0_189] : memref<3x32x32xf32, #tpu.memory_space<vmem>>, vector<1x32x32xf32>
    %281 = vector.shape_cast %280 : vector<1x32x32xf32> to vector<32x32xf32>
    %cst_190 = arith.constant dense<0.000000e+00> : vector<16x32xf32>
    %282 = tpu.matmul %218, %281, %cst_190 {dimension_numbers = #tpu.dot_dimension_numbers<[1], [0], [0], [1], [0, 0, 1, 1], [], []>} : vector<16x32xf32>, vector<32x32xf32>, vector<16x32xf32> -> vector<16x32xf32>
    %c0_191 = arith.constant 0 : index
    %c0_192 = arith.constant 0 : index
    %c0_193 = arith.constant 0 : index
    %283 = vector.load %arg10[%c0_191, %c0_192, %c0_193] : memref<3x1x32xf32, #tpu.memory_space<vmem>>, vector<1x1x32xf32>
    %284 = vector.shape_cast %283 : vector<1x1x32xf32> to vector<1x32xf32>
    %285 = vector.broadcast %284 : vector<1x32xf32> to vector<16x32xf32>
    %286 = arith.addf %282, %285 : vector<16x32xf32>
    %c1_194 = arith.constant 1 : index
    %c0_195 = arith.constant 0 : index
    %c0_196 = arith.constant 0 : index
    %287 = vector.load %arg9[%c1_194, %c0_195, %c0_196] : memref<3x32x32xf32, #tpu.memory_space<vmem>>, vector<1x32x32xf32>
    %288 = vector.shape_cast %287 : vector<1x32x32xf32> to vector<32x32xf32>
    %cst_197 = arith.constant dense<0.000000e+00> : vector<16x32xf32>
    %289 = tpu.matmul %218, %288, %cst_197 {dimension_numbers = #tpu.dot_dimension_numbers<[1], [0], [0], [1], [0, 0, 1, 1], [], []>} : vector<16x32xf32>, vector<32x32xf32>, vector<16x32xf32> -> vector<16x32xf32>
    %c1_198 = arith.constant 1 : index
    %c0_199 = arith.constant 0 : index
    %c0_200 = arith.constant 0 : index
    %290 = vector.load %arg10[%c1_198, %c0_199, %c0_200] : memref<3x1x32xf32, #tpu.memory_space<vmem>>, vector<1x1x32xf32>
    %291 = vector.shape_cast %290 : vector<1x1x32xf32> to vector<1x32xf32>
    %292 = vector.broadcast %291 : vector<1x32xf32> to vector<16x32xf32>
    %293 = arith.addf %289, %292 : vector<16x32xf32>
    %c2_201 = arith.constant 2 : index
    %c0_202 = arith.constant 0 : index
    %c0_203 = arith.constant 0 : index
    %294 = vector.load %arg9[%c2_201, %c0_202, %c0_203] : memref<3x32x32xf32, #tpu.memory_space<vmem>>, vector<1x32x32xf32>
    %295 = vector.shape_cast %294 : vector<1x32x32xf32> to vector<32x32xf32>
    %cst_204 = arith.constant dense<0.000000e+00> : vector<16x32xf32>
    %296 = tpu.matmul %218, %295, %cst_204 {dimension_numbers = #tpu.dot_dimension_numbers<[1], [0], [0], [1], [0, 0, 1, 1], [], []>} : vector<16x32xf32>, vector<32x32xf32>, vector<16x32xf32> -> vector<16x32xf32>
    %c2_205 = arith.constant 2 : index
    %c0_206 = arith.constant 0 : index
    %c0_207 = arith.constant 0 : index
    %297 = vector.load %arg10[%c2_205, %c0_206, %c0_207] : memref<3x1x32xf32, #tpu.memory_space<vmem>>, vector<1x1x32xf32>
    %298 = vector.shape_cast %297 : vector<1x1x32xf32> to vector<1x32xf32>
    %299 = vector.broadcast %298 : vector<1x32xf32> to vector<16x32xf32>
    %300 = arith.addf %296, %299 : vector<16x32xf32>
    %301 = arith.addf %275, %286 : vector<16x32xf32>
    %302 = arith.negf %301 : vector<16x32xf32>
    %303 = math.exp %302 : vector<16x32xf32>
    %cst_208 = arith.constant 1.000000e+00 : f32
    %304 = vector.broadcast %cst_208 : f32 to vector<16x32xf32>
    %305 = arith.addf %304, %303 : vector<16x32xf32>
    %306 = arith.divf %304, %305 : vector<16x32xf32>
    %307 = arith.addf %277, %293 : vector<16x32xf32>
    %308 = arith.negf %307 : vector<16x32xf32>
    %309 = math.exp %308 : vector<16x32xf32>
    %cst_209 = arith.constant 1.000000e+00 : f32
    %310 = vector.broadcast %cst_209 : f32 to vector<16x32xf32>
    %311 = arith.addf %310, %309 : vector<16x32xf32>
    %312 = arith.divf %310, %311 : vector<16x32xf32>
    %313 = arith.mulf %306, %300 : vector<16x32xf32>
    %314 = arith.addf %279, %313 : vector<16x32xf32>
    %315 = math.tanh %314 : vector<16x32xf32>
    %cst_210 = arith.constant 1.000000e+00 : f32
    %316 = vector.broadcast %cst_210 : f32 to vector<16x32xf32>
    %317 = arith.subf %316, %312 : vector<16x32xf32>
    %318 = arith.mulf %317, %315 : vector<16x32xf32>
    %319 = arith.mulf %312, %218 : vector<16x32xf32>
    %320 = arith.addf %318, %319 : vector<16x32xf32>
    %321 = arith.index_cast %273 : i32 to index
    %c0_211 = arith.constant 0 : index
    %322 = vector.load %arg27[%321, %c0_211] : memref<64x32xf32, #tpu.memory_space<vmem>>, vector<8x32xf32>
    %323 = arith.index_cast %273 : i32 to index
    %c0_212 = arith.constant 0 : index
    %324 = vector.load %arg28[%323, %c0_212] : memref<64x32xf32, #tpu.memory_space<vmem>>, vector<8x32xf32>
    %325 = arith.index_cast %273 : i32 to index
    %c0_213 = arith.constant 0 : index
    %326 = vector.load %arg29[%325, %c0_213] : memref<64x32xf32, #tpu.memory_space<vmem>>, vector<8x32xf32>
    %c0_214 = arith.constant 0 : index
    %c0_215 = arith.constant 0 : index
    %c0_216 = arith.constant 0 : index
    %327 = vector.load %arg17[%c0_214, %c0_215, %c0_216] : memref<3x32x32xf32, #tpu.memory_space<vmem>>, vector<1x32x32xf32>
    %328 = vector.shape_cast %327 : vector<1x32x32xf32> to vector<32x32xf32>
    %cst_217 = arith.constant dense<0.000000e+00> : vector<8x32xf32>
    %329 = tpu.matmul %265, %328, %cst_217 {dimension_numbers = #tpu.dot_dimension_numbers<[1], [0], [0], [1], [0, 0, 1, 1], [], []>} : vector<8x32xf32>, vector<32x32xf32>, vector<8x32xf32> -> vector<8x32xf32>
    %c0_218 = arith.constant 0 : index
    %c0_219 = arith.constant 0 : index
    %c0_220 = arith.constant 0 : index
    %330 = vector.load %arg18[%c0_218, %c0_219, %c0_220] : memref<3x1x32xf32, #tpu.memory_space<vmem>>, vector<1x1x32xf32>
    %331 = vector.shape_cast %330 : vector<1x1x32xf32> to vector<1x32xf32>
    %332 = vector.broadcast %331 : vector<1x32xf32> to vector<8x32xf32>
    %333 = arith.addf %329, %332 : vector<8x32xf32>
    %c1_221 = arith.constant 1 : index
    %c0_222 = arith.constant 0 : index
    %c0_223 = arith.constant 0 : index
    %334 = vector.load %arg17[%c1_221, %c0_222, %c0_223] : memref<3x32x32xf32, #tpu.memory_space<vmem>>, vector<1x32x32xf32>
    %335 = vector.shape_cast %334 : vector<1x32x32xf32> to vector<32x32xf32>
    %cst_224 = arith.constant dense<0.000000e+00> : vector<8x32xf32>
    %336 = tpu.matmul %265, %335, %cst_224 {dimension_numbers = #tpu.dot_dimension_numbers<[1], [0], [0], [1], [0, 0, 1, 1], [], []>} : vector<8x32xf32>, vector<32x32xf32>, vector<8x32xf32> -> vector<8x32xf32>
    %c1_225 = arith.constant 1 : index
    %c0_226 = arith.constant 0 : index
    %c0_227 = arith.constant 0 : index
    %337 = vector.load %arg18[%c1_225, %c0_226, %c0_227] : memref<3x1x32xf32, #tpu.memory_space<vmem>>, vector<1x1x32xf32>
    %338 = vector.shape_cast %337 : vector<1x1x32xf32> to vector<1x32xf32>
    %339 = vector.broadcast %338 : vector<1x32xf32> to vector<8x32xf32>
    %340 = arith.addf %336, %339 : vector<8x32xf32>
    %c2_228 = arith.constant 2 : index
    %c0_229 = arith.constant 0 : index
    %c0_230 = arith.constant 0 : index
    %341 = vector.load %arg17[%c2_228, %c0_229, %c0_230] : memref<3x32x32xf32, #tpu.memory_space<vmem>>, vector<1x32x32xf32>
    %342 = vector.shape_cast %341 : vector<1x32x32xf32> to vector<32x32xf32>
    %cst_231 = arith.constant dense<0.000000e+00> : vector<8x32xf32>
    %343 = tpu.matmul %265, %342, %cst_231 {dimension_numbers = #tpu.dot_dimension_numbers<[1], [0], [0], [1], [0, 0, 1, 1], [], []>} : vector<8x32xf32>, vector<32x32xf32>, vector<8x32xf32> -> vector<8x32xf32>
    %c2_232 = arith.constant 2 : index
    %c0_233 = arith.constant 0 : index
    %c0_234 = arith.constant 0 : index
    %344 = vector.load %arg18[%c2_232, %c0_233, %c0_234] : memref<3x1x32xf32, #tpu.memory_space<vmem>>, vector<1x1x32xf32>
    %345 = vector.shape_cast %344 : vector<1x1x32xf32> to vector<1x32xf32>
    %346 = vector.broadcast %345 : vector<1x32xf32> to vector<8x32xf32>
    %347 = arith.addf %343, %346 : vector<8x32xf32>
    %348 = arith.addf %322, %333 : vector<8x32xf32>
    %349 = arith.negf %348 : vector<8x32xf32>
    %350 = math.exp %349 : vector<8x32xf32>
    %cst_235 = arith.constant 1.000000e+00 : f32
    %351 = vector.broadcast %cst_235 : f32 to vector<8x32xf32>
    %352 = arith.addf %351, %350 : vector<8x32xf32>
    %353 = arith.divf %351, %352 : vector<8x32xf32>
    %354 = arith.addf %324, %340 : vector<8x32xf32>
    %355 = arith.negf %354 : vector<8x32xf32>
    %356 = math.exp %355 : vector<8x32xf32>
    %cst_236 = arith.constant 1.000000e+00 : f32
    %357 = vector.broadcast %cst_236 : f32 to vector<8x32xf32>
    %358 = arith.addf %357, %356 : vector<8x32xf32>
    %359 = arith.divf %357, %358 : vector<8x32xf32>
    %360 = arith.mulf %353, %347 : vector<8x32xf32>
    %361 = arith.addf %326, %360 : vector<8x32xf32>
    %362 = math.tanh %361 : vector<8x32xf32>
    %cst_237 = arith.constant 1.000000e+00 : f32
    %363 = vector.broadcast %cst_237 : f32 to vector<8x32xf32>
    %364 = arith.subf %363, %359 : vector<8x32xf32>
    %365 = arith.mulf %364, %362 : vector<8x32xf32>
    %366 = arith.mulf %359, %265 : vector<8x32xf32>
    %367 = arith.addf %365, %366 : vector<8x32xf32>
    %368 = arith.index_cast %271 : i32 to index
    %c0_238 = arith.constant 0 : index
    %369 = vector.load %arg30[%368, %c0_238] : memref<128x32xf32, #tpu.memory_space<vmem>>, vector<16x32xf32>
    tpu.vector_store %arg30[%368, %c0_238], %320 {strides = array<i32>} : memref<128x32xf32, #tpu.memory_space<vmem>>, vector<16x32xf32>,
    %370 = arith.index_cast %273 : i32 to index
    %c0_239 = arith.constant 0 : index
    %371 = vector.load %arg31[%370, %c0_239] : memref<64x32xf32, #tpu.memory_space<vmem>>, vector<8x32xf32>
    tpu.vector_store %arg31[%370, %c0_239], %367 {strides = array<i32>} : memref<64x32xf32, #tpu.memory_space<vmem>>, vector<8x32xf32>,
    %c3_i32 = arith.constant 3 : i32
    %c16_i32_240 = arith.constant 16 : i32
    %372 = arith.muli %c3_i32, %c16_i32_240 : i32
    %373 = tpu.assume_multiple %372, 16 : i32
    %c8_i32_241 = arith.constant 8 : i32
    %374 = arith.muli %c3_i32, %c8_i32_241 : i32
    %375 = tpu.assume_multiple %374, 8 : i32
    %376 = arith.index_cast %373 : i32 to index
    %c0_242 = arith.constant 0 : index
    %377 = vector.load %arg24[%376, %c0_242] : memref<128x32xf32, #tpu.memory_space<vmem>>, vector<16x32xf32>
    %378 = arith.index_cast %373 : i32 to index
    %c0_243 = arith.constant 0 : index
    %379 = vector.load %arg25[%378, %c0_243] : memref<128x32xf32, #tpu.memory_space<vmem>>, vector<16x32xf32>
    %380 = arith.index_cast %373 : i32 to index
    %c0_244 = arith.constant 0 : index
    %381 = vector.load %arg26[%380, %c0_244] : memref<128x32xf32, #tpu.memory_space<vmem>>, vector<16x32xf32>
    %c0_245 = arith.constant 0 : index
    %c0_246 = arith.constant 0 : index
    %c0_247 = arith.constant 0 : index
    %382 = vector.load %arg9[%c0_245, %c0_246, %c0_247] : memref<3x32x32xf32, #tpu.memory_space<vmem>>, vector<1x32x32xf32>
    %383 = vector.shape_cast %382 : vector<1x32x32xf32> to vector<32x32xf32>
    %cst_248 = arith.constant dense<0.000000e+00> : vector<16x32xf32>
    %384 = tpu.matmul %320, %383, %cst_248 {dimension_numbers = #tpu.dot_dimension_numbers<[1], [0], [0], [1], [0, 0, 1, 1], [], []>} : vector<16x32xf32>, vector<32x32xf32>, vector<16x32xf32> -> vector<16x32xf32>
    %c0_249 = arith.constant 0 : index
    %c0_250 = arith.constant 0 : index
    %c0_251 = arith.constant 0 : index
    %385 = vector.load %arg10[%c0_249, %c0_250, %c0_251] : memref<3x1x32xf32, #tpu.memory_space<vmem>>, vector<1x1x32xf32>
    %386 = vector.shape_cast %385 : vector<1x1x32xf32> to vector<1x32xf32>
    %387 = vector.broadcast %386 : vector<1x32xf32> to vector<16x32xf32>
    %388 = arith.addf %384, %387 : vector<16x32xf32>
    %c1_252 = arith.constant 1 : index
    %c0_253 = arith.constant 0 : index
    %c0_254 = arith.constant 0 : index
    %389 = vector.load %arg9[%c1_252, %c0_253, %c0_254] : memref<3x32x32xf32, #tpu.memory_space<vmem>>, vector<1x32x32xf32>
    %390 = vector.shape_cast %389 : vector<1x32x32xf32> to vector<32x32xf32>
    %cst_255 = arith.constant dense<0.000000e+00> : vector<16x32xf32>
    %391 = tpu.matmul %320, %390, %cst_255 {dimension_numbers = #tpu.dot_dimension_numbers<[1], [0], [0], [1], [0, 0, 1, 1], [], []>} : vector<16x32xf32>, vector<32x32xf32>, vector<16x32xf32> -> vector<16x32xf32>
    %c1_256 = arith.constant 1 : index
    %c0_257 = arith.constant 0 : index
    %c0_258 = arith.constant 0 : index
    %392 = vector.load %arg10[%c1_256, %c0_257, %c0_258] : memref<3x1x32xf32, #tpu.memory_space<vmem>>, vector<1x1x32xf32>
    %393 = vector.shape_cast %392 : vector<1x1x32xf32> to vector<1x32xf32>
    %394 = vector.broadcast %393 : vector<1x32xf32> to vector<16x32xf32>
    %395 = arith.addf %391, %394 : vector<16x32xf32>
    %c2_259 = arith.constant 2 : index
    %c0_260 = arith.constant 0 : index
    %c0_261 = arith.constant 0 : index
    %396 = vector.load %arg9[%c2_259, %c0_260, %c0_261] : memref<3x32x32xf32, #tpu.memory_space<vmem>>, vector<1x32x32xf32>
    %397 = vector.shape_cast %396 : vector<1x32x32xf32> to vector<32x32xf32>
    %cst_262 = arith.constant dense<0.000000e+00> : vector<16x32xf32>
    %398 = tpu.matmul %320, %397, %cst_262 {dimension_numbers = #tpu.dot_dimension_numbers<[1], [0], [0], [1], [0, 0, 1, 1], [], []>} : vector<16x32xf32>, vector<32x32xf32>, vector<16x32xf32> -> vector<16x32xf32>
    %c2_263 = arith.constant 2 : index
    %c0_264 = arith.constant 0 : index
    %c0_265 = arith.constant 0 : index
    %399 = vector.load %arg10[%c2_263, %c0_264, %c0_265] : memref<3x1x32xf32, #tpu.memory_space<vmem>>, vector<1x1x32xf32>
    %400 = vector.shape_cast %399 : vector<1x1x32xf32> to vector<1x32xf32>
    %401 = vector.broadcast %400 : vector<1x32xf32> to vector<16x32xf32>
    %402 = arith.addf %398, %401 : vector<16x32xf32>
    %403 = arith.addf %377, %388 : vector<16x32xf32>
    %404 = arith.negf %403 : vector<16x32xf32>
    %405 = math.exp %404 : vector<16x32xf32>
    %cst_266 = arith.constant 1.000000e+00 : f32
    %406 = vector.broadcast %cst_266 : f32 to vector<16x32xf32>
    %407 = arith.addf %406, %405 : vector<16x32xf32>
    %408 = arith.divf %406, %407 : vector<16x32xf32>
    %409 = arith.addf %379, %395 : vector<16x32xf32>
    %410 = arith.negf %409 : vector<16x32xf32>
    %411 = math.exp %410 : vector<16x32xf32>
    %cst_267 = arith.constant 1.000000e+00 : f32
    %412 = vector.broadcast %cst_267 : f32 to vector<16x32xf32>
    %413 = arith.addf %412, %411 : vector<16x32xf32>
    %414 = arith.divf %412, %413 : vector<16x32xf32>
    %415 = arith.mulf %408, %402 : vector<16x32xf32>
    %416 = arith.addf %381, %415 : vector<16x32xf32>
    %417 = math.tanh %416 : vector<16x32xf32>
    %cst_268 = arith.constant 1.000000e+00 : f32
    %418 = vector.broadcast %cst_268 : f32 to vector<16x32xf32>
    %419 = arith.subf %418, %414 : vector<16x32xf32>
    %420 = arith.mulf %419, %417 : vector<16x32xf32>
    %421 = arith.mulf %414, %320 : vector<16x32xf32>
    %422 = arith.addf %420, %421 : vector<16x32xf32>
    %423 = arith.index_cast %375 : i32 to index
    %c0_269 = arith.constant 0 : index
    %424 = vector.load %arg27[%423, %c0_269] : memref<64x32xf32, #tpu.memory_space<vmem>>, vector<8x32xf32>
    %425 = arith.index_cast %375 : i32 to index
    %c0_270 = arith.constant 0 : index
    %426 = vector.load %arg28[%425, %c0_270] : memref<64x32xf32, #tpu.memory_space<vmem>>, vector<8x32xf32>
    %427 = arith.index_cast %375 : i32 to index
    %c0_271 = arith.constant 0 : index
    %428 = vector.load %arg29[%427, %c0_271] : memref<64x32xf32, #tpu.memory_space<vmem>>, vector<8x32xf32>
    %c0_272 = arith.constant 0 : index
    %c0_273 = arith.constant 0 : index
    %c0_274 = arith.constant 0 : index
    %429 = vector.load %arg17[%c0_272, %c0_273, %c0_274] : memref<3x32x32xf32, #tpu.memory_space<vmem>>, vector<1x32x32xf32>
    %430 = vector.shape_cast %429 : vector<1x32x32xf32> to vector<32x32xf32>
    %cst_275 = arith.constant dense<0.000000e+00> : vector<8x32xf32>
    %431 = tpu.matmul %367, %430, %cst_275 {dimension_numbers = #tpu.dot_dimension_numbers<[1], [0], [0], [1], [0, 0, 1, 1], [], []>} : vector<8x32xf32>, vector<32x32xf32>, vector<8x32xf32> -> vector<8x32xf32>
    %c0_276 = arith.constant 0 : index
    %c0_277 = arith.constant 0 : index
    %c0_278 = arith.constant 0 : index
    %432 = vector.load %arg18[%c0_276, %c0_277, %c0_278] : memref<3x1x32xf32, #tpu.memory_space<vmem>>, vector<1x1x32xf32>
    %433 = vector.shape_cast %432 : vector<1x1x32xf32> to vector<1x32xf32>
    %434 = vector.broadcast %433 : vector<1x32xf32> to vector<8x32xf32>
    %435 = arith.addf %431, %434 : vector<8x32xf32>
    %c1_279 = arith.constant 1 : index
    %c0_280 = arith.constant 0 : index
    %c0_281 = arith.constant 0 : index
    %436 = vector.load %arg17[%c1_279, %c0_280, %c0_281] : memref<3x32x32xf32, #tpu.memory_space<vmem>>, vector<1x32x32xf32>
    %437 = vector.shape_cast %436 : vector<1x32x32xf32> to vector<32x32xf32>
    %cst_282 = arith.constant dense<0.000000e+00> : vector<8x32xf32>
    %438 = tpu.matmul %367, %437, %cst_282 {dimension_numbers = #tpu.dot_dimension_numbers<[1], [0], [0], [1], [0, 0, 1, 1], [], []>} : vector<8x32xf32>, vector<32x32xf32>, vector<8x32xf32> -> vector<8x32xf32>
    %c1_283 = arith.constant 1 : index
    %c0_284 = arith.constant 0 : index
    %c0_285 = arith.constant 0 : index
    %439 = vector.load %arg18[%c1_283, %c0_284, %c0_285] : memref<3x1x32xf32, #tpu.memory_space<vmem>>, vector<1x1x32xf32>
    %440 = vector.shape_cast %439 : vector<1x1x32xf32> to vector<1x32xf32>
    %441 = vector.broadcast %440 : vector<1x32xf32> to vector<8x32xf32>
    %442 = arith.addf %438, %441 : vector<8x32xf32>
    %c2_286 = arith.constant 2 : index
    %c0_287 = arith.constant 0 : index
    %c0_288 = arith.constant 0 : index
    %443 = vector.load %arg17[%c2_286, %c0_287, %c0_288] : memref<3x32x32xf32, #tpu.memory_space<vmem>>, vector<1x32x32xf32>
    %444 = vector.shape_cast %443 : vector<1x32x32xf32> to vector<32x32xf32>
    %cst_289 = arith.constant dense<0.000000e+00> : vector<8x32xf32>
    %445 = tpu.matmul %367, %444, %cst_289 {dimension_numbers = #tpu.dot_dimension_numbers<[1], [0], [0], [1], [0, 0, 1, 1], [], []>} : vector<8x32xf32>, vector<32x32xf32>, vector<8x32xf32> -> vector<8x32xf32>
    %c2_290 = arith.constant 2 : index
    %c0_291 = arith.constant 0 : index
    %c0_292 = arith.constant 0 : index
    %446 = vector.load %arg18[%c2_290, %c0_291, %c0_292] : memref<3x1x32xf32, #tpu.memory_space<vmem>>, vector<1x1x32xf32>
    %447 = vector.shape_cast %446 : vector<1x1x32xf32> to vector<1x32xf32>
    %448 = vector.broadcast %447 : vector<1x32xf32> to vector<8x32xf32>
    %449 = arith.addf %445, %448 : vector<8x32xf32>
    %450 = arith.addf %424, %435 : vector<8x32xf32>
    %451 = arith.negf %450 : vector<8x32xf32>
    %452 = math.exp %451 : vector<8x32xf32>
    %cst_293 = arith.constant 1.000000e+00 : f32
    %453 = vector.broadcast %cst_293 : f32 to vector<8x32xf32>
    %454 = arith.addf %453, %452 : vector<8x32xf32>
    %455 = arith.divf %453, %454 : vector<8x32xf32>
    %456 = arith.addf %426, %442 : vector<8x32xf32>
    %457 = arith.negf %456 : vector<8x32xf32>
    %458 = math.exp %457 : vector<8x32xf32>
    %cst_294 = arith.constant 1.000000e+00 : f32
    %459 = vector.broadcast %cst_294 : f32 to vector<8x32xf32>
    %460 = arith.addf %459, %458 : vector<8x32xf32>
    %461 = arith.divf %459, %460 : vector<8x32xf32>
    %462 = arith.mulf %455, %449 : vector<8x32xf32>
    %463 = arith.addf %428, %462 : vector<8x32xf32>
    %464 = math.tanh %463 : vector<8x32xf32>
    %cst_295 = arith.constant 1.000000e+00 : f32
    %465 = vector.broadcast %cst_295 : f32 to vector<8x32xf32>
    %466 = arith.subf %465, %461 : vector<8x32xf32>
    %467 = arith.mulf %466, %464 : vector<8x32xf32>
    %468 = arith.mulf %461, %367 : vector<8x32xf32>
    %469 = arith.addf %467, %468 : vector<8x32xf32>
    %470 = arith.index_cast %373 : i32 to index
    %c0_296 = arith.constant 0 : index
    %471 = vector.load %arg30[%470, %c0_296] : memref<128x32xf32, #tpu.memory_space<vmem>>, vector<16x32xf32>
    tpu.vector_store %arg30[%470, %c0_296], %422 {strides = array<i32>} : memref<128x32xf32, #tpu.memory_space<vmem>>, vector<16x32xf32>,
    %472 = arith.index_cast %375 : i32 to index
    %c0_297 = arith.constant 0 : index
    %473 = vector.load %arg31[%472, %c0_297] : memref<64x32xf32, #tpu.memory_space<vmem>>, vector<8x32xf32>
    tpu.vector_store %arg31[%472, %c0_297], %469 {strides = array<i32>} : memref<64x32xf32, #tpu.memory_space<vmem>>, vector<8x32xf32>,
    %c4_i32 = arith.constant 4 : i32
    %c16_i32_298 = arith.constant 16 : i32
    %474 = arith.muli %c4_i32, %c16_i32_298 : i32
    %475 = tpu.assume_multiple %474, 16 : i32
    %c8_i32_299 = arith.constant 8 : i32
    %476 = arith.muli %c4_i32, %c8_i32_299 : i32
    %477 = tpu.assume_multiple %476, 8 : i32
    %478 = arith.index_cast %475 : i32 to index
    %c0_300 = arith.constant 0 : index
    %479 = vector.load %arg24[%478, %c0_300] : memref<128x32xf32, #tpu.memory_space<vmem>>, vector<16x32xf32>
    %480 = arith.index_cast %475 : i32 to index
    %c0_301 = arith.constant 0 : index
    %481 = vector.load %arg25[%480, %c0_301] : memref<128x32xf32, #tpu.memory_space<vmem>>, vector<16x32xf32>
    %482 = arith.index_cast %475 : i32 to index
    %c0_302 = arith.constant 0 : index
    %483 = vector.load %arg26[%482, %c0_302] : memref<128x32xf32, #tpu.memory_space<vmem>>, vector<16x32xf32>
    %c0_303 = arith.constant 0 : index
    %c0_304 = arith.constant 0 : index
    %c0_305 = arith.constant 0 : index
    %484 = vector.load %arg9[%c0_303, %c0_304, %c0_305] : memref<3x32x32xf32, #tpu.memory_space<vmem>>, vector<1x32x32xf32>
    %485 = vector.shape_cast %484 : vector<1x32x32xf32> to vector<32x32xf32>
    %cst_306 = arith.constant dense<0.000000e+00> : vector<16x32xf32>
    %486 = tpu.matmul %422, %485, %cst_306 {dimension_numbers = #tpu.dot_dimension_numbers<[1], [0], [0], [1], [0, 0, 1, 1], [], []>} : vector<16x32xf32>, vector<32x32xf32>, vector<16x32xf32> -> vector<16x32xf32>
    %c0_307 = arith.constant 0 : index
    %c0_308 = arith.constant 0 : index
    %c0_309 = arith.constant 0 : index
    %487 = vector.load %arg10[%c0_307, %c0_308, %c0_309] : memref<3x1x32xf32, #tpu.memory_space<vmem>>, vector<1x1x32xf32>
    %488 = vector.shape_cast %487 : vector<1x1x32xf32> to vector<1x32xf32>
    %489 = vector.broadcast %488 : vector<1x32xf32> to vector<16x32xf32>
    %490 = arith.addf %486, %489 : vector<16x32xf32>
    %c1_310 = arith.constant 1 : index
    %c0_311 = arith.constant 0 : index
    %c0_312 = arith.constant 0 : index
    %491 = vector.load %arg9[%c1_310, %c0_311, %c0_312] : memref<3x32x32xf32, #tpu.memory_space<vmem>>, vector<1x32x32xf32>
    %492 = vector.shape_cast %491 : vector<1x32x32xf32> to vector<32x32xf32>
    %cst_313 = arith.constant dense<0.000000e+00> : vector<16x32xf32>
    %493 = tpu.matmul %422, %492, %cst_313 {dimension_numbers = #tpu.dot_dimension_numbers<[1], [0], [0], [1], [0, 0, 1, 1], [], []>} : vector<16x32xf32>, vector<32x32xf32>, vector<16x32xf32> -> vector<16x32xf32>
    %c1_314 = arith.constant 1 : index
    %c0_315 = arith.constant 0 : index
    %c0_316 = arith.constant 0 : index
    %494 = vector.load %arg10[%c1_314, %c0_315, %c0_316] : memref<3x1x32xf32, #tpu.memory_space<vmem>>, vector<1x1x32xf32>
    %495 = vector.shape_cast %494 : vector<1x1x32xf32> to vector<1x32xf32>
    %496 = vector.broadcast %495 : vector<1x32xf32> to vector<16x32xf32>
    %497 = arith.addf %493, %496 : vector<16x32xf32>
    %c2_317 = arith.constant 2 : index
    %c0_318 = arith.constant 0 : index
    %c0_319 = arith.constant 0 : index
    %498 = vector.load %arg9[%c2_317, %c0_318, %c0_319] : memref<3x32x32xf32, #tpu.memory_space<vmem>>, vector<1x32x32xf32>
    %499 = vector.shape_cast %498 : vector<1x32x32xf32> to vector<32x32xf32>
    %cst_320 = arith.constant dense<0.000000e+00> : vector<16x32xf32>
    %500 = tpu.matmul %422, %499, %cst_320 {dimension_numbers = #tpu.dot_dimension_numbers<[1], [0], [0], [1], [0, 0, 1, 1], [], []>} : vector<16x32xf32>, vector<32x32xf32>, vector<16x32xf32> -> vector<16x32xf32>
    %c2_321 = arith.constant 2 : index
    %c0_322 = arith.constant 0 : index
    %c0_323 = arith.constant 0 : index
    %501 = vector.load %arg10[%c2_321, %c0_322, %c0_323] : memref<3x1x32xf32, #tpu.memory_space<vmem>>, vector<1x1x32xf32>
    %502 = vector.shape_cast %501 : vector<1x1x32xf32> to vector<1x32xf32>
    %503 = vector.broadcast %502 : vector<1x32xf32> to vector<16x32xf32>
    %504 = arith.addf %500, %503 : vector<16x32xf32>
    %505 = arith.addf %479, %490 : vector<16x32xf32>
    %506 = arith.negf %505 : vector<16x32xf32>
    %507 = math.exp %506 : vector<16x32xf32>
    %cst_324 = arith.constant 1.000000e+00 : f32
    %508 = vector.broadcast %cst_324 : f32 to vector<16x32xf32>
    %509 = arith.addf %508, %507 : vector<16x32xf32>
    %510 = arith.divf %508, %509 : vector<16x32xf32>
    %511 = arith.addf %481, %497 : vector<16x32xf32>
    %512 = arith.negf %511 : vector<16x32xf32>
    %513 = math.exp %512 : vector<16x32xf32>
    %cst_325 = arith.constant 1.000000e+00 : f32
    %514 = vector.broadcast %cst_325 : f32 to vector<16x32xf32>
    %515 = arith.addf %514, %513 : vector<16x32xf32>
    %516 = arith.divf %514, %515 : vector<16x32xf32>
    %517 = arith.mulf %510, %504 : vector<16x32xf32>
    %518 = arith.addf %483, %517 : vector<16x32xf32>
    %519 = math.tanh %518 : vector<16x32xf32>
    %cst_326 = arith.constant 1.000000e+00 : f32
    %520 = vector.broadcast %cst_326 : f32 to vector<16x32xf32>
    %521 = arith.subf %520, %516 : vector<16x32xf32>
    %522 = arith.mulf %521, %519 : vector<16x32xf32>
    %523 = arith.mulf %516, %422 : vector<16x32xf32>
    %524 = arith.addf %522, %523 : vector<16x32xf32>
    %525 = arith.index_cast %477 : i32 to index
    %c0_327 = arith.constant 0 : index
    %526 = vector.load %arg27[%525, %c0_327] : memref<64x32xf32, #tpu.memory_space<vmem>>, vector<8x32xf32>
    %527 = arith.index_cast %477 : i32 to index
    %c0_328 = arith.constant 0 : index
    %528 = vector.load %arg28[%527, %c0_328] : memref<64x32xf32, #tpu.memory_space<vmem>>, vector<8x32xf32>
    %529 = arith.index_cast %477 : i32 to index
    %c0_329 = arith.constant 0 : index
    %530 = vector.load %arg29[%529, %c0_329] : memref<64x32xf32, #tpu.memory_space<vmem>>, vector<8x32xf32>
    %c0_330 = arith.constant 0 : index
    %c0_331 = arith.constant 0 : index
    %c0_332 = arith.constant 0 : index
    %531 = vector.load %arg17[%c0_330, %c0_331, %c0_332] : memref<3x32x32xf32, #tpu.memory_space<vmem>>, vector<1x32x32xf32>
    %532 = vector.shape_cast %531 : vector<1x32x32xf32> to vector<32x32xf32>
    %cst_333 = arith.constant dense<0.000000e+00> : vector<8x32xf32>
    %533 = tpu.matmul %469, %532, %cst_333 {dimension_numbers = #tpu.dot_dimension_numbers<[1], [0], [0], [1], [0, 0, 1, 1], [], []>} : vector<8x32xf32>, vector<32x32xf32>, vector<8x32xf32> -> vector<8x32xf32>
    %c0_334 = arith.constant 0 : index
    %c0_335 = arith.constant 0 : index
    %c0_336 = arith.constant 0 : index
    %534 = vector.load %arg18[%c0_334, %c0_335, %c0_336] : memref<3x1x32xf32, #tpu.memory_space<vmem>>, vector<1x1x32xf32>
    %535 = vector.shape_cast %534 : vector<1x1x32xf32> to vector<1x32xf32>
    %536 = vector.broadcast %535 : vector<1x32xf32> to vector<8x32xf32>
    %537 = arith.addf %533, %536 : vector<8x32xf32>
    %c1_337 = arith.constant 1 : index
    %c0_338 = arith.constant 0 : index
    %c0_339 = arith.constant 0 : index
    %538 = vector.load %arg17[%c1_337, %c0_338, %c0_339] : memref<3x32x32xf32, #tpu.memory_space<vmem>>, vector<1x32x32xf32>
    %539 = vector.shape_cast %538 : vector<1x32x32xf32> to vector<32x32xf32>
    %cst_340 = arith.constant dense<0.000000e+00> : vector<8x32xf32>
    %540 = tpu.matmul %469, %539, %cst_340 {dimension_numbers = #tpu.dot_dimension_numbers<[1], [0], [0], [1], [0, 0, 1, 1], [], []>} : vector<8x32xf32>, vector<32x32xf32>, vector<8x32xf32> -> vector<8x32xf32>
    %c1_341 = arith.constant 1 : index
    %c0_342 = arith.constant 0 : index
    %c0_343 = arith.constant 0 : index
    %541 = vector.load %arg18[%c1_341, %c0_342, %c0_343] : memref<3x1x32xf32, #tpu.memory_space<vmem>>, vector<1x1x32xf32>
    %542 = vector.shape_cast %541 : vector<1x1x32xf32> to vector<1x32xf32>
    %543 = vector.broadcast %542 : vector<1x32xf32> to vector<8x32xf32>
    %544 = arith.addf %540, %543 : vector<8x32xf32>
    %c2_344 = arith.constant 2 : index
    %c0_345 = arith.constant 0 : index
    %c0_346 = arith.constant 0 : index
    %545 = vector.load %arg17[%c2_344, %c0_345, %c0_346] : memref<3x32x32xf32, #tpu.memory_space<vmem>>, vector<1x32x32xf32>
    %546 = vector.shape_cast %545 : vector<1x32x32xf32> to vector<32x32xf32>
    %cst_347 = arith.constant dense<0.000000e+00> : vector<8x32xf32>
    %547 = tpu.matmul %469, %546, %cst_347 {dimension_numbers = #tpu.dot_dimension_numbers<[1], [0], [0], [1], [0, 0, 1, 1], [], []>} : vector<8x32xf32>, vector<32x32xf32>, vector<8x32xf32> -> vector<8x32xf32>
    %c2_348 = arith.constant 2 : index
    %c0_349 = arith.constant 0 : index
    %c0_350 = arith.constant 0 : index
    %548 = vector.load %arg18[%c2_348, %c0_349, %c0_350] : memref<3x1x32xf32, #tpu.memory_space<vmem>>, vector<1x1x32xf32>
    %549 = vector.shape_cast %548 : vector<1x1x32xf32> to vector<1x32xf32>
    %550 = vector.broadcast %549 : vector<1x32xf32> to vector<8x32xf32>
    %551 = arith.addf %547, %550 : vector<8x32xf32>
    %552 = arith.addf %526, %537 : vector<8x32xf32>
    %553 = arith.negf %552 : vector<8x32xf32>
    %554 = math.exp %553 : vector<8x32xf32>
    %cst_351 = arith.constant 1.000000e+00 : f32
    %555 = vector.broadcast %cst_351 : f32 to vector<8x32xf32>
    %556 = arith.addf %555, %554 : vector<8x32xf32>
    %557 = arith.divf %555, %556 : vector<8x32xf32>
    %558 = arith.addf %528, %544 : vector<8x32xf32>
    %559 = arith.negf %558 : vector<8x32xf32>
    %560 = math.exp %559 : vector<8x32xf32>
    %cst_352 = arith.constant 1.000000e+00 : f32
    %561 = vector.broadcast %cst_352 : f32 to vector<8x32xf32>
    %562 = arith.addf %561, %560 : vector<8x32xf32>
    %563 = arith.divf %561, %562 : vector<8x32xf32>
    %564 = arith.mulf %557, %551 : vector<8x32xf32>
    %565 = arith.addf %530, %564 : vector<8x32xf32>
    %566 = math.tanh %565 : vector<8x32xf32>
    %cst_353 = arith.constant 1.000000e+00 : f32
    %567 = vector.broadcast %cst_353 : f32 to vector<8x32xf32>
    %568 = arith.subf %567, %563 : vector<8x32xf32>
    %569 = arith.mulf %568, %566 : vector<8x32xf32>
    %570 = arith.mulf %563, %469 : vector<8x32xf32>
    %571 = arith.addf %569, %570 : vector<8x32xf32>
    %572 = arith.index_cast %475 : i32 to index
    %c0_354 = arith.constant 0 : index
    %573 = vector.load %arg30[%572, %c0_354] : memref<128x32xf32, #tpu.memory_space<vmem>>, vector<16x32xf32>
    tpu.vector_store %arg30[%572, %c0_354], %524 {strides = array<i32>} : memref<128x32xf32, #tpu.memory_space<vmem>>, vector<16x32xf32>,
    %574 = arith.index_cast %477 : i32 to index
    %c0_355 = arith.constant 0 : index
    %575 = vector.load %arg31[%574, %c0_355] : memref<64x32xf32, #tpu.memory_space<vmem>>, vector<8x32xf32>
    tpu.vector_store %arg31[%574, %c0_355], %571 {strides = array<i32>} : memref<64x32xf32, #tpu.memory_space<vmem>>, vector<8x32xf32>,
    %c5_i32 = arith.constant 5 : i32
    %c16_i32_356 = arith.constant 16 : i32
    %576 = arith.muli %c5_i32, %c16_i32_356 : i32
    %577 = tpu.assume_multiple %576, 16 : i32
    %c8_i32_357 = arith.constant 8 : i32
    %578 = arith.muli %c5_i32, %c8_i32_357 : i32
    %579 = tpu.assume_multiple %578, 8 : i32
    %580 = arith.index_cast %577 : i32 to index
    %c0_358 = arith.constant 0 : index
    %581 = vector.load %arg24[%580, %c0_358] : memref<128x32xf32, #tpu.memory_space<vmem>>, vector<16x32xf32>
    %582 = arith.index_cast %577 : i32 to index
    %c0_359 = arith.constant 0 : index
    %583 = vector.load %arg25[%582, %c0_359] : memref<128x32xf32, #tpu.memory_space<vmem>>, vector<16x32xf32>
    %584 = arith.index_cast %577 : i32 to index
    %c0_360 = arith.constant 0 : index
    %585 = vector.load %arg26[%584, %c0_360] : memref<128x32xf32, #tpu.memory_space<vmem>>, vector<16x32xf32>
    %c0_361 = arith.constant 0 : index
    %c0_362 = arith.constant 0 : index
    %c0_363 = arith.constant 0 : index
    %586 = vector.load %arg9[%c0_361, %c0_362, %c0_363] : memref<3x32x32xf32, #tpu.memory_space<vmem>>, vector<1x32x32xf32>
    %587 = vector.shape_cast %586 : vector<1x32x32xf32> to vector<32x32xf32>
    %cst_364 = arith.constant dense<0.000000e+00> : vector<16x32xf32>
    %588 = tpu.matmul %524, %587, %cst_364 {dimension_numbers = #tpu.dot_dimension_numbers<[1], [0], [0], [1], [0, 0, 1, 1], [], []>} : vector<16x32xf32>, vector<32x32xf32>, vector<16x32xf32> -> vector<16x32xf32>
    %c0_365 = arith.constant 0 : index
    %c0_366 = arith.constant 0 : index
    %c0_367 = arith.constant 0 : index
    %589 = vector.load %arg10[%c0_365, %c0_366, %c0_367] : memref<3x1x32xf32, #tpu.memory_space<vmem>>, vector<1x1x32xf32>
    %590 = vector.shape_cast %589 : vector<1x1x32xf32> to vector<1x32xf32>
    %591 = vector.broadcast %590 : vector<1x32xf32> to vector<16x32xf32>
    %592 = arith.addf %588, %591 : vector<16x32xf32>
    %c1_368 = arith.constant 1 : index
    %c0_369 = arith.constant 0 : index
    %c0_370 = arith.constant 0 : index
    %593 = vector.load %arg9[%c1_368, %c0_369, %c0_370] : memref<3x32x32xf32, #tpu.memory_space<vmem>>, vector<1x32x32xf32>
    %594 = vector.shape_cast %593 : vector<1x32x32xf32> to vector<32x32xf32>
    %cst_371 = arith.constant dense<0.000000e+00> : vector<16x32xf32>
    %595 = tpu.matmul %524, %594, %cst_371 {dimension_numbers = #tpu.dot_dimension_numbers<[1], [0], [0], [1], [0, 0, 1, 1], [], []>} : vector<16x32xf32>, vector<32x32xf32>, vector<16x32xf32> -> vector<16x32xf32>
    %c1_372 = arith.constant 1 : index
    %c0_373 = arith.constant 0 : index
    %c0_374 = arith.constant 0 : index
    %596 = vector.load %arg10[%c1_372, %c0_373, %c0_374] : memref<3x1x32xf32, #tpu.memory_space<vmem>>, vector<1x1x32xf32>
    %597 = vector.shape_cast %596 : vector<1x1x32xf32> to vector<1x32xf32>
    %598 = vector.broadcast %597 : vector<1x32xf32> to vector<16x32xf32>
    %599 = arith.addf %595, %598 : vector<16x32xf32>
    %c2_375 = arith.constant 2 : index
    %c0_376 = arith.constant 0 : index
    %c0_377 = arith.constant 0 : index
    %600 = vector.load %arg9[%c2_375, %c0_376, %c0_377] : memref<3x32x32xf32, #tpu.memory_space<vmem>>, vector<1x32x32xf32>
    %601 = vector.shape_cast %600 : vector<1x32x32xf32> to vector<32x32xf32>
    %cst_378 = arith.constant dense<0.000000e+00> : vector<16x32xf32>
    %602 = tpu.matmul %524, %601, %cst_378 {dimension_numbers = #tpu.dot_dimension_numbers<[1], [0], [0], [1], [0, 0, 1, 1], [], []>} : vector<16x32xf32>, vector<32x32xf32>, vector<16x32xf32> -> vector<16x32xf32>
    %c2_379 = arith.constant 2 : index
    %c0_380 = arith.constant 0 : index
    %c0_381 = arith.constant 0 : index
    %603 = vector.load %arg10[%c2_379, %c0_380, %c0_381] : memref<3x1x32xf32, #tpu.memory_space<vmem>>, vector<1x1x32xf32>
    %604 = vector.shape_cast %603 : vector<1x1x32xf32> to vector<1x32xf32>
    %605 = vector.broadcast %604 : vector<1x32xf32> to vector<16x32xf32>
    %606 = arith.addf %602, %605 : vector<16x32xf32>
    %607 = arith.addf %581, %592 : vector<16x32xf32>
    %608 = arith.negf %607 : vector<16x32xf32>
    %609 = math.exp %608 : vector<16x32xf32>
    %cst_382 = arith.constant 1.000000e+00 : f32
    %610 = vector.broadcast %cst_382 : f32 to vector<16x32xf32>
    %611 = arith.addf %610, %609 : vector<16x32xf32>
    %612 = arith.divf %610, %611 : vector<16x32xf32>
    %613 = arith.addf %583, %599 : vector<16x32xf32>
    %614 = arith.negf %613 : vector<16x32xf32>
    %615 = math.exp %614 : vector<16x32xf32>
    %cst_383 = arith.constant 1.000000e+00 : f32
    %616 = vector.broadcast %cst_383 : f32 to vector<16x32xf32>
    %617 = arith.addf %616, %615 : vector<16x32xf32>
    %618 = arith.divf %616, %617 : vector<16x32xf32>
    %619 = arith.mulf %612, %606 : vector<16x32xf32>
    %620 = arith.addf %585, %619 : vector<16x32xf32>
    %621 = math.tanh %620 : vector<16x32xf32>
    %cst_384 = arith.constant 1.000000e+00 : f32
    %622 = vector.broadcast %cst_384 : f32 to vector<16x32xf32>
    %623 = arith.subf %622, %618 : vector<16x32xf32>
    %624 = arith.mulf %623, %621 : vector<16x32xf32>
    %625 = arith.mulf %618, %524 : vector<16x32xf32>
    %626 = arith.addf %624, %625 : vector<16x32xf32>
    %627 = arith.index_cast %579 : i32 to index
    %c0_385 = arith.constant 0 : index
    %628 = vector.load %arg27[%627, %c0_385] : memref<64x32xf32, #tpu.memory_space<vmem>>, vector<8x32xf32>
    %629 = arith.index_cast %579 : i32 to index
    %c0_386 = arith.constant 0 : index
    %630 = vector.load %arg28[%629, %c0_386] : memref<64x32xf32, #tpu.memory_space<vmem>>, vector<8x32xf32>
    %631 = arith.index_cast %579 : i32 to index
    %c0_387 = arith.constant 0 : index
    %632 = vector.load %arg29[%631, %c0_387] : memref<64x32xf32, #tpu.memory_space<vmem>>, vector<8x32xf32>
    %c0_388 = arith.constant 0 : index
    %c0_389 = arith.constant 0 : index
    %c0_390 = arith.constant 0 : index
    %633 = vector.load %arg17[%c0_388, %c0_389, %c0_390] : memref<3x32x32xf32, #tpu.memory_space<vmem>>, vector<1x32x32xf32>
    %634 = vector.shape_cast %633 : vector<1x32x32xf32> to vector<32x32xf32>
    %cst_391 = arith.constant dense<0.000000e+00> : vector<8x32xf32>
    %635 = tpu.matmul %571, %634, %cst_391 {dimension_numbers = #tpu.dot_dimension_numbers<[1], [0], [0], [1], [0, 0, 1, 1], [], []>} : vector<8x32xf32>, vector<32x32xf32>, vector<8x32xf32> -> vector<8x32xf32>
    %c0_392 = arith.constant 0 : index
    %c0_393 = arith.constant 0 : index
    %c0_394 = arith.constant 0 : index
    %636 = vector.load %arg18[%c0_392, %c0_393, %c0_394] : memref<3x1x32xf32, #tpu.memory_space<vmem>>, vector<1x1x32xf32>
    %637 = vector.shape_cast %636 : vector<1x1x32xf32> to vector<1x32xf32>
    %638 = vector.broadcast %637 : vector<1x32xf32> to vector<8x32xf32>
    %639 = arith.addf %635, %638 : vector<8x32xf32>
    %c1_395 = arith.constant 1 : index
    %c0_396 = arith.constant 0 : index
    %c0_397 = arith.constant 0 : index
    %640 = vector.load %arg17[%c1_395, %c0_396, %c0_397] : memref<3x32x32xf32, #tpu.memory_space<vmem>>, vector<1x32x32xf32>
    %641 = vector.shape_cast %640 : vector<1x32x32xf32> to vector<32x32xf32>
    %cst_398 = arith.constant dense<0.000000e+00> : vector<8x32xf32>
    %642 = tpu.matmul %571, %641, %cst_398 {dimension_numbers = #tpu.dot_dimension_numbers<[1], [0], [0], [1], [0, 0, 1, 1], [], []>} : vector<8x32xf32>, vector<32x32xf32>, vector<8x32xf32> -> vector<8x32xf32>
    %c1_399 = arith.constant 1 : index
    %c0_400 = arith.constant 0 : index
    %c0_401 = arith.constant 0 : index
    %643 = vector.load %arg18[%c1_399, %c0_400, %c0_401] : memref<3x1x32xf32, #tpu.memory_space<vmem>>, vector<1x1x32xf32>
    %644 = vector.shape_cast %643 : vector<1x1x32xf32> to vector<1x32xf32>
    %645 = vector.broadcast %644 : vector<1x32xf32> to vector<8x32xf32>
    %646 = arith.addf %642, %645 : vector<8x32xf32>
    %c2_402 = arith.constant 2 : index
    %c0_403 = arith.constant 0 : index
    %c0_404 = arith.constant 0 : index
    %647 = vector.load %arg17[%c2_402, %c0_403, %c0_404] : memref<3x32x32xf32, #tpu.memory_space<vmem>>, vector<1x32x32xf32>
    %648 = vector.shape_cast %647 : vector<1x32x32xf32> to vector<32x32xf32>
    %cst_405 = arith.constant dense<0.000000e+00> : vector<8x32xf32>
    %649 = tpu.matmul %571, %648, %cst_405 {dimension_numbers = #tpu.dot_dimension_numbers<[1], [0], [0], [1], [0, 0, 1, 1], [], []>} : vector<8x32xf32>, vector<32x32xf32>, vector<8x32xf32> -> vector<8x32xf32>
    %c2_406 = arith.constant 2 : index
    %c0_407 = arith.constant 0 : index
    %c0_408 = arith.constant 0 : index
    %650 = vector.load %arg18[%c2_406, %c0_407, %c0_408] : memref<3x1x32xf32, #tpu.memory_space<vmem>>, vector<1x1x32xf32>
    %651 = vector.shape_cast %650 : vector<1x1x32xf32> to vector<1x32xf32>
    %652 = vector.broadcast %651 : vector<1x32xf32> to vector<8x32xf32>
    %653 = arith.addf %649, %652 : vector<8x32xf32>
    %654 = arith.addf %628, %639 : vector<8x32xf32>
    %655 = arith.negf %654 : vector<8x32xf32>
    %656 = math.exp %655 : vector<8x32xf32>
    %cst_409 = arith.constant 1.000000e+00 : f32
    %657 = vector.broadcast %cst_409 : f32 to vector<8x32xf32>
    %658 = arith.addf %657, %656 : vector<8x32xf32>
    %659 = arith.divf %657, %658 : vector<8x32xf32>
    %660 = arith.addf %630, %646 : vector<8x32xf32>
    %661 = arith.negf %660 : vector<8x32xf32>
    %662 = math.exp %661 : vector<8x32xf32>
    %cst_410 = arith.constant 1.000000e+00 : f32
    %663 = vector.broadcast %cst_410 : f32 to vector<8x32xf32>
    %664 = arith.addf %663, %662 : vector<8x32xf32>
    %665 = arith.divf %663, %664 : vector<8x32xf32>
    %666 = arith.mulf %659, %653 : vector<8x32xf32>
    %667 = arith.addf %632, %666 : vector<8x32xf32>
    %668 = math.tanh %667 : vector<8x32xf32>
    %cst_411 = arith.constant 1.000000e+00 : f32
    %669 = vector.broadcast %cst_411 : f32 to vector<8x32xf32>
    %670 = arith.subf %669, %665 : vector<8x32xf32>
    %671 = arith.mulf %670, %668 : vector<8x32xf32>
    %672 = arith.mulf %665, %571 : vector<8x32xf32>
    %673 = arith.addf %671, %672 : vector<8x32xf32>
    %674 = arith.index_cast %577 : i32 to index
    %c0_412 = arith.constant 0 : index
    %675 = vector.load %arg30[%674, %c0_412] : memref<128x32xf32, #tpu.memory_space<vmem>>, vector<16x32xf32>
    tpu.vector_store %arg30[%674, %c0_412], %626 {strides = array<i32>} : memref<128x32xf32, #tpu.memory_space<vmem>>, vector<16x32xf32>,
    %676 = arith.index_cast %579 : i32 to index
    %c0_413 = arith.constant 0 : index
    %677 = vector.load %arg31[%676, %c0_413] : memref<64x32xf32, #tpu.memory_space<vmem>>, vector<8x32xf32>
    tpu.vector_store %arg31[%676, %c0_413], %673 {strides = array<i32>} : memref<64x32xf32, #tpu.memory_space<vmem>>, vector<8x32xf32>,
    %c6_i32 = arith.constant 6 : i32
    %c16_i32_414 = arith.constant 16 : i32
    %678 = arith.muli %c6_i32, %c16_i32_414 : i32
    %679 = tpu.assume_multiple %678, 16 : i32
    %c8_i32_415 = arith.constant 8 : i32
    %680 = arith.muli %c6_i32, %c8_i32_415 : i32
    %681 = tpu.assume_multiple %680, 8 : i32
    %682 = arith.index_cast %679 : i32 to index
    %c0_416 = arith.constant 0 : index
    %683 = vector.load %arg24[%682, %c0_416] : memref<128x32xf32, #tpu.memory_space<vmem>>, vector<16x32xf32>
    %684 = arith.index_cast %679 : i32 to index
    %c0_417 = arith.constant 0 : index
    %685 = vector.load %arg25[%684, %c0_417] : memref<128x32xf32, #tpu.memory_space<vmem>>, vector<16x32xf32>
    %686 = arith.index_cast %679 : i32 to index
    %c0_418 = arith.constant 0 : index
    %687 = vector.load %arg26[%686, %c0_418] : memref<128x32xf32, #tpu.memory_space<vmem>>, vector<16x32xf32>
    %c0_419 = arith.constant 0 : index
    %c0_420 = arith.constant 0 : index
    %c0_421 = arith.constant 0 : index
    %688 = vector.load %arg9[%c0_419, %c0_420, %c0_421] : memref<3x32x32xf32, #tpu.memory_space<vmem>>, vector<1x32x32xf32>
    %689 = vector.shape_cast %688 : vector<1x32x32xf32> to vector<32x32xf32>
    %cst_422 = arith.constant dense<0.000000e+00> : vector<16x32xf32>
    %690 = tpu.matmul %626, %689, %cst_422 {dimension_numbers = #tpu.dot_dimension_numbers<[1], [0], [0], [1], [0, 0, 1, 1], [], []>} : vector<16x32xf32>, vector<32x32xf32>, vector<16x32xf32> -> vector<16x32xf32>
    %c0_423 = arith.constant 0 : index
    %c0_424 = arith.constant 0 : index
    %c0_425 = arith.constant 0 : index
    %691 = vector.load %arg10[%c0_423, %c0_424, %c0_425] : memref<3x1x32xf32, #tpu.memory_space<vmem>>, vector<1x1x32xf32>
    %692 = vector.shape_cast %691 : vector<1x1x32xf32> to vector<1x32xf32>
    %693 = vector.broadcast %692 : vector<1x32xf32> to vector<16x32xf32>
    %694 = arith.addf %690, %693 : vector<16x32xf32>
    %c1_426 = arith.constant 1 : index
    %c0_427 = arith.constant 0 : index
    %c0_428 = arith.constant 0 : index
    %695 = vector.load %arg9[%c1_426, %c0_427, %c0_428] : memref<3x32x32xf32, #tpu.memory_space<vmem>>, vector<1x32x32xf32>
    %696 = vector.shape_cast %695 : vector<1x32x32xf32> to vector<32x32xf32>
    %cst_429 = arith.constant dense<0.000000e+00> : vector<16x32xf32>
    %697 = tpu.matmul %626, %696, %cst_429 {dimension_numbers = #tpu.dot_dimension_numbers<[1], [0], [0], [1], [0, 0, 1, 1], [], []>} : vector<16x32xf32>, vector<32x32xf32>, vector<16x32xf32> -> vector<16x32xf32>
    %c1_430 = arith.constant 1 : index
    %c0_431 = arith.constant 0 : index
    %c0_432 = arith.constant 0 : index
    %698 = vector.load %arg10[%c1_430, %c0_431, %c0_432] : memref<3x1x32xf32, #tpu.memory_space<vmem>>, vector<1x1x32xf32>
    %699 = vector.shape_cast %698 : vector<1x1x32xf32> to vector<1x32xf32>
    %700 = vector.broadcast %699 : vector<1x32xf32> to vector<16x32xf32>
    %701 = arith.addf %697, %700 : vector<16x32xf32>
    %c2_433 = arith.constant 2 : index
    %c0_434 = arith.constant 0 : index
    %c0_435 = arith.constant 0 : index
    %702 = vector.load %arg9[%c2_433, %c0_434, %c0_435] : memref<3x32x32xf32, #tpu.memory_space<vmem>>, vector<1x32x32xf32>
    %703 = vector.shape_cast %702 : vector<1x32x32xf32> to vector<32x32xf32>
    %cst_436 = arith.constant dense<0.000000e+00> : vector<16x32xf32>
    %704 = tpu.matmul %626, %703, %cst_436 {dimension_numbers = #tpu.dot_dimension_numbers<[1], [0], [0], [1], [0, 0, 1, 1], [], []>} : vector<16x32xf32>, vector<32x32xf32>, vector<16x32xf32> -> vector<16x32xf32>
    %c2_437 = arith.constant 2 : index
    %c0_438 = arith.constant 0 : index
    %c0_439 = arith.constant 0 : index
    %705 = vector.load %arg10[%c2_437, %c0_438, %c0_439] : memref<3x1x32xf32, #tpu.memory_space<vmem>>, vector<1x1x32xf32>
    %706 = vector.shape_cast %705 : vector<1x1x32xf32> to vector<1x32xf32>
    %707 = vector.broadcast %706 : vector<1x32xf32> to vector<16x32xf32>
    %708 = arith.addf %704, %707 : vector<16x32xf32>
    %709 = arith.addf %683, %694 : vector<16x32xf32>
    %710 = arith.negf %709 : vector<16x32xf32>
    %711 = math.exp %710 : vector<16x32xf32>
    %cst_440 = arith.constant 1.000000e+00 : f32
    %712 = vector.broadcast %cst_440 : f32 to vector<16x32xf32>
    %713 = arith.addf %712, %711 : vector<16x32xf32>
    %714 = arith.divf %712, %713 : vector<16x32xf32>
    %715 = arith.addf %685, %701 : vector<16x32xf32>
    %716 = arith.negf %715 : vector<16x32xf32>
    %717 = math.exp %716 : vector<16x32xf32>
    %cst_441 = arith.constant 1.000000e+00 : f32
    %718 = vector.broadcast %cst_441 : f32 to vector<16x32xf32>
    %719 = arith.addf %718, %717 : vector<16x32xf32>
    %720 = arith.divf %718, %719 : vector<16x32xf32>
    %721 = arith.mulf %714, %708 : vector<16x32xf32>
    %722 = arith.addf %687, %721 : vector<16x32xf32>
    %723 = math.tanh %722 : vector<16x32xf32>
    %cst_442 = arith.constant 1.000000e+00 : f32
    %724 = vector.broadcast %cst_442 : f32 to vector<16x32xf32>
    %725 = arith.subf %724, %720 : vector<16x32xf32>
    %726 = arith.mulf %725, %723 : vector<16x32xf32>
    %727 = arith.mulf %720, %626 : vector<16x32xf32>
    %728 = arith.addf %726, %727 : vector<16x32xf32>
    %729 = arith.index_cast %681 : i32 to index
    %c0_443 = arith.constant 0 : index
    %730 = vector.load %arg27[%729, %c0_443] : memref<64x32xf32, #tpu.memory_space<vmem>>, vector<8x32xf32>
    %731 = arith.index_cast %681 : i32 to index
    %c0_444 = arith.constant 0 : index
    %732 = vector.load %arg28[%731, %c0_444] : memref<64x32xf32, #tpu.memory_space<vmem>>, vector<8x32xf32>
    %733 = arith.index_cast %681 : i32 to index
    %c0_445 = arith.constant 0 : index
    %734 = vector.load %arg29[%733, %c0_445] : memref<64x32xf32, #tpu.memory_space<vmem>>, vector<8x32xf32>
    %c0_446 = arith.constant 0 : index
    %c0_447 = arith.constant 0 : index
    %c0_448 = arith.constant 0 : index
    %735 = vector.load %arg17[%c0_446, %c0_447, %c0_448] : memref<3x32x32xf32, #tpu.memory_space<vmem>>, vector<1x32x32xf32>
    %736 = vector.shape_cast %735 : vector<1x32x32xf32> to vector<32x32xf32>
    %cst_449 = arith.constant dense<0.000000e+00> : vector<8x32xf32>
    %737 = tpu.matmul %673, %736, %cst_449 {dimension_numbers = #tpu.dot_dimension_numbers<[1], [0], [0], [1], [0, 0, 1, 1], [], []>} : vector<8x32xf32>, vector<32x32xf32>, vector<8x32xf32> -> vector<8x32xf32>
    %c0_450 = arith.constant 0 : index
    %c0_451 = arith.constant 0 : index
    %c0_452 = arith.constant 0 : index
    %738 = vector.load %arg18[%c0_450, %c0_451, %c0_452] : memref<3x1x32xf32, #tpu.memory_space<vmem>>, vector<1x1x32xf32>
    %739 = vector.shape_cast %738 : vector<1x1x32xf32> to vector<1x32xf32>
    %740 = vector.broadcast %739 : vector<1x32xf32> to vector<8x32xf32>
    %741 = arith.addf %737, %740 : vector<8x32xf32>
    %c1_453 = arith.constant 1 : index
    %c0_454 = arith.constant 0 : index
    %c0_455 = arith.constant 0 : index
    %742 = vector.load %arg17[%c1_453, %c0_454, %c0_455] : memref<3x32x32xf32, #tpu.memory_space<vmem>>, vector<1x32x32xf32>
    %743 = vector.shape_cast %742 : vector<1x32x32xf32> to vector<32x32xf32>
    %cst_456 = arith.constant dense<0.000000e+00> : vector<8x32xf32>
    %744 = tpu.matmul %673, %743, %cst_456 {dimension_numbers = #tpu.dot_dimension_numbers<[1], [0], [0], [1], [0, 0, 1, 1], [], []>} : vector<8x32xf32>, vector<32x32xf32>, vector<8x32xf32> -> vector<8x32xf32>
    %c1_457 = arith.constant 1 : index
    %c0_458 = arith.constant 0 : index
    %c0_459 = arith.constant 0 : index
    %745 = vector.load %arg18[%c1_457, %c0_458, %c0_459] : memref<3x1x32xf32, #tpu.memory_space<vmem>>, vector<1x1x32xf32>
    %746 = vector.shape_cast %745 : vector<1x1x32xf32> to vector<1x32xf32>
    %747 = vector.broadcast %746 : vector<1x32xf32> to vector<8x32xf32>
    %748 = arith.addf %744, %747 : vector<8x32xf32>
    %c2_460 = arith.constant 2 : index
    %c0_461 = arith.constant 0 : index
    %c0_462 = arith.constant 0 : index
    %749 = vector.load %arg17[%c2_460, %c0_461, %c0_462] : memref<3x32x32xf32, #tpu.memory_space<vmem>>, vector<1x32x32xf32>
    %750 = vector.shape_cast %749 : vector<1x32x32xf32> to vector<32x32xf32>
    %cst_463 = arith.constant dense<0.000000e+00> : vector<8x32xf32>
    %751 = tpu.matmul %673, %750, %cst_463 {dimension_numbers = #tpu.dot_dimension_numbers<[1], [0], [0], [1], [0, 0, 1, 1], [], []>} : vector<8x32xf32>, vector<32x32xf32>, vector<8x32xf32> -> vector<8x32xf32>
    %c2_464 = arith.constant 2 : index
    %c0_465 = arith.constant 0 : index
    %c0_466 = arith.constant 0 : index
    %752 = vector.load %arg18[%c2_464, %c0_465, %c0_466] : memref<3x1x32xf32, #tpu.memory_space<vmem>>, vector<1x1x32xf32>
    %753 = vector.shape_cast %752 : vector<1x1x32xf32> to vector<1x32xf32>
    %754 = vector.broadcast %753 : vector<1x32xf32> to vector<8x32xf32>
    %755 = arith.addf %751, %754 : vector<8x32xf32>
    %756 = arith.addf %730, %741 : vector<8x32xf32>
    %757 = arith.negf %756 : vector<8x32xf32>
    %758 = math.exp %757 : vector<8x32xf32>
    %cst_467 = arith.constant 1.000000e+00 : f32
    %759 = vector.broadcast %cst_467 : f32 to vector<8x32xf32>
    %760 = arith.addf %759, %758 : vector<8x32xf32>
    %761 = arith.divf %759, %760 : vector<8x32xf32>
    %762 = arith.addf %732, %748 : vector<8x32xf32>
    %763 = arith.negf %762 : vector<8x32xf32>
    %764 = math.exp %763 : vector<8x32xf32>
    %cst_468 = arith.constant 1.000000e+00 : f32
    %765 = vector.broadcast %cst_468 : f32 to vector<8x32xf32>
    %766 = arith.addf %765, %764 : vector<8x32xf32>
    %767 = arith.divf %765, %766 : vector<8x32xf32>
    %768 = arith.mulf %761, %755 : vector<8x32xf32>
    %769 = arith.addf %734, %768 : vector<8x32xf32>
    %770 = math.tanh %769 : vector<8x32xf32>
    %cst_469 = arith.constant 1.000000e+00 : f32
    %771 = vector.broadcast %cst_469 : f32 to vector<8x32xf32>
    %772 = arith.subf %771, %767 : vector<8x32xf32>
    %773 = arith.mulf %772, %770 : vector<8x32xf32>
    %774 = arith.mulf %767, %673 : vector<8x32xf32>
    %775 = arith.addf %773, %774 : vector<8x32xf32>
    %776 = arith.index_cast %679 : i32 to index
    %c0_470 = arith.constant 0 : index
    %777 = vector.load %arg30[%776, %c0_470] : memref<128x32xf32, #tpu.memory_space<vmem>>, vector<16x32xf32>
    tpu.vector_store %arg30[%776, %c0_470], %728 {strides = array<i32>} : memref<128x32xf32, #tpu.memory_space<vmem>>, vector<16x32xf32>,
    %778 = arith.index_cast %681 : i32 to index
    %c0_471 = arith.constant 0 : index
    %779 = vector.load %arg31[%778, %c0_471] : memref<64x32xf32, #tpu.memory_space<vmem>>, vector<8x32xf32>
    tpu.vector_store %arg31[%778, %c0_471], %775 {strides = array<i32>} : memref<64x32xf32, #tpu.memory_space<vmem>>, vector<8x32xf32>,
    %c7_i32 = arith.constant 7 : i32
    %c16_i32_472 = arith.constant 16 : i32
    %780 = arith.muli %c7_i32, %c16_i32_472 : i32
    %781 = tpu.assume_multiple %780, 16 : i32
    %c8_i32_473 = arith.constant 8 : i32
    %782 = arith.muli %c7_i32, %c8_i32_473 : i32
    %783 = tpu.assume_multiple %782, 8 : i32
    %784 = arith.index_cast %781 : i32 to index
    %c0_474 = arith.constant 0 : index
    %785 = vector.load %arg24[%784, %c0_474] : memref<128x32xf32, #tpu.memory_space<vmem>>, vector<16x32xf32>
    %786 = arith.index_cast %781 : i32 to index
    %c0_475 = arith.constant 0 : index
    %787 = vector.load %arg25[%786, %c0_475] : memref<128x32xf32, #tpu.memory_space<vmem>>, vector<16x32xf32>
    %788 = arith.index_cast %781 : i32 to index
    %c0_476 = arith.constant 0 : index
    %789 = vector.load %arg26[%788, %c0_476] : memref<128x32xf32, #tpu.memory_space<vmem>>, vector<16x32xf32>
    %c0_477 = arith.constant 0 : index
    %c0_478 = arith.constant 0 : index
    %c0_479 = arith.constant 0 : index
    %790 = vector.load %arg9[%c0_477, %c0_478, %c0_479] : memref<3x32x32xf32, #tpu.memory_space<vmem>>, vector<1x32x32xf32>
    %791 = vector.shape_cast %790 : vector<1x32x32xf32> to vector<32x32xf32>
    %cst_480 = arith.constant dense<0.000000e+00> : vector<16x32xf32>
    %792 = tpu.matmul %728, %791, %cst_480 {dimension_numbers = #tpu.dot_dimension_numbers<[1], [0], [0], [1], [0, 0, 1, 1], [], []>} : vector<16x32xf32>, vector<32x32xf32>, vector<16x32xf32> -> vector<16x32xf32>
    %c0_481 = arith.constant 0 : index
    %c0_482 = arith.constant 0 : index
    %c0_483 = arith.constant 0 : index
    %793 = vector.load %arg10[%c0_481, %c0_482, %c0_483] : memref<3x1x32xf32, #tpu.memory_space<vmem>>, vector<1x1x32xf32>
    %794 = vector.shape_cast %793 : vector<1x1x32xf32> to vector<1x32xf32>
    %795 = vector.broadcast %794 : vector<1x32xf32> to vector<16x32xf32>
    %796 = arith.addf %792, %795 : vector<16x32xf32>
    %c1_484 = arith.constant 1 : index
    %c0_485 = arith.constant 0 : index
    %c0_486 = arith.constant 0 : index
    %797 = vector.load %arg9[%c1_484, %c0_485, %c0_486] : memref<3x32x32xf32, #tpu.memory_space<vmem>>, vector<1x32x32xf32>
    %798 = vector.shape_cast %797 : vector<1x32x32xf32> to vector<32x32xf32>
    %cst_487 = arith.constant dense<0.000000e+00> : vector<16x32xf32>
    %799 = tpu.matmul %728, %798, %cst_487 {dimension_numbers = #tpu.dot_dimension_numbers<[1], [0], [0], [1], [0, 0, 1, 1], [], []>} : vector<16x32xf32>, vector<32x32xf32>, vector<16x32xf32> -> vector<16x32xf32>
    %c1_488 = arith.constant 1 : index
    %c0_489 = arith.constant 0 : index
    %c0_490 = arith.constant 0 : index
    %800 = vector.load %arg10[%c1_488, %c0_489, %c0_490] : memref<3x1x32xf32, #tpu.memory_space<vmem>>, vector<1x1x32xf32>
    %801 = vector.shape_cast %800 : vector<1x1x32xf32> to vector<1x32xf32>
    %802 = vector.broadcast %801 : vector<1x32xf32> to vector<16x32xf32>
    %803 = arith.addf %799, %802 : vector<16x32xf32>
    %c2_491 = arith.constant 2 : index
    %c0_492 = arith.constant 0 : index
    %c0_493 = arith.constant 0 : index
    %804 = vector.load %arg9[%c2_491, %c0_492, %c0_493] : memref<3x32x32xf32, #tpu.memory_space<vmem>>, vector<1x32x32xf32>
    %805 = vector.shape_cast %804 : vector<1x32x32xf32> to vector<32x32xf32>
    %cst_494 = arith.constant dense<0.000000e+00> : vector<16x32xf32>
    %806 = tpu.matmul %728, %805, %cst_494 {dimension_numbers = #tpu.dot_dimension_numbers<[1], [0], [0], [1], [0, 0, 1, 1], [], []>} : vector<16x32xf32>, vector<32x32xf32>, vector<16x32xf32> -> vector<16x32xf32>
    %c2_495 = arith.constant 2 : index
    %c0_496 = arith.constant 0 : index
    %c0_497 = arith.constant 0 : index
    %807 = vector.load %arg10[%c2_495, %c0_496, %c0_497] : memref<3x1x32xf32, #tpu.memory_space<vmem>>, vector<1x1x32xf32>
    %808 = vector.shape_cast %807 : vector<1x1x32xf32> to vector<1x32xf32>
    %809 = vector.broadcast %808 : vector<1x32xf32> to vector<16x32xf32>
    %810 = arith.addf %806, %809 : vector<16x32xf32>
    %811 = arith.addf %785, %796 : vector<16x32xf32>
    %812 = arith.negf %811 : vector<16x32xf32>
    %813 = math.exp %812 : vector<16x32xf32>
    %cst_498 = arith.constant 1.000000e+00 : f32
    %814 = vector.broadcast %cst_498 : f32 to vector<16x32xf32>
    %815 = arith.addf %814, %813 : vector<16x32xf32>
    %816 = arith.divf %814, %815 : vector<16x32xf32>
    %817 = arith.addf %787, %803 : vector<16x32xf32>
    %818 = arith.negf %817 : vector<16x32xf32>
    %819 = math.exp %818 : vector<16x32xf32>
    %cst_499 = arith.constant 1.000000e+00 : f32
    %820 = vector.broadcast %cst_499 : f32 to vector<16x32xf32>
    %821 = arith.addf %820, %819 : vector<16x32xf32>
    %822 = arith.divf %820, %821 : vector<16x32xf32>
    %823 = arith.mulf %816, %810 : vector<16x32xf32>
    %824 = arith.addf %789, %823 : vector<16x32xf32>
    %825 = math.tanh %824 : vector<16x32xf32>
    %cst_500 = arith.constant 1.000000e+00 : f32
    %826 = vector.broadcast %cst_500 : f32 to vector<16x32xf32>
    %827 = arith.subf %826, %822 : vector<16x32xf32>
    %828 = arith.mulf %827, %825 : vector<16x32xf32>
    %829 = arith.mulf %822, %728 : vector<16x32xf32>
    %830 = arith.addf %828, %829 : vector<16x32xf32>
    %831 = arith.index_cast %783 : i32 to index
    %c0_501 = arith.constant 0 : index
    %832 = vector.load %arg27[%831, %c0_501] : memref<64x32xf32, #tpu.memory_space<vmem>>, vector<8x32xf32>
    %833 = arith.index_cast %783 : i32 to index
    %c0_502 = arith.constant 0 : index
    %834 = vector.load %arg28[%833, %c0_502] : memref<64x32xf32, #tpu.memory_space<vmem>>, vector<8x32xf32>
    %835 = arith.index_cast %783 : i32 to index
    %c0_503 = arith.constant 0 : index
    %836 = vector.load %arg29[%835, %c0_503] : memref<64x32xf32, #tpu.memory_space<vmem>>, vector<8x32xf32>
    %c0_504 = arith.constant 0 : index
    %c0_505 = arith.constant 0 : index
    %c0_506 = arith.constant 0 : index
    %837 = vector.load %arg17[%c0_504, %c0_505, %c0_506] : memref<3x32x32xf32, #tpu.memory_space<vmem>>, vector<1x32x32xf32>
    %838 = vector.shape_cast %837 : vector<1x32x32xf32> to vector<32x32xf32>
    %cst_507 = arith.constant dense<0.000000e+00> : vector<8x32xf32>
    %839 = tpu.matmul %775, %838, %cst_507 {dimension_numbers = #tpu.dot_dimension_numbers<[1], [0], [0], [1], [0, 0, 1, 1], [], []>} : vector<8x32xf32>, vector<32x32xf32>, vector<8x32xf32> -> vector<8x32xf32>
    %c0_508 = arith.constant 0 : index
    %c0_509 = arith.constant 0 : index
    %c0_510 = arith.constant 0 : index
    %840 = vector.load %arg18[%c0_508, %c0_509, %c0_510] : memref<3x1x32xf32, #tpu.memory_space<vmem>>, vector<1x1x32xf32>
    %841 = vector.shape_cast %840 : vector<1x1x32xf32> to vector<1x32xf32>
    %842 = vector.broadcast %841 : vector<1x32xf32> to vector<8x32xf32>
    %843 = arith.addf %839, %842 : vector<8x32xf32>
    %c1_511 = arith.constant 1 : index
    %c0_512 = arith.constant 0 : index
    %c0_513 = arith.constant 0 : index
    %844 = vector.load %arg17[%c1_511, %c0_512, %c0_513] : memref<3x32x32xf32, #tpu.memory_space<vmem>>, vector<1x32x32xf32>
    %845 = vector.shape_cast %844 : vector<1x32x32xf32> to vector<32x32xf32>
    %cst_514 = arith.constant dense<0.000000e+00> : vector<8x32xf32>
    %846 = tpu.matmul %775, %845, %cst_514 {dimension_numbers = #tpu.dot_dimension_numbers<[1], [0], [0], [1], [0, 0, 1, 1], [], []>} : vector<8x32xf32>, vector<32x32xf32>, vector<8x32xf32> -> vector<8x32xf32>
    %c1_515 = arith.constant 1 : index
    %c0_516 = arith.constant 0 : index
    %c0_517 = arith.constant 0 : index
    %847 = vector.load %arg18[%c1_515, %c0_516, %c0_517] : memref<3x1x32xf32, #tpu.memory_space<vmem>>, vector<1x1x32xf32>
    %848 = vector.shape_cast %847 : vector<1x1x32xf32> to vector<1x32xf32>
    %849 = vector.broadcast %848 : vector<1x32xf32> to vector<8x32xf32>
    %850 = arith.addf %846, %849 : vector<8x32xf32>
    %c2_518 = arith.constant 2 : index
    %c0_519 = arith.constant 0 : index
    %c0_520 = arith.constant 0 : index
    %851 = vector.load %arg17[%c2_518, %c0_519, %c0_520] : memref<3x32x32xf32, #tpu.memory_space<vmem>>, vector<1x32x32xf32>
    %852 = vector.shape_cast %851 : vector<1x32x32xf32> to vector<32x32xf32>
    %cst_521 = arith.constant dense<0.000000e+00> : vector<8x32xf32>
    %853 = tpu.matmul %775, %852, %cst_521 {dimension_numbers = #tpu.dot_dimension_numbers<[1], [0], [0], [1], [0, 0, 1, 1], [], []>} : vector<8x32xf32>, vector<32x32xf32>, vector<8x32xf32> -> vector<8x32xf32>
    %c2_522 = arith.constant 2 : index
    %c0_523 = arith.constant 0 : index
    %c0_524 = arith.constant 0 : index
    %854 = vector.load %arg18[%c2_522, %c0_523, %c0_524] : memref<3x1x32xf32, #tpu.memory_space<vmem>>, vector<1x1x32xf32>
    %855 = vector.shape_cast %854 : vector<1x1x32xf32> to vector<1x32xf32>
    %856 = vector.broadcast %855 : vector<1x32xf32> to vector<8x32xf32>
    %857 = arith.addf %853, %856 : vector<8x32xf32>
    %858 = arith.addf %832, %843 : vector<8x32xf32>
    %859 = arith.negf %858 : vector<8x32xf32>
    %860 = math.exp %859 : vector<8x32xf32>
    %cst_525 = arith.constant 1.000000e+00 : f32
    %861 = vector.broadcast %cst_525 : f32 to vector<8x32xf32>
    %862 = arith.addf %861, %860 : vector<8x32xf32>
    %863 = arith.divf %861, %862 : vector<8x32xf32>
    %864 = arith.addf %834, %850 : vector<8x32xf32>
    %865 = arith.negf %864 : vector<8x32xf32>
    %866 = math.exp %865 : vector<8x32xf32>
    %cst_526 = arith.constant 1.000000e+00 : f32
    %867 = vector.broadcast %cst_526 : f32 to vector<8x32xf32>
    %868 = arith.addf %867, %866 : vector<8x32xf32>
    %869 = arith.divf %867, %868 : vector<8x32xf32>
    %870 = arith.mulf %863, %857 : vector<8x32xf32>
    %871 = arith.addf %836, %870 : vector<8x32xf32>
    %872 = math.tanh %871 : vector<8x32xf32>
    %cst_527 = arith.constant 1.000000e+00 : f32
    %873 = vector.broadcast %cst_527 : f32 to vector<8x32xf32>
    %874 = arith.subf %873, %869 : vector<8x32xf32>
    %875 = arith.mulf %874, %872 : vector<8x32xf32>
    %876 = arith.mulf %869, %775 : vector<8x32xf32>
    %877 = arith.addf %875, %876 : vector<8x32xf32>
    %878 = arith.index_cast %781 : i32 to index
    %c0_528 = arith.constant 0 : index
    %879 = vector.load %arg30[%878, %c0_528] : memref<128x32xf32, #tpu.memory_space<vmem>>, vector<16x32xf32>
    tpu.vector_store %arg30[%878, %c0_528], %830 {strides = array<i32>} : memref<128x32xf32, #tpu.memory_space<vmem>>, vector<16x32xf32>,
    %880 = arith.index_cast %783 : i32 to index
    %c0_529 = arith.constant 0 : index
    %881 = vector.load %arg31[%880, %c0_529] : memref<64x32xf32, #tpu.memory_space<vmem>>, vector<8x32xf32>
    tpu.vector_store %arg31[%880, %c0_529], %877 {strides = array<i32>} : memref<64x32xf32, #tpu.memory_space<vmem>>, vector<8x32xf32>,
    %c8_i32_530 = arith.constant 8 : i32
    %c0_531 = arith.constant 0 : index
    %c0_532 = arith.constant 0 : index
    %882 = vector.load %arg30[%c0_531, %c0_532] : memref<128x32xf32, #tpu.memory_space<vmem>>, vector<128x32xf32>
    %c0_533 = arith.constant 0 : index
    %c0_534 = arith.constant 0 : index
    %883 = vector.load %arg11[%c0_533, %c0_534] : memref<32x7xf32, #tpu.memory_space<vmem>>, vector<32x7xf32>
    %cst_535 = arith.constant dense<0.000000e+00> : vector<128x7xf32>
    %884 = tpu.matmul %882, %883, %cst_535 {dimension_numbers = #tpu.dot_dimension_numbers<[1], [0], [0], [1], [0, 0, 1, 1], [], []>} : vector<128x32xf32>, vector<32x7xf32>, vector<128x7xf32> -> vector<128x7xf32>
    %c0_536 = arith.constant 0 : index
    %c0_537 = arith.constant 0 : index
    %885 = vector.load %arg12[%c0_536, %c0_537] : memref<1x7xf32, #tpu.memory_space<vmem>>, vector<1x7xf32>
    %886 = vector.broadcast %885 : vector<1x7xf32> to vector<128x7xf32>
    %887 = arith.addf %884, %886 : vector<128x7xf32>
    %888 = vector.shape_cast %887 : vector<128x7xf32> to vector<8x16x7xf32>
    %c0_538 = arith.constant 0 : index
    %c0_539 = arith.constant 0 : index
    %889 = vector.load %arg31[%c0_538, %c0_539] : memref<64x32xf32, #tpu.memory_space<vmem>>, vector<64x32xf32>
    %c0_540 = arith.constant 0 : index
    %c0_541 = arith.constant 0 : index
    %890 = vector.load %arg19[%c0_540, %c0_541] : memref<32x7xf32, #tpu.memory_space<vmem>>, vector<32x7xf32>
    %cst_542 = arith.constant dense<0.000000e+00> : vector<64x7xf32>
    %891 = tpu.matmul %889, %890, %cst_542 {dimension_numbers = #tpu.dot_dimension_numbers<[1], [0], [0], [1], [0, 0, 1, 1], [], []>} : vector<64x32xf32>, vector<32x7xf32>, vector<64x7xf32> -> vector<64x7xf32>
    %c0_543 = arith.constant 0 : index
    %c0_544 = arith.constant 0 : index
    %892 = vector.load %arg20[%c0_543, %c0_544] : memref<1x7xf32, #tpu.memory_space<vmem>>, vector<1x7xf32>
    %893 = vector.broadcast %892 : vector<1x7xf32> to vector<64x7xf32>
    %894 = arith.addf %891, %893 : vector<64x7xf32>
    %895 = vector.shape_cast %894 : vector<64x7xf32> to vector<8x8x7xf32>
    %896 = vector.extract_strided_slice %888 {offsets = [0, 0, 0], sizes = [8, 8, 7], strides = [1, 1, 1]} : vector<8x16x7xf32> to vector<8x8x7xf32>
    %897 = vector.extract_strided_slice %888 {offsets = [0, 8, 0], sizes = [8, 8, 7], strides = [1, 1, 1]} : vector<8x16x7xf32> to vector<8x8x7xf32>
    %898 = tpu.iota {dimensions = array<i32: 2>} : vector<8x8x7xi32>
    %c0_545 = arith.constant 0 : index
    %c0_546 = arith.constant 0 : index
    %899 = vector.load %arg2[%c0_545, %c0_546] : memref<8x8xi32, #tpu.memory_space<vmem>>, vector<8x8xi32>
    %900 = vector.shape_cast %899 : vector<8x8xi32> to vector<8x8x1xi32>
    %901 = vector.broadcast %900 : vector<8x8x1xi32> to vector<8x8x7xi32>
    %902 = arith.cmpi eq, %898, %901 : vector<8x8x7xi32>
    %cst_547 = arith.constant 0.000000e+00 : f32
    %903 = vector.broadcast %cst_547 : f32 to vector<8x8x7xf32>
    %904 = arith.select %902, %896, %903 : vector<8x8x7xi1>, vector<8x8x7xf32>
    %cst_548 = arith.constant dense<0.000000e+00> : vector<8x8xf32>
    %905 = vector.multi_reduction <add>, %904, %cst_548 [2] : vector<8x8x7xf32> to vector<8x8xf32>
    %c0_549 = arith.constant 0 : index
    %c0_550 = arith.constant 0 : index
    %c0_551 = arith.constant 0 : index
    %906 = vector.load %arg3[%c0_549, %c0_550, %c0_551] : memref<8x8x7xf32, #tpu.memory_space<vmem>>, vector<8x8x7xf32>
    %cst_552 = arith.constant 0.000000e+00 : f32
    %907 = vector.broadcast %cst_552 : f32 to vector<8x8x7xf32>
    %908 = arith.cmpf oeq, %906, %907 : vector<8x8x7xf32>
    %c0_553 = arith.constant 0 : index
    %c0_554 = arith.constant 0 : index
    %909 = vector.load %arg4[%c0_553, %c0_554] : memref<8x8xf32, #tpu.memory_space<vmem>>, vector<8x8xf32>
    %910 = vector.shape_cast %909 : vector<8x8xf32> to vector<8x8x1xf32>
    %cst_555 = arith.constant 1.000000e+00 : f32
    %911 = vector.broadcast %cst_555 : f32 to vector<8x8x1xf32>
    %912 = arith.cmpf oeq, %910, %911 : vector<8x8x1xf32>
    %913 = vector.broadcast %912 : vector<8x8x1xi1> to vector<8x8x7xi1>
    %914 = arith.andi %908, %913 : vector<8x8x7xi1>
    %cst_556 = arith.constant 0xFF800000 : f32
    %915 = vector.broadcast %cst_556 : f32 to vector<8x8x7xf32>
    %916 = arith.select %914, %915, %895 : vector<8x8x7xi1>, vector<8x8x7xf32>
    %cst_557 = arith.constant 0xFF800000 : f32
    %917 = vector.broadcast %cst_557 : f32 to vector<8x8x7xf32>
    %918 = arith.select %914, %917, %897 : vector<8x8x7xi1>, vector<8x8x7xf32>
    %cst_558 = arith.constant dense<0xFF800000> : vector<8x8xf32>
    %919 = vector.multi_reduction <maximumf>, %918, %cst_558 [2] : vector<8x8x7xf32> to vector<8x8xf32>
    %920 = vector.shape_cast %919 : vector<8x8xf32> to vector<8x8x1xf32>
    %921 = vector.broadcast %920 : vector<8x8x1xf32> to vector<8x8x7xf32>
    %922 = arith.cmpf oeq, %918, %921 : vector<8x8x7xf32>
    %c7_i32_559 = arith.constant 7 : i32
    %923 = vector.broadcast %c7_i32_559 : i32 to vector<8x8x7xi32>
    %924 = arith.select %922, %898, %923 : vector<8x8x7xi1>, vector<8x8x7xi32>
    %cst_560 = arith.constant dense<2147483647> : vector<8x8xi32>
    %925 = vector.multi_reduction <minsi>, %924, %cst_560 [2] : vector<8x8x7xi32> to vector<8x8xi32>
    %926 = vector.shape_cast %925 : vector<8x8xi32> to vector<8x8x1xi32>
    %927 = vector.broadcast %926 : vector<8x8x1xi32> to vector<8x8x7xi32>
    %928 = arith.cmpi eq, %898, %927 : vector<8x8x7xi32>
    %cst_561 = arith.constant 0.000000e+00 : f32
    %929 = vector.broadcast %cst_561 : f32 to vector<8x8x7xf32>
    %930 = arith.select %928, %916, %929 : vector<8x8x7xi1>, vector<8x8x7xf32>
    %cst_562 = arith.constant dense<0.000000e+00> : vector<8x8xf32>
    %931 = vector.multi_reduction <add>, %930, %cst_562 [2] : vector<8x8x7xf32> to vector<8x8xf32>
    %c0_563 = arith.constant 0 : index
    %c0_564 = arith.constant 0 : index
    %932 = vector.load %arg21[%c0_563, %c0_564] : memref<8x8xf32, #tpu.memory_space<vmem>>, vector<8x8xf32>
    tpu.vector_store %arg21[%c0_563, %c0_564], %905 {strides = array<i32>} : memref<8x8xf32, #tpu.memory_space<vmem>>, vector<8x8xf32>,
    %c0_565 = arith.constant 0 : index
    %c0_566 = arith.constant 0 : index
    %933 = vector.load %arg22[%c0_565, %c0_566] : memref<8x8xf32, #tpu.memory_space<vmem>>, vector<8x8xf32>
    tpu.vector_store %arg22[%c0_565, %c0_566], %931 {strides = array<i32>} : memref<8x8xf32, #tpu.memory_space<vmem>>, vector<8x8xf32>,
    %cst_567 = arith.constant 1.000000e+00 : f32
    %934 = vector.broadcast %cst_567 : f32 to vector<1x1xf32>
    %935 = vector.shape_cast %931 : vector<8x8xf32> to vector<1x8x8xf32>
    %cst_568 = arith.constant dense<0x7F800000> : vector<1xf32>
    %936 = vector.multi_reduction <minimumf>, %935, %cst_568 [1, 2] : vector<1x8x8xf32> to vector<1xf32>
    %937 = vector.shape_cast %936 : vector<1xf32> to vector<1x1x1xf32>
    %938 = vector.extract %937[0, 0, 0] : f32 from vector<1x1x1xf32>
    %939 = vector.broadcast %938 : f32 to vector<1x1xf32>
    %940 = arith.mulf %934, %939 : vector<1x1xf32>
    %c0_569 = arith.constant 0 : index
    %c0_570 = arith.constant 0 : index
    %941 = vector.load %arg23[%c0_569, %c0_570] : memref<1x1xf32, #tpu.memory_space<vmem>>, vector<1x1xf32>
    tpu.vector_store %arg23[%c0_569, %c0_570], %940 {strides = array<i32>} : memref<1x1xf32, #tpu.memory_space<vmem>>, vector<1x1xf32>,
    return
  }
}

module attributes {stable_mosaic.version = 11 : i64} {
  func.func @_mix_td_kernel(%arg0: memref<3x16x1xf32, #tpu.memory_space<vmem>>, %arg1: memref<3x16x1xf32, #tpu.memory_space<vmem>>, %arg2: memref<16x48xf32, #tpu.memory_space<vmem>>, %arg3: memref<16x48xf32, #tpu.memory_space<vmem>>, %arg4: memref<16x3xf32, #tpu.memory_space<vmem>>, %arg5: memref<16x3xf32, #tpu.memory_space<vmem>>, %arg6: memref<16x3xf32, #tpu.memory_space<vmem>>, %arg7: memref<2x3x48x32xf32, #tpu.memory_space<vmem>>, %arg8: memref<2x3x1x32xf32, #tpu.memory_space<vmem>>, %arg9: memref<2x48x32xf32, #tpu.memory_space<vmem>>, %arg10: memref<2x1x32xf32, #tpu.memory_space<vmem>>, %arg11: memref<2x48x32xf32, #tpu.memory_space<vmem>>, %arg12: memref<2x1x32xf32, #tpu.memory_space<vmem>>, %arg13: memref<2x48x32xf32, #tpu.memory_space<vmem>>, %arg14: memref<2x1x32xf32, #tpu.memory_space<vmem>>, %arg15: memref<2x32x1xf32, #tpu.memory_space<vmem>>, %arg16: memref<2x1x1xf32, #tpu.memory_space<vmem>>, %arg17: memref<1x1xf32, #tpu.memory_space<vmem>>, %arg18: memref<16x3xf32, #tpu.memory_space<vmem>>, %arg19: memref<16x1xf32, #tpu.memory_space<vmem>>, %arg20: memref<16x3xf32, #tpu.memory_space<vmem>>) attributes {dimension_semantics = [], scalar_prefetch = 0 : i64, scratch_operands = 0 : i64, tpu.core_type = #tpu.core_type<tc>} {
    %c0 = arith.constant 0 : index
    %c0_0 = arith.constant 0 : index
    %0 = vector.load %arg2[%c0, %c0_0] : memref<16x48xf32, #tpu.memory_space<vmem>>, vector<16x48xf32>
    %c0_1 = arith.constant 0 : index
    %c0_2 = arith.constant 0 : index
    %c0_3 = arith.constant 0 : index
    %1 = vector.load %arg9[%c0_1, %c0_2, %c0_3] : memref<2x48x32xf32, #tpu.memory_space<vmem>>, vector<1x48x32xf32>
    %2 = vector.shape_cast %1 : vector<1x48x32xf32> to vector<48x32xf32>
    %cst = arith.constant dense<0.000000e+00> : vector<16x32xf32>
    %3 = tpu.matmul %0, %2, %cst {dimension_numbers = #tpu.dot_dimension_numbers<[1], [0], [0], [1], [0, 0, 1, 1], [], []>} : vector<16x48xf32>, vector<48x32xf32>, vector<16x32xf32> -> vector<16x32xf32>
    %c0_4 = arith.constant 0 : index
    %c0_5 = arith.constant 0 : index
    %c0_6 = arith.constant 0 : index
    %4 = vector.load %arg10[%c0_4, %c0_5, %c0_6] : memref<2x1x32xf32, #tpu.memory_space<vmem>>, vector<1x1x32xf32>
    %5 = vector.shape_cast %4 : vector<1x1x32xf32> to vector<1x32xf32>
    %6 = vector.broadcast %5 : vector<1x32xf32> to vector<16x32xf32>
    %7 = arith.addf %3, %6 : vector<16x32xf32>
    %c0_7 = arith.constant 0 : index
    %c0_8 = arith.constant 0 : index
    %c0_9 = arith.constant 0 : index
    %c0_10 = arith.constant 0 : index
    %8 = vector.load %arg7[%c0_7, %c0_8, %c0_9, %c0_10] : memref<2x3x48x32xf32, #tpu.memory_space<vmem>>, vector<1x1x48x32xf32>
    %9 = vector.shape_cast %8 : vector<1x1x48x32xf32> to vector<48x32xf32>
    %cst_11 = arith.constant dense<0.000000e+00> : vector<16x32xf32>
    %10 = tpu.matmul %0, %9, %cst_11 {dimension_numbers = #tpu.dot_dimension_numbers<[1], [0], [0], [1], [0, 0, 1, 1], [], []>} : vector<16x48xf32>, vector<48x32xf32>, vector<16x32xf32> -> vector<16x32xf32>
    %c0_12 = arith.constant 0 : index
    %c0_13 = arith.constant 0 : index
    %c0_14 = arith.constant 0 : index
    %c0_15 = arith.constant 0 : index
    %11 = vector.load %arg8[%c0_12, %c0_13, %c0_14, %c0_15] : memref<2x3x1x32xf32, #tpu.memory_space<vmem>>, vector<1x1x1x32xf32>
    %12 = vector.shape_cast %11 : vector<1x1x1x32xf32> to vector<1x32xf32>
    %13 = vector.broadcast %12 : vector<1x32xf32> to vector<16x32xf32>
    %14 = arith.addf %10, %13 : vector<16x32xf32>
    %15 = math.absf %14 : vector<16x32xf32>
    %c0_16 = arith.constant 0 : index
    %c0_17 = arith.constant 0 : index
    %c0_18 = arith.constant 0 : index
    %16 = vector.load %arg0[%c0_16, %c0_17, %c0_18] : memref<3x16x1xf32, #tpu.memory_space<vmem>>, vector<1x16x1xf32>
    %17 = vector.shape_cast %16 : vector<1x16x1xf32> to vector<16x1xf32>
    %18 = vector.broadcast %17 : vector<16x1xf32> to vector<16x32xf32>
    %19 = arith.mulf %18, %15 : vector<16x32xf32>
    %20 = arith.addf %7, %19 : vector<16x32xf32>
    %c0_19 = arith.constant 0 : index
    %c1 = arith.constant 1 : index
    %c0_20 = arith.constant 0 : index
    %c0_21 = arith.constant 0 : index
    %21 = vector.load %arg7[%c0_19, %c1, %c0_20, %c0_21] : memref<2x3x48x32xf32, #tpu.memory_space<vmem>>, vector<1x1x48x32xf32>
    %22 = vector.shape_cast %21 : vector<1x1x48x32xf32> to vector<48x32xf32>
    %cst_22 = arith.constant dense<0.000000e+00> : vector<16x32xf32>
    %23 = tpu.matmul %0, %22, %cst_22 {dimension_numbers = #tpu.dot_dimension_numbers<[1], [0], [0], [1], [0, 0, 1, 1], [], []>} : vector<16x48xf32>, vector<48x32xf32>, vector<16x32xf32> -> vector<16x32xf32>
    %c0_23 = arith.constant 0 : index
    %c1_24 = arith.constant 1 : index
    %c0_25 = arith.constant 0 : index
    %c0_26 = arith.constant 0 : index
    %24 = vector.load %arg8[%c0_23, %c1_24, %c0_25, %c0_26] : memref<2x3x1x32xf32, #tpu.memory_space<vmem>>, vector<1x1x1x32xf32>
    %25 = vector.shape_cast %24 : vector<1x1x1x32xf32> to vector<1x32xf32>
    %26 = vector.broadcast %25 : vector<1x32xf32> to vector<16x32xf32>
    %27 = arith.addf %23, %26 : vector<16x32xf32>
    %28 = math.absf %27 : vector<16x32xf32>
    %c1_27 = arith.constant 1 : index
    %c0_28 = arith.constant 0 : index
    %c0_29 = arith.constant 0 : index
    %29 = vector.load %arg0[%c1_27, %c0_28, %c0_29] : memref<3x16x1xf32, #tpu.memory_space<vmem>>, vector<1x16x1xf32>
    %30 = vector.shape_cast %29 : vector<1x16x1xf32> to vector<16x1xf32>
    %31 = vector.broadcast %30 : vector<16x1xf32> to vector<16x32xf32>
    %32 = arith.mulf %31, %28 : vector<16x32xf32>
    %33 = arith.addf %20, %32 : vector<16x32xf32>
    %c0_30 = arith.constant 0 : index
    %c2 = arith.constant 2 : index
    %c0_31 = arith.constant 0 : index
    %c0_32 = arith.constant 0 : index
    %34 = vector.load %arg7[%c0_30, %c2, %c0_31, %c0_32] : memref<2x3x48x32xf32, #tpu.memory_space<vmem>>, vector<1x1x48x32xf32>
    %35 = vector.shape_cast %34 : vector<1x1x48x32xf32> to vector<48x32xf32>
    %cst_33 = arith.constant dense<0.000000e+00> : vector<16x32xf32>
    %36 = tpu.matmul %0, %35, %cst_33 {dimension_numbers = #tpu.dot_dimension_numbers<[1], [0], [0], [1], [0, 0, 1, 1], [], []>} : vector<16x48xf32>, vector<48x32xf32>, vector<16x32xf32> -> vector<16x32xf32>
    %c0_34 = arith.constant 0 : index
    %c2_35 = arith.constant 2 : index
    %c0_36 = arith.constant 0 : index
    %c0_37 = arith.constant 0 : index
    %37 = vector.load %arg8[%c0_34, %c2_35, %c0_36, %c0_37] : memref<2x3x1x32xf32, #tpu.memory_space<vmem>>, vector<1x1x1x32xf32>
    %38 = vector.shape_cast %37 : vector<1x1x1x32xf32> to vector<1x32xf32>
    %39 = vector.broadcast %38 : vector<1x32xf32> to vector<16x32xf32>
    %40 = arith.addf %36, %39 : vector<16x32xf32>
    %41 = math.absf %40 : vector<16x32xf32>
    %c2_38 = arith.constant 2 : index
    %c0_39 = arith.constant 0 : index
    %c0_40 = arith.constant 0 : index
    %42 = vector.load %arg0[%c2_38, %c0_39, %c0_40] : memref<3x16x1xf32, #tpu.memory_space<vmem>>, vector<1x16x1xf32>
    %43 = vector.shape_cast %42 : vector<1x16x1xf32> to vector<16x1xf32>
    %44 = vector.broadcast %43 : vector<16x1xf32> to vector<16x32xf32>
    %45 = arith.mulf %44, %41 : vector<16x32xf32>
    %46 = arith.addf %33, %45 : vector<16x32xf32>
    %cst_41 = arith.constant 0.000000e+00 : f32
    %47 = vector.broadcast %cst_41 : f32 to vector<16x32xf32>
    %48 = arith.cmpf ogt, %46, %47 : vector<16x32xf32>
    %49 = math.exp %46 : vector<16x32xf32>
    %cst_42 = arith.constant 1.000000e+00 : f32
    %50 = vector.broadcast %cst_42 : f32 to vector<16x32xf32>
    %51 = arith.subf %49, %50 : vector<16x32xf32>
    %52 = arith.select %48, %46, %51 : vector<16x32xi1>, vector<16x32xf32>
    %c0_43 = arith.constant 0 : index
    %c0_44 = arith.constant 0 : index
    %c0_45 = arith.constant 0 : index
    %53 = vector.load %arg11[%c0_43, %c0_44, %c0_45] : memref<2x48x32xf32, #tpu.memory_space<vmem>>, vector<1x48x32xf32>
    %54 = vector.shape_cast %53 : vector<1x48x32xf32> to vector<48x32xf32>
    %cst_46 = arith.constant dense<0.000000e+00> : vector<16x32xf32>
    %55 = tpu.matmul %0, %54, %cst_46 {dimension_numbers = #tpu.dot_dimension_numbers<[1], [0], [0], [1], [0, 0, 1, 1], [], []>} : vector<16x48xf32>, vector<48x32xf32>, vector<16x32xf32> -> vector<16x32xf32>
    %c0_47 = arith.constant 0 : index
    %c0_48 = arith.constant 0 : index
    %c0_49 = arith.constant 0 : index
    %56 = vector.load %arg12[%c0_47, %c0_48, %c0_49] : memref<2x1x32xf32, #tpu.memory_space<vmem>>, vector<1x1x32xf32>
    %57 = vector.shape_cast %56 : vector<1x1x32xf32> to vector<1x32xf32>
    %58 = vector.broadcast %57 : vector<1x32xf32> to vector<16x32xf32>
    %59 = arith.addf %55, %58 : vector<16x32xf32>
    %60 = math.absf %59 : vector<16x32xf32>
    %c0_50 = arith.constant 0 : index
    %c0_51 = arith.constant 0 : index
    %c0_52 = arith.constant 0 : index
    %61 = vector.load %arg13[%c0_50, %c0_51, %c0_52] : memref<2x48x32xf32, #tpu.memory_space<vmem>>, vector<1x48x32xf32>
    %62 = vector.shape_cast %61 : vector<1x48x32xf32> to vector<48x32xf32>
    %cst_53 = arith.constant dense<0.000000e+00> : vector<16x32xf32>
    %63 = tpu.matmul %0, %62, %cst_53 {dimension_numbers = #tpu.dot_dimension_numbers<[1], [0], [0], [1], [0, 0, 1, 1], [], []>} : vector<16x48xf32>, vector<48x32xf32>, vector<16x32xf32> -> vector<16x32xf32>
    %c0_54 = arith.constant 0 : index
    %c0_55 = arith.constant 0 : index
    %c0_56 = arith.constant 0 : index
    %64 = vector.load %arg14[%c0_54, %c0_55, %c0_56] : memref<2x1x32xf32, #tpu.memory_space<vmem>>, vector<1x1x32xf32>
    %65 = vector.shape_cast %64 : vector<1x1x32xf32> to vector<1x32xf32>
    %66 = vector.broadcast %65 : vector<1x32xf32> to vector<16x32xf32>
    %67 = arith.addf %63, %66 : vector<16x32xf32>
    %cst_57 = arith.constant 0.000000e+00 : f32
    %68 = vector.broadcast %cst_57 : f32 to vector<16x32xf32>
    %69 = arith.maximumf %67, %68 : vector<16x32xf32>
    %c0_58 = arith.constant 0 : index
    %c0_59 = arith.constant 0 : index
    %c0_60 = arith.constant 0 : index
    %70 = vector.load %arg15[%c0_58, %c0_59, %c0_60] : memref<2x32x1xf32, #tpu.memory_space<vmem>>, vector<1x32x1xf32>
    %71 = vector.shape_cast %70 : vector<1x32x1xf32> to vector<32x1xf32>
    %cst_61 = arith.constant dense<0.000000e+00> : vector<16x1xf32>
    %72 = tpu.matmul %69, %71, %cst_61 {dimension_numbers = #tpu.dot_dimension_numbers<[1], [0], [0], [1], [0, 0, 1, 1], [], []>} : vector<16x32xf32>, vector<32x1xf32>, vector<16x1xf32> -> vector<16x1xf32>
    %c0_62 = arith.constant 0 : index
    %c0_63 = arith.constant 0 : index
    %c0_64 = arith.constant 0 : index
    %73 = vector.load %arg16[%c0_62, %c0_63, %c0_64] : memref<2x1x1xf32, #tpu.memory_space<vmem>>, vector<1x1x1xf32>
    %74 = vector.shape_cast %73 : vector<1x1x1xf32> to vector<1x1xf32>
    %75 = vector.broadcast %74 : vector<1x1xf32> to vector<16x1xf32>
    %76 = arith.addf %72, %75 : vector<16x1xf32>
    %77 = arith.mulf %52, %60 : vector<16x32xf32>
    %cst_65 = arith.constant dense<0.000000e+00> : vector<16xf32>
    %78 = vector.multi_reduction <add>, %77, %cst_65 [1] : vector<16x32xf32> to vector<16xf32>
    %79 = vector.shape_cast %78 : vector<16xf32> to vector<16x1xf32>
    %80 = arith.addf %79, %76 : vector<16x1xf32>
    %c0_66 = arith.constant 0 : index
    %c0_67 = arith.constant 0 : index
    %81 = vector.load %arg3[%c0_66, %c0_67] : memref<16x48xf32, #tpu.memory_space<vmem>>, vector<16x48xf32>
    %c1_68 = arith.constant 1 : index
    %c0_69 = arith.constant 0 : index
    %c0_70 = arith.constant 0 : index
    %82 = vector.load %arg9[%c1_68, %c0_69, %c0_70] : memref<2x48x32xf32, #tpu.memory_space<vmem>>, vector<1x48x32xf32>
    %83 = vector.shape_cast %82 : vector<1x48x32xf32> to vector<48x32xf32>
    %cst_71 = arith.constant dense<0.000000e+00> : vector<16x32xf32>
    %84 = tpu.matmul %81, %83, %cst_71 {dimension_numbers = #tpu.dot_dimension_numbers<[1], [0], [0], [1], [0, 0, 1, 1], [], []>} : vector<16x48xf32>, vector<48x32xf32>, vector<16x32xf32> -> vector<16x32xf32>
    %c1_72 = arith.constant 1 : index
    %c0_73 = arith.constant 0 : index
    %c0_74 = arith.constant 0 : index
    %85 = vector.load %arg10[%c1_72, %c0_73, %c0_74] : memref<2x1x32xf32, #tpu.memory_space<vmem>>, vector<1x1x32xf32>
    %86 = vector.shape_cast %85 : vector<1x1x32xf32> to vector<1x32xf32>
    %87 = vector.broadcast %86 : vector<1x32xf32> to vector<16x32xf32>
    %88 = arith.addf %84, %87 : vector<16x32xf32>
    %c1_75 = arith.constant 1 : index
    %c0_76 = arith.constant 0 : index
    %c0_77 = arith.constant 0 : index
    %c0_78 = arith.constant 0 : index
    %89 = vector.load %arg7[%c1_75, %c0_76, %c0_77, %c0_78] : memref<2x3x48x32xf32, #tpu.memory_space<vmem>>, vector<1x1x48x32xf32>
    %90 = vector.shape_cast %89 : vector<1x1x48x32xf32> to vector<48x32xf32>
    %cst_79 = arith.constant dense<0.000000e+00> : vector<16x32xf32>
    %91 = tpu.matmul %81, %90, %cst_79 {dimension_numbers = #tpu.dot_dimension_numbers<[1], [0], [0], [1], [0, 0, 1, 1], [], []>} : vector<16x48xf32>, vector<48x32xf32>, vector<16x32xf32> -> vector<16x32xf32>
    %c1_80 = arith.constant 1 : index
    %c0_81 = arith.constant 0 : index
    %c0_82 = arith.constant 0 : index
    %c0_83 = arith.constant 0 : index
    %92 = vector.load %arg8[%c1_80, %c0_81, %c0_82, %c0_83] : memref<2x3x1x32xf32, #tpu.memory_space<vmem>>, vector<1x1x1x32xf32>
    %93 = vector.shape_cast %92 : vector<1x1x1x32xf32> to vector<1x32xf32>
    %94 = vector.broadcast %93 : vector<1x32xf32> to vector<16x32xf32>
    %95 = arith.addf %91, %94 : vector<16x32xf32>
    %96 = math.absf %95 : vector<16x32xf32>
    %c0_84 = arith.constant 0 : index
    %c0_85 = arith.constant 0 : index
    %c0_86 = arith.constant 0 : index
    %97 = vector.load %arg1[%c0_84, %c0_85, %c0_86] : memref<3x16x1xf32, #tpu.memory_space<vmem>>, vector<1x16x1xf32>
    %98 = vector.shape_cast %97 : vector<1x16x1xf32> to vector<16x1xf32>
    %99 = vector.broadcast %98 : vector<16x1xf32> to vector<16x32xf32>
    %100 = arith.mulf %99, %96 : vector<16x32xf32>
    %101 = arith.addf %88, %100 : vector<16x32xf32>
    %c1_87 = arith.constant 1 : index
    %c1_88 = arith.constant 1 : index
    %c0_89 = arith.constant 0 : index
    %c0_90 = arith.constant 0 : index
    %102 = vector.load %arg7[%c1_87, %c1_88, %c0_89, %c0_90] : memref<2x3x48x32xf32, #tpu.memory_space<vmem>>, vector<1x1x48x32xf32>
    %103 = vector.shape_cast %102 : vector<1x1x48x32xf32> to vector<48x32xf32>
    %cst_91 = arith.constant dense<0.000000e+00> : vector<16x32xf32>
    %104 = tpu.matmul %81, %103, %cst_91 {dimension_numbers = #tpu.dot_dimension_numbers<[1], [0], [0], [1], [0, 0, 1, 1], [], []>} : vector<16x48xf32>, vector<48x32xf32>, vector<16x32xf32> -> vector<16x32xf32>
    %c1_92 = arith.constant 1 : index
    %c1_93 = arith.constant 1 : index
    %c0_94 = arith.constant 0 : index
    %c0_95 = arith.constant 0 : index
    %105 = vector.load %arg8[%c1_92, %c1_93, %c0_94, %c0_95] : memref<2x3x1x32xf32, #tpu.memory_space<vmem>>, vector<1x1x1x32xf32>
    %106 = vector.shape_cast %105 : vector<1x1x1x32xf32> to vector<1x32xf32>
    %107 = vector.broadcast %106 : vector<1x32xf32> to vector<16x32xf32>
    %108 = arith.addf %104, %107 : vector<16x32xf32>
    %109 = math.absf %108 : vector<16x32xf32>
    %c1_96 = arith.constant 1 : index
    %c0_97 = arith.constant 0 : index
    %c0_98 = arith.constant 0 : index
    %110 = vector.load %arg1[%c1_96, %c0_97, %c0_98] : memref<3x16x1xf32, #tpu.memory_space<vmem>>, vector<1x16x1xf32>
    %111 = vector.shape_cast %110 : vector<1x16x1xf32> to vector<16x1xf32>
    %112 = vector.broadcast %111 : vector<16x1xf32> to vector<16x32xf32>
    %113 = arith.mulf %112, %109 : vector<16x32xf32>
    %114 = arith.addf %101, %113 : vector<16x32xf32>
    %c1_99 = arith.constant 1 : index
    %c2_100 = arith.constant 2 : index
    %c0_101 = arith.constant 0 : index
    %c0_102 = arith.constant 0 : index
    %115 = vector.load %arg7[%c1_99, %c2_100, %c0_101, %c0_102] : memref<2x3x48x32xf32, #tpu.memory_space<vmem>>, vector<1x1x48x32xf32>
    %116 = vector.shape_cast %115 : vector<1x1x48x32xf32> to vector<48x32xf32>
    %cst_103 = arith.constant dense<0.000000e+00> : vector<16x32xf32>
    %117 = tpu.matmul %81, %116, %cst_103 {dimension_numbers = #tpu.dot_dimension_numbers<[1], [0], [0], [1], [0, 0, 1, 1], [], []>} : vector<16x48xf32>, vector<48x32xf32>, vector<16x32xf32> -> vector<16x32xf32>
    %c1_104 = arith.constant 1 : index
    %c2_105 = arith.constant 2 : index
    %c0_106 = arith.constant 0 : index
    %c0_107 = arith.constant 0 : index
    %118 = vector.load %arg8[%c1_104, %c2_105, %c0_106, %c0_107] : memref<2x3x1x32xf32, #tpu.memory_space<vmem>>, vector<1x1x1x32xf32>
    %119 = vector.shape_cast %118 : vector<1x1x1x32xf32> to vector<1x32xf32>
    %120 = vector.broadcast %119 : vector<1x32xf32> to vector<16x32xf32>
    %121 = arith.addf %117, %120 : vector<16x32xf32>
    %122 = math.absf %121 : vector<16x32xf32>
    %c2_108 = arith.constant 2 : index
    %c0_109 = arith.constant 0 : index
    %c0_110 = arith.constant 0 : index
    %123 = vector.load %arg1[%c2_108, %c0_109, %c0_110] : memref<3x16x1xf32, #tpu.memory_space<vmem>>, vector<1x16x1xf32>
    %124 = vector.shape_cast %123 : vector<1x16x1xf32> to vector<16x1xf32>
    %125 = vector.broadcast %124 : vector<16x1xf32> to vector<16x32xf32>
    %126 = arith.mulf %125, %122 : vector<16x32xf32>
    %127 = arith.addf %114, %126 : vector<16x32xf32>
    %cst_111 = arith.constant 0.000000e+00 : f32
    %128 = vector.broadcast %cst_111 : f32 to vector<16x32xf32>
    %129 = arith.cmpf ogt, %127, %128 : vector<16x32xf32>
    %130 = math.exp %127 : vector<16x32xf32>
    %cst_112 = arith.constant 1.000000e+00 : f32
    %131 = vector.broadcast %cst_112 : f32 to vector<16x32xf32>
    %132 = arith.subf %130, %131 : vector<16x32xf32>
    %133 = arith.select %129, %127, %132 : vector<16x32xi1>, vector<16x32xf32>
    %c1_113 = arith.constant 1 : index
    %c0_114 = arith.constant 0 : index
    %c0_115 = arith.constant 0 : index
    %134 = vector.load %arg11[%c1_113, %c0_114, %c0_115] : memref<2x48x32xf32, #tpu.memory_space<vmem>>, vector<1x48x32xf32>
    %135 = vector.shape_cast %134 : vector<1x48x32xf32> to vector<48x32xf32>
    %cst_116 = arith.constant dense<0.000000e+00> : vector<16x32xf32>
    %136 = tpu.matmul %81, %135, %cst_116 {dimension_numbers = #tpu.dot_dimension_numbers<[1], [0], [0], [1], [0, 0, 1, 1], [], []>} : vector<16x48xf32>, vector<48x32xf32>, vector<16x32xf32> -> vector<16x32xf32>
    %c1_117 = arith.constant 1 : index
    %c0_118 = arith.constant 0 : index
    %c0_119 = arith.constant 0 : index
    %137 = vector.load %arg12[%c1_117, %c0_118, %c0_119] : memref<2x1x32xf32, #tpu.memory_space<vmem>>, vector<1x1x32xf32>
    %138 = vector.shape_cast %137 : vector<1x1x32xf32> to vector<1x32xf32>
    %139 = vector.broadcast %138 : vector<1x32xf32> to vector<16x32xf32>
    %140 = arith.addf %136, %139 : vector<16x32xf32>
    %141 = math.absf %140 : vector<16x32xf32>
    %c1_120 = arith.constant 1 : index
    %c0_121 = arith.constant 0 : index
    %c0_122 = arith.constant 0 : index
    %142 = vector.load %arg13[%c1_120, %c0_121, %c0_122] : memref<2x48x32xf32, #tpu.memory_space<vmem>>, vector<1x48x32xf32>
    %143 = vector.shape_cast %142 : vector<1x48x32xf32> to vector<48x32xf32>
    %cst_123 = arith.constant dense<0.000000e+00> : vector<16x32xf32>
    %144 = tpu.matmul %81, %143, %cst_123 {dimension_numbers = #tpu.dot_dimension_numbers<[1], [0], [0], [1], [0, 0, 1, 1], [], []>} : vector<16x48xf32>, vector<48x32xf32>, vector<16x32xf32> -> vector<16x32xf32>
    %c1_124 = arith.constant 1 : index
    %c0_125 = arith.constant 0 : index
    %c0_126 = arith.constant 0 : index
    %145 = vector.load %arg14[%c1_124, %c0_125, %c0_126] : memref<2x1x32xf32, #tpu.memory_space<vmem>>, vector<1x1x32xf32>
    %146 = vector.shape_cast %145 : vector<1x1x32xf32> to vector<1x32xf32>
    %147 = vector.broadcast %146 : vector<1x32xf32> to vector<16x32xf32>
    %148 = arith.addf %144, %147 : vector<16x32xf32>
    %cst_127 = arith.constant 0.000000e+00 : f32
    %149 = vector.broadcast %cst_127 : f32 to vector<16x32xf32>
    %150 = arith.maximumf %148, %149 : vector<16x32xf32>
    %c1_128 = arith.constant 1 : index
    %c0_129 = arith.constant 0 : index
    %c0_130 = arith.constant 0 : index
    %151 = vector.load %arg15[%c1_128, %c0_129, %c0_130] : memref<2x32x1xf32, #tpu.memory_space<vmem>>, vector<1x32x1xf32>
    %152 = vector.shape_cast %151 : vector<1x32x1xf32> to vector<32x1xf32>
    %cst_131 = arith.constant dense<0.000000e+00> : vector<16x1xf32>
    %153 = tpu.matmul %150, %152, %cst_131 {dimension_numbers = #tpu.dot_dimension_numbers<[1], [0], [0], [1], [0, 0, 1, 1], [], []>} : vector<16x32xf32>, vector<32x1xf32>, vector<16x1xf32> -> vector<16x1xf32>
    %c1_132 = arith.constant 1 : index
    %c0_133 = arith.constant 0 : index
    %c0_134 = arith.constant 0 : index
    %154 = vector.load %arg16[%c1_132, %c0_133, %c0_134] : memref<2x1x1xf32, #tpu.memory_space<vmem>>, vector<1x1x1xf32>
    %155 = vector.shape_cast %154 : vector<1x1x1xf32> to vector<1x1xf32>
    %156 = vector.broadcast %155 : vector<1x1xf32> to vector<16x1xf32>
    %157 = arith.addf %153, %156 : vector<16x1xf32>
    %158 = arith.mulf %133, %141 : vector<16x32xf32>
    %cst_135 = arith.constant dense<0.000000e+00> : vector<16xf32>
    %159 = vector.multi_reduction <add>, %158, %cst_135 [1] : vector<16x32xf32> to vector<16xf32>
    %160 = vector.shape_cast %159 : vector<16xf32> to vector<16x1xf32>
    %161 = arith.addf %160, %157 : vector<16x1xf32>
    %c0_136 = arith.constant 0 : index
    %c0_137 = arith.constant 0 : index
    %162 = vector.load %arg4[%c0_136, %c0_137] : memref<16x3xf32, #tpu.memory_space<vmem>>, vector<16x3xf32>
    %c0_138 = arith.constant 0 : index
    %c0_139 = arith.constant 0 : index
    %163 = vector.load %arg5[%c0_138, %c0_139] : memref<16x3xf32, #tpu.memory_space<vmem>>, vector<16x3xf32>
    %cst_140 = arith.constant 1.000000e+00 : f32
    %164 = vector.broadcast %cst_140 : f32 to vector<16x3xf32>
    %165 = arith.subf %164, %163 : vector<16x3xf32>
    %cst_141 = arith.constant 9.900000e-01 : f32
    %166 = vector.broadcast %cst_141 : f32 to vector<16x3xf32>
    %167 = arith.mulf %166, %165 : vector<16x3xf32>
    %168 = vector.broadcast %161 : vector<16x1xf32> to vector<16x3xf32>
    %169 = arith.mulf %167, %168 : vector<16x3xf32>
    %170 = arith.addf %162, %169 : vector<16x3xf32>
    %171 = vector.broadcast %80 : vector<16x1xf32> to vector<16x3xf32>
    %172 = arith.subf %171, %170 : vector<16x3xf32>
    %c0_142 = arith.constant 0 : index
    %c0_143 = arith.constant 0 : index
    %173 = vector.load %arg6[%c0_142, %c0_143] : memref<16x3xf32, #tpu.memory_space<vmem>>, vector<16x3xf32>
    %174 = arith.mulf %172, %173 : vector<16x3xf32>
    %c0_144 = arith.constant 0 : index
    %c0_145 = arith.constant 0 : index
    %175 = vector.load %arg19[%c0_144, %c0_145] : memref<16x1xf32, #tpu.memory_space<vmem>>, vector<16x1xf32>
    tpu.vector_store %arg19[%c0_144, %c0_145], %80 {strides = array<i32>} : memref<16x1xf32, #tpu.memory_space<vmem>>, vector<16x1xf32>,
    %c0_146 = arith.constant 0 : index
    %c0_147 = arith.constant 0 : index
    %176 = vector.load %arg20[%c0_146, %c0_147] : memref<16x3xf32, #tpu.memory_space<vmem>>, vector<16x3xf32>
    tpu.vector_store %arg20[%c0_146, %c0_147], %170 {strides = array<i32>} : memref<16x3xf32, #tpu.memory_space<vmem>>, vector<16x3xf32>,
    %c0_148 = arith.constant 0 : index
    %c0_149 = arith.constant 0 : index
    %177 = vector.load %arg18[%c0_148, %c0_149] : memref<16x3xf32, #tpu.memory_space<vmem>>, vector<16x3xf32>
    tpu.vector_store %arg18[%c0_148, %c0_149], %174 {strides = array<i32>} : memref<16x3xf32, #tpu.memory_space<vmem>>, vector<16x3xf32>,
    %cst_150 = arith.constant 1.000000e+00 : f32
    %178 = vector.broadcast %cst_150 : f32 to vector<1x1xf32>
    %179 = arith.mulf %174, %174 : vector<16x3xf32>
    %180 = vector.shape_cast %179 : vector<16x3xf32> to vector<1x16x3xf32>
    %cst_151 = arith.constant dense<0.000000e+00> : vector<1xf32>
    %181 = vector.multi_reduction <add>, %180, %cst_151 [1, 2] : vector<1x16x3xf32> to vector<1xf32>
    %182 = vector.shape_cast %181 : vector<1xf32> to vector<1x1x1xf32>
    %183 = vector.extract %182[0, 0, 0] : f32 from vector<1x1x1xf32>
    %c0_152 = arith.constant 0 : index
    %c0_153 = arith.constant 0 : index
    %184 = vector.load %arg6[%c0_152, %c0_153] : memref<16x3xf32, #tpu.memory_space<vmem>>, vector<16x3xf32>
    %185 = vector.shape_cast %184 : vector<16x3xf32> to vector<1x16x3xf32>
    %cst_154 = arith.constant dense<0.000000e+00> : vector<1xf32>
    %186 = vector.multi_reduction <add>, %185, %cst_154 [1, 2] : vector<1x16x3xf32> to vector<1xf32>
    %187 = vector.shape_cast %186 : vector<1xf32> to vector<1x1x1xf32>
    %188 = vector.extract %187[0, 0, 0] : f32 from vector<1x1x1xf32>
    %189 = arith.divf %183, %188 : f32
    %190 = vector.broadcast %189 : f32 to vector<1x1xf32>
    %191 = arith.mulf %178, %190 : vector<1x1xf32>
    %c0_155 = arith.constant 0 : index
    %c0_156 = arith.constant 0 : index
    %192 = vector.load %arg17[%c0_155, %c0_156] : memref<1x1xf32, #tpu.memory_space<vmem>>, vector<1x1xf32>
    tpu.vector_store %arg17[%c0_155, %c0_156], %191 {strides = array<i32>} : memref<1x1xf32, #tpu.memory_space<vmem>>, vector<1x1xf32>,
    return
  }
}

</mosaic_0001>

<llo_original>
// kernel: qmix_loss_forward.3
$region0: #{qmix_loss_forward.3}
  #allocation0 [shape = 'u32[]', space=smem, size = 0x4, offset = 0x4, fixed_abs, tag = 'smem constant byte address 0x4 - core index']
  #allocation1 [shape = 'u32[72,128]{1,0:T(1,128)}', space=vmem, size = 0x9000, scoped, tag = 'internal scratch']
  %s0 = inlined_call_operand.vmem [shape: f32[3,16,1], index: 0, kind: input, shape index: {}]
  %s1 = inlined_call_operand.vmem [shape: f32[3,16,1], index: 1, kind: input, shape index: {}]
  %s2 = inlined_call_operand.vmem [shape: f32[16,48], index: 2, kind: input, shape index: {}]
  %s3 = inlined_call_operand.vmem [shape: f32[16,48], index: 3, kind: input, shape index: {}]
  %s4 = inlined_call_operand.vmem [shape: f32[16,3], index: 4, kind: input, shape index: {}]
  %s5 = inlined_call_operand.vmem [shape: f32[16,3], index: 5, kind: input, shape index: {}]
  %s6 = inlined_call_operand.vmem [shape: f32[16,3], index: 6, kind: input, shape index: {}]
  %s7 = inlined_call_operand.vmem [shape: f32[2,3,48,32], index: 7, kind: input, shape index: {}]
  %s8 = inlined_call_operand.vmem [shape: f32[2,3,1,32], index: 8, kind: input, shape index: {}]
  %s9 = inlined_call_operand.vmem [shape: f32[2,48,32], index: 9, kind: input, shape index: {}]
  %s10 = inlined_call_operand.vmem [shape: f32[2,1,32], index: 10, kind: input, shape index: {}]
  %s11 = inlined_call_operand.vmem [shape: f32[2,48,32], index: 11, kind: input, shape index: {}]
  %s12 = inlined_call_operand.vmem [shape: f32[2,1,32], index: 12, kind: input, shape index: {}]
  %s13 = inlined_call_operand.vmem [shape: f32[2,48,32], index: 13, kind: input, shape index: {}]
  %s14 = inlined_call_operand.vmem [shape: f32[2,1,32], index: 14, kind: input, shape index: {}]
  %s15 = inlined_call_operand.vmem [shape: f32[2,32,1], index: 15, kind: input, shape index: {}]
  %s16 = inlined_call_operand.vmem [shape: f32[2,1,1], index: 16, kind: input, shape index: {}]
  %s17 = inlined_call_operand.hbm [shape: f32[1,1], index: 17, kind: output, shape index: {0}]
  %s18 = inlined_call_operand.vmem [shape: f32[16,3], index: 18, kind: output, shape index: {1}]
  %s19 = inlined_call_operand.vmem [shape: f32[16,1], index: 19, kind: output, shape index: {2}]
  %s20 = inlined_call_operand.vmem [shape: f32[16,3], index: 20, kind: output, shape index: {3}]
  %21 = xla_tuple %s17, %s18, %s19, %s20
  %s22 = sld [smem:[#allocation0]]
  $region102: #{qmix_loss_forward.3} parent=0
    _
  %s24 = ssub.s32 1, %s22
  %s25 = scalar_select 0, %s24, %s22
  $region1: #{qmix_loss_forward.3} parent=0
    #allocation2 [shape = 'u8[512]{0}', space=vmem, size = 0x400, scoped, tag = 'output window, operand 0, single buffered']
    #allocation3 [shape = 's32[1]{0}', space=sflag, size = 0x4, scoped, tag = 'scoped memory for qmix_loss_forward.3']
    %26 = vsyncpa [#allocation3], 0
    // Predicated region
    $region2: #{qmix_loss_forward.3} parent=1 // pred_check
      _
    $region3: #{qmix_loss_forward.3} parent=1 // pred_check_branch
      %28 = sbr.rel (0) target = $region5
    $region4: #{qmix_loss_forward.3} parent=1 // pred_region
      _
    $region5: #{qmix_loss_forward.3} parent=1 // pred_fallthru
      _
    // Predicated region
    $region6: #{qmix_loss_forward.3} parent=1 // pred_check
      _
    $region7: #{qmix_loss_forward.3} parent=1 // pred_check_branch
      %30 = sbr.rel (0) target = $region9
    $region8: #{qmix_loss_forward.3} parent=1 // pred_region
      _
    $region9: #{qmix_loss_forward.3} parent=1 // pred_fallthru
      _
    // Predicated region
    $region10: #{qmix_loss_forward.3} parent=1 // pred_check
      _
    $region11: #{qmix_loss_forward.3} parent=1 // pred_check_branch
      %32 = sbr.rel (0) target = $region13
    $region12: #{qmix_loss_forward.3} parent=1 // pred_region
      _
    $region13: #{qmix_loss_forward.3} parent=1 // pred_fallthru
      _
    // Predicated region
    $region14: #{qmix_loss_forward.3} parent=1 // pred_check
      _
    $region15: #{qmix_loss_forward.3} parent=1 // pred_check_branch
      %34 = sbr.rel (0) target = $region17
    $region16: #{qmix_loss_forward.3} parent=1 // pred_region
      _
    $region17: #{qmix_loss_forward.3} parent=1 // pred_fallthru
      _
    // Predicated region
    $region18: #{qmix_loss_forward.3} parent=1 // pred_check
      _
    $region19: #{qmix_loss_forward.3} parent=1 // pred_check_branch
      %36 = sbr.rel (0) target = $region21
    $region20: #{qmix_loss_forward.3} parent=1 // pred_region
      _
    $region21: #{qmix_loss_forward.3} parent=1 // pred_fallthru
      _
    // Predicated region
    $region22: #{qmix_loss_forward.3} parent=1 // pred_check
      _
    $region23: #{qmix_loss_forward.3} parent=1 // pred_check_branch
      %38 = sbr.rel (0) target = $region25
    $region24: #{qmix_loss_forward.3} parent=1 // pred_region
      _
    $region25: #{qmix_loss_forward.3} parent=1 // pred_fallthru
      _
    // Predicated region
    $region26: #{qmix_loss_forward.3} parent=1 // pred_check
      _
    $region27: #{qmix_loss_forward.3} parent=1 // pred_check_branch
      %40 = sbr.rel (0) target = $region29
    $region28: #{qmix_loss_forward.3} parent=1 // pred_region
      _
    $region29: #{qmix_loss_forward.3} parent=1 // pred_fallthru
      _
    // Predicated region
    $region30: #{qmix_loss_forward.3} parent=1 // pred_check
      _
    $region31: #{qmix_loss_forward.3} parent=1 // pred_check_branch
      %42 = sbr.rel (0) target = $region33
    $region32: #{qmix_loss_forward.3} parent=1 // pred_region
      _
    $region33: #{qmix_loss_forward.3} parent=1 // pred_fallthru
      _
    // Predicated region
    $region34: #{qmix_loss_forward.3} parent=1 // pred_check
      _
    $region35: #{qmix_loss_forward.3} parent=1 // pred_check_branch
      %44 = sbr.rel (0) target = $region37
    $region36: #{qmix_loss_forward.3} parent=1 // pred_region
      _
    $region37: #{qmix_loss_forward.3} parent=1 // pred_fallthru
      _
    // Predicated region
    $region38: #{qmix_loss_forward.3} parent=1 // pred_check
      _
    $region39: #{qmix_loss_forward.3} parent=1 // pred_check_branch
      %46 = sbr.rel (0) target = $region41
    $region40: #{qmix_loss_forward.3} parent=1 // pred_region
      _
    $region41: #{qmix_loss_forward.3} parent=1 // pred_fallthru
      _
    // Predicated region
    $region42: #{qmix_loss_forward.3} parent=1 // pred_check
      _
    $region43: #{qmix_loss_forward.3} parent=1 // pred_check_branch
      %48 = sbr.rel (0) target = $region45
    $region44: #{qmix_loss_forward.3} parent=1 // pred_region
      _
    $region45: #{qmix_loss_forward.3} parent=1 // pred_fallthru
      _
    // Predicated region
    $region46: #{qmix_loss_forward.3} parent=1 // pred_check
      _
    $region47: #{qmix_loss_forward.3} parent=1 // pred_check_branch
      %50 = sbr.rel (0) target = $region49
    $region48: #{qmix_loss_forward.3} parent=1 // pred_region
      _
    $region49: #{qmix_loss_forward.3} parent=1 // pred_fallthru
      _
    // Predicated region
    $region50: #{qmix_loss_forward.3} parent=1 // pred_check
      _
    $region51: #{qmix_loss_forward.3} parent=1 // pred_check_branch
      %52 = sbr.rel (0) target = $region53
    $region52: #{qmix_loss_forward.3} parent=1 // pred_region
      _
    $region53: #{qmix_loss_forward.3} parent=1 // pred_fallthru
      _
    // Predicated region
    $region54: #{qmix_loss_forward.3} parent=1 // pred_check
      _
    $region55: #{qmix_loss_forward.3} parent=1 // pred_check_branch
      %54 = sbr.rel (0) target = $region57
    $region56: #{qmix_loss_forward.3} parent=1 // pred_region
      _
    $region57: #{qmix_loss_forward.3} parent=1 // pred_fallthru
      _
    // Predicated region
    $region58: #{qmix_loss_forward.3} parent=1 // pred_check
      _
    $region59: #{qmix_loss_forward.3} parent=1 // pred_check_branch
      %56 = sbr.rel (0) target = $region61
    $region60: #{qmix_loss_forward.3} parent=1 // pred_region
      _
    $region61: #{qmix_loss_forward.3} parent=1 // pred_fallthru
      _
    // Predicated region
    $region62: #{qmix_loss_forward.3} parent=1 // pred_check
      _
    $region63: #{qmix_loss_forward.3} parent=1 // pred_check_branch
      %58 = sbr.rel (0) target = $region65
    $region64: #{qmix_loss_forward.3} parent=1 // pred_region
      _
    $region65: #{qmix_loss_forward.3} parent=1 // pred_fallthru
      _
    // Predicated region
    $region66: #{qmix_loss_forward.3} parent=1 // pred_check
      _
    $region67: #{qmix_loss_forward.3} parent=1 // pred_check_branch
      %60 = sbr.rel (0) target = $region69
    $region68: #{qmix_loss_forward.3} parent=1 // pred_region
      _
    $region69: #{qmix_loss_forward.3} parent=1 // pred_fallthru
      _
    %v61 = vld [vmem:[%s2] sm:$0xff]
    %v62 = vld [vmem:[%s2 + $0x8] sm:$0xff]
    %v63 = vld [vmem:[%s9] sm:$0xff]
    %v64 = vld [vmem:[%s9 + $0x8] sm:$0xff]
    %v65 = vld [vmem:[%s9 + $0x10] sm:$0xff]
    %v66 = vld [vmem:[%s9 + $0x18] sm:$0xff]
    %v67 = vld [vmem:[%s9 + $0x20] sm:$0xff]
    %v68 = vld [vmem:[%s9 + $0x28] sm:$0xff]
    %v69 = vld [vmem:[%s10] sm:$0x1]
    %v71 = vperm.slane %v69, 0
    %vm73 = vcmask 392192
    %v75 = vsel %vm73, %v61, 0
    %v78 = vsel %vm73, %v62, 0
    %80 = vmatpush.msra.mxu0 0.0
    %81 = vmatpush.msra.mxu0 0.0
    %82 = vmatpush.msra.mxu0 0.0
    %83 = vmatpush.msra.mxu0 0.0
    %84 = vmatpush.msra.mxu0 0.0
    %85 = vmatpush.msra.mxu0 0.0
    %86 = vmatpush.msra.mxu0 0.0
    %87 = vmatpush.msra.mxu0 0.0
    %88 = vmatpush.msra.mxu0 0.0
    %89 = vmatpush.msra.mxu0 0.0
    %90 = vmatpush.msra.mxu0 %v68
    %91 = vmatpush.msra.mxu0 %v67
    %92 = vmatpush.msra.mxu0 %v66
    %93 = vmatpush.msra.mxu0 %v65
    %94 = vmatpush.msra.mxu0 %v64
    %95 = vmatpush.msra.mxu0 %v63
    %96 = vmatmul.f32.gmra.mxu0 %v75
    %v97 = vpop.f32.mrf.mxu0
    %v98 = vadd.f32 %v71, %v97
    %99 = vmatmul.f32.gmra.mxu0 %v78
    %v100 = vpop.f32.mrf.mxu0
    %v101 = vadd.f32 %v71, %v100
    %102 = vdwg.mxu0
    %v103 = vld [vmem:[%s7] sm:$0xff]
    %v104 = vld [vmem:[%s7 + $0x8] sm:$0xff]
    %v105 = vld [vmem:[%s7 + $0x10] sm:$0xff]
    %v106 = vld [vmem:[%s7 + $0x18] sm:$0xff]
    %v107 = vld [vmem:[%s7 + $0x20] sm:$0xff]
    %v108 = vld [vmem:[%s7 + $0x28] sm:$0xff]
    %v109 = vld [vmem:[%s8] sm:$0x1]
    %v111 = vperm.slane %v109, 0
    %113 = vmatpush.msra.mxu0 0.0
    %114 = vmatpush.msra.mxu0 0.0
    %115 = vmatpush.msra.mxu0 0.0
    %116 = vmatpush.msra.mxu0 0.0
    %117 = vmatpush.msra.mxu0 0.0
    %118 = vmatpush.msra.mxu0 0.0
    %119 = vmatpush.msra.mxu0 0.0
    %120 = vmatpush.msra.mxu0 0.0
    %121 = vmatpush.msra.mxu0 0.0
    %122 = vmatpush.msra.mxu0 0.0
    %123 = vmatpush.msra.mxu0 %v108
    %124 = vmatpush.msra.mxu0 %v107
    %125 = vmatpush.msra.mxu0 %v106
    %126 = vmatpush.msra.mxu0 %v105
    %127 = vmatpush.msra.mxu0 %v104
    %128 = vmatpush.msra.mxu0 %v103
    %129 = vmatmul.f32.gmra.mxu0 %v75
    %v130 = vpop.f32.mrf.mxu0
    %v131 = vadd.f32 %v111, %v130
    %132 = vmatmul.f32.gmra.mxu0 %v78
    %v133 = vpop.f32.mrf.mxu0
    %v134 = vadd.f32 %v111, %v133
    %135 = vdwg.mxu0
    %v136 = vand.u32 2147483647, %v131
    %v137 = vand.u32 2147483647, %v134
    %v138 = vld [vmem:[%s0] sm:$0xff]
    %v139 = vld [vmem:[%s0 + $0x8] sm:$0xff]
    %141 = vset.pattern.permute.xlu0 0
    %142 = vperm.xlu0 %141, %v138
    %v143 = vpop.permute.xlu0 %142
    %146 = vset.pattern.permute.xlu0 0
    %147 = vperm.xlu0 %146, %v139
    %v148 = vpop.permute.xlu0 %147
    %v150 = vmul.f32 %v143, %v136
    %v151 = vmul.f32 %v148, %v137
    %v152 = vadd.f32 %v98, %v150
    %v153 = vadd.f32 %v101, %v151
    %s154 = scalar_lea.vmem %s7, 48
    %v155 = vld [vmem:[%s154] sm:$0xff]
    %v156 = vld [vmem:[%s154 + $0x8] sm:$0xff]
    %v157 = vld [vmem:[%s154 + $0x10] sm:$0xff]
    %v158 = vld [vmem:[%s154 + $0x18] sm:$0xff]
    %v159 = vld [vmem:[%s154 + $0x20] sm:$0xff]
    %v160 = vld [vmem:[%s154 + $0x28] sm:$0xff]
    %s161 = scalar_lea.vmem %s8, 1
    %v162 = vld [vmem:[%s161] sm:$0x1]
    %v164 = vperm.slane %v162, 0
    %166 = vmatpush.msra.mxu0 0.0
    %167 = vmatpush.msra.mxu0 0.0
    %168 = vmatpush.msra.mxu0 0.0
    %169 = vmatpush.msra.mxu0 0.0
    %170 = vmatpush.msra.mxu0 0.0
    %171 = vmatpush.msra.mxu0 0.0
    %172 = vmatpush.msra.mxu0 0.0
    %173 = vmatpush.msra.mxu0 0.0
    %174 = vmatpush.msra.mxu0 0.0
    %175 = vmatpush.msra.mxu0 0.0
    %176 = vmatpush.msra.mxu0 %v160
    %177 = vmatpush.msra.mxu0 %v159
    %178 = vmatpush.msra.mxu0 %v158
    %179 = vmatpush.msra.mxu0 %v157
    %180 = vmatpush.msra.mxu0 %v156
    %181 = vmatpush.msra.mxu0 %v155
    %182 = vmatmul.f32.gmra.mxu0 %v75
    %v183 = vpop.f32.mrf.mxu0
    %v184 = vadd.f32 %v164, %v183
    %185 = vmatmul.f32.gmra.mxu0 %v78
    %v186 = vpop.f32.mrf.mxu0
    %v187 = vadd.f32 %v164, %v186
    %188 = vdwg.mxu0
    %v189 = vand.u32 2147483647, %v184
    %v190 = vand.u32 2147483647, %v187
    %s191 = scalar_lea.vmem %s0, 16
    %v192 = vld [vmem:[%s191] sm:$0xff]
    %v193 = vld [vmem:[%s191 + $0x8] sm:$0xff]
    %195 = vset.pattern.permute.xlu0 0
    %196 = vperm.xlu0 %195, %v192
    %v197 = vpop.permute.xlu0 %196
    %200 = vset.pattern.permute.xlu0 0
    %201 = vperm.xlu0 %200, %v193
    %v202 = vpop.permute.xlu0 %201
    %v204 = vmul.f32 %v197, %v189
    %v205 = vmul.f32 %v202, %v190
    %v206 = vadd.f32 %v152, %v204
    %v207 = vadd.f32 %v153, %v205
    %s208 = scalar_lea.vmem %s7, 96
    %v209 = vld [vmem:[%s208] sm:$0xff]
    %v210 = vld [vmem:[%s208 + $0x8] sm:$0xff]
    %v211 = vld [vmem:[%s208 + $0x10] sm:$0xff]
    %v212 = vld [vmem:[%s208 + $0x18] sm:$0xff]
    %v213 = vld [vmem:[%s208 + $0x20] sm:$0xff]
    %v214 = vld [vmem:[%s208 + $0x28] sm:$0xff]
    %s215 = scalar_lea.vmem %s8, 2
    %v216 = vld [vmem:[%s215] sm:$0x1]
    %v218 = vperm.slane %v216, 0
    %220 = vmatpush.msra.mxu0 0.0
    %221 = vmatpush.msra.mxu0 0.0
    %222 = vmatpush.msra.mxu0 0.0
    %223 = vmatpush.msra.mxu0 0.0
    %224 = vmatpush.msra.mxu0 0.0
    %225 = vmatpush.msra.mxu0 0.0
    %226 = vmatpush.msra.mxu0 0.0
    %227 = vmatpush.msra.mxu0 0.0
    %228 = vmatpush.msra.mxu0 0.0
    %229 = vmatpush.msra.mxu0 0.0
    %230 = vmatpush.msra.mxu0 %v214
    %231 = vmatpush.msra.mxu0 %v213
    %232 = vmatpush.msra.mxu0 %v212
    %233 = vmatpush.msra.mxu0 %v211
    %234 = vmatpush.msra.mxu0 %v210
    %235 = vmatpush.msra.mxu0 %v209
    %236 = vmatmul.f32.gmra.mxu0 %v75
    %v237 = vpop.f32.mrf.mxu0
    %v238 = vadd.f32 %v218, %v237
    %239 = vmatmul.f32.gmra.mxu0 %v78
    %v240 = vpop.f32.mrf.mxu0
    %v241 = vadd.f32 %v218, %v240
    %242 = vdwg.mxu0
    %v243 = vand.u32 2147483647, %v238
    %v244 = vand.u32 2147483647, %v241
    %s245 = scalar_lea.vmem %s0, 32
    %v246 = vld [vmem:[%s245] sm:$0xff]
    %v247 = vld [vmem:[%s245 + $0x8] sm:$0xff]
    %249 = vset.pattern.permute.xlu0 0
    %250 = vperm.xlu0 %249, %v246
    %v251 = vpop.permute.xlu0 %250
    %254 = vset.pattern.permute.xlu0 0
    %255 = vperm.xlu0 %254, %v247
    %v256 = vpop.permute.xlu0 %255
    %v258 = vmul.f32 %v251, %v243
    %v259 = vmul.f32 %v256, %v244
    %v260 = vadd.f32 %v206, %v258
    %v261 = vadd.f32 %v207, %v259
    %vm262 = vcmp.gt.f32.partialorder %v260, 0.0
    %vm263 = vcmp.gt.f32.partialorder %v261, 0.0
    %v264 = vmul.f32 %v260, 1.442695
    %v265 = vpow.pop %v264
    %v266 = vmul.f32 %v261, 1.442695
    %v267 = vpow.pop %v266
    %v268 = vsub.f32 %v265, 1.0
    %v269 = vsub.f32 %v267, 1.0
    %v270 = vsel %vm262, %v260, %v268
    %v271 = vsel %vm263, %v261, %v269
    %v272 = vld [vmem:[%s11] sm:$0xff]
    %v273 = vld [vmem:[%s11 + $0x8] sm:$0xff]
    %v274 = vld [vmem:[%s11 + $0x10] sm:$0xff]
    %v275 = vld [vmem:[%s11 + $0x18] sm:$0xff]
    %v276 = vld [vmem:[%s11 + $0x20] sm:$0xff]
    %v277 = vld [vmem:[%s11 + $0x28] sm:$0xff]
    %v278 = vld [vmem:[%s12] sm:$0x1]
    %v280 = vperm.slane %v278, 0
    %282 = vmatpush.msra.mxu0 0.0
    %283 = vmatpush.msra.mxu0 0.0
    %284 = vmatpush.msra.mxu0 0.0
    %285 = vmatpush.msra.mxu0 0.0
    %286 = vmatpush.msra.mxu0 0.0
    %287 = vmatpush.msra.mxu0 0.0
    %288 = vmatpush.msra.mxu0 0.0
    %289 = vmatpush.msra.mxu0 0.0
    %290 = vmatpush.msra.mxu0 0.0
    %291 = vmatpush.msra.mxu0 0.0
    %292 = vmatpush.msra.mxu0 %v277
    %293 = vmatpush.msra.mxu0 %v276
    %294 = vmatpush.msra.mxu0 %v275
    %295 = vmatpush.msra.mxu0 %v274
    %296 = vmatpush.msra.mxu0 %v273
    %297 = vmatpush.msra.mxu0 %v272
    %298 = vmatmul.f32.gmra.mxu0 %v75
    %v299 = vpop.f32.mrf.mxu0
    %v300 = vadd.f32 %v280, %v299
    %301 = vmatmul.f32.gmra.mxu0 %v78
    %v302 = vpop.f32.mrf.mxu0
    %v303 = vadd.f32 %v280, %v302
    %304 = vdwg.mxu0
    %v305 = vand.u32 2147483647, %v300
    %v306 = vand.u32 2147483647, %v303
    %v307 = vld [vmem:[%s13] sm:$0xff]
    %v308 = vld [vmem:[%s13 + $0x8] sm:$0xff]
    %v309 = vld [vmem:[%s13 + $0x10] sm:$0xff]
    %v310 = vld [vmem:[%s13 + $0x18] sm:$0xff]
    %v311 = vld [vmem:[%s13 + $0x20] sm:$0xff]
    %v312 = vld [vmem:[%s13 + $0x28] sm:$0xff]
    %v313 = vld [vmem:[%s14] sm:$0x1]
    %v315 = vperm.slane %v313, 0
    %317 = vmatpush.msra.mxu0 0.0
    %318 = vmatpush.msra.mxu0 0.0
    %319 = vmatpush.msra.mxu0 0.0
    %320 = vmatpush.msra.mxu0 0.0
    %321 = vmatpush.msra.mxu0 0.0
    %322 = vmatpush.msra.mxu0 0.0
    %323 = vmatpush.msra.mxu0 0.0
    %324 = vmatpush.msra.mxu0 0.0
    %325 = vmatpush.msra.mxu0 0.0
    %326 = vmatpush.msra.mxu0 0.0
    %327 = vmatpush.msra.mxu0 %v312
    %328 = vmatpush.msra.mxu0 %v311
    %329 = vmatpush.msra.mxu0 %v310
    %330 = vmatpush.msra.mxu0 %v309
    %331 = vmatpush.msra.mxu0 %v308
    %332 = vmatpush.msra.mxu0 %v307
    %333 = vmatmul.f32.gmra.mxu0 %v75
    %v334 = vpop.f32.mrf.mxu0
    %v335 = vadd.f32 %v315, %v334
    %336 = vmatmul.f32.gmra.mxu0 %v78
    %v337 = vpop.f32.mrf.mxu0
    %v338 = vadd.f32 %v315, %v337
    %339 = vdwg.mxu0
    %v340 = vmax.f32 %v335, 0.0
    %v341 = vmax.f32 %v338, 0.0
    %v342 = vld [vmem:[%s15] sm:$0xff]
    %v343 = vld [vmem:[%s15 + $0x8] sm:$0xff]
    %v344 = vld [vmem:[%s15 + $0x10] sm:$0xff]
    %v345 = vld [vmem:[%s15 + $0x18] sm:$0xff]
    %v346 = vld [vmem:[%s16] sm:$0x1]
    %v348 = vperm.slane %v346, 0
    %vm350 = vcmask 261120
    %v352 = vsel %vm350, %v340, 0
    %v355 = vsel %vm350, %v341, 0
    %357 = vmatpush.msra.mxu0 0.0
    %358 = vmatpush.msra.mxu0 0.0
    %359 = vmatpush.msra.mxu0 0.0
    %360 = vmatpush.msra.mxu0 0.0
    %361 = vmatpush.msra.mxu0 0.0
    %362 = vmatpush.msra.mxu0 0.0
    %363 = vmatpush.msra.mxu0 0.0
    %364 = vmatpush.msra.mxu0 0.0
    %365 = vmatpush.msra.mxu0 0.0
    %366 = vmatpush.msra.mxu0 0.0
    %367 = vmatpush.msra.mxu0 0.0
    %368 = vmatpush.msra.mxu0 0.0
    %369 = vmatpush.msra.mxu0 %v345
    %370 = vmatpush.msra.mxu0 %v344
    %371 = vmatpush.msra.mxu0 %v343
    %372 = vmatpush.msra.mxu0 %v342
    %373 = vmatmul.f32.gmra.mxu0 %v352
    %v374 = vpop.f32.mrf.mxu0
    %v375 = vadd.f32 %v348, %v374
    %376 = vmatmul.f32.gmra.mxu0 %v355
    %v377 = vpop.f32.mrf.mxu0
    %v378 = vadd.f32 %v348, %v377
    %379 = vdwg.mxu0
    %v380 = vmul.f32 %v270, %v305
    %v381 = vmul.f32 %v271, %v306
    %v382 = vsel %vm350, %v380, 0.0
    %383 = vadd.xlane.f32.xlu0 %v382
    %v384 = vpop.xlane.xlu0 %383
    %v385 = vsel %vm350, %v381, 0.0
    %386 = vadd.xlane.f32.xlu0 %v385
    %v387 = vpop.xlane.xlu0 %386
    %v388 = vadd.f32 %v384, %v375
    %v389 = vadd.f32 %v387, %v378
    %v390 = vld [vmem:[%s3] sm:$0xff]
    %v391 = vld [vmem:[%s3 + $0x8] sm:$0xff]
    %s392 = scalar_lea.vmem %s9, 48
    %v393 = vld [vmem:[%s392] sm:$0xff]
    %v394 = vld [vmem:[%s392 + $0x8] sm:$0xff]
    %v395 = vld [vmem:[%s392 + $0x10] sm:$0xff]
    %v396 = vld [vmem:[%s392 + $0x18] sm:$0xff]
    %v397 = vld [vmem:[%s392 + $0x20] sm:$0xff]
    %v398 = vld [vmem:[%s392 + $0x28] sm:$0xff]
    %s399 = scalar_lea.vmem %s10, 1
    %v400 = vld [vmem:[%s399] sm:$0x1]
    %v402 = vperm.slane %v400, 0
    %v405 = vsel %vm73, %v390, 0
    %v408 = vsel %vm73, %v391, 0
    %410 = vmatpush.msra.mxu0 0.0
    %411 = vmatpush.msra.mxu0 0.0
    %412 = vmatpush.msra.mxu0 0.0
    %413 = vmatpush.msra.mxu0 0.0
    %414 = vmatpush.msra.mxu0 0.0
    %415 = vmatpush.msra.mxu0 0.0
    %416 = vmatpush.msra.mxu0 0.0
    %417 = vmatpush.msra.mxu0 0.0
    %418 = vmatpush.msra.mxu0 0.0
    %419 = vmatpush.msra.mxu0 0.0
    %420 = vmatpush.msra.mxu0 %v398
    %421 = vmatpush.msra.mxu0 %v397
    %422 = vmatpush.msra.mxu0 %v396
    %423 = vmatpush.msra.mxu0 %v395
    %424 = vmatpush.msra.mxu0 %v394
    %425 = vmatpush.msra.mxu0 %v393
    %426 = vmatmul.f32.gmra.mxu0 %v405
    %v427 = vpop.f32.mrf.mxu0
    %v428 = vadd.f32 %v402, %v427
    %429 = vmatmul.f32.gmra.mxu0 %v408
    %v430 = vpop.f32.mrf.mxu0
    %v431 = vadd.f32 %v402, %v430
    %432 = vdwg.mxu0
    %s433 = scalar_lea.vmem %s7, 144
    %v434 = vld [vmem:[%s433] sm:$0xff]
    %v435 = vld [vmem:[%s433 + $0x8] sm:$0xff]
    %v436 = vld [vmem:[%s433 + $0x10] sm:$0xff]
    %v437 = vld [vmem:[%s433 + $0x18] sm:$0xff]
    %v438 = vld [vmem:[%s433 + $0x20] sm:$0xff]
    %v439 = vld [vmem:[%s433 + $0x28] sm:$0xff]
    %s440 = scalar_lea.vmem %s8, 3
    %v441 = vld [vmem:[%s440] sm:$0x1]
    %v443 = vperm.slane %v441, 0
    %445 = vmatpush.msra.mxu0 0.0
    %446 = vmatpush.msra.mxu0 0.0
    %447 = vmatpush.msra.mxu0 0.0
    %448 = vmatpush.msra.mxu0 0.0
    %449 = vmatpush.msra.mxu0 0.0
    %450 = vmatpush.msra.mxu0 0.0
    %451 = vmatpush.msra.mxu0 0.0
    %452 = vmatpush.msra.mxu0 0.0
    %453 = vmatpush.msra.mxu0 0.0
    %454 = vmatpush.msra.mxu0 0.0
    %455 = vmatpush.msra.mxu0 %v439
    %456 = vmatpush.msra.mxu0 %v438
    %457 = vmatpush.msra.mxu0 %v437
    %458 = vmatpush.msra.mxu0 %v436
    %459 = vmatpush.msra.mxu0 %v435
    %460 = vmatpush.msra.mxu0 %v434
    %461 = vmatmul.f32.gmra.mxu0 %v405
    %v462 = vpop.f32.mrf.mxu0
    %v463 = vadd.f32 %v443, %v462
    %464 = vmatmul.f32.gmra.mxu0 %v408
    %v465 = vpop.f32.mrf.mxu0
    %v466 = vadd.f32 %v443, %v465
    %467 = vdwg.mxu0
    %v468 = vand.u32 2147483647, %v463
    %v469 = vand.u32 2147483647, %v466
    %v470 = vld [vmem:[%s1] sm:$0xff]
    %v471 = vld [vmem:[%s1 + $0x8] sm:$0xff]
    %473 = vset.pattern.permute.xlu0 0
    %474 = vperm.xlu0 %473, %v470
    %v475 = vpop.permute.xlu0 %474
    %478 = vset.pattern.permute.xlu0 0
    %479 = vperm.xlu0 %478, %v471
    %v480 = vpop.permute.xlu0 %479
    %v482 = vmul.f32 %v475, %v468
    %v483 = vmul.f32 %v480, %v469
    %v484 = vadd.f32 %v428, %v482
    %v485 = vadd.f32 %v431, %v483
    %s486 = scalar_lea.vmem %s7, 192
    %v487 = vld [vmem:[%s486] sm:$0xff]
    %v488 = vld [vmem:[%s486 + $0x8] sm:$0xff]
    %v489 = vld [vmem:[%s486 + $0x10] sm:$0xff]
    %v490 = vld [vmem:[%s486 + $0x18] sm:$0xff]
    %v491 = vld [vmem:[%s486 + $0x20] sm:$0xff]
    %v492 = vld [vmem:[%s486 + $0x28] sm:$0xff]
    %s493 = scalar_lea.vmem %s8, 4
    %v494 = vld [vmem:[%s493] sm:$0x1]
    %v496 = vperm.slane %v494, 0
    %498 = vmatpush.msra.mxu0 0.0
    %499 = vmatpush.msra.mxu0 0.0
    %500 = vmatpush.msra.mxu0 0.0
    %501 = vmatpush.msra.mxu0 0.0
    %502 = vmatpush.msra.mxu0 0.0
    %503 = vmatpush.msra.mxu0 0.0
    %504 = vmatpush.msra.mxu0 0.0
    %505 = vmatpush.msra.mxu0 0.0
    %506 = vmatpush.msra.mxu0 0.0
    %507 = vmatpush.msra.mxu0 0.0
    %508 = vmatpush.msra.mxu0 %v492
    %509 = vmatpush.msra.mxu0 %v491
    %510 = vmatpush.msra.mxu0 %v490
    %511 = vmatpush.msra.mxu0 %v489
    %512 = vmatpush.msra.mxu0 %v488
    %513 = vmatpush.msra.mxu0 %v487
    %514 = vmatmul.f32.gmra.mxu0 %v405
    %v515 = vpop.f32.mrf.mxu0
    %v516 = vadd.f32 %v496, %v515
    %517 = vmatmul.f32.gmra.mxu0 %v408
    %v518 = vpop.f32.mrf.mxu0
    %v519 = vadd.f32 %v496, %v518
    %520 = vdwg.mxu0
    %v521 = vand.u32 2147483647, %v516
    %v522 = vand.u32 2147483647, %v519
    %s523 = scalar_lea.vmem %s1, 16
    %v524 = vld [vmem:[%s523] sm:$0xff]
    %v525 = vld [vmem:[%s523 + $0x8] sm:$0xff]
    %527 = vset.pattern.permute.xlu0 0
    %528 = vperm.xlu0 %527, %v524
    %v529 = vpop.permute.xlu0 %528
    %532 = vset.pattern.permute.xlu0 0
    %533 = vperm.xlu0 %532, %v525
    %v534 = vpop.permute.xlu0 %533
    %v536 = vmul.f32 %v529, %v521
    %v537 = vmul.f32 %v534, %v522
    %v538 = vadd.f32 %v484, %v536
    %v539 = vadd.f32 %v485, %v537
    %s540 = scalar_lea.vmem %s7, 240
    %v541 = vld [vmem:[%s540] sm:$0xff]
    %v542 = vld [vmem:[%s540 + $0x8] sm:$0xff]
    %v543 = vld [vmem:[%s540 + $0x10] sm:$0xff]
    %v544 = vld [vmem:[%s540 + $0x18] sm:$0xff]
    %v545 = vld [vmem:[%s540 + $0x20] sm:$0xff]
    %v546 = vld [vmem:[%s540 + $0x28] sm:$0xff]
    %s547 = scalar_lea.vmem %s8, 5
    %v548 = vld [vmem:[%s547] sm:$0x1]
    %v550 = vperm.slane %v548, 0
    %552 = vmatpush.msra.mxu0 0.0
    %553 = vmatpush.msra.mxu0 0.0
    %554 = vmatpush.msra.mxu0 0.0
    %555 = vmatpush.msra.mxu0 0.0
    %556 = vmatpush.msra.mxu0 0.0
    %557 = vmatpush.msra.mxu0 0.0
    %558 = vmatpush.msra.mxu0 0.0
    %559 = vmatpush.msra.mxu0 0.0
    %560 = vmatpush.msra.mxu0 0.0
    %561 = vmatpush.msra.mxu0 0.0
    %562 = vmatpush.msra.mxu0 %v546
    %563 = vmatpush.msra.mxu0 %v545
    %564 = vmatpush.msra.mxu0 %v544
    %565 = vmatpush.msra.mxu0 %v543
    %566 = vmatpush.msra.mxu0 %v542
    %567 = vmatpush.msra.mxu0 %v541
    %568 = vmatmul.f32.gmra.mxu0 %v405
    %v569 = vpop.f32.mrf.mxu0
    %v570 = vadd.f32 %v550, %v569
    %571 = vmatmul.f32.gmra.mxu0 %v408
    %v572 = vpop.f32.mrf.mxu0
    %v573 = vadd.f32 %v550, %v572
    %574 = vdwg.mxu0
    %v575 = vand.u32 2147483647, %v570
    %v576 = vand.u32 2147483647, %v573
    %s577 = scalar_lea.vmem %s1, 32
    %v578 = vld [vmem:[%s577] sm:$0xff]
    %v579 = vld [vmem:[%s577 + $0x8] sm:$0xff]
    %581 = vset.pattern.permute.xlu0 0
    %582 = vperm.xlu0 %581, %v578
    %v583 = vpop.permute.xlu0 %582
    %586 = vset.pattern.permute.xlu0 0
    %587 = vperm.xlu0 %586, %v579
    %v588 = vpop.permute.xlu0 %587
    %v590 = vmul.f32 %v583, %v575
    %v591 = vmul.f32 %v588, %v576
    %v592 = vadd.f32 %v538, %v590
    %v593 = vadd.f32 %v539, %v591
    %vm594 = vcmp.gt.f32.partialorder %v592, 0.0
    %vm595 = vcmp.gt.f32.partialorder %v593, 0.0
    %v596 = vmul.f32 %v592, 1.442695
    %v597 = vpow.pop %v596
    %v598 = vmul.f32 %v593, 1.442695
    %v599 = vpow.pop %v598
    %v600 = vsub.f32 %v597, 1.0
    %v601 = vsub.f32 %v599, 1.0
    %v602 = vsel %vm594, %v592, %v600
    %v603 = vsel %vm595, %v593, %v601
    %s604 = scalar_lea.vmem %s11, 48
    %v605 = vld [vmem:[%s604] sm:$0xff]
    %v606 = vld [vmem:[%s604 + $0x8] sm:$0xff]
    %v607 = vld [vmem:[%s604 + $0x10] sm:$0xff]
    %v608 = vld [vmem:[%s604 + $0x18] sm:$0xff]
    %v609 = vld [vmem:[%s604 + $0x20] sm:$0xff]
    %v610 = vld [vmem:[%s604 + $0x28] sm:$0xff]
    %s611 = scalar_lea.vmem %s12, 1
    %v612 = vld [vmem:[%s611] sm:$0x1]
    %v614 = vperm.slane %v612, 0
    %616 = vmatpush.msra.mxu0 0.0
    %617 = vmatpush.msra.mxu0 0.0
    %618 = vmatpush.msra.mxu0 0.0
    %619 = vmatpush.msra.mxu0 0.0
    %620 = vmatpush.msra.mxu0 0.0
    %621 = vmatpush.msra.mxu0 0.0
    %622 = vmatpush.msra.mxu0 0.0
    %623 = vmatpush.msra.mxu0 0.0
    %624 = vmatpush.msra.mxu0 0.0
    %625 = vmatpush.msra.mxu0 0.0
    %626 = vmatpush.msra.mxu0 %v610
    %627 = vmatpush.msra.mxu0 %v609
    %628 = vmatpush.msra.mxu0 %v608
    %629 = vmatpush.msra.mxu0 %v607
    %630 = vmatpush.msra.mxu0 %v606
    %631 = vmatpush.msra.mxu0 %v605
    %632 = vmatmul.f32.gmra.mxu0 %v405
    %v633 = vpop.f32.mrf.mxu0
    %v634 = vadd.f32 %v614, %v633
    %635 = vmatmul.f32.gmra.mxu0 %v408
    %v636 = vpop.f32.mrf.mxu0
    %v637 = vadd.f32 %v614, %v636
    %638 = vdwg.mxu0
    %v639 = vand.u32 2147483647, %v634
    %v640 = vand.u32 2147483647, %v637
    %s641 = scalar_lea.vmem %s13, 48
    %v642 = vld [vmem:[%s641] sm:$0xff]
    %v643 = vld [vmem:[%s641 + $0x8] sm:$0xff]
    %v644 = vld [vmem:[%s641 + $0x10] sm:$0xff]
    %v645 = vld [vmem:[%s641 + $0x18] sm:$0xff]
    %v646 = vld [vmem:[%s641 + $0x20] sm:$0xff]
    %v647 = vld [vmem:[%s641 + $0x28] sm:$0xff]
    %s648 = scalar_lea.vmem %s14, 1
    %v649 = vld [vmem:[%s648] sm:$0x1]
    %v651 = vperm.slane %v649, 0
    %653 = vmatpush.msra.mxu0 0.0
    %654 = vmatpush.msra.mxu0 0.0
    %655 = vmatpush.msra.mxu0 0.0
    %656 = vmatpush.msra.mxu0 0.0
    %657 = vmatpush.msra.mxu0 0.0
    %658 = vmatpush.msra.mxu0 0.0
    %659 = vmatpush.msra.mxu0 0.0
    %660 = vmatpush.msra.mxu0 0.0
    %661 = vmatpush.msra.mxu0 0.0
    %662 = vmatpush.msra.mxu0 0.0
    %663 = vmatpush.msra.mxu0 %v647
    %664 = vmatpush.msra.mxu0 %v646
    %665 = vmatpush.msra.mxu0 %v645
    %666 = vmatpush.msra.mxu0 %v644
    %667 = vmatpush.msra.mxu0 %v643
    %668 = vmatpush.msra.mxu0 %v642
    %669 = vmatmul.f32.gmra.mxu0 %v405
    %v670 = vpop.f32.mrf.mxu0
    %v671 = vadd.f32 %v651, %v670
    %672 = vmatmul.f32.gmra.mxu0 %v408
    %v673 = vpop.f32.mrf.mxu0
    %v674 = vadd.f32 %v651, %v673
    %675 = vdwg.mxu0
    %v676 = vmax.f32 %v671, 0.0
    %v677 = vmax.f32 %v674, 0.0
    %s678 = scalar_lea.vmem %s15, 32
    %v679 = vld [vmem:[%s678] sm:$0xff]
    %v680 = vld [vmem:[%s678 + $0x8] sm:$0xff]
    %v681 = vld [vmem:[%s678 + $0x10] sm:$0xff]
    %v682 = vld [vmem:[%s678 + $0x18] sm:$0xff]
    %s683 = scalar_lea.vmem %s16, 1
    %v684 = vld [vmem:[%s683] sm:$0x1]
    %v686 = vperm.slane %v684, 0
    %v689 = vsel %vm350, %v676, 0
    %v692 = vsel %vm350, %v677, 0
    %694 = vmatpush.msra.mxu0 0.0
    %695 = vmatpush.msra.mxu0 0.0
    %696 = vmatpush.msra.mxu0 0.0
    %697 = vmatpush.msra.mxu0 0.0
    %698 = vmatpush.msra.mxu0 0.0
    %699 = vmatpush.msra.mxu0 0.0
    %700 = vmatpush.msra.mxu0 0.0
    %701 = vmatpush.msra.mxu0 0.0
    %702 = vmatpush.msra.mxu0 0.0
    %703 = vmatpush.msra.mxu0 0.0
    %704 = vmatpush.msra.mxu0 0.0
    %705 = vmatpush.msra.mxu0 0.0
    %706 = vmatpush.msra.mxu0 %v682
    %707 = vmatpush.msra.mxu0 %v681
    %708 = vmatpush.msra.mxu0 %v680
    %709 = vmatpush.msra.mxu0 %v679
    %710 = vmatmul.f32.gmra.mxu0 %v689
    %v711 = vpop.f32.mrf.mxu0
    %v712 = vadd.f32 %v686, %v711
    %713 = vmatmul.f32.gmra.mxu0 %v692
    %v714 = vpop.f32.mrf.mxu0
    %v715 = vadd.f32 %v686, %v714
    %716 = vdwg.mxu0
    %v717 = vmul.f32 %v602, %v639
    %v718 = vmul.f32 %v603, %v640
    %v719 = vsel %vm350, %v717, 0.0
    %720 = vadd.xlane.f32.xlu0 %v719
    %v721 = vpop.xlane.xlu0 %720
    %v722 = vsel %vm350, %v718, 0.0
    %723 = vadd.xlane.f32.xlu0 %v722
    %v724 = vpop.xlane.xlu0 %723
    %v725 = vadd.f32 %v721, %v712
    %v726 = vadd.f32 %v724, %v715
    %v727 = vld [vmem:[%s4] sm:$0xff]
    %v728 = vld [vmem:[%s4 + $0x8] sm:$0xff]
    %v729 = vld [vmem:[%s5] sm:$0xff]
    %v730 = vld [vmem:[%s5 + $0x8] sm:$0xff]
    %v731 = vsub.f32 1.0, %v729
    %v732 = vsub.f32 1.0, %v730
    %v733 = vmul.f32 %v731, 0.99
    %v734 = vmul.f32 %v732, 0.99
    %736 = vset.pattern.permute.xlu0 0
    %737 = vperm.xlu0 %736, %v725
    %v738 = vpop.permute.xlu0 %737
    %741 = vset.pattern.permute.xlu0 0
    %742 = vperm.xlu0 %741, %v726
    %v743 = vpop.permute.xlu0 %742
    %v745 = vmul.f32 %v733, %v738
    %v746 = vmul.f32 %v734, %v743
    %v747 = vadd.f32 %v727, %v745
    %v748 = vadd.f32 %v728, %v746
    %750 = vset.pattern.permute.xlu0 0
    %751 = vperm.xlu0 %750, %v388
    %v752 = vpop.permute.xlu0 %751
    %755 = vset.pattern.permute.xlu0 0
    %756 = vperm.xlu0 %755, %v389
    %v757 = vpop.permute.xlu0 %756
    %v759 = vsub.f32 %v752, %v747
    %v760 = vsub.f32 %v757, %v748
    %v761 = vld [vmem:[%s6] sm:$0xff]
    %v762 = vld [vmem:[%s6 + $0x8] sm:$0xff]
    %v763 = vmul.f32 %v759, %v761
    %v764 = vmul.f32 %v760, %v762
    %vm765 = vcmask 7168
    %766 = vst.msk [vmem:[%s19] sm:$0xff] %vm765, %v388
    %767 = vst.msk [vmem:[%s19 + $0x8] sm:$0xff] %vm765, %v389
    %vm768 = vcmask 23552
    %769 = vst.msk [vmem:[%s20] sm:$0xff] %vm768, %v747
    %770 = vst.msk [vmem:[%s20 + $0x8] sm:$0xff] %vm768, %v748
    %771 = vst.msk [vmem:[%s18] sm:$0xff] %vm768, %v763
    %772 = vst.msk [vmem:[%s18 + $0x8] sm:$0xff] %vm768, %v764
    %v773 = vmul.f32 %v763, %v763
    %v774 = vmul.f32 %v764, %v764
    %v775 = vsel %vm768, %v773, 0.0
    %v776 = vsel %vm768, %v774, 0.0
    %v777 = vadd.f32 %v775, %v776
    %778 = vadd.xlane.f32.xlu0 %v777
    %v779 = vpop.xlane.xlu0 %778
    %v780 = vrot.slane %v779, 4
    %v781 = vadd.f32 %v779, %v780
    %v782 = vrot.slane %v781, 2
    %v783 = vadd.f32 %v781, %v782
    %v784 = vrot.slane %v783, 1
    %v785 = vadd.f32 %v783, %v784
    %s786 = vtos %v785
    %v787 = vld [vmem:[%s6] sm:$0xff]
    %v788 = vld [vmem:[%s6 + $0x8] sm:$0xff]
    %v789 = vsel %vm768, %v787, 0.0
    %v790 = vsel %vm768, %v788, 0.0
    %v791 = vadd.f32 %v789, %v790
    %792 = vadd.xlane.f32.xlu0 %v791
    %v793 = vpop.xlane.xlu0 %792
    %v794 = vrot.slane %v793, 4
    %v795 = vadd.f32 %v793, %v794
    %v796 = vrot.slane %v795, 2
    %v797 = vadd.f32 %v795, %v796
    %v798 = vrot.slane %v797, 1
    %v799 = vadd.f32 %v797, %v798
    %s800 = vtos %v799
    %v801 = vstv %s800
    %v802 = vrcp.pop %v801
    %v803 = vmul.f32 %v801, %v802
    %v804 = vsub.f32 1.0, %v803
    %v805 = vmul.f32 %v802, %v804
    %v806 = vadd.f32 %v802, %v805
    %vm807 = vweird.f32 %v801
    %vm808 = vweird.f32 %v802
    %vm809 = vmor %vm807, %vm808
    %v810 = vsel %vm809, %v802, %v806
    %v811 = vand.u32 2147483647, %v801
    %vm812 = vcmp.eq.f32.partialorder %v811, 8.507059e+37
    %v813 = vand.u32 %v801, 2147483648
    %v814 = vor.u32 1.1754944e-38, %v813
    %v815 = vsel %vm812, %v814, %v810
    %s816 = vtos %v815
    %s817 = smul.f32 %s786, %s816
    %v818 = vstv %s817
    %vm819 = vcmask 0
    %820 = vst.msk [vmem:[#allocation2] sm:$0x1] %vm819, %v818
    // Predicated region
    $region70: #{qmix_loss_forward.3} parent=1 // pred_check
      _
    $region71: #{qmix_loss_forward.3} parent=1 // pred_check_branch
      %822 = sbr.rel (0) target = $region73
    $region72: #{qmix_loss_forward.3} parent=1 // pred_region
      %824 = vsyncadd [#allocation3], 0
      %s826 = sshll.u32 [#allocation2], 4
      %s827 = int_to_ptr.vmem [resolvable:$true] %s826
      %s828 = sshll.u32 %s17, 4
      %s829 = int_to_ptr.hbm [resolvable:$true] %s828
      %831 = dma.vmem_to_hbm [thread:$0]  %s827, 16, %s829, [#allocation3]
    $region73: #{qmix_loss_forward.3} parent=1 // pred_fallthru
      _
    // Predicated region
    $region74: #{qmix_loss_forward.3} parent=1 // pred_check
      _
    $region75: #{qmix_loss_forward.3} parent=1 // pred_check_branch
      %833 = sbr.rel (0) target = $region77
    $region76: #{qmix_loss_forward.3} parent=1 // pred_region
      _
    $region77: #{qmix_loss_forward.3} parent=1 // pred_fallthru
      _
    // Predicated region
    $region78: #{qmix_loss_forward.3} parent=1 // pred_check
      _
    $region79: #{qmix_loss_forward.3} parent=1 // pred_check_branch
      %835 = sbr.rel (0) target = $region81
    $region80: #{qmix_loss_forward.3} parent=1 // pred_region
      _
    $region81: #{qmix_loss_forward.3} parent=1 // pred_fallthru
      _
    // Predicated region
    $region82: #{qmix_loss_forward.3} parent=1 // pred_check
      _
    $region83: #{qmix_loss_forward.3} parent=1 // pred_check_branch
      %837 = sbr.rel (0) target = $region85
    $region84: #{qmix_loss_forward.3} parent=1 // pred_region
      _
    $region85: #{qmix_loss_forward.3} parent=1 // pred_fallthru
      _
    // Predicated region
    $region86: #{qmix_loss_forward.3} parent=1 // pred_check
      _
    $region87: #{qmix_loss_forward.3} parent=1 // pred_check_branch
      %839 = sbr.rel (0) target = $region89
    $region88: #{qmix_loss_forward.3} parent=1 // pred_region
      %841 = dma.done [#allocation3], 16
    $region89: #{qmix_loss_forward.3} parent=1 // pred_fallthru
      _
    // Predicated region
    $region90: #{qmix_loss_forward.3} parent=1 // pred_check
      _
    $region91: #{qmix_loss_forward.3} parent=1 // pred_check_branch
      %843 = sbr.rel (0) target = $region93
    $region92: #{qmix_loss_forward.3} parent=1 // pred_region
      _
    $region93: #{qmix_loss_forward.3} parent=1 // pred_fallthru
      _
    // Predicated region
    $region94: #{qmix_loss_forward.3} parent=1 // pred_check
      _
    $region95: #{qmix_loss_forward.3} parent=1 // pred_check_branch
      %845 = sbr.rel (0) target = $region97
    $region96: #{qmix_loss_forward.3} parent=1 // pred_region
      _
    $region97: #{qmix_loss_forward.3} parent=1 // pred_fallthru
      _
    // Predicated region
    $region98: #{qmix_loss_forward.3} parent=1 // pred_check
      _
    $region99: #{qmix_loss_forward.3} parent=1 // pred_check_branch
      %847 = sbr.rel (0) target = $region101
    $region100: #{qmix_loss_forward.3} parent=1 // pred_region
      _
    $region101: #{qmix_loss_forward.3} parent=1 // pred_fallthru
      _
    %848 = vsyncpa [#allocation3], 1

// kernel: qmix_loss_forward.2
$region0: #{qmix_loss_forward.2}
  #allocation0 [shape = 'u32[]', space=smem, size = 0x4, offset = 0x4, fixed_abs, tag = 'smem constant byte address 0x4 - core index']
  #allocation1 [shape = 'u32[72,128]{1,0:T(1,128)}', space=vmem, size = 0x9000, scoped, tag = 'internal scratch']
  #allocation2 [shape = 'f32[128,32]{1,0:T(8,128)}', space=vmem, size = 0x10000, scoped, tag = 'scratch operand']
  #allocation3 [shape = 'f32[128,32]{1,0:T(8,128)}', space=vmem, size = 0x10000, scoped, tag = 'scratch operand']
  #allocation4 [shape = 'f32[128,32]{1,0:T(8,128)}', space=vmem, size = 0x10000, scoped, tag = 'scratch operand']
  #allocation5 [shape = 'f32[64,32]{1,0:T(8,128)}', space=vmem, size = 0x8000, scoped, tag = 'scratch operand']
  #allocation6 [shape = 'f32[64,32]{1,0:T(8,128)}', space=vmem, size = 0x8000, scoped, tag = 'scratch operand']
  #allocation7 [shape = 'f32[64,32]{1,0:T(8,128)}', space=vmem, size = 0x8000, scoped, tag = 'scratch operand']
  #allocation8 [shape = 'f32[128,32]{1,0:T(8,128)}', space=vmem, size = 0x10000, scoped, tag = 'scratch operand']
  #allocation9 [shape = 'f32[64,32]{1,0:T(8,128)}', space=vmem, size = 0x8000, scoped, tag = 'scratch operand']
  %s0 = inlined_call_operand.vmem [shape: f32[128,16], index: 0, kind: input, shape index: {}]
  %s1 = inlined_call_operand.vmem [shape: f32[64,16], index: 1, kind: input, shape index: {}]
  %s2 = inlined_call_operand.vmem [shape: s32[8,8], index: 2, kind: input, shape index: {}]
  %s3 = inlined_call_operand.vmem [shape: f32[8,8,7], index: 3, kind: input, shape index: {}]
  %s4 = inlined_call_operand.vmem [shape: f32[8,8], index: 4, kind: input, shape index: {}]
  %s5 = inlined_call_operand.vmem [shape: f32[16,32], index: 5, kind: input, shape index: {}]
  %s6 = inlined_call_operand.vmem [shape: f32[1,32], index: 6, kind: input, shape index: {}]
  %s7 = inlined_call_operand.vmem [shape: f32[3,32,32], index: 7, kind: input, shape index: {}]
  %s8 = inlined_call_operand.vmem [shape: f32[3,1,32], index: 8, kind: input, shape index: {}]
  %s9 = inlined_call_operand.vmem [shape: f32[3,32,32], index: 9, kind: input, shape index: {}]
  %s10 = inlined_call_operand.vmem [shape: f32[3,1,32], index: 10, kind: input, shape index: {}]
  %s11 = inlined_call_operand.vmem [shape: f32[32,7], index: 11, kind: input, shape index: {}]
  %s12 = inlined_call_operand.vmem [shape: f32[1,7], index: 12, kind: input, shape index: {}]
  %s13 = inlined_call_operand.vmem [shape: f32[16,32], index: 13, kind: input, shape index: {}]
  %s14 = inlined_call_operand.vmem [shape: f32[1,32], index: 14, kind: input, shape index: {}]
  %s15 = inlined_call_operand.vmem [shape: f32[3,32,32], index: 15, kind: input, shape index: {}]
  %s16 = inlined_call_operand.vmem [shape: f32[3,1,32], index: 16, kind: input, shape index: {}]
  %s17 = inlined_call_operand.vmem [shape: f32[3,32,32], index: 17, kind: input, shape index: {}]
  %s18 = inlined_call_operand.vmem [shape: f32[3,1,32], index: 18, kind: input, shape index: {}]
  %s19 = inlined_call_operand.vmem [shape: f32[32,7], index: 19, kind: input, shape index: {}]
  %s20 = inlined_call_operand.vmem [shape: f32[1,7], index: 20, kind: input, shape index: {}]
  %s21 = inlined_call_operand.vmem [shape: f32[8,8], index: 21, kind: output, shape index: {0}]
  %s22 = inlined_call_operand.vmem [shape: f32[8,8], index: 22, kind: output, shape index: {1}]
  %s23 = inlined_call_operand.hbm [shape: f32[1,1], index: 23, kind: output, shape index: {2}]
  %24 = xla_tuple %s21, %s22, %s23
  %s25 = sld [smem:[#allocation0]]
  $region110: #{qmix_loss_forward.2} parent=0
    _
  %s27 = ssub.s32 1, %s25
  %s28 = scalar_select 0, %s27, %s25
  $region1: #{qmix_loss_forward.2} parent=0
    #allocation10 [shape = 'u8[512]{0}', space=vmem, size = 0x400, scoped, tag = 'output window, operand 2, single buffered']
    #allocation11 [shape = 's32[1]{0}', space=sflag, size = 0x4, scoped, tag = 'scoped memory for qmix_loss_forward.2']
    %29 = vsyncpa [#allocation11], 0
    // Predicated region
    $region2: #{qmix_loss_forward.2} parent=1 // pred_check
      _
    $region3: #{qmix_loss_forward.2} parent=1 // pred_check_branch
      %31 = sbr.rel (0) target = $region5
    $region4: #{qmix_loss_forward.2} parent=1 // pred_region
      _
    $region5: #{qmix_loss_forward.2} parent=1 // pred_fallthru
      _
    // Predicated region
    $region6: #{qmix_loss_forward.2} parent=1 // pred_check
      _
    $region7: #{qmix_loss_forward.2} parent=1 // pred_check_branch
      %33 = sbr.rel (0) target = $region9
    $region8: #{qmix_loss_forward.2} parent=1 // pred_region
      _
    $region9: #{qmix_loss_forward.2} parent=1 // pred_fallthru
      _
    // Predicated region
    $region10: #{qmix_loss_forward.2} parent=1 // pred_check
      _
    $region11: #{qmix_loss_forward.2} parent=1 // pred_check_branch
      %35 = sbr.rel (0) target = $region13
    $region12: #{qmix_loss_forward.2} parent=1 // pred_region
      _
    $region13: #{qmix_loss_forward.2} parent=1 // pred_fallthru
      _
    // Predicated region
    $region14: #{qmix_loss_forward.2} parent=1 // pred_check
      _
    $region15: #{qmix_loss_forward.2} parent=1 // pred_check_branch
      %37 = sbr.rel (0) target = $region17
    $region16: #{qmix_loss_forward.2} parent=1 // pred_region
      _
    $region17: #{qmix_loss_forward.2} parent=1 // pred_fallthru
      _
    // Predicated region
    $region18: #{qmix_loss_forward.2} parent=1 // pred_check
      _
    $region19: #{qmix_loss_forward.2} parent=1 // pred_check_branch
      %39 = sbr.rel (0) target = $region21
    $region20: #{qmix_loss_forward.2} parent=1 // pred_region
      _
    $region21: #{qmix_loss_forward.2} parent=1 // pred_fallthru
      _
    // Predicated region
    $region22: #{qmix_loss_forward.2} parent=1 // pred_check
      _
    $region23: #{qmix_loss_forward.2} parent=1 // pred_check_branch
      %41 = sbr.rel (0) target = $region25
    $region24: #{qmix_loss_forward.2} parent=1 // pred_region
      _
    $region25: #{qmix_loss_forward.2} parent=1 // pred_fallthru
      _
    // Predicated region
    $region26: #{qmix_loss_forward.2} parent=1 // pred_check
      _
    $region27: #{qmix_loss_forward.2} parent=1 // pred_check_branch
      %43 = sbr.rel (0) target = $region29
    $region28: #{qmix_loss_forward.2} parent=1 // pred_region
      _
    $region29: #{qmix_loss_forward.2} parent=1 // pred_fallthru
      _
    // Predicated region
    $region30: #{qmix_loss_forward.2} parent=1 // pred_check
      _
    $region31: #{qmix_loss_forward.2} parent=1 // pred_check_branch
      %45 = sbr.rel (0) target = $region33
    $region32: #{qmix_loss_forward.2} parent=1 // pred_region
      _
    $region33: #{qmix_loss_forward.2} parent=1 // pred_fallthru
      _
    // Predicated region
    $region34: #{qmix_loss_forward.2} parent=1 // pred_check
      _
    $region35: #{qmix_loss_forward.2} parent=1 // pred_check_branch
      %47 = sbr.rel (0) target = $region37
    $region36: #{qmix_loss_forward.2} parent=1 // pred_region
      _
    $region37: #{qmix_loss_forward.2} parent=1 // pred_fallthru
      _
    // Predicated region
    $region38: #{qmix_loss_forward.2} parent=1 // pred_check
      _
    $region39: #{qmix_loss_forward.2} parent=1 // pred_check_branch
      %49 = sbr.rel (0) target = $region41
    $region40: #{qmix_loss_forward.2} parent=1 // pred_region
      _
    $region41: #{qmix_loss_forward.2} parent=1 // pred_fallthru
      _
    // Predicated region
    $region42: #{qmix_loss_forward.2} parent=1 // pred_check
      _
    $region43: #{qmix_loss_forward.2} parent=1 // pred_check_branch
      %51 = sbr.rel (0) target = $region45
    $region44: #{qmix_loss_forward.2} parent=1 // pred_region
      _
    $region45: #{qmix_loss_forward.2} parent=1 // pred_fallthru
      _
    // Predicated region
    $region46: #{qmix_loss_forward.2} parent=1 // pred_check
      _
    $region47: #{qmix_loss_forward.2} parent=1 // pred_check_branch
      %53 = sbr.rel (0) target = $region49
    $region48: #{qmix_loss_forward.2} parent=1 // pred_region
      _
    $region49: #{qmix_loss_forward.2} parent=1 // pred_fallthru
      _
    // Predicated region
    $region50: #{qmix_loss_forward.2} parent=1 // pred_check
      _
    $region51: #{qmix_loss_forward.2} parent=1 // pred_check_branch
      %55 = sbr.rel (0) target = $region53
    $region52: #{qmix_loss_forward.2} parent=1 // pred_region
      _
    $region53: #{qmix_loss_forward.2} parent=1 // pred_fallthru
      _
    // Predicated region
    $region54: #{qmix_loss_forward.2} parent=1 // pred_check
      _
    $region55: #{qmix_loss_forward.2} parent=1 // pred_check_branch
      %57 = sbr.rel (0) target = $region57
    $region56: #{qmix_loss_forward.2} parent=1 // pred_region
      _
    $region57: #{qmix_loss_forward.2} parent=1 // pred_fallthru
      _
    // Predicated region
    $region58: #{qmix_loss_forward.2} parent=1 // pred_check
      _
    $region59: #{qmix_loss_forward.2} parent=1 // pred_check_branch
      %59 = sbr.rel (0) target = $region61
    $region60: #{qmix_loss_forward.2} parent=1 // pred_region
      _
    $region61: #{qmix_loss_forward.2} parent=1 // pred_fallthru
      _
    // Predicated region
    $region62: #{qmix_loss_forward.2} parent=1 // pred_check
      _
    $region63: #{qmix_loss_forward.2} parent=1 // pred_check_branch
      %61 = sbr.rel (0) target = $region65
    $region64: #{qmix_loss_forward.2} parent=1 // pred_region
      _
    $region65: #{qmix_loss_forward.2} parent=1 // pred_fallthru
      _
    // Predicated region
    $region66: #{qmix_loss_forward.2} parent=1 // pred_check
      _
    $region67: #{qmix_loss_forward.2} parent=1 // pred_check_branch
      %63 = sbr.rel (0) target = $region69
    $region68: #{qmix_loss_forward.2} parent=1 // pred_region
      _
    $region69: #{qmix_loss_forward.2} parent=1 // pred_fallthru
      _
    // Predicated region
    $region70: #{qmix_loss_forward.2} parent=1 // pred_check
      _
    $region71: #{qmix_loss_forward.2} parent=1 // pred_check_branch
      %65 = sbr.rel (0) target = $region73
    $region72: #{qmix_loss_forward.2} parent=1 // pred_region
      _
    $region73: #{qmix_loss_forward.2} parent=1 // pred_fallthru
      _
    // Predicated region
    $region74: #{qmix_loss_forward.2} parent=1 // pred_check
      _
    $region75: #{qmix_loss_forward.2} parent=1 // pred_check_branch
      %67 = sbr.rel (0) target = $region77
    $region76: #{qmix_loss_forward.2} parent=1 // pred_region
      _
    $region77: #{qmix_loss_forward.2} parent=1 // pred_fallthru
      _
    // Predicated region
    $region78: #{qmix_loss_forward.2} parent=1 // pred_check
      _
    $region79: #{qmix_loss_forward.2} parent=1 // pred_check_branch
      %69 = sbr.rel (0) target = $region81
    $region80: #{qmix_loss_forward.2} parent=1 // pred_region
      _
    $region81: #{qmix_loss_forward.2} parent=1 // pred_fallthru
      _
    // Predicated region
    $region82: #{qmix_loss_forward.2} parent=1 // pred_check
      _
    $region83: #{qmix_loss_forward.2} parent=1 // pred_check_branch
      %71 = sbr.rel (0) target = $region85
    $region84: #{qmix_loss_forward.2} parent=1 // pred_region
      _
    $region85: #{qmix_loss_forward.2} parent=1 // pred_fallthru
      _
    %v72 = vld [vmem:[%s0] sm:$0xff]
    %v73 = vld [vmem:[%s0 + $0x8] sm:$0xff]
    %v74 = vld [vmem:[%s0 + $0x10] sm:$0xff]
    %v75 = vld [vmem:[%s0 + $0x18] sm:$0xff]
    %v76 = vld [vmem:[%s0 + $0x20] sm:$0xff]
    %v77 = vld [vmem:[%s0 + $0x28] sm:$0xff]
    %v78 = vld [vmem:[%s0 + $0x30] sm:$0xff]
    %v79 = vld [vmem:[%s0 + $0x38] sm:$0xff]
    %v80 = vld [vmem:[%s0 + $0x40] sm:$0xff]
    %v81 = vld [vmem:[%s0 + $0x48] sm:$0xff]
    %v82 = vld [vmem:[%s0 + $0x50] sm:$0xff]
    %v83 = vld [vmem:[%s0 + $0x58] sm:$0xff]
    %v84 = vld [vmem:[%s0 + $0x60] sm:$0xff]
    %v85 = vld [vmem:[%s0 + $0x68] sm:$0xff]
    %v86 = vld [vmem:[%s0 + $0x70] sm:$0xff]
    %v87 = vld [vmem:[%s0 + $0x78] sm:$0xff]
    %v88 = vld [vmem:[%s5] sm:$0xff]
    %v89 = vld [vmem:[%s5 + $0x8] sm:$0xff]
    %v90 = vld [vmem:[%s6] sm:$0x1]
    %v92 = vperm.slane %v90, 0
    %vm94 = vcmask 130048
    %v96 = vsel %vm94, %v72, 0
    %v99 = vsel %vm94, %v73, 0
    %v102 = vsel %vm94, %v74, 0
    %v105 = vsel %vm94, %v75, 0
    %v108 = vsel %vm94, %v76, 0
    %v111 = vsel %vm94, %v77, 0
    %v114 = vsel %vm94, %v78, 0
    %v117 = vsel %vm94, %v79, 0
    %v120 = vsel %vm94, %v80, 0
    %v123 = vsel %vm94, %v81, 0
    %v126 = vsel %vm94, %v82, 0
    %v129 = vsel %vm94, %v83, 0
    %v132 = vsel %vm94, %v84, 0
    %v135 = vsel %vm94, %v85, 0
    %v138 = vsel %vm94, %v86, 0
    %v141 = vsel %vm94, %v87, 0
    %143 = vmatpush.msra.mxu0 0.0
    %144 = vmatpush.msra.mxu0 0.0
    %145 = vmatpush.msra.mxu0 0.0
    %146 = vmatpush.msra.mxu0 0.0
    %147 = vmatpush.msra.mxu0 0.0
    %148 = vmatpush.msra.mxu0 0.0
    %149 = vmatpush.msra.mxu0 0.0
    %150 = vmatpush.msra.mxu0 0.0
    %151 = vmatpush.msra.mxu0 0.0
    %152 = vmatpush.msra.mxu0 0.0
    %153 = vmatpush.msra.mxu0 0.0
    %154 = vmatpush.msra.mxu0 0.0
    %155 = vmatpush.msra.mxu0 0.0
    %156 = vmatpush.msra.mxu0 0.0
    %157 = vmatpush.msra.mxu0 %v89
    %158 = vmatpush.msra.mxu0 %v88
    %159 = vmatmul.f32.gmra.mxu0 %v96
    %v160 = vpop.f32.mrf.mxu0
    %v161 = vadd.f32 %v92, %v160
    %162 = vmatmul.f32.gmra.mxu0 %v99
    %v163 = vpop.f32.mrf.mxu0
    %v164 = vadd.f32 %v92, %v163
    %165 = vmatmul.f32.gmra.mxu0 %v102
    %v166 = vpop.f32.mrf.mxu0
    %v167 = vadd.f32 %v92, %v166
    %168 = vmatmul.f32.gmra.mxu0 %v105
    %v169 = vpop.f32.mrf.mxu0
    %v170 = vadd.f32 %v92, %v169
    %171 = vmatmul.f32.gmra.mxu0 %v108
    %v172 = vpop.f32.mrf.mxu0
    %v173 = vadd.f32 %v92, %v172
    %174 = vmatmul.f32.gmra.mxu0 %v111
    %v175 = vpop.f32.mrf.mxu0
    %v176 = vadd.f32 %v92, %v175
    %177 = vmatmul.f32.gmra.mxu0 %v114
    %v178 = vpop.f32.mrf.mxu0
    %v179 = vadd.f32 %v92, %v178
    %180 = vmatmul.f32.gmra.mxu0 %v117
    %v181 = vpop.f32.mrf.mxu0
    %v182 = vadd.f32 %v92, %v181
    %183 = vmatmul.f32.gmra.mxu0 %v120
    %v184 = vpop.f32.mrf.mxu0
    %v185 = vadd.f32 %v92, %v184
    %186 = vmatmul.f32.gmra.mxu0 %v123
    %v187 = vpop.f32.mrf.mxu0
    %v188 = vadd.f32 %v92, %v187
    %189 = vmatmul.f32.gmra.mxu0 %v126
    %v190 = vpop.f32.mrf.mxu0
    %v191 = vadd.f32 %v92, %v190
    %192 = vmatmul.f32.gmra.mxu0 %v129
    %v193 = vpop.f32.mrf.mxu0
    %v194 = vadd.f32 %v92, %v193
    %195 = vmatmul.f32.gmra.mxu0 %v132
    %v196 = vpop.f32.mrf.mxu0
    %v197 = vadd.f32 %v92, %v196
    %198 = vmatmul.f32.gmra.mxu0 %v135
    %v199 = vpop.f32.mrf.mxu0
    %v200 = vadd.f32 %v92, %v199
    %201 = vmatmul.f32.gmra.mxu0 %v138
    %v202 = vpop.f32.mrf.mxu0
    %v203 = vadd.f32 %v92, %v202
    %204 = vmatmul.f32.gmra.mxu0 %v141
    %v205 = vpop.f32.mrf.mxu0
    %v206 = vadd.f32 %v92, %v205
    %207 = vdwg.mxu0
    %v208 = vmax.f32 %v161, 0.0
    %v209 = vmax.f32 %v164, 0.0
    %v210 = vmax.f32 %v167, 0.0
    %v211 = vmax.f32 %v170, 0.0
    %v212 = vmax.f32 %v173, 0.0
    %v213 = vmax.f32 %v176, 0.0
    %v214 = vmax.f32 %v179, 0.0
    %v215 = vmax.f32 %v182, 0.0
    %v216 = vmax.f32 %v185, 0.0
    %v217 = vmax.f32 %v188, 0.0
    %v218 = vmax.f32 %v191, 0.0
    %v219 = vmax.f32 %v194, 0.0
    %v220 = vmax.f32 %v197, 0.0
    %v221 = vmax.f32 %v200, 0.0
    %v222 = vmax.f32 %v203, 0.0
    %v223 = vmax.f32 %v206, 0.0
    %v224 = vld [vmem:[%s1] sm:$0xff]
    %v225 = vld [vmem:[%s1 + $0x8] sm:$0xff]
    %v226 = vld [vmem:[%s1 + $0x10] sm:$0xff]
    %v227 = vld [vmem:[%s1 + $0x18] sm:$0xff]
    %v228 = vld [vmem:[%s1 + $0x20] sm:$0xff]
    %v229 = vld [vmem:[%s1 + $0x28] sm:$0xff]
    %v230 = vld [vmem:[%s1 + $0x30] sm:$0xff]
    %v231 = vld [vmem:[%s1 + $0x38] sm:$0xff]
    %v232 = vld [vmem:[%s13] sm:$0xff]
    %v233 = vld [vmem:[%s13 + $0x8] sm:$0xff]
    %v234 = vld [vmem:[%s14] sm:$0x1]
    %v236 = vperm.slane %v234, 0
    %v239 = vsel %vm94, %v224, 0
    %v242 = vsel %vm94, %v225, 0
    %v245 = vsel %vm94, %v226, 0
    %v248 = vsel %vm94, %v227, 0
    %v251 = vsel %vm94, %v228, 0
    %v254 = vsel %vm94, %v229, 0
    %v257 = vsel %vm94, %v230, 0
    %v260 = vsel %vm94, %v231, 0
    %262 = vmatpush.msra.mxu0 0.0
    %263 = vmatpush.msra.mxu0 0.0
    %264 = vmatpush.msra.mxu0 0.0
    %265 = vmatpush.msra.mxu0 0.0
    %266 = vmatpush.msra.mxu0 0.0
    %267 = vmatpush.msra.mxu0 0.0
    %268 = vmatpush.msra.mxu0 0.0
    %269 = vmatpush.msra.mxu0 0.0
    %270 = vmatpush.msra.mxu0 0.0
    %271 = vmatpush.msra.mxu0 0.0
    %272 = vmatpush.msra.mxu0 0.0
    %273 = vmatpush.msra.mxu0 0.0
    %274 = vmatpush.msra.mxu0 0.0
    %275 = vmatpush.msra.mxu0 0.0
    %276 = vmatpush.msra.mxu0 %v233
    %277 = vmatpush.msra.mxu0 %v232
    %278 = vmatmul.f32.gmra.mxu0 %v239
    %v279 = vpop.f32.mrf.mxu0
    %v280 = vadd.f32 %v236, %v279
    %281 = vmatmul.f32.gmra.mxu0 %v242
    %v282 = vpop.f32.mrf.mxu0
    %v283 = vadd.f32 %v236, %v282
    %284 = vmatmul.f32.gmra.mxu0 %v245
    %v285 = vpop.f32.mrf.mxu0
    %v286 = vadd.f32 %v236, %v285
    %287 = vmatmul.f32.gmra.mxu0 %v248
    %v288 = vpop.f32.mrf.mxu0
    %v289 = vadd.f32 %v236, %v288
    %290 = vmatmul.f32.gmra.mxu0 %v251
    %v291 = vpop.f32.mrf.mxu0
    %v292 = vadd.f32 %v236, %v291
    %293 = vmatmul.f32.gmra.mxu0 %v254
    %v294 = vpop.f32.mrf.mxu0
    %v295 = vadd.f32 %v236, %v294
    %296 = vmatmul.f32.gmra.mxu0 %v257
    %v297 = vpop.f32.mrf.mxu0
    %v298 = vadd.f32 %v236, %v297
    %299 = vmatmul.f32.gmra.mxu0 %v260
    %v300 = vpop.f32.mrf.mxu0
    %v301 = vadd.f32 %v236, %v300
    %302 = vdwg.mxu0
    %v303 = vmax.f32 %v280, 0.0
    %v304 = vmax.f32 %v283, 0.0
    %v305 = vmax.f32 %v286, 0.0
    %v306 = vmax.f32 %v289, 0.0
    %v307 = vmax.f32 %v292, 0.0
    %v308 = vmax.f32 %v295, 0.0
    %v309 = vmax.f32 %v298, 0.0
    %v310 = vmax.f32 %v301, 0.0
    %v311 = vld [vmem:[%s7] sm:$0xff]
    %v312 = vld [vmem:[%s7 + $0x8] sm:$0xff]
    %v313 = vld [vmem:[%s7 + $0x10] sm:$0xff]
    %v314 = vld [vmem:[%s7 + $0x18] sm:$0xff]
    %v315 = vld [vmem:[%s8] sm:$0x1]
    %v317 = vperm.slane %v315, 0
    %vm319 = vcmask 261120
    %v321 = vsel %vm319, %v208, 0
    %v324 = vsel %vm319, %v209, 0
    %v327 = vsel %vm319, %v210, 0
    %v330 = vsel %vm319, %v211, 0
    %v333 = vsel %vm319, %v212, 0
    %v336 = vsel %vm319, %v213, 0
    %v339 = vsel %vm319, %v214, 0
    %v342 = vsel %vm319, %v215, 0
    %v345 = vsel %vm319, %v216, 0
    %v348 = vsel %vm319, %v217, 0
    %v351 = vsel %vm319, %v218, 0
    %v354 = vsel %vm319, %v219, 0
    %v357 = vsel %vm319, %v220, 0
    %v360 = vsel %vm319, %v221, 0
    %v363 = vsel %vm319, %v222, 0
    %v366 = vsel %vm319, %v223, 0
    %368 = vmatpush.msra.mxu0 0.0
    %369 = vmatpush.msra.mxu0 0.0
    %370 = vmatpush.msra.mxu0 0.0
    %371 = vmatpush.msra.mxu0 0.0
    %372 = vmatpush.msra.mxu0 0.0
    %373 = vmatpush.msra.mxu0 0.0
    %374 = vmatpush.msra.mxu0 0.0
    %375 = vmatpush.msra.mxu0 0.0
    %376 = vmatpush.msra.mxu0 0.0
    %377 = vmatpush.msra.mxu0 0.0
    %378 = vmatpush.msra.mxu0 0.0
    %379 = vmatpush.msra.mxu0 0.0
    %380 = vmatpush.msra.mxu0 %v314
    %381 = vmatpush.msra.mxu0 %v313
    %382 = vmatpush.msra.mxu0 %v312
    %383 = vmatpush.msra.mxu0 %v311
    %384 = vmatmul.f32.gmra.mxu0 %v321
    %v385 = vpop.f32.mrf.mxu0
    %v386 = vadd.f32 %v317, %v385
    %387 = vmatmul.f32.gmra.mxu0 %v324
    %v388 = vpop.f32.mrf.mxu0
    %v389 = vadd.f32 %v317, %v388
    %390 = vmatmul.f32.gmra.mxu0 %v327
    %v391 = vpop.f32.mrf.mxu0
    %v392 = vadd.f32 %v317, %v391
    %393 = vmatmul.f32.gmra.mxu0 %v330
    %v394 = vpop.f32.mrf.mxu0
    %v395 = vadd.f32 %v317, %v394
    %396 = vmatmul.f32.gmra.mxu0 %v333
    %v397 = vpop.f32.mrf.mxu0
    %v398 = vadd.f32 %v317, %v397
    %399 = vmatmul.f32.gmra.mxu0 %v336
    %v400 = vpop.f32.mrf.mxu0
    %v401 = vadd.f32 %v317, %v400
    %402 = vmatmul.f32.gmra.mxu0 %v339
    %v403 = vpop.f32.mrf.mxu0
    %v404 = vadd.f32 %v317, %v403
    %405 = vmatmul.f32.gmra.mxu0 %v342
    %v406 = vpop.f32.mrf.mxu0
    %v407 = vadd.f32 %v317, %v406
    %408 = vmatmul.f32.gmra.mxu0 %v345
    %v409 = vpop.f32.mrf.mxu0
    %v410 = vadd.f32 %v317, %v409
    %411 = vmatmul.f32.gmra.mxu0 %v348
    %v412 = vpop.f32.mrf.mxu0
    %v413 = vadd.f32 %v317, %v412
    %414 = vmatmul.f32.gmra.mxu0 %v351
    %v415 = vpop.f32.mrf.mxu0
    %v416 = vadd.f32 %v317, %v415
    %417 = vmatmul.f32.gmra.mxu0 %v354
    %v418 = vpop.f32.mrf.mxu0
    %v419 = vadd.f32 %v317, %v418
    %420 = vmatmul.f32.gmra.mxu0 %v357
    %v421 = vpop.f32.mrf.mxu0
    %v422 = vadd.f32 %v317, %v421
    %423 = vmatmul.f32.gmra.mxu0 %v360
    %v424 = vpop.f32.mrf.mxu0
    %v425 = vadd.f32 %v317, %v424
    %426 = vmatmul.f32.gmra.mxu0 %v363
    %v427 = vpop.f32.mrf.mxu0
    %v428 = vadd.f32 %v317, %v427
    %429 = vmatmul.f32.gmra.mxu0 %v366
    %v430 = vpop.f32.mrf.mxu0
    %v431 = vadd.f32 %v317, %v430
    %432 = vdwg.mxu0
    %433 = vst.msk [vmem:[#allocation2] sm:$0xff] %vm319, %v386
    %434 = vst.msk [vmem:[#allocation2 + $0x8] sm:$0xff] %vm319, %v389
    %435 = vst.msk [vmem:[#allocation2 + $0x10] sm:$0xff] %vm319, %v392
    %436 = vst.msk [vmem:[#allocation2 + $0x18] sm:$0xff] %vm319, %v395
    %437 = vst.msk [vmem:[#allocation2 + $0x20] sm:$0xff] %vm319, %v398
    %438 = vst.msk [vmem:[#allocation2 + $0x28] sm:$0xff] %vm319, %v401
    %439 = vst.msk [vmem:[#allocation2 + $0x30] sm:$0xff] %vm319, %v404
    %440 = vst.msk [vmem:[#allocation2 + $0x38] sm:$0xff] %vm319, %v407
    %441 = vst.msk [vmem:[#allocation2 + $0x40] sm:$0xff] %vm319, %v410
    %442 = vst.msk [vmem:[#allocation2 + $0x48] sm:$0xff] %vm319, %v413
    %443 = vst.msk [vmem:[#allocation2 + $0x50] sm:$0xff] %vm319, %v416
    %444 = vst.msk [vmem:[#allocation2 + $0x58] sm:$0xff] %vm319, %v419
    %445 = vst.msk [vmem:[#allocation2 + $0x60] sm:$0xff] %vm319, %v422
    %446 = vst.msk [vmem:[#allocation2 + $0x68] sm:$0xff] %vm319, %v425
    %447 = vst.msk [vmem:[#allocation2 + $0x70] sm:$0xff] %vm319, %v428
    %448 = vst.msk [vmem:[#allocation2 + $0x78] sm:$0xff] %vm319, %v431
    %s449 = scalar_lea.vmem %s7, 32
    %v450 = vld [vmem:[%s449] sm:$0xff]
    %v451 = vld [vmem:[%s449 + $0x8] sm:$0xff]
    %v452 = vld [vmem:[%s449 + $0x10] sm:$0xff]
    %v453 = vld [vmem:[%s449 + $0x18] sm:$0xff]
    %s454 = scalar_lea.vmem %s8, 1
    %v455 = vld [vmem:[%s454] sm:$0x1]
    %v457 = vperm.slane %v455, 0
    %459 = vmatpush.msra.mxu0 0.0
    %460 = vmatpush.msra.mxu0 0.0
    %461 = vmatpush.msra.mxu0 0.0
    %462 = vmatpush.msra.mxu0 0.0
    %463 = vmatpush.msra.mxu0 0.0
    %464 = vmatpush.msra.mxu0 0.0
    %465 = vmatpush.msra.mxu0 0.0
    %466 = vmatpush.msra.mxu0 0.0
    %467 = vmatpush.msra.mxu0 0.0
    %468 = vmatpush.msra.mxu0 0.0
    %469 = vmatpush.msra.mxu0 0.0
    %470 = vmatpush.msra.mxu0 0.0
    %471 = vmatpush.msra.mxu0 %v453
    %472 = vmatpush.msra.mxu0 %v452
    %473 = vmatpush.msra.mxu0 %v451
    %474 = vmatpush.msra.mxu0 %v450
    %475 = vmatmul.f32.gmra.mxu0 %v321
    %v476 = vpop.f32.mrf.mxu0
    %v477 = vadd.f32 %v457, %v476
    %478 = vmatmul.f32.gmra.mxu0 %v324
    %v479 = vpop.f32.mrf.mxu0
    %v480 = vadd.f32 %v457, %v479
    %481 = vmatmul.f32.gmra.mxu0 %v327
    %v482 = vpop.f32.mrf.mxu0
    %v483 = vadd.f32 %v457, %v482
    %484 = vmatmul.f32.gmra.mxu0 %v330
    %v485 = vpop.f32.mrf.mxu0
    %v486 = vadd.f32 %v457, %v485
    %487 = vmatmul.f32.gmra.mxu0 %v333
    %v488 = vpop.f32.mrf.mxu0
    %v489 = vadd.f32 %v457, %v488
    %490 = vmatmul.f32.gmra.mxu0 %v336
    %v491 = vpop.f32.mrf.mxu0
    %v492 = vadd.f32 %v457, %v491
    %493 = vmatmul.f32.gmra.mxu0 %v339
    %v494 = vpop.f32.mrf.mxu0
    %v495 = vadd.f32 %v457, %v494
    %496 = vmatmul.f32.gmra.mxu0 %v342
    %v497 = vpop.f32.mrf.mxu0
    %v498 = vadd.f32 %v457, %v497
    %499 = vmatmul.f32.gmra.mxu0 %v345
    %v500 = vpop.f32.mrf.mxu0
    %v501 = vadd.f32 %v457, %v500
    %502 = vmatmul.f32.gmra.mxu0 %v348
    %v503 = vpop.f32.mrf.mxu0
    %v504 = vadd.f32 %v457, %v503
    %505 = vmatmul.f32.gmra.mxu0 %v351
    %v506 = vpop.f32.mrf.mxu0
    %v507 = vadd.f32 %v457, %v506
    %508 = vmatmul.f32.gmra.mxu0 %v354
    %v509 = vpop.f32.mrf.mxu0
    %v510 = vadd.f32 %v457, %v509
    %511 = vmatmul.f32.gmra.mxu0 %v357
    %v512 = vpop.f32.mrf.mxu0
    %v513 = vadd.f32 %v457, %v512
    %514 = vmatmul.f32.gmra.mxu0 %v360
    %v515 = vpop.f32.mrf.mxu0
    %v516 = vadd.f32 %v457, %v515
    %517 = vmatmul.f32.gmra.mxu0 %v363
    %v518 = vpop.f32.mrf.mxu0
    %v519 = vadd.f32 %v457, %v518
    %520 = vmatmul.f32.gmra.mxu0 %v366
    %v521 = vpop.f32.mrf.mxu0
    %v522 = vadd.f32 %v457, %v521
    %523 = vdwg.mxu0
    %524 = vst.msk [vmem:[#allocation3] sm:$0xff] %vm319, %v477
    %525 = vst.msk [vmem:[#allocation3 + $0x8] sm:$0xff] %vm319, %v480
    %526 = vst.msk [vmem:[#allocation3 + $0x10] sm:$0xff] %vm319, %v483
    %527 = vst.msk [vmem:[#allocation3 + $0x18] sm:$0xff] %vm319, %v486
    %528 = vst.msk [vmem:[#allocation3 + $0x20] sm:$0xff] %vm319, %v489
    %529 = vst.msk [vmem:[#allocation3 + $0x28] sm:$0xff] %vm319, %v492
    %530 = vst.msk [vmem:[#allocation3 + $0x30] sm:$0xff] %vm319, %v495
    %531 = vst.msk [vmem:[#allocation3 + $0x38] sm:$0xff] %vm319, %v498
    %532 = vst.msk [vmem:[#allocation3 + $0x40] sm:$0xff] %vm319, %v501
    %533 = vst.msk [vmem:[#allocation3 + $0x48] sm:$0xff] %vm319, %v504
    %534 = vst.msk [vmem:[#allocation3 + $0x50] sm:$0xff] %vm319, %v507
    %535 = vst.msk [vmem:[#allocation3 + $0x58] sm:$0xff] %vm319, %v510
    %536 = vst.msk [vmem:[#allocation3 + $0x60] sm:$0xff] %vm319, %v513
    %537 = vst.msk [vmem:[#allocation3 + $0x68] sm:$0xff] %vm319, %v516
    %538 = vst.msk [vmem:[#allocation3 + $0x70] sm:$0xff] %vm319, %v519
    %539 = vst.msk [vmem:[#allocation3 + $0x78] sm:$0xff] %vm319, %v522
    %s540 = scalar_lea.vmem %s7, 64
    %v541 = vld [vmem:[%s540] sm:$0xff]
    %v542 = vld [vmem:[%s540 + $0x8] sm:$0xff]
    %v543 = vld [vmem:[%s540 + $0x10] sm:$0xff]
    %v544 = vld [vmem:[%s540 + $0x18] sm:$0xff]
    %s545 = scalar_lea.vmem %s8, 2
    %v546 = vld [vmem:[%s545] sm:$0x1]
    %v548 = vperm.slane %v546, 0
    %550 = vmatpush.msra.mxu0 0.0
    %551 = vmatpush.msra.mxu0 0.0
    %552 = vmatpush.msra.mxu0 0.0
    %553 = vmatpush.msra.mxu0 0.0
    %554 = vmatpush.msra.mxu0 0.0
    %555 = vmatpush.msra.mxu0 0.0
    %556 = vmatpush.msra.mxu0 0.0
    %557 = vmatpush.msra.mxu0 0.0
    %558 = vmatpush.msra.mxu0 0.0
    %559 = vmatpush.msra.mxu0 0.0
    %560 = vmatpush.msra.mxu0 0.0
    %561 = vmatpush.msra.mxu0 0.0
    %562 = vmatpush.msra.mxu0 %v544
    %563 = vmatpush.msra.mxu0 %v543
    %564 = vmatpush.msra.mxu0 %v542
    %565 = vmatpush.msra.mxu0 %v541
    %566 = vmatmul.f32.gmra.mxu0 %v321
    %v567 = vpop.f32.mrf.mxu0
    %v568 = vadd.f32 %v548, %v567
    %569 = vmatmul.f32.gmra.mxu0 %v324
    %v570 = vpop.f32.mrf.mxu0
    %v571 = vadd.f32 %v548, %v570
    %572 = vmatmul.f32.gmra.mxu0 %v327
    %v573 = vpop.f32.mrf.mxu0
    %v574 = vadd.f32 %v548, %v573
    %575 = vmatmul.f32.gmra.mxu0 %v330
    %v576 = vpop.f32.mrf.mxu0
    %v577 = vadd.f32 %v548, %v576
    %578 = vmatmul.f32.gmra.mxu0 %v333
    %v579 = vpop.f32.mrf.mxu0
    %v580 = vadd.f32 %v548, %v579
    %581 = vmatmul.f32.gmra.mxu0 %v336
    %v582 = vpop.f32.mrf.mxu0
    %v583 = vadd.f32 %v548, %v582
    %584 = vmatmul.f32.gmra.mxu0 %v339
    %v585 = vpop.f32.mrf.mxu0
    %v586 = vadd.f32 %v548, %v585
    %587 = vmatmul.f32.gmra.mxu0 %v342
    %v588 = vpop.f32.mrf.mxu0
    %v589 = vadd.f32 %v548, %v588
    %590 = vmatmul.f32.gmra.mxu0 %v345
    %v591 = vpop.f32.mrf.mxu0
    %v592 = vadd.f32 %v548, %v591
    %593 = vmatmul.f32.gmra.mxu0 %v348
    %v594 = vpop.f32.mrf.mxu0
    %v595 = vadd.f32 %v548, %v594
    %596 = vmatmul.f32.gmra.mxu0 %v351
    %v597 = vpop.f32.mrf.mxu0
    %v598 = vadd.f32 %v548, %v597
    %599 = vmatmul.f32.gmra.mxu0 %v354
    %v600 = vpop.f32.mrf.mxu0
    %v601 = vadd.f32 %v548, %v600
    %602 = vmatmul.f32.gmra.mxu0 %v357
    %v603 = vpop.f32.mrf.mxu0
    %v604 = vadd.f32 %v548, %v603
    %605 = vmatmul.f32.gmra.mxu0 %v360
    %v606 = vpop.f32.mrf.mxu0
    %v607 = vadd.f32 %v548, %v606
    %608 = vmatmul.f32.gmra.mxu0 %v363
    %v609 = vpop.f32.mrf.mxu0
    %v610 = vadd.f32 %v548, %v609
    %611 = vmatmul.f32.gmra.mxu0 %v366
    %v612 = vpop.f32.mrf.mxu0
    %v613 = vadd.f32 %v548, %v612
    %614 = vdwg.mxu0
    %615 = vst.msk [vmem:[#allocation4] sm:$0xff] %vm319, %v568
    %616 = vst.msk [vmem:[#allocation4 + $0x8] sm:$0xff] %vm319, %v571
    %617 = vst.msk [vmem:[#allocation4 + $0x10] sm:$0xff] %vm319, %v574
    %618 = vst.msk [vmem:[#allocation4 + $0x18] sm:$0xff] %vm319, %v577
    %619 = vst.msk [vmem:[#allocation4 + $0x20] sm:$0xff] %vm319, %v580
    %620 = vst.msk [vmem:[#allocation4 + $0x28] sm:$0xff] %vm319, %v583
    %621 = vst.msk [vmem:[#allocation4 + $0x30] sm:$0xff] %vm319, %v586
    %622 = vst.msk [vmem:[#allocation4 + $0x38] sm:$0xff] %vm319, %v589
    %623 = vst.msk [vmem:[#allocation4 + $0x40] sm:$0xff] %vm319, %v592
    %624 = vst.msk [vmem:[#allocation4 + $0x48] sm:$0xff] %vm319, %v595
    %625 = vst.msk [vmem:[#allocation4 + $0x50] sm:$0xff] %vm319, %v598
    %626 = vst.msk [vmem:[#allocation4 + $0x58] sm:$0xff] %vm319, %v601
    %627 = vst.msk [vmem:[#allocation4 + $0x60] sm:$0xff] %vm319, %v604
    %628 = vst.msk [vmem:[#allocation4 + $0x68] sm:$0xff] %vm319, %v607
    %629 = vst.msk [vmem:[#allocation4 + $0x70] sm:$0xff] %vm319, %v610
    %630 = vst.msk [vmem:[#allocation4 + $0x78] sm:$0xff] %vm319, %v613
    %v631 = vld [vmem:[%s15] sm:$0xff]
    %v632 = vld [vmem:[%s15 + $0x8] sm:$0xff]
    %v633 = vld [vmem:[%s15 + $0x10] sm:$0xff]
    %v634 = vld [vmem:[%s15 + $0x18] sm:$0xff]
    %v635 = vld [vmem:[%s16] sm:$0x1]
    %v637 = vperm.slane %v635, 0
    %v640 = vsel %vm319, %v303, 0
    %v643 = vsel %vm319, %v304, 0
    %v646 = vsel %vm319, %v305, 0
    %v649 = vsel %vm319, %v306, 0
    %v652 = vsel %vm319, %v307, 0
    %v655 = vsel %vm319, %v308, 0
    %v658 = vsel %vm319, %v309, 0
    %v661 = vsel %vm319, %v310, 0
    %663 = vmatpush.msra.mxu0 0.0
    %664 = vmatpush.msra.mxu0 0.0
    %665 = vmatpush.msra.mxu0 0.0
    %666 = vmatpush.msra.mxu0 0.0
    %667 = vmatpush.msra.mxu0 0.0
    %668 = vmatpush.msra.mxu0 0.0
    %669 = vmatpush.msra.mxu0 0.0
    %670 = vmatpush.msra.mxu0 0.0
    %671 = vmatpush.msra.mxu0 0.0
    %672 = vmatpush.msra.mxu0 0.0
    %673 = vmatpush.msra.mxu0 0.0
    %674 = vmatpush.msra.mxu0 0.0
    %675 = vmatpush.msra.mxu0 %v634
    %676 = vmatpush.msra.mxu0 %v633
    %677 = vmatpush.msra.mxu0 %v632
    %678 = vmatpush.msra.mxu0 %v631
    %679 = vmatmul.f32.gmra.mxu0 %v640
    %v680 = vpop.f32.mrf.mxu0
    %v681 = vadd.f32 %v637, %v680
    %682 = vmatmul.f32.gmra.mxu0 %v643
    %v683 = vpop.f32.mrf.mxu0
    %v684 = vadd.f32 %v637, %v683
    %685 = vmatmul.f32.gmra.mxu0 %v646
    %v686 = vpop.f32.mrf.mxu0
    %v687 = vadd.f32 %v637, %v686
    %688 = vmatmul.f32.gmra.mxu0 %v649
    %v689 = vpop.f32.mrf.mxu0
    %v690 = vadd.f32 %v637, %v689
    %691 = vmatmul.f32.gmra.mxu0 %v652
    %v692 = vpop.f32.mrf.mxu0
    %v693 = vadd.f32 %v637, %v692
    %694 = vmatmul.f32.gmra.mxu0 %v655
    %v695 = vpop.f32.mrf.mxu0
    %v696 = vadd.f32 %v637, %v695
    %697 = vmatmul.f32.gmra.mxu0 %v658
    %v698 = vpop.f32.mrf.mxu0
    %v699 = vadd.f32 %v637, %v698
    %700 = vmatmul.f32.gmra.mxu0 %v661
    %v701 = vpop.f32.mrf.mxu0
    %v702 = vadd.f32 %v637, %v701
    %703 = vdwg.mxu0
    %704 = vst.msk [vmem:[#allocation5] sm:$0xff] %vm319, %v681
    %705 = vst.msk [vmem:[#allocation5 + $0x8] sm:$0xff] %vm319, %v684
    %706 = vst.msk [vmem:[#allocation5 + $0x10] sm:$0xff] %vm319, %v687
    %707 = vst.msk [vmem:[#allocation5 + $0x18] sm:$0xff] %vm319, %v690
    %708 = vst.msk [vmem:[#allocation5 + $0x20] sm:$0xff] %vm319, %v693
    %709 = vst.msk [vmem:[#allocation5 + $0x28] sm:$0xff] %vm319, %v696
    %710 = vst.msk [vmem:[#allocation5 + $0x30] sm:$0xff] %vm319, %v699
    %711 = vst.msk [vmem:[#allocation5 + $0x38] sm:$0xff] %vm319, %v702
    %s712 = scalar_lea.vmem %s15, 32
    %v713 = vld [vmem:[%s712] sm:$0xff]
    %v714 = vld [vmem:[%s712 + $0x8] sm:$0xff]
    %v715 = vld [vmem:[%s712 + $0x10] sm:$0xff]
    %v716 = vld [vmem:[%s712 + $0x18] sm:$0xff]
    %s717 = scalar_lea.vmem %s16, 1
    %v718 = vld [vmem:[%s717] sm:$0x1]
    %v720 = vperm.slane %v718, 0
    %722 = vmatpush.msra.mxu0 0.0
    %723 = vmatpush.msra.mxu0 0.0
    %724 = vmatpush.msra.mxu0 0.0
    %725 = vmatpush.msra.mxu0 0.0
    %726 = vmatpush.msra.mxu0 0.0
    %727 = vmatpush.msra.mxu0 0.0
    %728 = vmatpush.msra.mxu0 0.0
    %729 = vmatpush.msra.mxu0 0.0
    %730 = vmatpush.msra.mxu0 0.0
    %731 = vmatpush.msra.mxu0 0.0
    %732 = vmatpush.msra.mxu0 0.0
    %733 = vmatpush.msra.mxu0 0.0
    %734 = vmatpush.msra.mxu0 %v716
    %735 = vmatpush.msra.mxu0 %v715
    %736 = vmatpush.msra.mxu0 %v714
    %737 = vmatpush.msra.mxu0 %v713
    %738 = vmatmul.f32.gmra.mxu0 %v640
    %v739 = vpop.f32.mrf.mxu0
    %v740 = vadd.f32 %v720, %v739
    %741 = vmatmul.f32.gmra.mxu0 %v643
    %v742 = vpop.f32.mrf.mxu0
    %v743 = vadd.f32 %v720, %v742
    %744 = vmatmul.f32.gmra.mxu0 %v646
    %v745 = vpop.f32.mrf.mxu0
    %v746 = vadd.f32 %v720, %v745
    %747 = vmatmul.f32.gmra.mxu0 %v649
    %v748 = vpop.f32.mrf.mxu0
    %v749 = vadd.f32 %v720, %v748
    %750 = vmatmul.f32.gmra.mxu0 %v652
    %v751 = vpop.f32.mrf.mxu0
    %v752 = vadd.f32 %v720, %v751
    %753 = vmatmul.f32.gmra.mxu0 %v655
    %v754 = vpop.f32.mrf.mxu0
    %v755 = vadd.f32 %v720, %v754
    %756 = vmatmul.f32.gmra.mxu0 %v658
    %v757 = vpop.f32.mrf.mxu0
    %v758 = vadd.f32 %v720, %v757
    %759 = vmatmul.f32.gmra.mxu0 %v661
    %v760 = vpop.f32.mrf.mxu0
    %v761 = vadd.f32 %v720, %v760
    %762 = vdwg.mxu0
    %763 = vst.msk [vmem:[#allocation6] sm:$0xff] %vm319, %v740
    %764 = vst.msk [vmem:[#allocation6 + $0x8] sm:$0xff] %vm319, %v743
    %765 = vst.msk [vmem:[#allocation6 + $0x10] sm:$0xff] %vm319, %v746
    %766 = vst.msk [vmem:[#allocation6 + $0x18] sm:$0xff] %vm319, %v749
    %767 = vst.msk [vmem:[#allocation6 + $0x20] sm:$0xff] %vm319, %v752
    %768 = vst.msk [vmem:[#allocation6 + $0x28] sm:$0xff] %vm319, %v755
    %769 = vst.msk [vmem:[#allocation6 + $0x30] sm:$0xff] %vm319, %v758
    %770 = vst.msk [vmem:[#allocation6 + $0x38] sm:$0xff] %vm319, %v761
    %s771 = scalar_lea.vmem %s15, 64
    %v772 = vld [vmem:[%s771] sm:$0xff]
    %v773 = vld [vmem:[%s771 + $0x8] sm:$0xff]
    %v774 = vld [vmem:[%s771 + $0x10] sm:$0xff]
    %v775 = vld [vmem:[%s771 + $0x18] sm:$0xff]
    %s776 = scalar_lea.vmem %s16, 2
    %v777 = vld [vmem:[%s776] sm:$0x1]
    %v779 = vperm.slane %v777, 0
    %781 = vmatpush.msra.mxu0 0.0
    %782 = vmatpush.msra.mxu0 0.0
    %783 = vmatpush.msra.mxu0 0.0
    %784 = vmatpush.msra.mxu0 0.0
    %785 = vmatpush.msra.mxu0 0.0
    %786 = vmatpush.msra.mxu0 0.0
    %787 = vmatpush.msra.mxu0 0.0
    %788 = vmatpush.msra.mxu0 0.0
    %789 = vmatpush.msra.mxu0 0.0
    %790 = vmatpush.msra.mxu0 0.0
    %791 = vmatpush.msra.mxu0 0.0
    %792 = vmatpush.msra.mxu0 0.0
    %793 = vmatpush.msra.mxu0 %v775
    %794 = vmatpush.msra.mxu0 %v774
    %795 = vmatpush.msra.mxu0 %v773
    %796 = vmatpush.msra.mxu0 %v772
    %797 = vmatmul.f32.gmra.mxu0 %v640
    %v798 = vpop.f32.mrf.mxu0
    %v799 = vadd.f32 %v779, %v798
    %800 = vmatmul.f32.gmra.mxu0 %v643
    %v801 = vpop.f32.mrf.mxu0
    %v802 = vadd.f32 %v779, %v801
    %803 = vmatmul.f32.gmra.mxu0 %v646
    %v804 = vpop.f32.mrf.mxu0
    %v805 = vadd.f32 %v779, %v804
    %806 = vmatmul.f32.gmra.mxu0 %v649
    %v807 = vpop.f32.mrf.mxu0
    %v808 = vadd.f32 %v779, %v807
    %809 = vmatmul.f32.gmra.mxu0 %v652
    %v810 = vpop.f32.mrf.mxu0
    %v811 = vadd.f32 %v779, %v810
    %812 = vmatmul.f32.gmra.mxu0 %v655
    %v813 = vpop.f32.mrf.mxu0
    %v814 = vadd.f32 %v779, %v813
    %815 = vmatmul.f32.gmra.mxu0 %v658
    %v816 = vpop.f32.mrf.mxu0
    %v817 = vadd.f32 %v779, %v816
    %818 = vmatmul.f32.gmra.mxu0 %v661
    %v819 = vpop.f32.mrf.mxu0
    %v820 = vadd.f32 %v779, %v819
    %821 = vdwg.mxu0
    %822 = vst.msk [vmem:[#allocation7] sm:$0xff] %vm319, %v799
    %823 = vst.msk [vmem:[#allocation7 + $0x8] sm:$0xff] %vm319, %v802
    %824 = vst.msk [vmem:[#allocation7 + $0x10] sm:$0xff] %vm319, %v805
    %825 = vst.msk [vmem:[#allocation7 + $0x18] sm:$0xff] %vm319, %v808
    %826 = vst.msk [vmem:[#allocation7 + $0x20] sm:$0xff] %vm319, %v811
    %827 = vst.msk [vmem:[#allocation7 + $0x28] sm:$0xff] %vm319, %v814
    %828 = vst.msk [vmem:[#allocation7 + $0x30] sm:$0xff] %vm319, %v817
    %829 = vst.msk [vmem:[#allocation7 + $0x38] sm:$0xff] %vm319, %v820
    %v830 = vld [vmem:[#allocation2] sm:$0xff]
    %v831 = vld [vmem:[#allocation2 + $0x8] sm:$0xff]
    %v832 = vld [vmem:[#allocation3] sm:$0xff]
    %v833 = vld [vmem:[#allocation3 + $0x8] sm:$0xff]
    %v834 = vld [vmem:[#allocation4] sm:$0xff]
    %v835 = vld [vmem:[#allocation4 + $0x8] sm:$0xff]
    %v836 = vld [vmem:[%s9] sm:$0xff]
    %v837 = vld [vmem:[%s9 + $0x8] sm:$0xff]
    %v838 = vld [vmem:[%s9 + $0x10] sm:$0xff]
    %v839 = vld [vmem:[%s9 + $0x18] sm:$0xff]
    %v840 = vld [vmem:[%s10] sm:$0x1]
    %v842 = vperm.slane %v840, 0
    %v845 = vsel %vm319, 0.0, 0
    %847 = vmatpush.msra.mxu0 0.0
    %848 = vmatpush.msra.mxu0 0.0
    %849 = vmatpush.msra.mxu0 0.0
    %850 = vmatpush.msra.mxu0 0.0
    %851 = vmatpush.msra.mxu0 0.0
    %852 = vmatpush.msra.mxu0 0.0
    %853 = vmatpush.msra.mxu0 0.0
    %854 = vmatpush.msra.mxu0 0.0
    %855 = vmatpush.msra.mxu0 0.0
    %856 = vmatpush.msra.mxu0 0.0
    %857 = vmatpush.msra.mxu0 0.0
    %858 = vmatpush.msra.mxu0 0.0
    %859 = vmatpush.msra.mxu0 %v839
    %860 = vmatpush.msra.mxu0 %v838
    %861 = vmatpush.msra.mxu0 %v837
    %862 = vmatpush.msra.mxu0 %v836
    %863 = vmatmul.f32.gmra.mxu0 %v845
    %v864 = vpop.f32.mrf.mxu0
    %v865 = vadd.f32 %v842, %v864
    %866 = vmatmul.f32.gmra.mxu0 %v845
    %v867 = vpop.f32.mrf.mxu0
    %v868 = vadd.f32 %v842, %v867
    %869 = vdwg.mxu0
    %s870 = scalar_lea.vmem %s9, 32
    %v871 = vld [vmem:[%s870] sm:$0xff]
    %v872 = vld [vmem:[%s870 + $0x8] sm:$0xff]
    %v873 = vld [vmem:[%s870 + $0x10] sm:$0xff]
    %v874 = vld [vmem:[%s870 + $0x18] sm:$0xff]
    %s875 = scalar_lea.vmem %s10, 1
    %v876 = vld [vmem:[%s875] sm:$0x1]
    %v878 = vperm.slane %v876, 0
    %880 = vmatpush.msra.mxu0 0.0
    %881 = vmatpush.msra.mxu0 0.0
    %882 = vmatpush.msra.mxu0 0.0
    %883 = vmatpush.msra.mxu0 0.0
    %884 = vmatpush.msra.mxu0 0.0
    %885 = vmatpush.msra.mxu0 0.0
    %886 = vmatpush.msra.mxu0 0.0
    %887 = vmatpush.msra.mxu0 0.0
    %888 = vmatpush.msra.mxu0 0.0
    %889 = vmatpush.msra.mxu0 0.0
    %890 = vmatpush.msra.mxu0 0.0
    %891 = vmatpush.msra.mxu0 0.0
    %892 = vmatpush.msra.mxu0 %v874
    %893 = vmatpush.msra.mxu0 %v873
    %894 = vmatpush.msra.mxu0 %v872
    %895 = vmatpush.msra.mxu0 %v871
    %896 = vmatmul.f32.gmra.mxu0 %v845
    %v897 = vpop.f32.mrf.mxu0
    %v898 = vadd.f32 %v878, %v897
    %899 = vmatmul.f32.gmra.mxu0 %v845
    %v900 = vpop.f32.mrf.mxu0
    %v901 = vadd.f32 %v878, %v900
    %902 = vdwg.mxu0
    %s903 = scalar_lea.vmem %s9, 64
    %v904 = vld [vmem:[%s903] sm:$0xff]
    %v905 = vld [vmem:[%s903 + $0x8] sm:$0xff]
    %v906 = vld [vmem:[%s903 + $0x10] sm:$0xff]
    %v907 = vld [vmem:[%s903 + $0x18] sm:$0xff]
    %s908 = scalar_lea.vmem %s10, 2
    %v909 = vld [vmem:[%s908] sm:$0x1]
    %v911 = vperm.slane %v909, 0
    %913 = vmatpush.msra.mxu0 0.0
    %914 = vmatpush.msra.mxu0 0.0
    %915 = vmatpush.msra.mxu0 0.0
    %916 = vmatpush.msra.mxu0 0.0
    %917 = vmatpush.msra.mxu0 0.0
    %918 = vmatpush.msra.mxu0 0.0
    %919 = vmatpush.msra.mxu0 0.0
    %920 = vmatpush.msra.mxu0 0.0
    %921 = vmatpush.msra.mxu0 0.0
    %922 = vmatpush.msra.mxu0 0.0
    %923 = vmatpush.msra.mxu0 0.0
    %924 = vmatpush.msra.mxu0 0.0
    %925 = vmatpush.msra.mxu0 %v907
    %926 = vmatpush.msra.mxu0 %v906
    %927 = vmatpush.msra.mxu0 %v905
    %928 = vmatpush.msra.mxu0 %v904
    %929 = vmatmul.f32.gmra.mxu0 %v845
    %v930 = vpop.f32.mrf.mxu0
    %v931 = vadd.f32 %v911, %v930
    %932 = vmatmul.f32.gmra.mxu0 %v845
    %v933 = vpop.f32.mrf.mxu0
    %v934 = vadd.f32 %v911, %v933
    %935 = vdwg.mxu0
    %v936 = vadd.f32 %v830, %v865
    %v937 = vadd.f32 %v831, %v868
    %v938 = vxor.u32 %v936, 2147483648
    %v939 = vxor.u32 %v937, 2147483648
    %v940 = vmul.f32 %v938, 1.442695
    %v941 = vpow.pop %v940
    %v942 = vmul.f32 %v939, 1.442695
    %v943 = vpow.pop %v942
    %v944 = vadd.f32 %v941, 1.0
    %v945 = vadd.f32 %v943, 1.0
    %v946 = vrcp.pop %v944
    %v947 = vmul.f32 %v944, %v946
    %v948 = vsub.f32 1.0, %v947
    %v949 = vmul.f32 %v946, %v948
    %v950 = vadd.f32 %v946, %v949
    %vm951 = vweird.f32 %v944
    %vm952 = vweird.f32 %v946
    %vm953 = vmor %vm951, %vm952
    %v954 = vsel %vm953, %v946, %v950
    %v955 = vand.u32 2147483647, %v944
    %vm956 = vcmp.eq.f32.partialorder %v955, 8.507059e+37
    %v957 = vand.u32 %v944, 2147483648
    %v958 = vor.u32 1.1754944e-38, %v957
    %v959 = vsel %vm956, %v958, %v954
    %v960 = vmul.f32 1.0, %v959
    %v961 = vrcp.pop %v945
    %v962 = vmul.f32 %v945, %v961
    %v963 = vsub.f32 1.0, %v962
    %v964 = vmul.f32 %v961, %v963
    %v965 = vadd.f32 %v961, %v964
    %vm966 = vweird.f32 %v945
    %vm967 = vweird.f32 %v961
    %vm968 = vmor %vm966, %vm967
    %v969 = vsel %vm968, %v961, %v965
    %v970 = vand.u32 2147483647, %v945
    %vm971 = vcmp.eq.f32.partialorder %v970, 8.507059e+37
    %v972 = vand.u32 %v945, 2147483648
    %v973 = vor.u32 1.1754944e-38, %v972
    %v974 = vsel %vm971, %v973, %v969
    %v975 = vmul.f32 1.0, %v974
    %v976 = vadd.f32 %v832, %v898
    %v977 = vadd.f32 %v833, %v901
    %v978 = vxor.u32 %v976, 2147483648
    %v979 = vxor.u32 %v977, 2147483648
    %v980 = vmul.f32 %v978, 1.442695
    %v981 = vpow.pop %v980
    %v982 = vmul.f32 %v979, 1.442695
    %v983 = vpow.pop %v982
    %v984 = vadd.f32 %v981, 1.0
    %v985 = vadd.f32 %v983, 1.0
    %v986 = vrcp.pop %v984
    %v987 = vmul.f32 %v984, %v986
    %v988 = vsub.f32 1.0, %v987
    %v989 = vmul.f32 %v986, %v988
    %v990 = vadd.f32 %v986, %v989
    %vm991 = vweird.f32 %v984
    %vm992 = vweird.f32 %v986
    %vm993 = vmor %vm991, %vm992
    %v994 = vsel %vm993, %v986, %v990
    %v995 = vand.u32 2147483647, %v984
    %vm996 = vcmp.eq.f32.partialorder %v995, 8.507059e+37
    %v997 = vand.u32 %v984, 2147483648
    %v998 = vor.u32 1.1754944e-38, %v997
    %v999 = vsel %vm996, %v998, %v994
    %v1000 = vmul.f32 1.0, %v999
    %v1001 = vrcp.pop %v985
    %v1002 = vmul.f32 %v985, %v1001
    %v1003 = vsub.f32 1.0, %v1002
    %v1004 = vmul.f32 %v1001, %v1003
    %v1005 = vadd.f32 %v1001, %v1004
    %vm1006 = vweird.f32 %v985
    %vm1007 = vweird.f32 %v1001
    %vm1008 = vmor %vm1006, %vm1007
    %v1009 = vsel %vm1008, %v1001, %v1005
    %v1010 = vand.u32 2147483647, %v985
    %vm1011 = vcmp.eq.f32.partialorder %v1010, 8.507059e+37
    %v1012 = vand.u32 %v985, 2147483648
    %v1013 = vor.u32 1.1754944e-38, %v1012
    %v1014 = vsel %vm1011, %v1013, %v1009
    %v1015 = vmul.f32 1.0, %v1014
    %v1016 = vmul.f32 %v960, %v931
    %v1017 = vmul.f32 %v975, %v934
    %v1018 = vadd.f32 %v834, %v1016
    %v1019 = vadd.f32 %v835, %v1017
    %v1020 = vtanh.pop %v1018
    %v1021 = vtanh.pop %v1019
    %v1022 = vsub.f32 1.0, %v1000
    %v1023 = vsub.f32 1.0, %v1015
    %v1024 = vmul.f32 %v1022, %v1020
    %v1025 = vmul.f32 %v1023, %v1021
    %v1026 = vmul.f32 %v1000, 0.0
    %v1027 = vmul.f32 %v1015, 0.0
    %v1028 = vadd.f32 %v1024, %v1026
    %v1029 = vadd.f32 %v1025, %v1027
    %v1030 = vld [vmem:[#allocation5] sm:$0xff]
    %v1031 = vld [vmem:[#allocation6] sm:$0xff]
    %v1032 = vld [vmem:[#allocation7] sm:$0xff]
    %v1033 = vld [vmem:[%s17] sm:$0xff]
    %v1034 = vld [vmem:[%s17 + $0x8] sm:$0xff]
    %v1035 = vld [vmem:[%s17 + $0x10] sm:$0xff]
    %v1036 = vld [vmem:[%s17 + $0x18] sm:$0xff]
    %v1037 = vld [vmem:[%s18] sm:$0x1]
    %v1039 = vperm.slane %v1037, 0
    %1041 = vmatpush.msra.mxu0 0.0
    %1042 = vmatpush.msra.mxu0 0.0
    %1043 = vmatpush.msra.mxu0 0.0
    %1044 = vmatpush.msra.mxu0 0.0
    %1045 = vmatpush.msra.mxu0 0.0
    %1046 = vmatpush.msra.mxu0 0.0
    %1047 = vmatpush.msra.mxu0 0.0
    %1048 = vmatpush.msra.mxu0 0.0
    %1049 = vmatpush.msra.mxu0 0.0
    %1050 = vmatpush.msra.mxu0 0.0
    %1051 = vmatpush.msra.mxu0 0.0
    %1052 = vmatpush.msra.mxu0 0.0
    %1053 = vmatpush.msra.mxu0 %v1036
    %1054 = vmatpush.msra.mxu0 %v1035
    %1055 = vmatpush.msra.mxu0 %v1034
    %1056 = vmatpush.msra.mxu0 %v1033
    %1057 = vmatmul.f32.gmra.mxu0 %v845
    %v1058 = vpop.f32.mrf.mxu0
    %v1059 = vadd.f32 %v1039, %v1058
    %1060 = vdwg.mxu0
    %s1061 = scalar_lea.vmem %s17, 32
    %v1062 = vld [vmem:[%s1061] sm:$0xff]
    %v1063 = vld [vmem:[%s1061 + $0x8] sm:$0xff]
    %v1064 = vld [vmem:[%s1061 + $0x10] sm:$0xff]
    %v1065 = vld [vmem:[%s1061 + $0x18] sm:$0xff]
    %s1066 = scalar_lea.vmem %s18, 1
    %v1067 = vld [vmem:[%s1066] sm:$0x1]
    %v1069 = vperm.slane %v1067, 0
    %1071 = vmatpush.msra.mxu0 0.0
    %1072 = vmatpush.msra.mxu0 0.0
    %1073 = vmatpush.msra.mxu0 0.0
    %1074 = vmatpush.msra.mxu0 0.0
    %1075 = vmatpush.msra.mxu0 0.0
    %1076 = vmatpush.msra.mxu0 0.0
    %1077 = vmatpush.msra.mxu0 0.0
    %1078 = vmatpush.msra.mxu0 0.0
    %1079 = vmatpush.msra.mxu0 0.0
    %1080 = vmatpush.msra.mxu0 0.0
    %1081 = vmatpush.msra.mxu0 0.0
    %1082 = vmatpush.msra.mxu0 0.0
    %1083 = vmatpush.msra.mxu0 %v1065
    %1084 = vmatpush.msra.mxu0 %v1064
    %1085 = vmatpush.msra.mxu0 %v1063
    %1086 = vmatpush.msra.mxu0 %v1062
    %1087 = vmatmul.f32.gmra.mxu0 %v845
    %v1088 = vpop.f32.mrf.mxu0
    %v1089 = vadd.f32 %v1069, %v1088
    %1090 = vdwg.mxu0
    %s1091 = scalar_lea.vmem %s17, 64
    %v1092 = vld [vmem:[%s1091] sm:$0xff]
    %v1093 = vld [vmem:[%s1091 + $0x8] sm:$0xff]
    %v1094 = vld [vmem:[%s1091 + $0x10] sm:$0xff]
    %v1095 = vld [vmem:[%s1091 + $0x18] sm:$0xff]
    %s1096 = scalar_lea.vmem %s18, 2
    %v1097 = vld [vmem:[%s1096] sm:$0x1]
    %v1099 = vperm.slane %v1097, 0
    %1101 = vmatpush.msra.mxu0 0.0
    %1102 = vmatpush.msra.mxu0 0.0
    %1103 = vmatpush.msra.mxu0 0.0
    %1104 = vmatpush.msra.mxu0 0.0
    %1105 = vmatpush.msra.mxu0 0.0
    %1106 = vmatpush.msra.mxu0 0.0
    %1107 = vmatpush.msra.mxu0 0.0
    %1108 = vmatpush.msra.mxu0 0.0
    %1109 = vmatpush.msra.mxu0 0.0
    %1110 = vmatpush.msra.mxu0 0.0
    %1111 = vmatpush.msra.mxu0 0.0
    %1112 = vmatpush.msra.mxu0 0.0
    %1113 = vmatpush.msra.mxu0 %v1095
    %1114 = vmatpush.msra.mxu0 %v1094
    %1115 = vmatpush.msra.mxu0 %v1093
    %1116 = vmatpush.msra.mxu0 %v1092
    %1117 = vmatmul.f32.gmra.mxu0 %v845
    %v1118 = vpop.f32.mrf.mxu0
    %v1119 = vadd.f32 %v1099, %v1118
    %1120 = vdwg.mxu0
    %v1121 = vadd.f32 %v1030, %v1059
    %v1122 = vxor.u32 %v1121, 2147483648
    %v1123 = vmul.f32 %v1122, 1.442695
    %v1124 = vpow.pop %v1123
    %v1125 = vadd.f32 %v1124, 1.0
    %v1126 = vrcp.pop %v1125
    %v1127 = vmul.f32 %v1125, %v1126
    %v1128 = vsub.f32 1.0, %v1127
    %v1129 = vmul.f32 %v1126, %v1128
    %v1130 = vadd.f32 %v1126, %v1129
    %vm1131 = vweird.f32 %v1125
    %vm1132 = vweird.f32 %v1126
    %vm1133 = vmor %vm1131, %vm1132
    %v1134 = vsel %vm1133, %v1126, %v1130
    %v1135 = vand.u32 2147483647, %v1125
    %vm1136 = vcmp.eq.f32.partialorder %v1135, 8.507059e+37
    %v1137 = vand.u32 %v1125, 2147483648
    %v1138 = vor.u32 1.1754944e-38, %v1137
    %v1139 = vsel %vm1136, %v1138, %v1134
    %v1140 = vmul.f32 1.0, %v1139
    %v1141 = vadd.f32 %v1031, %v1089
    %v1142 = vxor.u32 %v1141, 2147483648
    %v1143 = vmul.f32 %v1142, 1.442695
    %v1144 = vpow.pop %v1143
    %v1145 = vadd.f32 %v1144, 1.0
    %v1146 = vrcp.pop %v1145
    %v1147 = vmul.f32 %v1145, %v1146
    %v1148 = vsub.f32 1.0, %v1147
    %v1149 = vmul.f32 %v1146, %v1148
    %v1150 = vadd.f32 %v1146, %v1149
    %vm1151 = vweird.f32 %v1145
    %vm1152 = vweird.f32 %v1146
    %vm1153 = vmor %vm1151, %vm1152
    %v1154 = vsel %vm1153, %v1146, %v1150
    %v1155 = vand.u32 2147483647, %v1145
    %vm1156 = vcmp.eq.f32.partialorder %v1155, 8.507059e+37
    %v1157 = vand.u32 %v1145, 2147483648
    %v1158 = vor.u32 1.1754944e-38, %v1157
    %v1159 = vsel %vm1156, %v1158, %v1154
    %v1160 = vmul.f32 1.0, %v1159
    %v1161 = vmul.f32 %v1140, %v1119
    %v1162 = vadd.f32 %v1032, %v1161
    %v1163 = vtanh.pop %v1162
    %v1164 = vsub.f32 1.0, %v1160
    %v1165 = vmul.f32 %v1164, %v1163
    %v1166 = vmul.f32 %v1160, 0.0
    %v1167 = vadd.f32 %v1165, %v1166
    %1168 = vst.msk [vmem:[#allocation8] sm:$0xff] %vm319, %v1028
    %1169 = vst.msk [vmem:[#allocation8 + $0x8] sm:$0xff] %vm319, %v1029
    %1170 = vst.msk [vmem:[#allocation9] sm:$0xff] %vm319, %v1167
    %s1171 = scalar_lea.vmem [#allocation2], 16
    %v1172 = vld [vmem:[%s1171] sm:$0xff]
    %v1173 = vld [vmem:[%s1171 + $0x8] sm:$0xff]
    %s1174 = scalar_lea.vmem [#allocation3], 16
    %v1175 = vld [vmem:[%s1174] sm:$0xff]
    %v1176 = vld [vmem:[%s1174 + $0x8] sm:$0xff]
    %s1177 = scalar_lea.vmem [#allocation4], 16
    %v1178 = vld [vmem:[%s1177] sm:$0xff]
    %v1179 = vld [vmem:[%s1177 + $0x8] sm:$0xff]
    %v1180 = vld [vmem:[%s9] sm:$0xff]
    %v1181 = vld [vmem:[%s9 + $0x8] sm:$0xff]
    %v1182 = vld [vmem:[%s9 + $0x10] sm:$0xff]
    %v1183 = vld [vmem:[%s9 + $0x18] sm:$0xff]
    %v1184 = vld [vmem:[%s10] sm:$0x1]
    %v1186 = vperm.slane %v1184, 0
    %v1189 = vsel %vm319, %v1028, 0
    %v1192 = vsel %vm319, %v1029, 0
    %1194 = vmatpush.msra.mxu0 0.0
    %1195 = vmatpush.msra.mxu0 0.0
    %1196 = vmatpush.msra.mxu0 0.0
    %1197 = vmatpush.msra.mxu0 0.0
    %1198 = vmatpush.msra.mxu0 0.0
    %1199 = vmatpush.msra.mxu0 0.0
    %1200 = vmatpush.msra.mxu0 0.0
    %1201 = vmatpush.msra.mxu0 0.0
    %1202 = vmatpush.msra.mxu0 0.0
    %1203 = vmatpush.msra.mxu0 0.0
    %1204 = vmatpush.msra.mxu0 0.0
    %1205 = vmatpush.msra.mxu0 0.0
    %1206 = vmatpush.msra.mxu0 %v1183
    %1207 = vmatpush.msra.mxu0 %v1182
    %1208 = vmatpush.msra.mxu0 %v1181
    %1209 = vmatpush.msra.mxu0 %v1180
    %1210 = vmatmul.f32.gmra.mxu0 %v1189
    %v1211 = vpop.f32.mrf.mxu0
    %v1212 = vadd.f32 %v1186, %v1211
    %1213 = vmatmul.f32.gmra.mxu0 %v1192
    %v1214 = vpop.f32.mrf.mxu0
    %v1215 = vadd.f32 %v1186, %v1214
    %1216 = vdwg.mxu0
    %v1217 = vld [vmem:[%s870] sm:$0xff]
    %v1218 = vld [vmem:[%s870 + $0x8] sm:$0xff]
    %v1219 = vld [vmem:[%s870 + $0x10] sm:$0xff]
    %v1220 = vld [vmem:[%s870 + $0x18] sm:$0xff]
    %v1221 = vld [vmem:[%s875] sm:$0x1]
    %v1223 = vperm.slane %v1221, 0
    %1225 = vmatpush.msra.mxu0 0.0
    %1226 = vmatpush.msra.mxu0 0.0
    %1227 = vmatpush.msra.mxu0 0.0
    %1228 = vmatpush.msra.mxu0 0.0
    %1229 = vmatpush.msra.mxu0 0.0
    %1230 = vmatpush.msra.mxu0 0.0
    %1231 = vmatpush.msra.mxu0 0.0
    %1232 = vmatpush.msra.mxu0 0.0
    %1233 = vmatpush.msra.mxu0 0.0
    %1234 = vmatpush.msra.mxu0 0.0
    %1235 = vmatpush.msra.mxu0 0.0
    %1236 = vmatpush.msra.mxu0 0.0
    %1237 = vmatpush.msra.mxu0 %v1220
    %1238 = vmatpush.msra.mxu0 %v1219
    %1239 = vmatpush.msra.mxu0 %v1218
    %1240 = vmatpush.msra.mxu0 %v1217
    %1241 = vmatmul.f32.gmra.mxu0 %v1189
    %v1242 = vpop.f32.mrf.mxu0
    %v1243 = vadd.f32 %v1223, %v1242
    %1244 = vmatmul.f32.gmra.mxu0 %v1192
    %v1245 = vpop.f32.mrf.mxu0
    %v1246 = vadd.f32 %v1223, %v1245
    %1247 = vdwg.mxu0
    %v1248 = vld [vmem:[%s903] sm:$0xff]
    %v1249 = vld [vmem:[%s903 + $0x8] sm:$0xff]
    %v1250 = vld [vmem:[%s903 + $0x10] sm:$0xff]
    %v1251 = vld [vmem:[%s903 + $0x18] sm:$0xff]
    %v1252 = vld [vmem:[%s908] sm:$0x1]
    %v1254 = vperm.slane %v1252, 0
    %1256 = vmatpush.msra.mxu0 0.0
    %1257 = vmatpush.msra.mxu0 0.0
    %1258 = vmatpush.msra.mxu0 0.0
    %1259 = vmatpush.msra.mxu0 0.0
    %1260 = vmatpush.msra.mxu0 0.0
    %1261 = vmatpush.msra.mxu0 0.0
    %1262 = vmatpush.msra.mxu0 0.0
    %1263 = vmatpush.msra.mxu0 0.0
    %1264 = vmatpush.msra.mxu0 0.0
    %1265 = vmatpush.msra.mxu0 0.0
    %1266 = vmatpush.msra.mxu0 0.0
    %1267 = vmatpush.msra.mxu0 0.0
    %1268 = vmatpush.msra.mxu0 %v1251
    %1269 = vmatpush.msra.mxu0 %v1250
    %1270 = vmatpush.msra.mxu0 %v1249
    %1271 = vmatpush.msra.mxu0 %v1248
    %1272 = vmatmul.f32.gmra.mxu0 %v1189
    %v1273 = vpop.f32.mrf.mxu0
    %v1274 = vadd.f32 %v1254, %v1273
    %1275 = vmatmul.f32.gmra.mxu0 %v1192
    %v1276 = vpop.f32.mrf.mxu0
    %v1277 = vadd.f32 %v1254, %v1276
    %1278 = vdwg.mxu0
    %v1279 = vadd.f32 %v1172, %v1212
    %v1280 = vadd.f32 %v1173, %v1215
    %v1281 = vxor.u32 %v1279, 2147483648
    %v1282 = vxor.u32 %v1280, 2147483648
    %v1283 = vmul.f32 %v1281, 1.442695
    %v1284 = vpow.pop %v1283
    %v1285 = vmul.f32 %v1282, 1.442695
    %v1286 = vpow.pop %v1285
    %v1287 = vadd.f32 %v1284, 1.0
    %v1288 = vadd.f32 %v1286, 1.0
    %v1289 = vrcp.pop %v1287
    %v1290 = vmul.f32 %v1287, %v1289
    %v1291 = vsub.f32 1.0, %v1290
    %v1292 = vmul.f32 %v1289, %v1291
    %v1293 = vadd.f32 %v1289, %v1292
    %vm1294 = vweird.f32 %v1287
    %vm1295 = vweird.f32 %v1289
    %vm1296 = vmor %vm1294, %vm1295
    %v1297 = vsel %vm1296, %v1289, %v1293
    %v1298 = vand.u32 2147483647, %v1287
    %vm1299 = vcmp.eq.f32.partialorder %v1298, 8.507059e+37
    %v1300 = vand.u32 %v1287, 2147483648
    %v1301 = vor.u32 1.1754944e-38, %v1300
    %v1302 = vsel %vm1299, %v1301, %v1297
    %v1303 = vmul.f32 1.0, %v1302
    %v1304 = vrcp.pop %v1288
    %v1305 = vmul.f32 %v1288, %v1304
    %v1306 = vsub.f32 1.0, %v1305
    %v1307 = vmul.f32 %v1304, %v1306
    %v1308 = vadd.f32 %v1304, %v1307
    %vm1309 = vweird.f32 %v1288
    %vm1310 = vweird.f32 %v1304
    %vm1311 = vmor %vm1309, %vm1310
    %v1312 = vsel %vm1311, %v1304, %v1308
    %v1313 = vand.u32 2147483647, %v1288
    %vm1314 = vcmp.eq.f32.partialorder %v1313, 8.507059e+37
    %v1315 = vand.u32 %v1288, 2147483648
    %v1316 = vor.u32 1.1754944e-38, %v1315
    %v1317 = vsel %vm1314, %v1316, %v1312
    %v1318 = vmul.f32 1.0, %v1317
    %v1319 = vadd.f32 %v1175, %v1243
    %v1320 = vadd.f32 %v1176, %v1246
    %v1321 = vxor.u32 %v1319, 2147483648
    %v1322 = vxor.u32 %v1320, 2147483648
    %v1323 = vmul.f32 %v1321, 1.442695
    %v1324 = vpow.pop %v1323
    %v1325 = vmul.f32 %v1322, 1.442695
    %v1326 = vpow.pop %v1325
    %v1327 = vadd.f32 %v1324, 1.0
    %v1328 = vadd.f32 %v1326, 1.0
    %v1329 = vrcp.pop %v1327
    %v1330 = vmul.f32 %v1327, %v1329
    %v1331 = vsub.f32 1.0, %v1330
    %v1332 = vmul.f32 %v1329, %v1331
    %v1333 = vadd.f32 %v1329, %v1332
    %vm1334 = vweird.f32 %v1327
    %vm1335 = vweird.f32 %v1329
    %vm1336 = vmor %vm1334, %vm1335
    %v1337 = vsel %vm1336, %v1329, %v1333
    %v1338 = vand.u32 2147483647, %v1327
    %vm1339 = vcmp.eq.f32.partialorder %v1338, 8.507059e+37
    %v1340 = vand.u32 %v1327, 2147483648
    %v1341 = vor.u32 1.1754944e-38, %v1340
    %v1342 = vsel %vm1339, %v1341, %v1337
    %v1343 = vmul.f32 1.0, %v1342
    %v1344 = vrcp.pop %v1328
    %v1345 = vmul.f32 %v1328, %v1344
    %v1346 = vsub.f32 1.0, %v1345
    %v1347 = vmul.f32 %v1344, %v1346
    %v1348 = vadd.f32 %v1344, %v1347
    %vm1349 = vweird.f32 %v1328
    %vm1350 = vweird.f32 %v1344
    %vm1351 = vmor %vm1349, %vm1350
    %v1352 = vsel %vm1351, %v1344, %v1348
    %v1353 = vand.u32 2147483647, %v1328
    %vm1354 = vcmp.eq.f32.partialorder %v1353, 8.507059e+37
    %v1355 = vand.u32 %v1328, 2147483648
    %v1356 = vor.u32 1.1754944e-38, %v1355
    %v1357 = vsel %vm1354, %v1356, %v1352
    %v1358 = vmul.f32 1.0, %v1357
    %v1359 = vmul.f32 %v1303, %v1274
    %v1360 = vmul.f32 %v1318, %v1277
    %v1361 = vadd.f32 %v1178, %v1359
    %v1362 = vadd.f32 %v1179, %v1360
    %v1363 = vtanh.pop %v1361
    %v1364 = vtanh.pop %v1362
    %v1365 = vsub.f32 1.0, %v1343
    %v1366 = vsub.f32 1.0, %v1358
    %v1367 = vmul.f32 %v1365, %v1363
    %v1368 = vmul.f32 %v1366, %v1364
    %v1369 = vmul.f32 %v1343, %v1028
    %v1370 = vmul.f32 %v1358, %v1029
    %v1371 = vadd.f32 %v1367, %v1369
    %v1372 = vadd.f32 %v1368, %v1370
    %s1373 = scalar_lea.vmem [#allocation5], 8
    %v1374 = vld [vmem:[%s1373] sm:$0xff]
    %s1375 = scalar_lea.vmem [#allocation6], 8
    %v1376 = vld [vmem:[%s1375] sm:$0xff]
    %s1377 = scalar_lea.vmem [#allocation7], 8
    %v1378 = vld [vmem:[%s1377] sm:$0xff]
    %v1379 = vld [vmem:[%s17] sm:$0xff]
    %v1380 = vld [vmem:[%s17 + $0x8] sm:$0xff]
    %v1381 = vld [vmem:[%s17 + $0x10] sm:$0xff]
    %v1382 = vld [vmem:[%s17 + $0x18] sm:$0xff]
    %v1383 = vld [vmem:[%s18] sm:$0x1]
    %v1385 = vperm.slane %v1383, 0
    %v1388 = vsel %vm319, %v1167, 0
    %1390 = vmatpush.msra.mxu0 0.0
    %1391 = vmatpush.msra.mxu0 0.0
    %1392 = vmatpush.msra.mxu0 0.0
    %1393 = vmatpush.msra.mxu0 0.0
    %1394 = vmatpush.msra.mxu0 0.0
    %1395 = vmatpush.msra.mxu0 0.0
    %1396 = vmatpush.msra.mxu0 0.0
    %1397 = vmatpush.msra.mxu0 0.0
    %1398 = vmatpush.msra.mxu0 0.0
    %1399 = vmatpush.msra.mxu0 0.0
    %1400 = vmatpush.msra.mxu0 0.0
    %1401 = vmatpush.msra.mxu0 0.0
    %1402 = vmatpush.msra.mxu0 %v1382
    %1403 = vmatpush.msra.mxu0 %v1381
    %1404 = vmatpush.msra.mxu0 %v1380
    %1405 = vmatpush.msra.mxu0 %v1379
    %1406 = vmatmul.f32.gmra.mxu0 %v1388
    %v1407 = vpop.f32.mrf.mxu0
    %v1408 = vadd.f32 %v1385, %v1407
    %1409 = vdwg.mxu0
    %v1410 = vld [vmem:[%s1061] sm:$0xff]
    %v1411 = vld [vmem:[%s1061 + $0x8] sm:$0xff]
    %v1412 = vld [vmem:[%s1061 + $0x10] sm:$0xff]
    %v1413 = vld [vmem:[%s1061 + $0x18] sm:$0xff]
    %v1414 = vld [vmem:[%s1066] sm:$0x1]
    %v1416 = vperm.slane %v1414, 0
    %1418 = vmatpush.msra.mxu0 0.0
    %1419 = vmatpush.msra.mxu0 0.0
    %1420 = vmatpush.msra.mxu0 0.0
    %1421 = vmatpush.msra.mxu0 0.0
    %1422 = vmatpush.msra.mxu0 0.0
    %1423 = vmatpush.msra.mxu0 0.0
    %1424 = vmatpush.msra.mxu0 0.0
    %1425 = vmatpush.msra.mxu0 0.0
    %1426 = vmatpush.msra.mxu0 0.0
    %1427 = vmatpush.msra.mxu0 0.0
    %1428 = vmatpush.msra.mxu0 0.0
    %1429 = vmatpush.msra.mxu0 0.0
    %1430 = vmatpush.msra.mxu0 %v1413
    %1431 = vmatpush.msra.mxu0 %v1412
    %1432 = vmatpush.msra.mxu0 %v1411
    %1433 = vmatpush.msra.mxu0 %v1410
    %1434 = vmatmul.f32.gmra.mxu0 %v1388
    %v1435 = vpop.f32.mrf.mxu0
    %v1436 = vadd.f32 %v1416, %v1435
    %1437 = vdwg.mxu0
    %v1438 = vld [vmem:[%s1091] sm:$0xff]
    %v1439 = vld [vmem:[%s1091 + $0x8] sm:$0xff]
    %v1440 = vld [vmem:[%s1091 + $0x10] sm:$0xff]
    %v1441 = vld [vmem:[%s1091 + $0x18] sm:$0xff]
    %v1442 = vld [vmem:[%s1096] sm:$0x1]
    %v1444 = vperm.slane %v1442, 0
    %1446 = vmatpush.msra.mxu0 0.0
    %1447 = vmatpush.msra.mxu0 0.0
    %1448 = vmatpush.msra.mxu0 0.0
    %1449 = vmatpush.msra.mxu0 0.0
    %1450 = vmatpush.msra.mxu0 0.0
    %1451 = vmatpush.msra.mxu0 0.0
    %1452 = vmatpush.msra.mxu0 0.0
    %1453 = vmatpush.msra.mxu0 0.0
    %1454 = vmatpush.msra.mxu0 0.0
    %1455 = vmatpush.msra.mxu0 0.0
    %1456 = vmatpush.msra.mxu0 0.0
    %1457 = vmatpush.msra.mxu0 0.0
    %1458 = vmatpush.msra.mxu0 %v1441
    %1459 = vmatpush.msra.mxu0 %v1440
    %1460 = vmatpush.msra.mxu0 %v1439
    %1461 = vmatpush.msra.mxu0 %v1438
    %1462 = vmatmul.f32.gmra.mxu0 %v1388
    %v1463 = vpop.f32.mrf.mxu0
    %v1464 = vadd.f32 %v1444, %v1463
    %1465 = vdwg.mxu0
    %v1466 = vadd.f32 %v1374, %v1408
    %v1467 = vxor.u32 %v1466, 2147483648
    %v1468 = vmul.f32 %v1467, 1.442695
    %v1469 = vpow.pop %v1468
    %v1470 = vadd.f32 %v1469, 1.0
    %v1471 = vrcp.pop %v1470
    %v1472 = vmul.f32 %v1470, %v1471
    %v1473 = vsub.f32 1.0, %v1472
    %v1474 = vmul.f32 %v1471, %v1473
    %v1475 = vadd.f32 %v1471, %v1474
    %vm1476 = vweird.f32 %v1470
    %vm1477 = vweird.f32 %v1471
    %vm1478 = vmor %vm1476, %vm1477
    %v1479 = vsel %vm1478, %v1471, %v1475
    %v1480 = vand.u32 2147483647, %v1470
    %vm1481 = vcmp.eq.f32.partialorder %v1480, 8.507059e+37
    %v1482 = vand.u32 %v1470, 2147483648
    %v1483 = vor.u32 1.1754944e-38, %v1482
    %v1484 = vsel %vm1481, %v1483, %v1479
    %v1485 = vmul.f32 1.0, %v1484
    %v1486 = vadd.f32 %v1376, %v1436
    %v1487 = vxor.u32 %v1486, 2147483648
    %v1488 = vmul.f32 %v1487, 1.442695
    %v1489 = vpow.pop %v1488
    %v1490 = vadd.f32 %v1489, 1.0
    %v1491 = vrcp.pop %v1490
    %v1492 = vmul.f32 %v1490, %v1491
    %v1493 = vsub.f32 1.0, %v1492
    %v1494 = vmul.f32 %v1491, %v1493
    %v1495 = vadd.f32 %v1491, %v1494
    %vm1496 = vweird.f32 %v1490
    %vm1497 = vweird.f32 %v1491
    %vm1498 = vmor %vm1496, %vm1497
    %v1499 = vsel %vm1498, %v1491, %v1495
    %v1500 = vand.u32 2147483647, %v1490
    %vm1501 = vcmp.eq.f32.partialorder %v1500, 8.507059e+37
    %v1502 = vand.u32 %v1490, 2147483648
    %v1503 = vor.u32 1.1754944e-38, %v1502
    %v1504 = vsel %vm1501, %v1503, %v1499
    %v1505 = vmul.f32 1.0, %v1504
    %v1506 = vmul.f32 %v1485, %v1464
    %v1507 = vadd.f32 %v1378, %v1506
    %v1508 = vtanh.pop %v1507
    %v1509 = vsub.f32 1.0, %v1505
    %v1510 = vmul.f32 %v1509, %v1508
    %v1511 = vmul.f32 %v1505, %v1167
    %v1512 = vadd.f32 %v1510, %v1511
    %s1513 = scalar_lea.vmem [#allocation8], 16
    %1514 = vst.msk [vmem:[%s1513] sm:$0xff] %vm319, %v1371
    %1515 = vst.msk [vmem:[%s1513 + $0x8] sm:$0xff] %vm319, %v1372
    %s1516 = scalar_lea.vmem [#allocation9], 8
    %1517 = vst.msk [vmem:[%s1516] sm:$0xff] %vm319, %v1512
    %s1518 = scalar_lea.vmem [#allocation2], 32
    %v1519 = vld [vmem:[%s1518] sm:$0xff]
    %v1520 = vld [vmem:[%s1518 + $0x8] sm:$0xff]
    %s1521 = scalar_lea.vmem [#allocation3], 32
    %v1522 = vld [vmem:[%s1521] sm:$0xff]
    %v1523 = vld [vmem:[%s1521 + $0x8] sm:$0xff]
    %s1524 = scalar_lea.vmem [#allocation4], 32
    %v1525 = vld [vmem:[%s1524] sm:$0xff]
    %v1526 = vld [vmem:[%s1524 + $0x8] sm:$0xff]
    %v1527 = vld [vmem:[%s9] sm:$0xff]
    %v1528 = vld [vmem:[%s9 + $0x8] sm:$0xff]
    %v1529 = vld [vmem:[%s9 + $0x10] sm:$0xff]
    %v1530 = vld [vmem:[%s9 + $0x18] sm:$0xff]
    %v1531 = vld [vmem:[%s10] sm:$0x1]
    %v1533 = vperm.slane %v1531, 0
    %v1536 = vsel %vm319, %v1371, 0
    %v1539 = vsel %vm319, %v1372, 0
    %1541 = vmatpush.msra.mxu0 0.0
    %1542 = vmatpush.msra.mxu0 0.0
    %1543 = vmatpush.msra.mxu0 0.0
    %1544 = vmatpush.msra.mxu0 0.0
    %1545 = vmatpush.msra.mxu0 0.0
    %1546 = vmatpush.msra.mxu0 0.0
    %1547 = vmatpush.msra.mxu0 0.0
    %1548 = vmatpush.msra.mxu0 0.0
    %1549 = vmatpush.msra.mxu0 0.0
    %1550 = vmatpush.msra.mxu0 0.0
    %1551 = vmatpush.msra.mxu0 0.0
    %1552 = vmatpush.msra.mxu0 0.0
    %1553 = vmatpush.msra.mxu0 %v1530
    %1554 = vmatpush.msra.mxu0 %v1529
    %1555 = vmatpush.msra.mxu0 %v1528
    %1556 = vmatpush.msra.mxu0 %v1527
    %1557 = vmatmul.f32.gmra.mxu0 %v1536
    %v1558 = vpop.f32.mrf.mxu0
    %v1559 = vadd.f32 %v1533, %v1558
    %1560 = vmatmul.f32.gmra.mxu0 %v1539
    %v1561 = vpop.f32.mrf.mxu0
    %v1562 = vadd.f32 %v1533, %v1561
    %1563 = vdwg.mxu0
    %v1564 = vld [vmem:[%s870] sm:$0xff]
    %v1565 = vld [vmem:[%s870 + $0x8] sm:$0xff]
    %v1566 = vld [vmem:[%s870 + $0x10] sm:$0xff]
    %v1567 = vld [vmem:[%s870 + $0x18] sm:$0xff]
    %v1568 = vld [vmem:[%s875] sm:$0x1]
    %v1570 = vperm.slane %v1568, 0
    %1572 = vmatpush.msra.mxu0 0.0
    %1573 = vmatpush.msra.mxu0 0.0
    %1574 = vmatpush.msra.mxu0 0.0
    %1575 = vmatpush.msra.mxu0 0.0
    %1576 = vmatpush.msra.mxu0 0.0
    %1577 = vmatpush.msra.mxu0 0.0
    %1578 = vmatpush.msra.mxu0 0.0
    %1579 = vmatpush.msra.mxu0 0.0
    %1580 = vmatpush.msra.mxu0 0.0
    %1581 = vmatpush.msra.mxu0 0.0
    %1582 = vmatpush.msra.mxu0 0.0
    %1583 = vmatpush.msra.mxu0 0.0
    %1584 = vmatpush.msra.mxu0 %v1567
    %1585 = vmatpush.msra.mxu0 %v1566
    %1586 = vmatpush.msra.mxu0 %v1565
    %1587 = vmatpush.msra.mxu0 %v1564
    %1588 = vmatmul.f32.gmra.mxu0 %v1536
    %v1589 = vpop.f32.mrf.mxu0
    %v1590 = vadd.f32 %v1570, %v1589
    %1591 = vmatmul.f32.gmra.mxu0 %v1539
    %v1592 = vpop.f32.mrf.mxu0
    %v1593 = vadd.f32 %v1570, %v1592
    %1594 = vdwg.mxu0
    %v1595 = vld [vmem:[%s903] sm:$0xff]
    %v1596 = vld [vmem:[%s903 + $0x8] sm:$0xff]
    %v1597 = vld [vmem:[%s903 + $0x10] sm:$0xff]
    %v1598 = vld [vmem:[%s903 + $0x18] sm:$0xff]
    %v1599 = vld [vmem:[%s908] sm:$0x1]
    %v1601 = vperm.slane %v1599, 0
    %1603 = vmatpush.msra.mxu0 0.0
    %1604 = vmatpush.msra.mxu0 0.0
    %1605 = vmatpush.msra.mxu0 0.0
    %1606 = vmatpush.msra.mxu0 0.0
    %1607 = vmatpush.msra.mxu0 0.0
    %1608 = vmatpush.msra.mxu0 0.0
    %1609 = vmatpush.msra.mxu0 0.0
    %1610 = vmatpush.msra.mxu0 0.0
    %1611 = vmatpush.msra.mxu0 0.0
    %1612 = vmatpush.msra.mxu0 0.0
    %1613 = vmatpush.msra.mxu0 0.0
    %1614 = vmatpush.msra.mxu0 0.0
    %1615 = vmatpush.msra.mxu0 %v1598
    %1616 = vmatpush.msra.mxu0 %v1597
    %1617 = vmatpush.msra.mxu0 %v1596
    %1618 = vmatpush.msra.mxu0 %v1595
    %1619 = vmatmul.f32.gmra.mxu0 %v1536
    %v1620 = vpop.f32.mrf.mxu0
    %v1621 = vadd.f32 %v1601, %v1620
    %1622 = vmatmul.f32.gmra.mxu0 %v1539
    %v1623 = vpop.f32.mrf.mxu0
    %v1624 = vadd.f32 %v1601, %v1623
    %1625 = vdwg.mxu0
    %v1626 = vadd.f32 %v1519, %v1559
    %v1627 = vadd.f32 %v1520, %v1562
    %v1628 = vxor.u32 %v1626, 2147483648
    %v1629 = vxor.u32 %v1627, 2147483648
    %v1630 = vmul.f32 %v1628, 1.442695
    %v1631 = vpow.pop %v1630
    %v1632 = vmul.f32 %v1629, 1.442695
    %v1633 = vpow.pop %v1632
    %v1634 = vadd.f32 %v1631, 1.0
    %v1635 = vadd.f32 %v1633, 1.0
    %v1636 = vrcp.pop %v1634
    %v1637 = vmul.f32 %v1634, %v1636
    %v1638 = vsub.f32 1.0, %v1637
    %v1639 = vmul.f32 %v1636, %v1638
    %v1640 = vadd.f32 %v1636, %v1639
    %vm1641 = vweird.f32 %v1634
    %vm1642 = vweird.f32 %v1636
    %vm1643 = vmor %vm1641, %vm1642
    %v1644 = vsel %vm1643, %v1636, %v1640
    %v1645 = vand.u32 2147483647, %v1634
    %vm1646 = vcmp.eq.f32.partialorder %v1645, 8.507059e+37
    %v1647 = vand.u32 %v1634, 2147483648
    %v1648 = vor.u32 1.1754944e-38, %v1647
    %v1649 = vsel %vm1646, %v1648, %v1644
    %v1650 = vmul.f32 1.0, %v1649
    %v1651 = vrcp.pop %v1635
    %v1652 = vmul.f32 %v1635, %v1651
    %v1653 = vsub.f32 1.0, %v1652
    %v1654 = vmul.f32 %v1651, %v1653
    %v1655 = vadd.f32 %v1651, %v1654
    %vm1656 = vweird.f32 %v1635
    %vm1657 = vweird.f32 %v1651
    %vm1658 = vmor %vm1656, %vm1657
    %v1659 = vsel %vm1658, %v1651, %v1655
    %v1660 = vand.u32 2147483647, %v1635
    %vm1661 = vcmp.eq.f32.partialorder %v1660, 8.507059e+37
    %v1662 = vand.u32 %v1635, 2147483648
    %v1663 = vor.u32 1.1754944e-38, %v1662
    %v1664 = vsel %vm1661, %v1663, %v1659
    %v1665 = vmul.f32 1.0, %v1664
    %v1666 = vadd.f32 %v1522, %v1590
    %v1667 = vadd.f32 %v1523, %v1593
    %v1668 = vxor.u32 %v1666, 2147483648
    %v1669 = vxor.u32 %v1667, 2147483648
    %v1670 = vmul.f32 %v1668, 1.442695
    %v1671 = vpow.pop %v1670
    %v1672 = vmul.f32 %v1669, 1.442695
    %v1673 = vpow.pop %v1672
    %v1674 = vadd.f32 %v1671, 1.0
    %v1675 = vadd.f32 %v1673, 1.0
    %v1676 = vrcp.pop %v1674
    %v1677 = vmul.f32 %v1674, %v1676
    %v1678 = vsub.f32 1.0, %v1677
    %v1679 = vmul.f32 %v1676, %v1678
    %v1680 = vadd.f32 %v1676, %v1679
    %vm1681 = vweird.f32 %v1674
    %vm1682 = vweird.f32 %v1676
    %vm1683 = vmor %vm1681, %vm1682
    %v1684 = vsel %vm1683, %v1676, %v1680
    %v1685 = vand.u32 2147483647, %v1674
    %vm1686 = vcmp.eq.f32.partialorder %v1685, 8.507059e+37
    %v1687 = vand.u32 %v1674, 2147483648
    %v1688 = vor.u32 1.1754944e-38, %v1687
    %v1689 = vsel %vm1686, %v1688, %v1684
    %v1690 = vmul.f32 1.0, %v1689
    %v1691 = vrcp.pop %v1675
    %v1692 = vmul.f32 %v1675, %v1691
    %v1693 = vsub.f32 1.0, %v1692
    %v1694 = vmul.f32 %v1691, %v1693
    %v1695 = vadd.f32 %v1691, %v1694
    %vm1696 = vweird.f32 %v1675
    %vm1697 = vweird.f32 %v1691
    %vm1698 = vmor %vm1696, %vm1697
    %v1699 = vsel %vm1698, %v1691, %v1695
    %v1700 = vand.u32 2147483647, %v1675
    %vm1701 = vcmp.eq.f32.partialorder %v1700, 8.507059e+37
    %v1702 = vand.u32 %v1675, 2147483648
    %v1703 = vor.u32 1.1754944e-38, %v1702
    %v1704 = vsel %vm1701, %v1703, %v1699
    %v1705 = vmul.f32 1.0, %v1704
    %v1706 = vmul.f32 %v1650, %v1621
    %v1707 = vmul.f32 %v1665, %v1624
    %v1708 = vadd.f32 %v1525, %v1706
    %v1709 = vadd.f32 %v1526, %v1707
    %v1710 = vtanh.pop %v1708
    %v1711 = vtanh.pop %v1709
    %v1712 = vsub.f32 1.0, %v1690
    %v1713 = vsub.f32 1.0, %v1705
    %v1714 = vmul.f32 %v1712, %v1710
    %v1715 = vmul.f32 %v1713, %v1711
    %v1716 = vmul.f32 %v1690, %v1371
    %v1717 = vmul.f32 %v1705, %v1372
    %v1718 = vadd.f32 %v1714, %v1716
    %v1719 = vadd.f32 %v1715, %v1717
    %s1720 = scalar_lea.vmem [#allocation5], 16
    %v1721 = vld [vmem:[%s1720] sm:$0xff]
    %s1722 = scalar_lea.vmem [#allocation6], 16
    %v1723 = vld [vmem:[%s1722] sm:$0xff]
    %s1724 = scalar_lea.vmem [#allocation7], 16
    %v1725 = vld [vmem:[%s1724] sm:$0xff]
    %v1726 = vld [vmem:[%s17] sm:$0xff]
    %v1727 = vld [vmem:[%s17 + $0x8] sm:$0xff]
    %v1728 = vld [vmem:[%s17 + $0x10] sm:$0xff]
    %v1729 = vld [vmem:[%s17 + $0x18] sm:$0xff]
    %v1730 = vld [vmem:[%s18] sm:$0x1]
    %v1732 = vperm.slane %v1730, 0
    %v1735 = vsel %vm319, %v1512, 0
    %1737 = vmatpush.msra.mxu0 0.0
    %1738 = vmatpush.msra.mxu0 0.0
    %1739 = vmatpush.msra.mxu0 0.0
    %1740 = vmatpush.msra.mxu0 0.0
    %1741 = vmatpush.msra.mxu0 0.0
    %1742 = vmatpush.msra.mxu0 0.0
    %1743 = vmatpush.msra.mxu0 0.0
    %1744 = vmatpush.msra.mxu0 0.0
    %1745 = vmatpush.msra.mxu0 0.0
    %1746 = vmatpush.msra.mxu0 0.0
    %1747 = vmatpush.msra.mxu0 0.0
    %1748 = vmatpush.msra.mxu0 0.0
    %1749 = vmatpush.msra.mxu0 %v1729
    %1750 = vmatpush.msra.mxu0 %v1728
    %1751 = vmatpush.msra.mxu0 %v1727
    %1752 = vmatpush.msra.mxu0 %v1726
    %1753 = vmatmul.f32.gmra.mxu0 %v1735
    %v1754 = vpop.f32.mrf.mxu0
    %v1755 = vadd.f32 %v1732, %v1754
    %1756 = vdwg.mxu0
    %v1757 = vld [vmem:[%s1061] sm:$0xff]
    %v1758 = vld [vmem:[%s1061 + $0x8] sm:$0xff]
    %v1759 = vld [vmem:[%s1061 + $0x10] sm:$0xff]
    %v1760 = vld [vmem:[%s1061 + $0x18] sm:$0xff]
    %v1761 = vld [vmem:[%s1066] sm:$0x1]
    %v1763 = vperm.slane %v1761, 0
    %1765 = vmatpush.msra.mxu0 0.0
    %1766 = vmatpush.msra.mxu0 0.0
    %1767 = vmatpush.msra.mxu0 0.0
    %1768 = vmatpush.msra.mxu0 0.0
    %1769 = vmatpush.msra.mxu0 0.0
    %1770 = vmatpush.msra.mxu0 0.0
    %1771 = vmatpush.msra.mxu0 0.0
    %1772 = vmatpush.msra.mxu0 0.0
    %1773 = vmatpush.msra.mxu0 0.0
    %1774 = vmatpush.msra.mxu0 0.0
    %1775 = vmatpush.msra.mxu0 0.0
    %1776 = vmatpush.msra.mxu0 0.0
    %1777 = vmatpush.msra.mxu0 %v1760
    %1778 = vmatpush.msra.mxu0 %v1759
    %1779 = vmatpush.msra.mxu0 %v1758
    %1780 = vmatpush.msra.mxu0 %v1757
    %1781 = vmatmul.f32.gmra.mxu0 %v1735
    %v1782 = vpop.f32.mrf.mxu0
    %v1783 = vadd.f32 %v1763, %v1782
    %1784 = vdwg.mxu0
    %v1785 = vld [vmem:[%s1091] sm:$0xff]
    %v1786 = vld [vmem:[%s1091 + $0x8] sm:$0xff]
    %v1787 = vld [vmem:[%s1091 + $0x10] sm:$0xff]
    %v1788 = vld [vmem:[%s1091 + $0x18] sm:$0xff]
    %v1789 = vld [vmem:[%s1096] sm:$0x1]
    %v1791 = vperm.slane %v1789, 0
    %1793 = vmatpush.msra.mxu0 0.0
    %1794 = vmatpush.msra.mxu0 0.0
    %1795 = vmatpush.msra.mxu0 0.0
    %1796 = vmatpush.msra.mxu0 0.0
    %1797 = vmatpush.msra.mxu0 0.0
    %1798 = vmatpush.msra.mxu0 0.0
    %1799 = vmatpush.msra.mxu0 0.0
    %1800 = vmatpush.msra.mxu0 0.0
    %1801 = vmatpush.msra.mxu0 0.0
    %1802 = vmatpush.msra.mxu0 0.0
    %1803 = vmatpush.msra.mxu0 0.0
    %1804 = vmatpush.msra.mxu0 0.0
    %1805 = vmatpush.msra.mxu0 %v1788
    %1806 = vmatpush.msra.mxu0 %v1787
    %1807 = vmatpush.msra.mxu0 %v1786
    %1808 = vmatpush.msra.mxu0 %v1785
    %1809 = vmatmul.f32.gmra.mxu0 %v1735
    %v1810 = vpop.f32.mrf.mxu0
    %v1811 = vadd.f32 %v1791, %v1810
    %1812 = vdwg.mxu0
    %v1813 = vadd.f32 %v1721, %v1755
    %v1814 = vxor.u32 %v1813, 2147483648
    %v1815 = vmul.f32 %v1814, 1.442695
    %v1816 = vpow.pop %v1815
    %v1817 = vadd.f32 %v1816, 1.0
    %v1818 = vrcp.pop %v1817
    %v1819 = vmul.f32 %v1817, %v1818
    %v1820 = vsub.f32 1.0, %v1819
    %v1821 = vmul.f32 %v1818, %v1820
    %v1822 = vadd.f32 %v1818, %v1821
    %vm1823 = vweird.f32 %v1817
    %vm1824 = vweird.f32 %v1818
    %vm1825 = vmor %vm1823, %vm1824
    %v1826 = vsel %vm1825, %v1818, %v1822
    %v1827 = vand.u32 2147483647, %v1817
    %vm1828 = vcmp.eq.f32.partialorder %v1827, 8.507059e+37
    %v1829 = vand.u32 %v1817, 2147483648
    %v1830 = vor.u32 1.1754944e-38, %v1829
    %v1831 = vsel %vm1828, %v1830, %v1826
    %v1832 = vmul.f32 1.0, %v1831
    %v1833 = vadd.f32 %v1723, %v1783
    %v1834 = vxor.u32 %v1833, 2147483648
    %v1835 = vmul.f32 %v1834, 1.442695
    %v1836 = vpow.pop %v1835
    %v1837 = vadd.f32 %v1836, 1.0
    %v1838 = vrcp.pop %v1837
    %v1839 = vmul.f32 %v1837, %v1838
    %v1840 = vsub.f32 1.0, %v1839
    %v1841 = vmul.f32 %v1838, %v1840
    %v1842 = vadd.f32 %v1838, %v1841
    %vm1843 = vweird.f32 %v1837
    %vm1844 = vweird.f32 %v1838
    %vm1845 = vmor %vm1843, %vm1844
    %v1846 = vsel %vm1845, %v1838, %v1842
    %v1847 = vand.u32 2147483647, %v1837
    %vm1848 = vcmp.eq.f32.partialorder %v1847, 8.507059e+37
    %v1849 = vand.u32 %v1837, 2147483648
    %v1850 = vor.u32 1.1754944e-38, %v1849
    %v1851 = vsel %vm1848, %v1850, %v1846
    %v1852 = vmul.f32 1.0, %v1851
    %v1853 = vmul.f32 %v1832, %v1811
    %v1854 = vadd.f32 %v1725, %v1853
    %v1855 = vtanh.pop %v1854
    %v1856 = vsub.f32 1.0, %v1852
    %v1857 = vmul.f32 %v1856, %v1855
    %v1858 = vmul.f32 %v1852, %v1512
    %v1859 = vadd.f32 %v1857, %v1858
    %s1860 = scalar_lea.vmem [#allocation8], 32
    %1861 = vst.msk [vmem:[%s1860] sm:$0xff] %vm319, %v1718
    %1862 = vst.msk [vmem:[%s1860 + $0x8] sm:$0xff] %vm319, %v1719
    %s1863 = scalar_lea.vmem [#allocation9], 16
    %1864 = vst.msk [vmem:[%s1863] sm:$0xff] %vm319, %v1859
    %s1865 = scalar_lea.vmem [#allocation2], 48
    %v1866 = vld [vmem:[%s1865] sm:$0xff]
    %v1867 = vld [vmem:[%s1865 + $0x8] sm:$0xff]
    %s1868 = scalar_lea.vmem [#allocation3], 48
    %v1869 = vld [vmem:[%s1868] sm:$0xff]
    %v1870 = vld [vmem:[%s1868 + $0x8] sm:$0xff]
    %s1871 = scalar_lea.vmem [#allocation4], 48
    %v1872 = vld [vmem:[%s1871] sm:$0xff]
    %v1873 = vld [vmem:[%s1871 + $0x8] sm:$0xff]
    %v1874 = vld [vmem:[%s9] sm:$0xff]
    %v1875 = vld [vmem:[%s9 + $0x8] sm:$0xff]
    %v1876 = vld [vmem:[%s9 + $0x10] sm:$0xff]
    %v1877 = vld [vmem:[%s9 + $0x18] sm:$0xff]
    %v1878 = vld [vmem:[%s10] sm:$0x1]
    %v1880 = vperm.slane %v1878, 0
    %v1883 = vsel %vm319, %v1718, 0
    %v1886 = vsel %vm319, %v1719, 0
    %1888 = vmatpush.msra.mxu0 0.0
    %1889 = vmatpush.msra.mxu0 0.0
    %1890 = vmatpush.msra.mxu0 0.0
    %1891 = vmatpush.msra.mxu0 0.0
    %1892 = vmatpush.msra.mxu0 0.0
    %1893 = vmatpush.msra.mxu0 0.0
    %1894 = vmatpush.msra.mxu0 0.0
    %1895 = vmatpush.msra.mxu0 0.0
    %1896 = vmatpush.msra.mxu0 0.0
    %1897 = vmatpush.msra.mxu0 0.0
    %1898 = vmatpush.msra.mxu0 0.0
    %1899 = vmatpush.msra.mxu0 0.0
    %1900 = vmatpush.msra.mxu0 %v1877
    %1901 = vmatpush.msra.mxu0 %v1876
    %1902 = vmatpush.msra.mxu0 %v1875
    %1903 = vmatpush.msra.mxu0 %v1874
    %1904 = vmatmul.f32.gmra.mxu0 %v1883
    %v1905 = vpop.f32.mrf.mxu0
    %v1906 = vadd.f32 %v1880, %v1905
    %1907 = vmatmul.f32.gmra.mxu0 %v1886
    %v1908 = vpop.f32.mrf.mxu0
    %v1909 = vadd.f32 %v1880, %v1908
    %1910 = vdwg.mxu0
    %v1911 = vld [vmem:[%s870] sm:$0xff]
    %v1912 = vld [vmem:[%s870 + $0x8] sm:$0xff]
    %v1913 = vld [vmem:[%s870 + $0x10] sm:$0xff]
    %v1914 = vld [vmem:[%s870 + $0x18] sm:$0xff]
    %v1915 = vld [vmem:[%s875] sm:$0x1]
    %v1917 = vperm.slane %v1915, 0
    %1919 = vmatpush.msra.mxu0 0.0
    %1920 = vmatpush.msra.mxu0 0.0
    %1921 = vmatpush.msra.mxu0 0.0
    %1922 = vmatpush.msra.mxu0 0.0
    %1923 = vmatpush.msra.mxu0 0.0
    %1924 = vmatpush.msra.mxu0 0.0
    %1925 = vmatpush.msra.mxu0 0.0
    %1926 = vmatpush.msra.mxu0 0.0
    %1927 = vmatpush.msra.mxu0 0.0
    %1928 = vmatpush.msra.mxu0 0.0
    %1929 = vmatpush.msra.mxu0 0.0
    %1930 = vmatpush.msra.mxu0 0.0
    %1931 = vmatpush.msra.mxu0 %v1914
    %1932 = vmatpush.msra.mxu0 %v1913
    %1933 = vmatpush.msra.mxu0 %v1912
    %1934 = vmatpush.msra.mxu0 %v1911
    %1935 = vmatmul.f32.gmra.mxu0 %v1883
    %v1936 = vpop.f32.mrf.mxu0
    %v1937 = vadd.f32 %v1917, %v1936
    %1938 = vmatmul.f32.gmra.mxu0 %v1886
    %v1939 = vpop.f32.mrf.mxu0
    %v1940 = vadd.f32 %v1917, %v1939
    %1941 = vdwg.mxu0
    %v1942 = vld [vmem:[%s903] sm:$0xff]
    %v1943 = vld [vmem:[%s903 + $0x8] sm:$0xff]
    %v1944 = vld [vmem:[%s903 + $0x10] sm:$0xff]
    %v1945 = vld [vmem:[%s903 + $0x18] sm:$0xff]
    %v1946 = vld [vmem:[%s908] sm:$0x1]
    %v1948 = vperm.slane %v1946, 0
    %1950 = vmatpush.msra.mxu0 0.0
    %1951 = vmatpush.msra.mxu0 0.0
    %1952 = vmatpush.msra.mxu0 0.0
    %1953 = vmatpush.msra.mxu0 0.0
    %1954 = vmatpush.msra.mxu0 0.0
    %1955 = vmatpush.msra.mxu0 0.0
    %1956 = vmatpush.msra.mxu0 0.0
    %1957 = vmatpush.msra.mxu0 0.0
    %1958 = vmatpush.msra.mxu0 0.0
    %1959 = vmatpush.msra.mxu0 0.0
    %1960 = vmatpush.msra.mxu0 0.0
    %1961 = vmatpush.msra.mxu0 0.0
    %1962 = vmatpush.msra.mxu0 %v1945
    %1963 = vmatpush.msra.mxu0 %v1944
    %1964 = vmatpush.msra.mxu0 %v1943
    %1965 = vmatpush.msra.mxu0 %v1942
    %1966 = vmatmul.f32.gmra.mxu0 %v1883
    %v1967 = vpop.f32.mrf.mxu0
    %v1968 = vadd.f32 %v1948, %v1967
    %1969 = vmatmul.f32.gmra.mxu0 %v1886
    %v1970 = vpop.f32.mrf.mxu0
    %v1971 = vadd.f32 %v1948, %v1970
    %1972 = vdwg.mxu0
    %v1973 = vadd.f32 %v1866, %v1906
    %v1974 = vadd.f32 %v1867, %v1909
    %v1975 = vxor.u32 %v1973, 2147483648
    %v1976 = vxor.u32 %v1974, 2147483648
    %v1977 = vmul.f32 %v1975, 1.442695
    %v1978 = vpow.pop %v1977
    %v1979 = vmul.f32 %v1976, 1.442695
    %v1980 = vpow.pop %v1979
    %v1981 = vadd.f32 %v1978, 1.0
    %v1982 = vadd.f32 %v1980, 1.0
    %v1983 = vrcp.pop %v1981
    %v1984 = vmul.f32 %v1981, %v1983
    %v1985 = vsub.f32 1.0, %v1984
    %v1986 = vmul.f32 %v1983, %v1985
    %v1987 = vadd.f32 %v1983, %v1986
    %vm1988 = vweird.f32 %v1981
    %vm1989 = vweird.f32 %v1983
    %vm1990 = vmor %vm1988, %vm1989
    %v1991 = vsel %vm1990, %v1983, %v1987
    %v1992 = vand.u32 2147483647, %v1981
    %vm1993 = vcmp.eq.f32.partialorder %v1992, 8.507059e+37
    %v1994 = vand.u32 %v1981, 2147483648
    %v1995 = vor.u32 1.1754944e-38, %v1994
    %v1996 = vsel %vm1993, %v1995, %v1991
    %v1997 = vmul.f32 1.0, %v1996
    %v1998 = vrcp.pop %v1982
    %v1999 = vmul.f32 %v1982, %v1998
    %v2000 = vsub.f32 1.0, %v1999
    %v2001 = vmul.f32 %v1998, %v2000
    %v2002 = vadd.f32 %v1998, %v2001
    %vm2003 = vweird.f32 %v1982
    %vm2004 = vweird.f32 %v1998
    %vm2005 = vmor %vm2003, %vm2004
    %v2006 = vsel %vm2005, %v1998, %v2002
    %v2007 = vand.u32 2147483647, %v1982
    %vm2008 = vcmp.eq.f32.partialorder %v2007, 8.507059e+37
    %v2009 = vand.u32 %v1982, 2147483648
    %v2010 = vor.u32 1.1754944e-38, %v2009
    %v2011 = vsel %vm2008, %v2010, %v2006
    %v2012 = vmul.f32 1.0, %v2011
    %v2013 = vadd.f32 %v1869, %v1937
    %v2014 = vadd.f32 %v1870, %v1940
    %v2015 = vxor.u32 %v2013, 2147483648
    %v2016 = vxor.u32 %v2014, 2147483648
    %v2017 = vmul.f32 %v2015, 1.442695
    %v2018 = vpow.pop %v2017
    %v2019 = vmul.f32 %v2016, 1.442695
    %v2020 = vpow.pop %v2019
    %v2021 = vadd.f32 %v2018, 1.0
    %v2022 = vadd.f32 %v2020, 1.0
    %v2023 = vrcp.pop %v2021
    %v2024 = vmul.f32 %v2021, %v2023
    %v2025 = vsub.f32 1.0, %v2024
    %v2026 = vmul.f32 %v2023, %v2025
    %v2027 = vadd.f32 %v2023, %v2026
    %vm2028 = vweird.f32 %v2021
    %vm2029 = vweird.f32 %v2023
    %vm2030 = vmor %vm2028, %vm2029
    %v2031 = vsel %vm2030, %v2023, %v2027
    %v2032 = vand.u32 2147483647, %v2021
    %vm2033 = vcmp.eq.f32.partialorder %v2032, 8.507059e+37
    %v2034 = vand.u32 %v2021, 2147483648
    %v2035 = vor.u32 1.1754944e-38, %v2034
    %v2036 = vsel %vm2033, %v2035, %v2031
    %v2037 = vmul.f32 1.0, %v2036
    %v2038 = vrcp.pop %v2022
    %v2039 = vmul.f32 %v2022, %v2038
    %v2040 = vsub.f32 1.0, %v2039
    %v2041 = vmul.f32 %v2038, %v2040
    %v2042 = vadd.f32 %v2038, %v2041
    %vm2043 = vweird.f32 %v2022
    %vm2044 = vweird.f32 %v2038
    %vm2045 = vmor %vm2043, %vm2044
    %v2046 = vsel %vm2045, %v2038, %v2042
    %v2047 = vand.u32 2147483647, %v2022
    %vm2048 = vcmp.eq.f32.partialorder %v2047, 8.507059e+37
    %v2049 = vand.u32 %v2022, 2147483648
    %v2050 = vor.u32 1.1754944e-38, %v2049
    %v2051 = vsel %vm2048, %v2050, %v2046
    %v2052 = vmul.f32 1.0, %v2051
    %v2053 = vmul.f32 %v1997, %v1968
    %v2054 = vmul.f32 %v2012, %v1971
    %v2055 = vadd.f32 %v1872, %v2053
    %v2056 = vadd.f32 %v1873, %v2054
    %v2057 = vtanh.pop %v2055
    %v2058 = vtanh.pop %v2056
    %v2059 = vsub.f32 1.0, %v2037
    %v2060 = vsub.f32 1.0, %v2052
    %v2061 = vmul.f32 %v2059, %v2057
    %v2062 = vmul.f32 %v2060, %v2058
    %v2063 = vmul.f32 %v2037, %v1718
    %v2064 = vmul.f32 %v2052, %v1719
    %v2065 = vadd.f32 %v2061, %v2063
    %v2066 = vadd.f32 %v2062, %v2064
    %s2067 = scalar_lea.vmem [#allocation5], 24
    %v2068 = vld [vmem:[%s2067] sm:$0xff]
    %s2069 = scalar_lea.vmem [#allocation6], 24
    %v2070 = vld [vmem:[%s2069] sm:$0xff]
    %s2071 = scalar_lea.vmem [#allocation7], 24
    %v2072 = vld [vmem:[%s2071] sm:$0xff]
    %v2073 = vld [vmem:[%s17] sm:$0xff]
    %v2074 = vld [vmem:[%s17 + $0x8] sm:$0xff]
    %v2075 = vld [vmem:[%s17 + $0x10] sm:$0xff]
    %v2076 = vld [vmem:[%s17 + $0x18] sm:$0xff]
    %v2077 = vld [vmem:[%s18] sm:$0x1]
    %v2079 = vperm.slane %v2077, 0
    %v2082 = vsel %vm319, %v1859, 0
    %2084 = vmatpush.msra.mxu0 0.0
    %2085 = vmatpush.msra.mxu0 0.0
    %2086 = vmatpush.msra.mxu0 0.0
    %2087 = vmatpush.msra.mxu0 0.0
    %2088 = vmatpush.msra.mxu0 0.0
    %2089 = vmatpush.msra.mxu0 0.0
    %2090 = vmatpush.msra.mxu0 0.0
    %2091 = vmatpush.msra.mxu0 0.0
    %2092 = vmatpush.msra.mxu0 0.0
    %2093 = vmatpush.msra.mxu0 0.0
    %2094 = vmatpush.msra.mxu0 0.0
    %2095 = vmatpush.msra.mxu0 0.0
    %2096 = vmatpush.msra.mxu0 %v2076
    %2097 = vmatpush.msra.mxu0 %v2075
    %2098 = vmatpush.msra.mxu0 %v2074
    %2099 = vmatpush.msra.mxu0 %v2073
    %2100 = vmatmul.f32.gmra.mxu0 %v2082
    %v2101 = vpop.f32.mrf.mxu0
    %v2102 = vadd.f32 %v2079, %v2101
    %2103 = vdwg.mxu0
    %v2104 = vld [vmem:[%s1061] sm:$0xff]
    %v2105 = vld [vmem:[%s1061 + $0x8] sm:$0xff]
    %v2106 = vld [vmem:[%s1061 + $0x10] sm:$0xff]
    %v2107 = vld [vmem:[%s1061 + $0x18] sm:$0xff]
    %v2108 = vld [vmem:[%s1066] sm:$0x1]
    %v2110 = vperm.slane %v2108, 0
    %2112 = vmatpush.msra.mxu0 0.0
    %2113 = vmatpush.msra.mxu0 0.0
    %2114 = vmatpush.msra.mxu0 0.0
    %2115 = vmatpush.msra.mxu0 0.0
    %2116 = vmatpush.msra.mxu0 0.0
    %2117 = vmatpush.msra.mxu0 0.0
    %2118 = vmatpush.msra.mxu0 0.0
    %2119 = vmatpush.msra.mxu0 0.0
    %2120 = vmatpush.msra.mxu0 0.0
    %2121 = vmatpush.msra.mxu0 0.0
    %2122 = vmatpush.msra.mxu0 0.0
    %2123 = vmatpush.msra.mxu0 0.0
    %2124 = vmatpush.msra.mxu0 %v2107
    %2125 = vmatpush.msra.mxu0 %v2106
    %2126 = vmatpush.msra.mxu0 %v2105
    %2127 = vmatpush.msra.mxu0 %v2104
    %2128 = vmatmul.f32.gmra.mxu0 %v2082
    %v2129 = vpop.f32.mrf.mxu0
    %v2130 = vadd.f32 %v2110, %v2129
    %2131 = vdwg.mxu0
    %v2132 = vld [vmem:[%s1091] sm:$0xff]
    %v2133 = vld [vmem:[%s1091 + $0x8] sm:$0xff]
    %v2134 = vld [vmem:[%s1091 + $0x10] sm:$0xff]
    %v2135 = vld [vmem:[%s1091 + $0x18] sm:$0xff]
    %v2136 = vld [vmem:[%s1096] sm:$0x1]
    %v2138 = vperm.slane %v2136, 0
    %2140 = vmatpush.msra.mxu0 0.0
    %2141 = vmatpush.msra.mxu0 0.0
    %2142 = vmatpush.msra.mxu0 0.0
    %2143 = vmatpush.msra.mxu0 0.0
    %2144 = vmatpush.msra.mxu0 0.0
    %2145 = vmatpush.msra.mxu0 0.0
    %2146 = vmatpush.msra.mxu0 0.0
    %2147 = vmatpush.msra.mxu0 0.0
    %2148 = vmatpush.msra.mxu0 0.0
    %2149 = vmatpush.msra.mxu0 0.0
    %2150 = vmatpush.msra.mxu0 0.0
    %2151 = vmatpush.msra.mxu0 0.0
    %2152 = vmatpush.msra.mxu0 %v2135
    %2153 = vmatpush.msra.mxu0 %v2134
    %2154 = vmatpush.msra.mxu0 %v2133
    %2155 = vmatpush.msra.mxu0 %v2132
    %2156 = vmatmul.f32.gmra.mxu0 %v2082
    %v2157 = vpop.f32.mrf.mxu0
    %v2158 = vadd.f32 %v2138, %v2157
    %2159 = vdwg.mxu0
    %v2160 = vadd.f32 %v2068, %v2102
    %v2161 = vxor.u32 %v2160, 2147483648
    %v2162 = vmul.f32 %v2161, 1.442695
    %v2163 = vpow.pop %v2162
    %v2164 = vadd.f32 %v2163, 1.0
    %v2165 = vrcp.pop %v2164
    %v2166 = vmul.f32 %v2164, %v2165
    %v2167 = vsub.f32 1.0, %v2166
    %v2168 = vmul.f32 %v2165, %v2167
    %v2169 = vadd.f32 %v2165, %v2168
    %vm2170 = vweird.f32 %v2164
    %vm2171 = vweird.f32 %v2165
    %vm2172 = vmor %vm2170, %vm2171
    %v2173 = vsel %vm2172, %v2165, %v2169
    %v2174 = vand.u32 2147483647, %v2164
    %vm2175 = vcmp.eq.f32.partialorder %v2174, 8.507059e+37
    %v2176 = vand.u32 %v2164, 2147483648
    %v2177 = vor.u32 1.1754944e-38, %v2176
    %v2178 = vsel %vm2175, %v2177, %v2173
    %v2179 = vmul.f32 1.0, %v2178
    %v2180 = vadd.f32 %v2070, %v2130
    %v2181 = vxor.u32 %v2180, 2147483648
    %v2182 = vmul.f32 %v2181, 1.442695
    %v2183 = vpow.pop %v2182
    %v2184 = vadd.f32 %v2183, 1.0
    %v2185 = vrcp.pop %v2184
    %v2186 = vmul.f32 %v2184, %v2185
    %v2187 = vsub.f32 1.0, %v2186
    %v2188 = vmul.f32 %v2185, %v2187
    %v2189 = vadd.f32 %v2185, %v2188
    %vm2190 = vweird.f32 %v2184
    %vm2191 = vweird.f32 %v2185
    %vm2192 = vmor %vm2190, %vm2191
    %v2193 = vsel %vm2192, %v2185, %v2189
    %v2194 = vand.u32 2147483647, %v2184
    %vm2195 = vcmp.eq.f32.partialorder %v2194, 8.507059e+37
    %v2196 = vand.u32 %v2184, 2147483648
    %v2197 = vor.u32 1.1754944e-38, %v2196
    %v2198 = vsel %vm2195, %v2197, %v2193
    %v2199 = vmul.f32 1.0, %v2198
    %v2200 = vmul.f32 %v2179, %v2158
    %v2201 = vadd.f32 %v2072, %v2200
    %v2202 = vtanh.pop %v2201
    %v2203 = vsub.f32 1.0, %v2199
    %v2204 = vmul.f32 %v2203, %v2202
    %v2205 = vmul.f32 %v2199, %v1859
    %v2206 = vadd.f32 %v2204, %v2205
    %s2207 = scalar_lea.vmem [#allocation8], 48
    %2208 = vst.msk [vmem:[%s2207] sm:$0xff] %vm319, %v2065
    %2209 = vst.msk [vmem:[%s2207 + $0x8] sm:$0xff] %vm319, %v2066
    %s2210 = scalar_lea.vmem [#allocation9], 24
    %2211 = vst.msk [vmem:[%s2210] sm:$0xff] %vm319, %v2206
    %s2212 = scalar_lea.vmem [#allocation2], 64
    %v2213 = vld [vmem:[%s2212] sm:$0xff]
    %v2214 = vld [vmem:[%s2212 + $0x8] sm:$0xff]
    %s2215 = scalar_lea.vmem [#allocation3], 64
    %v2216 = vld [vmem:[%s2215] sm:$0xff]
    %v2217 = vld [vmem:[%s2215 + $0x8] sm:$0xff]
    %s2218 = scalar_lea.vmem [#allocation4], 64
    %v2219 = vld [vmem:[%s2218] sm:$0xff]
    %v2220 = vld [vmem:[%s2218 + $0x8] sm:$0xff]
    %v2221 = vld [vmem:[%s9] sm:$0xff]
    %v2222 = vld [vmem:[%s9 + $0x8] sm:$0xff]
    %v2223 = vld [vmem:[%s9 + $0x10] sm:$0xff]
    %v2224 = vld [vmem:[%s9 + $0x18] sm:$0xff]
    %v2225 = vld [vmem:[%s10] sm:$0x1]
    %v2227 = vperm.slane %v2225, 0
    %v2230 = vsel %vm319, %v2065, 0
    %v2233 = vsel %vm319, %v2066, 0
    %2235 = vmatpush.msra.mxu0 0.0
    %2236 = vmatpush.msra.mxu0 0.0
    %2237 = vmatpush.msra.mxu0 0.0
    %2238 = vmatpush.msra.mxu0 0.0
    %2239 = vmatpush.msra.mxu0 0.0
    %2240 = vmatpush.msra.mxu0 0.0
    %2241 = vmatpush.msra.mxu0 0.0
    %2242 = vmatpush.msra.mxu0 0.0
    %2243 = vmatpush.msra.mxu0 0.0
    %2244 = vmatpush.msra.mxu0 0.0
    %2245 = vmatpush.msra.mxu0 0.0
    %2246 = vmatpush.msra.mxu0 0.0
    %2247 = vmatpush.msra.mxu0 %v2224
    %2248 = vmatpush.msra.mxu0 %v2223
    %2249 = vmatpush.msra.mxu0 %v2222
    %2250 = vmatpush.msra.mxu0 %v2221
    %2251 = vmatmul.f32.gmra.mxu0 %v2230
    %v2252 = vpop.f32.mrf.mxu0
    %v2253 = vadd.f32 %v2227, %v2252
    %2254 = vmatmul.f32.gmra.mxu0 %v2233
    %v2255 = vpop.f32.mrf.mxu0
    %v2256 = vadd.f32 %v2227, %v2255
    %2257 = vdwg.mxu0
    %v2258 = vld [vmem:[%s870] sm:$0xff]
    %v2259 = vld [vmem:[%s870 + $0x8] sm:$0xff]
    %v2260 = vld [vmem:[%s870 + $0x10] sm:$0xff]
    %v2261 = vld [vmem:[%s870 + $0x18] sm:$0xff]
    %v2262 = vld [vmem:[%s875] sm:$0x1]
    %v2264 = vperm.slane %v2262, 0
    %2266 = vmatpush.msra.mxu0 0.0
    %2267 = vmatpush.msra.mxu0 0.0
    %2268 = vmatpush.msra.mxu0 0.0
    %2269 = vmatpush.msra.mxu0 0.0
    %2270 = vmatpush.msra.mxu0 0.0
    %2271 = vmatpush.msra.mxu0 0.0
    %2272 = vmatpush.msra.mxu0 0.0
    %2273 = vmatpush.msra.mxu0 0.0
    %2274 = vmatpush.msra.mxu0 0.0
    %2275 = vmatpush.msra.mxu0 0.0
    %2276 = vmatpush.msra.mxu0 0.0
    %2277 = vmatpush.msra.mxu0 0.0
    %2278 = vmatpush.msra.mxu0 %v2261
    %2279 = vmatpush.msra.mxu0 %v2260
    %2280 = vmatpush.msra.mxu0 %v2259
    %2281 = vmatpush.msra.mxu0 %v2258
    %2282 = vmatmul.f32.gmra.mxu0 %v2230
    %v2283 = vpop.f32.mrf.mxu0
    %v2284 = vadd.f32 %v2264, %v2283
    %2285 = vmatmul.f32.gmra.mxu0 %v2233
    %v2286 = vpop.f32.mrf.mxu0
    %v2287 = vadd.f32 %v2264, %v2286
    %2288 = vdwg.mxu0
    %v2289 = vld [vmem:[%s903] sm:$0xff]
    %v2290 = vld [vmem:[%s903 + $0x8] sm:$0xff]
    %v2291 = vld [vmem:[%s903 + $0x10] sm:$0xff]
    %v2292 = vld [vmem:[%s903 + $0x18] sm:$0xff]
    %v2293 = vld [vmem:[%s908] sm:$0x1]
    %v2295 = vperm.slane %v2293, 0
    %2297 = vmatpush.msra.mxu0 0.0
    %2298 = vmatpush.msra.mxu0 0.0
    %2299 = vmatpush.msra.mxu0 0.0
    %2300 = vmatpush.msra.mxu0 0.0
    %2301 = vmatpush.msra.mxu0 0.0
    %2302 = vmatpush.msra.mxu0 0.0
    %2303 = vmatpush.msra.mxu0 0.0
    %2304 = vmatpush.msra.mxu0 0.0
    %2305 = vmatpush.msra.mxu0 0.0
    %2306 = vmatpush.msra.mxu0 0.0
    %2307 = vmatpush.msra.mxu0 0.0
    %2308 = vmatpush.msra.mxu0 0.0
    %2309 = vmatpush.msra.mxu0 %v2292
    %2310 = vmatpush.msra.mxu0 %v2291
    %2311 = vmatpush.msra.mxu0 %v2290
    %2312 = vmatpush.msra.mxu0 %v2289
    %2313 = vmatmul.f32.gmra.mxu0 %v2230
    %v2314 = vpop.f32.mrf.mxu0
    %v2315 = vadd.f32 %v2295, %v2314
    %2316 = vmatmul.f32.gmra.mxu0 %v2233
    %v2317 = vpop.f32.mrf.mxu0
    %v2318 = vadd.f32 %v2295, %v2317
    %2319 = vdwg.mxu0
    %v2320 = vadd.f32 %v2213, %v2253
    %v2321 = vadd.f32 %v2214, %v2256
    %v2322 = vxor.u32 %v2320, 2147483648
    %v2323 = vxor.u32 %v2321, 2147483648
    %v2324 = vmul.f32 %v2322, 1.442695
    %v2325 = vpow.pop %v2324
    %v2326 = vmul.f32 %v2323, 1.442695
    %v2327 = vpow.pop %v2326
    %v2328 = vadd.f32 %v2325, 1.0
    %v2329 = vadd.f32 %v2327, 1.0
    %v2330 = vrcp.pop %v2328
    %v2331 = vmul.f32 %v2328, %v2330
    %v2332 = vsub.f32 1.0, %v2331
    %v2333 = vmul.f32 %v2330, %v2332
    %v2334 = vadd.f32 %v2330, %v2333
    %vm2335 = vweird.f32 %v2328
    %vm2336 = vweird.f32 %v2330
    %vm2337 = vmor %vm2335, %vm2336
    %v2338 = vsel %vm2337, %v2330, %v2334
    %v2339 = vand.u32 2147483647, %v2328
    %vm2340 = vcmp.eq.f32.partialorder %v2339, 8.507059e+37
    %v2341 = vand.u32 %v2328, 2147483648
    %v2342 = vor.u32 1.1754944e-38, %v2341
    %v2343 = vsel %vm2340, %v2342, %v2338
    %v2344 = vmul.f32 1.0, %v2343
    %v2345 = vrcp.pop %v2329
    %v2346 = vmul.f32 %v2329, %v2345
    %v2347 = vsub.f32 1.0, %v2346
    %v2348 = vmul.f32 %v2345, %v2347
    %v2349 = vadd.f32 %v2345, %v2348
    %vm2350 = vweird.f32 %v2329
    %vm2351 = vweird.f32 %v2345
    %vm2352 = vmor %vm2350, %vm2351
    %v2353 = vsel %vm2352, %v2345, %v2349
    %v2354 = vand.u32 2147483647, %v2329
    %vm2355 = vcmp.eq.f32.partialorder %v2354, 8.507059e+37
    %v2356 = vand.u32 %v2329, 2147483648
    %v2357 = vor.u32 1.1754944e-38, %v2356
    %v2358 = vsel %vm2355, %v2357, %v2353
    %v2359 = vmul.f32 1.0, %v2358
    %v2360 = vadd.f32 %v2216, %v2284
    %v2361 = vadd.f32 %v2217, %v2287
    %v2362 = vxor.u32 %v2360, 2147483648
    %v2363 = vxor.u32 %v2361, 2147483648
    %v2364 = vmul.f32 %v2362, 1.442695
    %v2365 = vpow.pop %v2364
    %v2366 = vmul.f32 %v2363, 1.442695
    %v2367 = vpow.pop %v2366
    %v2368 = vadd.f32 %v2365, 1.0
    %v2369 = vadd.f32 %v2367, 1.0
    %v2370 = vrcp.pop %v2368
    %v2371 = vmul.f32 %v2368, %v2370
    %v2372 = vsub.f32 1.0, %v2371
    %v2373 = vmul.f32 %v2370, %v2372
    %v2374 = vadd.f32 %v2370, %v2373
    %vm2375 = vweird.f32 %v2368
    %vm2376 = vweird.f32 %v2370
    %vm2377 = vmor %vm2375, %vm2376
    %v2378 = vsel %vm2377, %v2370, %v2374
    %v2379 = vand.u32 2147483647, %v2368
    %vm2380 = vcmp.eq.f32.partialorder %v2379, 8.507059e+37
    %v2381 = vand.u32 %v2368, 2147483648
    %v2382 = vor.u32 1.1754944e-38, %v2381
    %v2383 = vsel %vm2380, %v2382, %v2378
    %v2384 = vmul.f32 1.0, %v2383
    %v2385 = vrcp.pop %v2369
    %v2386 = vmul.f32 %v2369, %v2385
    %v2387 = vsub.f32 1.0, %v2386
    %v2388 = vmul.f32 %v2385, %v2387
    %v2389 = vadd.f32 %v2385, %v2388
    %vm2390 = vweird.f32 %v2369
    %vm2391 = vweird.f32 %v2385
    %vm2392 = vmor %vm2390, %vm2391
    %v2393 = vsel %vm2392, %v2385, %v2389
    %v2394 = vand.u32 2147483647, %v2369
    %vm2395 = vcmp.eq.f32.partialorder %v2394, 8.507059e+37
    %v2396 = vand.u32 %v2369, 2147483648
    %v2397 = vor.u32 1.1754944e-38, %v2396
    %v2398 = vsel %vm2395, %v2397, %v2393
    %v2399 = vmul.f32 1.0, %v2398
    %v2400 = vmul.f32 %v2344, %v2315
    %v2401 = vmul.f32 %v2359, %v2318
    %v2402 = vadd.f32 %v2219, %v2400
    %v2403 = vadd.f32 %v2220, %v2401
    %v2404 = vtanh.pop %v2402
    %v2405 = vtanh.pop %v2403
    %v2406 = vsub.f32 1.0, %v2384
    %v2407 = vsub.f32 1.0, %v2399
    %v2408 = vmul.f32 %v2406, %v2404
    %v2409 = vmul.f32 %v2407, %v2405
    %v2410 = vmul.f32 %v2384, %v2065
    %v2411 = vmul.f32 %v2399, %v2066
    %v2412 = vadd.f32 %v2408, %v2410
    %v2413 = vadd.f32 %v2409, %v2411
    %s2414 = scalar_lea.vmem [#allocation5], 32
    %v2415 = vld [vmem:[%s2414] sm:$0xff]
    %s2416 = scalar_lea.vmem [#allocation6], 32
    %v2417 = vld [vmem:[%s2416] sm:$0xff]
    %s2418 = scalar_lea.vmem [#allocation7], 32
    %v2419 = vld [vmem:[%s2418] sm:$0xff]
    %v2420 = vld [vmem:[%s17] sm:$0xff]
    %v2421 = vld [vmem:[%s17 + $0x8] sm:$0xff]
    %v2422 = vld [vmem:[%s17 + $0x10] sm:$0xff]
    %v2423 = vld [vmem:[%s17 + $0x18] sm:$0xff]
    %v2424 = vld [vmem:[%s18] sm:$0x1]
    %v2426 = vperm.slane %v2424, 0
    %v2429 = vsel %vm319, %v2206, 0
    %2431 = vmatpush.msra.mxu0 0.0
    %2432 = vmatpush.msra.mxu0 0.0
    %2433 = vmatpush.msra.mxu0 0.0
    %2434 = vmatpush.msra.mxu0 0.0
    %2435 = vmatpush.msra.mxu0 0.0
    %2436 = vmatpush.msra.mxu0 0.0
    %2437 = vmatpush.msra.mxu0 0.0
    %2438 = vmatpush.msra.mxu0 0.0
    %2439 = vmatpush.msra.mxu0 0.0
    %2440 = vmatpush.msra.mxu0 0.0
    %2441 = vmatpush.msra.mxu0 0.0
    %2442 = vmatpush.msra.mxu0 0.0
    %2443 = vmatpush.msra.mxu0 %v2423
    %2444 = vmatpush.msra.mxu0 %v2422
    %2445 = vmatpush.msra.mxu0 %v2421
    %2446 = vmatpush.msra.mxu0 %v2420
    %2447 = vmatmul.f32.gmra.mxu0 %v2429
    %v2448 = vpop.f32.mrf.mxu0
    %v2449 = vadd.f32 %v2426, %v2448
    %2450 = vdwg.mxu0
    %v2451 = vld [vmem:[%s1061] sm:$0xff]
    %v2452 = vld [vmem:[%s1061 + $0x8] sm:$0xff]
    %v2453 = vld [vmem:[%s1061 + $0x10] sm:$0xff]
    %v2454 = vld [vmem:[%s1061 + $0x18] sm:$0xff]
    %v2455 = vld [vmem:[%s1066] sm:$0x1]
    %v2457 = vperm.slane %v2455, 0
    %2459 = vmatpush.msra.mxu0 0.0
    %2460 = vmatpush.msra.mxu0 0.0
    %2461 = vmatpush.msra.mxu0 0.0
    %2462 = vmatpush.msra.mxu0 0.0
    %2463 = vmatpush.msra.mxu0 0.0
    %2464 = vmatpush.msra.mxu0 0.0
    %2465 = vmatpush.msra.mxu0 0.0
    %2466 = vmatpush.msra.mxu0 0.0
    %2467 = vmatpush.msra.mxu0 0.0
    %2468 = vmatpush.msra.mxu0 0.0
    %2469 = vmatpush.msra.mxu0 0.0
    %2470 = vmatpush.msra.mxu0 0.0
    %2471 = vmatpush.msra.mxu0 %v2454
    %2472 = vmatpush.msra.mxu0 %v2453
    %2473 = vmatpush.msra.mxu0 %v2452
    %2474 = vmatpush.msra.mxu0 %v2451
    %2475 = vmatmul.f32.gmra.mxu0 %v2429
    %v2476 = vpop.f32.mrf.mxu0
    %v2477 = vadd.f32 %v2457, %v2476
    %2478 = vdwg.mxu0
    %v2479 = vld [vmem:[%s1091] sm:$0xff]
    %v2480 = vld [vmem:[%s1091 + $0x8] sm:$0xff]
    %v2481 = vld [vmem:[%s1091 + $0x10] sm:$0xff]
    %v2482 = vld [vmem:[%s1091 + $0x18] sm:$0xff]
    %v2483 = vld [vmem:[%s1096] sm:$0x1]
    %v2485 = vperm.slane %v2483, 0
    %2487 = vmatpush.msra.mxu0 0.0
    %2488 = vmatpush.msra.mxu0 0.0
    %2489 = vmatpush.msra.mxu0 0.0
    %2490 = vmatpush.msra.mxu0 0.0
    %2491 = vmatpush.msra.mxu0 0.0
    %2492 = vmatpush.msra.mxu0 0.0
    %2493 = vmatpush.msra.mxu0 0.0
    %2494 = vmatpush.msra.mxu0 0.0
    %2495 = vmatpush.msra.mxu0 0.0
    %2496 = vmatpush.msra.mxu0 0.0
    %2497 = vmatpush.msra.mxu0 0.0
    %2498 = vmatpush.msra.mxu0 0.0
    %2499 = vmatpush.msra.mxu0 %v2482
    %2500 = vmatpush.msra.mxu0 %v2481
    %2501 = vmatpush.msra.mxu0 %v2480
    %2502 = vmatpush.msra.mxu0 %v2479
    %2503 = vmatmul.f32.gmra.mxu0 %v2429
    %v2504 = vpop.f32.mrf.mxu0
    %v2505 = vadd.f32 %v2485, %v2504
    %2506 = vdwg.mxu0
    %v2507 = vadd.f32 %v2415, %v2449
    %v2508 = vxor.u32 %v2507, 2147483648
    %v2509 = vmul.f32 %v2508, 1.442695
    %v2510 = vpow.pop %v2509
    %v2511 = vadd.f32 %v2510, 1.0
    %v2512 = vrcp.pop %v2511
    %v2513 = vmul.f32 %v2511, %v2512
    %v2514 = vsub.f32 1.0, %v2513
    %v2515 = vmul.f32 %v2512, %v2514
    %v2516 = vadd.f32 %v2512, %v2515
    %vm2517 = vweird.f32 %v2511
    %vm2518 = vweird.f32 %v2512
    %vm2519 = vmor %vm2517, %vm2518
    %v2520 = vsel %vm2519, %v2512, %v2516
    %v2521 = vand.u32 2147483647, %v2511
    %vm2522 = vcmp.eq.f32.partialorder %v2521, 8.507059e+37
    %v2523 = vand.u32 %v2511, 2147483648
    %v2524 = vor.u32 1.1754944e-38, %v2523
    %v2525 = vsel %vm2522, %v2524, %v2520
    %v2526 = vmul.f32 1.0, %v2525
    %v2527 = vadd.f32 %v2417, %v2477
    %v2528 = vxor.u32 %v2527, 2147483648
    %v2529 = vmul.f32 %v2528, 1.442695
    %v2530 = vpow.pop %v2529
    %v2531 = vadd.f32 %v2530, 1.0
    %v2532 = vrcp.pop %v2531
    %v2533 = vmul.f32 %v2531, %v2532
    %v2534 = vsub.f32 1.0, %v2533
    %v2535 = vmul.f32 %v2532, %v2534
    %v2536 = vadd.f32 %v2532, %v2535
    %vm2537 = vweird.f32 %v2531
    %vm2538 = vweird.f32 %v2532
    %vm2539 = vmor %vm2537, %vm2538
    %v2540 = vsel %vm2539, %v2532, %v2536
    %v2541 = vand.u32 2147483647, %v2531
    %vm2542 = vcmp.eq.f32.partialorder %v2541, 8.507059e+37
    %v2543 = vand.u32 %v2531, 2147483648
    %v2544 = vor.u32 1.1754944e-38, %v2543
    %v2545 = vsel %vm2542, %v2544, %v2540
    %v2546 = vmul.f32 1.0, %v2545
    %v2547 = vmul.f32 %v2526, %v2505
    %v2548 = vadd.f32 %v2419, %v2547
    %v2549 = vtanh.pop %v2548
    %v2550 = vsub.f32 1.0, %v2546
    %v2551 = vmul.f32 %v2550, %v2549
    %v2552 = vmul.f32 %v2546, %v2206
    %v2553 = vadd.f32 %v2551, %v2552
    %s2554 = scalar_lea.vmem [#allocation8], 64
    %2555 = vst.msk [vmem:[%s2554] sm:$0xff] %vm319, %v2412
    %2556 = vst.msk [vmem:[%s2554 + $0x8] sm:$0xff] %vm319, %v2413
    %s2557 = scalar_lea.vmem [#allocation9], 32
    %2558 = vst.msk [vmem:[%s2557] sm:$0xff] %vm319, %v2553
    %s2559 = scalar_lea.vmem [#allocation2], 80
    %v2560 = vld [vmem:[%s2559] sm:$0xff]
    %v2561 = vld [vmem:[%s2559 + $0x8] sm:$0xff]
    %s2562 = scalar_lea.vmem [#allocation3], 80
    %v2563 = vld [vmem:[%s2562] sm:$0xff]
    %v2564 = vld [vmem:[%s2562 + $0x8] sm:$0xff]
    %s2565 = scalar_lea.vmem [#allocation4], 80
    %v2566 = vld [vmem:[%s2565] sm:$0xff]
    %v2567 = vld [vmem:[%s2565 + $0x8] sm:$0xff]
    %v2568 = vld [vmem:[%s9] sm:$0xff]
    %v2569 = vld [vmem:[%s9 + $0x8] sm:$0xff]
    %v2570 = vld [vmem:[%s9 + $0x10] sm:$0xff]
    %v2571 = vld [vmem:[%s9 + $0x18] sm:$0xff]
    %v2572 = vld [vmem:[%s10] sm:$0x1]
    %v2574 = vperm.slane %v2572, 0
    %v2577 = vsel %vm319, %v2412, 0
    %v2580 = vsel %vm319, %v2413, 0
    %2582 = vmatpush.msra.mxu0 0.0
    %2583 = vmatpush.msra.mxu0 0.0
    %2584 = vmatpush.msra.mxu0 0.0
    %2585 = vmatpush.msra.mxu0 0.0
    %2586 = vmatpush.msra.mxu0 0.0
    %2587 = vmatpush.msra.mxu0 0.0
    %2588 = vmatpush.msra.mxu0 0.0
    %2589 = vmatpush.msra.mxu0 0.0
    %2590 = vmatpush.msra.mxu0 0.0
    %2591 = vmatpush.msra.mxu0 0.0
    %2592 = vmatpush.msra.mxu0 0.0
    %2593 = vmatpush.msra.mxu0 0.0
    %2594 = vmatpush.msra.mxu0 %v2571
    %2595 = vmatpush.msra.mxu0 %v2570
    %2596 = vmatpush.msra.mxu0 %v2569
    %2597 = vmatpush.msra.mxu0 %v2568
    %2598 = vmatmul.f32.gmra.mxu0 %v2577
    %v2599 = vpop.f32.mrf.mxu0
    %v2600 = vadd.f32 %v2574, %v2599
    %2601 = vmatmul.f32.gmra.mxu0 %v2580
    %v2602 = vpop.f32.mrf.mxu0
    %v2603 = vadd.f32 %v2574, %v2602
    %2604 = vdwg.mxu0
    %v2605 = vld [vmem:[%s870] sm:$0xff]
    %v2606 = vld [vmem:[%s870 + $0x8] sm:$0xff]
    %v2607 = vld [vmem:[%s870 + $0x10] sm:$0xff]
    %v2608 = vld [vmem:[%s870 + $0x18] sm:$0xff]
    %v2609 = vld [vmem:[%s875] sm:$0x1]
    %v2611 = vperm.slane %v2609, 0
    %2613 = vmatpush.msra.mxu0 0.0
    %2614 = vmatpush.msra.mxu0 0.0
    %2615 = vmatpush.msra.mxu0 0.0
    %2616 = vmatpush.msra.mxu0 0.0
    %2617 = vmatpush.msra.mxu0 0.0
    %2618 = vmatpush.msra.mxu0 0.0
    %2619 = vmatpush.msra.mxu0 0.0
    %2620 = vmatpush.msra.mxu0 0.0
    %2621 = vmatpush.msra.mxu0 0.0
    %2622 = vmatpush.msra.mxu0 0.0
    %2623 = vmatpush.msra.mxu0 0.0
    %2624 = vmatpush.msra.mxu0 0.0
    %2625 = vmatpush.msra.mxu0 %v2608
    %2626 = vmatpush.msra.mxu0 %v2607
    %2627 = vmatpush.msra.mxu0 %v2606
    %2628 = vmatpush.msra.mxu0 %v2605
    %2629 = vmatmul.f32.gmra.mxu0 %v2577
    %v2630 = vpop.f32.mrf.mxu0
    %v2631 = vadd.f32 %v2611, %v2630
    %2632 = vmatmul.f32.gmra.mxu0 %v2580
    %v2633 = vpop.f32.mrf.mxu0
    %v2634 = vadd.f32 %v2611, %v2633
    %2635 = vdwg.mxu0
    %v2636 = vld [vmem:[%s903] sm:$0xff]
    %v2637 = vld [vmem:[%s903 + $0x8] sm:$0xff]
    %v2638 = vld [vmem:[%s903 + $0x10] sm:$0xff]
    %v2639 = vld [vmem:[%s903 + $0x18] sm:$0xff]
    %v2640 = vld [vmem:[%s908] sm:$0x1]
    %v2642 = vperm.slane %v2640, 0
    %2644 = vmatpush.msra.mxu0 0.0
    %2645 = vmatpush.msra.mxu0 0.0
    %2646 = vmatpush.msra.mxu0 0.0
    %2647 = vmatpush.msra.mxu0 0.0
    %2648 = vmatpush.msra.mxu0 0.0
    %2649 = vmatpush.msra.mxu0 0.0
    %2650 = vmatpush.msra.mxu0 0.0
    %2651 = vmatpush.msra.mxu0 0.0
    %2652 = vmatpush.msra.mxu0 0.0
    %2653 = vmatpush.msra.mxu0 0.0
    %2654 = vmatpush.msra.mxu0 0.0
    %2655 = vmatpush.msra.mxu0 0.0
    %2656 = vmatpush.msra.mxu0 %v2639
    %2657 = vmatpush.msra.mxu0 %v2638
    %2658 = vmatpush.msra.mxu0 %v2637
    %2659 = vmatpush.msra.mxu0 %v2636
    %2660 = vmatmul.f32.gmra.mxu0 %v2577
    %v2661 = vpop.f32.mrf.mxu0
    %v2662 = vadd.f32 %v2642, %v2661
    %2663 = vmatmul.f32.gmra.mxu0 %v2580
    %v2664 = vpop.f32.mrf.mxu0
    %v2665 = vadd.f32 %v2642, %v2664
    %2666 = vdwg.mxu0
    %v2667 = vadd.f32 %v2560, %v2600
    %v2668 = vadd.f32 %v2561, %v2603
    %v2669 = vxor.u32 %v2667, 2147483648
    %v2670 = vxor.u32 %v2668, 2147483648
    %v2671 = vmul.f32 %v2669, 1.442695
    %v2672 = vpow.pop %v2671
    %v2673 = vmul.f32 %v2670, 1.442695
    %v2674 = vpow.pop %v2673
    %v2675 = vadd.f32 %v2672, 1.0
    %v2676 = vadd.f32 %v2674, 1.0
    %v2677 = vrcp.pop %v2675
    %v2678 = vmul.f32 %v2675, %v2677
    %v2679 = vsub.f32 1.0, %v2678
    %v2680 = vmul.f32 %v2677, %v2679
    %v2681 = vadd.f32 %v2677, %v2680
    %vm2682 = vweird.f32 %v2675
    %vm2683 = vweird.f32 %v2677
    %vm2684 = vmor %vm2682, %vm2683
    %v2685 = vsel %vm2684, %v2677, %v2681
    %v2686 = vand.u32 2147483647, %v2675
    %vm2687 = vcmp.eq.f32.partialorder %v2686, 8.507059e+37
    %v2688 = vand.u32 %v2675, 2147483648
    %v2689 = vor.u32 1.1754944e-38, %v2688
    %v2690 = vsel %vm2687, %v2689, %v2685
    %v2691 = vmul.f32 1.0, %v2690
    %v2692 = vrcp.pop %v2676
    %v2693 = vmul.f32 %v2676, %v2692
    %v2694 = vsub.f32 1.0, %v2693
    %v2695 = vmul.f32 %v2692, %v2694
    %v2696 = vadd.f32 %v2692, %v2695
    %vm2697 = vweird.f32 %v2676
    %vm2698 = vweird.f32 %v2692
    %vm2699 = vmor %vm2697, %vm2698
    %v2700 = vsel %vm2699, %v2692, %v2696
    %v2701 = vand.u32 2147483647, %v2676
    %vm2702 = vcmp.eq.f32.partialorder %v2701, 8.507059e+37
    %v2703 = vand.u32 %v2676, 2147483648
    %v2704 = vor.u32 1.1754944e-38, %v2703
    %v2705 = vsel %vm2702, %v2704, %v2700
    %v2706 = vmul.f32 1.0, %v2705
    %v2707 = vadd.f32 %v2563, %v2631
    %v2708 = vadd.f32 %v2564, %v2634
    %v2709 = vxor.u32 %v2707, 2147483648
    %v2710 = vxor.u32 %v2708, 2147483648
    %v2711 = vmul.f32 %v2709, 1.442695
    %v2712 = vpow.pop %v2711
    %v2713 = vmul.f32 %v2710, 1.442695
    %v2714 = vpow.pop %v2713
    %v2715 = vadd.f32 %v2712, 1.0
    %v2716 = vadd.f32 %v2714, 1.0
    %v2717 = vrcp.pop %v2715
    %v2718 = vmul.f32 %v2715, %v2717
    %v2719 = vsub.f32 1.0, %v2718
    %v2720 = vmul.f32 %v2717, %v2719
    %v2721 = vadd.f32 %v2717, %v2720
    %vm2722 = vweird.f32 %v2715
    %vm2723 = vweird.f32 %v2717
    %vm2724 = vmor %vm2722, %vm2723
    %v2725 = vsel %vm2724, %v2717, %v2721
    %v2726 = vand.u32 2147483647, %v2715
    %vm2727 = vcmp.eq.f32.partialorder %v2726, 8.507059e+37
    %v2728 = vand.u32 %v2715, 2147483648
    %v2729 = vor.u32 1.1754944e-38, %v2728
    %v2730 = vsel %vm2727, %v2729, %v2725
    %v2731 = vmul.f32 1.0, %v2730
    %v2732 = vrcp.pop %v2716
    %v2733 = vmul.f32 %v2716, %v2732
    %v2734 = vsub.f32 1.0, %v2733
    %v2735 = vmul.f32 %v2732, %v2734
    %v2736 = vadd.f32 %v2732, %v2735
    %vm2737 = vweird.f32 %v2716
    %vm2738 = vweird.f32 %v2732
    %vm2739 = vmor %vm2737, %vm2738
    %v2740 = vsel %vm2739, %v2732, %v2736
    %v2741 = vand.u32 2147483647, %v2716
    %vm2742 = vcmp.eq.f32.partialorder %v2741, 8.507059e+37
    %v2743 = vand.u32 %v2716, 2147483648
    %v2744 = vor.u32 1.1754944e-38, %v2743
    %v2745 = vsel %vm2742, %v2744, %v2740
    %v2746 = vmul.f32 1.0, %v2745
    %v2747 = vmul.f32 %v2691, %v2662
    %v2748 = vmul.f32 %v2706, %v2665
    %v2749 = vadd.f32 %v2566, %v2747
    %v2750 = vadd.f32 %v2567, %v2748
    %v2751 = vtanh.pop %v2749
    %v2752 = vtanh.pop %v2750
    %v2753 = vsub.f32 1.0, %v2731
    %v2754 = vsub.f32 1.0, %v2746
    %v2755 = vmul.f32 %v2753, %v2751
    %v2756 = vmul.f32 %v2754, %v2752
    %v2757 = vmul.f32 %v2731, %v2412
    %v2758 = vmul.f32 %v2746, %v2413
    %v2759 = vadd.f32 %v2755, %v2757
    %v2760 = vadd.f32 %v2756, %v2758
    %s2761 = scalar_lea.vmem [#allocation5], 40
    %v2762 = vld [vmem:[%s2761] sm:$0xff]
    %s2763 = scalar_lea.vmem [#allocation6], 40
    %v2764 = vld [vmem:[%s2763] sm:$0xff]
    %s2765 = scalar_lea.vmem [#allocation7], 40
    %v2766 = vld [vmem:[%s2765] sm:$0xff]
    %v2767 = vld [vmem:[%s17] sm:$0xff]
    %v2768 = vld [vmem:[%s17 + $0x8] sm:$0xff]
    %v2769 = vld [vmem:[%s17 + $0x10] sm:$0xff]
    %v2770 = vld [vmem:[%s17 + $0x18] sm:$0xff]
    %v2771 = vld [vmem:[%s18] sm:$0x1]
    %v2773 = vperm.slane %v2771, 0
    %v2776 = vsel %vm319, %v2553, 0
    %2778 = vmatpush.msra.mxu0 0.0
    %2779 = vmatpush.msra.mxu0 0.0
    %2780 = vmatpush.msra.mxu0 0.0
    %2781 = vmatpush.msra.mxu0 0.0
    %2782 = vmatpush.msra.mxu0 0.0
    %2783 = vmatpush.msra.mxu0 0.0
    %2784 = vmatpush.msra.mxu0 0.0
    %2785 = vmatpush.msra.mxu0 0.0
    %2786 = vmatpush.msra.mxu0 0.0
    %2787 = vmatpush.msra.mxu0 0.0
    %2788 = vmatpush.msra.mxu0 0.0
    %2789 = vmatpush.msra.mxu0 0.0
    %2790 = vmatpush.msra.mxu0 %v2770
    %2791 = vmatpush.msra.mxu0 %v2769
    %2792 = vmatpush.msra.mxu0 %v2768
    %2793 = vmatpush.msra.mxu0 %v2767
    %2794 = vmatmul.f32.gmra.mxu0 %v2776
    %v2795 = vpop.f32.mrf.mxu0
    %v2796 = vadd.f32 %v2773, %v2795
    %2797 = vdwg.mxu0
    %v2798 = vld [vmem:[%s1061] sm:$0xff]
    %v2799 = vld [vmem:[%s1061 + $0x8] sm:$0xff]
    %v2800 = vld [vmem:[%s1061 + $0x10] sm:$0xff]
    %v2801 = vld [vmem:[%s1061 + $0x18] sm:$0xff]
    %v2802 = vld [vmem:[%s1066] sm:$0x1]
    %v2804 = vperm.slane %v2802, 0
    %2806 = vmatpush.msra.mxu0 0.0
    %2807 = vmatpush.msra.mxu0 0.0
    %2808 = vmatpush.msra.mxu0 0.0
    %2809 = vmatpush.msra.mxu0 0.0
    %2810 = vmatpush.msra.mxu0 0.0
    %2811 = vmatpush.msra.mxu0 0.0
    %2812 = vmatpush.msra.mxu0 0.0
    %2813 = vmatpush.msra.mxu0 0.0
    %2814 = vmatpush.msra.mxu0 0.0
    %2815 = vmatpush.msra.mxu0 0.0
    %2816 = vmatpush.msra.mxu0 0.0
    %2817 = vmatpush.msra.mxu0 0.0
    %2818 = vmatpush.msra.mxu0 %v2801
    %2819 = vmatpush.msra.mxu0 %v2800
    %2820 = vmatpush.msra.mxu0 %v2799
    %2821 = vmatpush.msra.mxu0 %v2798
    %2822 = vmatmul.f32.gmra.mxu0 %v2776
    %v2823 = vpop.f32.mrf.mxu0
    %v2824 = vadd.f32 %v2804, %v2823
    %2825 = vdwg.mxu0
    %v2826 = vld [vmem:[%s1091] sm:$0xff]
    %v2827 = vld [vmem:[%s1091 + $0x8] sm:$0xff]
    %v2828 = vld [vmem:[%s1091 + $0x10] sm:$0xff]
    %v2829 = vld [vmem:[%s1091 + $0x18] sm:$0xff]
    %v2830 = vld [vmem:[%s1096] sm:$0x1]
    %v2832 = vperm.slane %v2830, 0
    %2834 = vmatpush.msra.mxu0 0.0
    %2835 = vmatpush.msra.mxu0 0.0
    %2836 = vmatpush.msra.mxu0 0.0
    %2837 = vmatpush.msra.mxu0 0.0
    %2838 = vmatpush.msra.mxu0 0.0
    %2839 = vmatpush.msra.mxu0 0.0
    %2840 = vmatpush.msra.mxu0 0.0
    %2841 = vmatpush.msra.mxu0 0.0
    %2842 = vmatpush.msra.mxu0 0.0
    %2843 = vmatpush.msra.mxu0 0.0
    %2844 = vmatpush.msra.mxu0 0.0
    %2845 = vmatpush.msra.mxu0 0.0
    %2846 = vmatpush.msra.mxu0 %v2829
    %2847 = vmatpush.msra.mxu0 %v2828
    %2848 = vmatpush.msra.mxu0 %v2827
    %2849 = vmatpush.msra.mxu0 %v2826
    %2850 = vmatmul.f32.gmra.mxu0 %v2776
    %v2851 = vpop.f32.mrf.mxu0
    %v2852 = vadd.f32 %v2832, %v2851
    %2853 = vdwg.mxu0
    %v2854 = vadd.f32 %v2762, %v2796
    %v2855 = vxor.u32 %v2854, 2147483648
    %v2856 = vmul.f32 %v2855, 1.442695
    %v2857 = vpow.pop %v2856
    %v2858 = vadd.f32 %v2857, 1.0
    %v2859 = vrcp.pop %v2858
    %v2860 = vmul.f32 %v2858, %v2859
    %v2861 = vsub.f32 1.0, %v2860
    %v2862 = vmul.f32 %v2859, %v2861
    %v2863 = vadd.f32 %v2859, %v2862
    %vm2864 = vweird.f32 %v2858
    %vm2865 = vweird.f32 %v2859
    %vm2866 = vmor %vm2864, %vm2865
    %v2867 = vsel %vm2866, %v2859, %v2863
    %v2868 = vand.u32 2147483647, %v2858
    %vm2869 = vcmp.eq.f32.partialorder %v2868, 8.507059e+37
    %v2870 = vand.u32 %v2858, 2147483648
    %v2871 = vor.u32 1.1754944e-38, %v2870
    %v2872 = vsel %vm2869, %v2871, %v2867
    %v2873 = vmul.f32 1.0, %v2872
    %v2874 = vadd.f32 %v2764, %v2824
    %v2875 = vxor.u32 %v2874, 2147483648
    %v2876 = vmul.f32 %v2875, 1.442695
    %v2877 = vpow.pop %v2876
    %v2878 = vadd.f32 %v2877, 1.0
    %v2879 = vrcp.pop %v2878
    %v2880 = vmul.f32 %v2878, %v2879
    %v2881 = vsub.f32 1.0, %v2880
    %v2882 = vmul.f32 %v2879, %v2881
    %v2883 = vadd.f32 %v2879, %v2882
    %vm2884 = vweird.f32 %v2878
    %vm2885 = vweird.f32 %v2879
    %vm2886 = vmor %vm2884, %vm2885
    %v2887 = vsel %vm2886, %v2879, %v2883
    %v2888 = vand.u32 2147483647, %v2878
    %vm2889 = vcmp.eq.f32.partialorder %v2888, 8.507059e+37
    %v2890 = vand.u32 %v2878, 2147483648
    %v2891 = vor.u32 1.1754944e-38, %v2890
    %v2892 = vsel %vm2889, %v2891, %v2887
    %v2893 = vmul.f32 1.0, %v2892
    %v2894 = vmul.f32 %v2873, %v2852
    %v2895 = vadd.f32 %v2766, %v2894
    %v2896 = vtanh.pop %v2895
    %v2897 = vsub.f32 1.0, %v2893
    %v2898 = vmul.f32 %v2897, %v2896
    %v2899 = vmul.f32 %v2893, %v2553
    %v2900 = vadd.f32 %v2898, %v2899
    %s2901 = scalar_lea.vmem [#allocation8], 80
    %2902 = vst.msk [vmem:[%s2901] sm:$0xff] %vm319, %v2759
    %2903 = vst.msk [vmem:[%s2901 + $0x8] sm:$0xff] %vm319, %v2760
    %s2904 = scalar_lea.vmem [#allocation9], 40
    %2905 = vst.msk [vmem:[%s2904] sm:$0xff] %vm319, %v2900
    %s2906 = scalar_lea.vmem [#allocation2], 96
    %v2907 = vld [vmem:[%s2906] sm:$0xff]
    %v2908 = vld [vmem:[%s2906 + $0x8] sm:$0xff]
    %s2909 = scalar_lea.vmem [#allocation3], 96
    %v2910 = vld [vmem:[%s2909] sm:$0xff]
    %v2911 = vld [vmem:[%s2909 + $0x8] sm:$0xff]
    %s2912 = scalar_lea.vmem [#allocation4], 96
    %v2913 = vld [vmem:[%s2912] sm:$0xff]
    %v2914 = vld [vmem:[%s2912 + $0x8] sm:$0xff]
    %v2915 = vld [vmem:[%s9] sm:$0xff]
    %v2916 = vld [vmem:[%s9 + $0x8] sm:$0xff]
    %v2917 = vld [vmem:[%s9 + $0x10] sm:$0xff]
    %v2918 = vld [vmem:[%s9 + $0x18] sm:$0xff]
    %v2919 = vld [vmem:[%s10] sm:$0x1]
    %v2921 = vperm.slane %v2919, 0
    %v2924 = vsel %vm319, %v2759, 0
    %v2927 = vsel %vm319, %v2760, 0
    %2929 = vmatpush.msra.mxu0 0.0
    %2930 = vmatpush.msra.mxu0 0.0
    %2931 = vmatpush.msra.mxu0 0.0
    %2932 = vmatpush.msra.mxu0 0.0
    %2933 = vmatpush.msra.mxu0 0.0
    %2934 = vmatpush.msra.mxu0 0.0
    %2935 = vmatpush.msra.mxu0 0.0
    %2936 = vmatpush.msra.mxu0 0.0
    %2937 = vmatpush.msra.mxu0 0.0
    %2938 = vmatpush.msra.mxu0 0.0
    %2939 = vmatpush.msra.mxu0 0.0
    %2940 = vmatpush.msra.mxu0 0.0
    %2941 = vmatpush.msra.mxu0 %v2918
    %2942 = vmatpush.msra.mxu0 %v2917
    %2943 = vmatpush.msra.mxu0 %v2916
    %2944 = vmatpush.msra.mxu0 %v2915
    %2945 = vmatmul.f32.gmra.mxu0 %v2924
    %v2946 = vpop.f32.mrf.mxu0
    %v2947 = vadd.f32 %v2921, %v2946
    %2948 = vmatmul.f32.gmra.mxu0 %v2927
    %v2949 = vpop.f32.mrf.mxu0
    %v2950 = vadd.f32 %v2921, %v2949
    %2951 = vdwg.mxu0
    %v2952 = vld [vmem:[%s870] sm:$0xff]
    %v2953 = vld [vmem:[%s870 + $0x8] sm:$0xff]
    %v2954 = vld [vmem:[%s870 + $0x10] sm:$0xff]
    %v2955 = vld [vmem:[%s870 + $0x18] sm:$0xff]
    %v2956 = vld [vmem:[%s875] sm:$0x1]
    %v2958 = vperm.slane %v2956, 0
    %2960 = vmatpush.msra.mxu0 0.0
    %2961 = vmatpush.msra.mxu0 0.0
    %2962 = vmatpush.msra.mxu0 0.0
    %2963 = vmatpush.msra.mxu0 0.0
    %2964 = vmatpush.msra.mxu0 0.0
    %2965 = vmatpush.msra.mxu0 0.0
    %2966 = vmatpush.msra.mxu0 0.0
    %2967 = vmatpush.msra.mxu0 0.0
    %2968 = vmatpush.msra.mxu0 0.0
    %2969 = vmatpush.msra.mxu0 0.0
    %2970 = vmatpush.msra.mxu0 0.0
    %2971 = vmatpush.msra.mxu0 0.0
    %2972 = vmatpush.msra.mxu0 %v2955
    %2973 = vmatpush.msra.mxu0 %v2954
    %2974 = vmatpush.msra.mxu0 %v2953
    %2975 = vmatpush.msra.mxu0 %v2952
    %2976 = vmatmul.f32.gmra.mxu0 %v2924
    %v2977 = vpop.f32.mrf.mxu0
    %v2978 = vadd.f32 %v2958, %v2977
    %2979 = vmatmul.f32.gmra.mxu0 %v2927
    %v2980 = vpop.f32.mrf.mxu0
    %v2981 = vadd.f32 %v2958, %v2980
    %2982 = vdwg.mxu0
    %v2983 = vld [vmem:[%s903] sm:$0xff]
    %v2984 = vld [vmem:[%s903 + $0x8] sm:$0xff]
    %v2985 = vld [vmem:[%s903 + $0x10] sm:$0xff]
    %v2986 = vld [vmem:[%s903 + $0x18] sm:$0xff]
    %v2987 = vld [vmem:[%s908] sm:$0x1]
    %v2989 = vperm.slane %v2987, 0
    %2991 = vmatpush.msra.mxu0 0.0
    %2992 = vmatpush.msra.mxu0 0.0
    %2993 = vmatpush.msra.mxu0 0.0
    %2994 = vmatpush.msra.mxu0 0.0
    %2995 = vmatpush.msra.mxu0 0.0
    %2996 = vmatpush.msra.mxu0 0.0
    %2997 = vmatpush.msra.mxu0 0.0
    %2998 = vmatpush.msra.mxu0 0.0
    %2999 = vmatpush.msra.mxu0 0.0
    %3000 = vmatpush.msra.mxu0 0.0
    %3001 = vmatpush.msra.mxu0 0.0
    %3002 = vmatpush.msra.mxu0 0.0
    %3003 = vmatpush.msra.mxu0 %v2986
    %3004 = vmatpush.msra.mxu0 %v2985
    %3005 = vmatpush.msra.mxu0 %v2984
    %3006 = vmatpush.msra.mxu0 %v2983
    %3007 = vmatmul.f32.gmra.mxu0 %v2924
    %v3008 = vpop.f32.mrf.mxu0
    %v3009 = vadd.f32 %v2989, %v3008
    %3010 = vmatmul.f32.gmra.mxu0 %v2927
    %v3011 = vpop.f32.mrf.mxu0
    %v3012 = vadd.f32 %v2989, %v3011
    %3013 = vdwg.mxu0
    %v3014 = vadd.f32 %v2907, %v2947
    %v3015 = vadd.f32 %v2908, %v2950
    %v3016 = vxor.u32 %v3014, 2147483648
    %v3017 = vxor.u32 %v3015, 2147483648
    %v3018 = vmul.f32 %v3016, 1.442695
    %v3019 = vpow.pop %v3018
    %v3020 = vmul.f32 %v3017, 1.442695
    %v3021 = vpow.pop %v3020
    %v3022 = vadd.f32 %v3019, 1.0
    %v3023 = vadd.f32 %v3021, 1.0
    %v3024 = vrcp.pop %v3022
    %v3025 = vmul.f32 %v3022, %v3024
    %v3026 = vsub.f32 1.0, %v3025
    %v3027 = vmul.f32 %v3024, %v3026
    %v3028 = vadd.f32 %v3024, %v3027
    %vm3029 = vweird.f32 %v3022
    %vm3030 = vweird.f32 %v3024
    %vm3031 = vmor %vm3029, %vm3030
    %v3032 = vsel %vm3031, %v3024, %v3028
    %v3033 = vand.u32 2147483647, %v3022
    %vm3034 = vcmp.eq.f32.partialorder %v3033, 8.507059e+37
    %v3035 = vand.u32 %v3022, 2147483648
    %v3036 = vor.u32 1.1754944e-38, %v3035
    %v3037 = vsel %vm3034, %v3036, %v3032
    %v3038 = vmul.f32 1.0, %v3037
    %v3039 = vrcp.pop %v3023
    %v3040 = vmul.f32 %v3023, %v3039
    %v3041 = vsub.f32 1.0, %v3040
    %v3042 = vmul.f32 %v3039, %v3041
    %v3043 = vadd.f32 %v3039, %v3042
    %vm3044 = vweird.f32 %v3023
    %vm3045 = vweird.f32 %v3039
    %vm3046 = vmor %vm3044, %vm3045
    %v3047 = vsel %vm3046, %v3039, %v3043
    %v3048 = vand.u32 2147483647, %v3023
    %vm3049 = vcmp.eq.f32.partialorder %v3048, 8.507059e+37
    %v3050 = vand.u32 %v3023, 2147483648
    %v3051 = vor.u32 1.1754944e-38, %v3050
    %v3052 = vsel %vm3049, %v3051, %v3047
    %v3053 = vmul.f32 1.0, %v3052
    %v3054 = vadd.f32 %v2910, %v2978
    %v3055 = vadd.f32 %v2911, %v2981
    %v3056 = vxor.u32 %v3054, 2147483648
    %v3057 = vxor.u32 %v3055, 2147483648
    %v3058 = vmul.f32 %v3056, 1.442695
    %v3059 = vpow.pop %v3058
    %v3060 = vmul.f32 %v3057, 1.442695
    %v3061 = vpow.pop %v3060
    %v3062 = vadd.f32 %v3059, 1.0
    %v3063 = vadd.f32 %v3061, 1.0
    %v3064 = vrcp.pop %v3062
    %v3065 = vmul.f32 %v3062, %v3064
    %v3066 = vsub.f32 1.0, %v3065
    %v3067 = vmul.f32 %v3064, %v3066
    %v3068 = vadd.f32 %v3064, %v3067
    %vm3069 = vweird.f32 %v3062
    %vm3070 = vweird.f32 %v3064
    %vm3071 = vmor %vm3069, %vm3070
    %v3072 = vsel %vm3071, %v3064, %v3068
    %v3073 = vand.u32 2147483647, %v3062
    %vm3074 = vcmp.eq.f32.partialorder %v3073, 8.507059e+37
    %v3075 = vand.u32 %v3062, 2147483648
    %v3076 = vor.u32 1.1754944e-38, %v3075
    %v3077 = vsel %vm3074, %v3076, %v3072
    %v3078 = vmul.f32 1.0, %v3077
    %v3079 = vrcp.pop %v3063
    %v3080 = vmul.f32 %v3063, %v3079
    %v3081 = vsub.f32 1.0, %v3080
    %v3082 = vmul.f32 %v3079, %v3081
    %v3083 = vadd.f32 %v3079, %v3082
    %vm3084 = vweird.f32 %v3063
    %vm3085 = vweird.f32 %v3079
    %vm3086 = vmor %vm3084, %vm3085
    %v3087 = vsel %vm3086, %v3079, %v3083
    %v3088 = vand.u32 2147483647, %v3063
    %vm3089 = vcmp.eq.f32.partialorder %v3088, 8.507059e+37
    %v3090 = vand.u32 %v3063, 2147483648
    %v3091 = vor.u32 1.1754944e-38, %v3090
    %v3092 = vsel %vm3089, %v3091, %v3087
    %v3093 = vmul.f32 1.0, %v3092
    %v3094 = vmul.f32 %v3038, %v3009
    %v3095 = vmul.f32 %v3053, %v3012
    %v3096 = vadd.f32 %v2913, %v3094
    %v3097 = vadd.f32 %v2914, %v3095
    %v3098 = vtanh.pop %v3096
    %v3099 = vtanh.pop %v3097
    %v3100 = vsub.f32 1.0, %v3078
    %v3101 = vsub.f32 1.0, %v3093
    %v3102 = vmul.f32 %v3100, %v3098
    %v3103 = vmul.f32 %v3101, %v3099
    %v3104 = vmul.f32 %v3078, %v2759
    %v3105 = vmul.f32 %v3093, %v2760
    %v3106 = vadd.f32 %v3102, %v3104
    %v3107 = vadd.f32 %v3103, %v3105
    %s3108 = scalar_lea.vmem [#allocation5], 48
    %v3109 = vld [vmem:[%s3108] sm:$0xff]
    %s3110 = scalar_lea.vmem [#allocation6], 48
    %v3111 = vld [vmem:[%s3110] sm:$0xff]
    %s3112 = scalar_lea.vmem [#allocation7], 48
    %v3113 = vld [vmem:[%s3112] sm:$0xff]
    %v3114 = vld [vmem:[%s17] sm:$0xff]
    %v3115 = vld [vmem:[%s17 + $0x8] sm:$0xff]
    %v3116 = vld [vmem:[%s17 + $0x10] sm:$0xff]
    %v3117 = vld [vmem:[%s17 + $0x18] sm:$0xff]
    %v3118 = vld [vmem:[%s18] sm:$0x1]
    %v3120 = vperm.slane %v3118, 0
    %v3123 = vsel %vm319, %v2900, 0
    %3125 = vmatpush.msra.mxu0 0.0
    %3126 = vmatpush.msra.mxu0 0.0
    %3127 = vmatpush.msra.mxu0 0.0
    %3128 = vmatpush.msra.mxu0 0.0
    %3129 = vmatpush.msra.mxu0 0.0
    %3130 = vmatpush.msra.mxu0 0.0
    %3131 = vmatpush.msra.mxu0 0.0
    %3132 = vmatpush.msra.mxu0 0.0
    %3133 = vmatpush.msra.mxu0 0.0
    %3134 = vmatpush.msra.mxu0 0.0
    %3135 = vmatpush.msra.mxu0 0.0
    %3136 = vmatpush.msra.mxu0 0.0
    %3137 = vmatpush.msra.mxu0 %v3117
    %3138 = vmatpush.msra.mxu0 %v3116
    %3139 = vmatpush.msra.mxu0 %v3115
    %3140 = vmatpush.msra.mxu0 %v3114
    %3141 = vmatmul.f32.gmra.mxu0 %v3123
    %v3142 = vpop.f32.mrf.mxu0
    %v3143 = vadd.f32 %v3120, %v3142
    %3144 = vdwg.mxu0
    %v3145 = vld [vmem:[%s1061] sm:$0xff]
    %v3146 = vld [vmem:[%s1061 + $0x8] sm:$0xff]
    %v3147 = vld [vmem:[%s1061 + $0x10] sm:$0xff]
    %v3148 = vld [vmem:[%s1061 + $0x18] sm:$0xff]
    %v3149 = vld [vmem:[%s1066] sm:$0x1]
    %v3151 = vperm.slane %v3149, 0
    %3153 = vmatpush.msra.mxu0 0.0
    %3154 = vmatpush.msra.mxu0 0.0
    %3155 = vmatpush.msra.mxu0 0.0
    %3156 = vmatpush.msra.mxu0 0.0
    %3157 = vmatpush.msra.mxu0 0.0
    %3158 = vmatpush.msra.mxu0 0.0
    %3159 = vmatpush.msra.mxu0 0.0
    %3160 = vmatpush.msra.mxu0 0.0
    %3161 = vmatpush.msra.mxu0 0.0
    %3162 = vmatpush.msra.mxu0 0.0
    %3163 = vmatpush.msra.mxu0 0.0
    %3164 = vmatpush.msra.mxu0 0.0
    %3165 = vmatpush.msra.mxu0 %v3148
    %3166 = vmatpush.msra.mxu0 %v3147
    %3167 = vmatpush.msra.mxu0 %v3146
    %3168 = vmatpush.msra.mxu0 %v3145
    %3169 = vmatmul.f32.gmra.mxu0 %v3123
    %v3170 = vpop.f32.mrf.mxu0
    %v3171 = vadd.f32 %v3151, %v3170
    %3172 = vdwg.mxu0
    %v3173 = vld [vmem:[%s1091] sm:$0xff]
    %v3174 = vld [vmem:[%s1091 + $0x8] sm:$0xff]
    %v3175 = vld [vmem:[%s1091 + $0x10] sm:$0xff]
    %v3176 = vld [vmem:[%s1091 + $0x18] sm:$0xff]
    %v3177 = vld [vmem:[%s1096] sm:$0x1]
    %v3179 = vperm.slane %v3177, 0
    %3181 = vmatpush.msra.mxu0 0.0
    %3182 = vmatpush.msra.mxu0 0.0
    %3183 = vmatpush.msra.mxu0 0.0
    %3184 = vmatpush.msra.mxu0 0.0
    %3185 = vmatpush.msra.mxu0 0.0
    %3186 = vmatpush.msra.mxu0 0.0
    %3187 = vmatpush.msra.mxu0 0.0
    %3188 = vmatpush.msra.mxu0 0.0
    %3189 = vmatpush.msra.mxu0 0.0
    %3190 = vmatpush.msra.mxu0 0.0
    %3191 = vmatpush.msra.mxu0 0.0
    %3192 = vmatpush.msra.mxu0 0.0
    %3193 = vmatpush.msra.mxu0 %v3176
    %3194 = vmatpush.msra.mxu0 %v3175
    %3195 = vmatpush.msra.mxu0 %v3174
    %3196 = vmatpush.msra.mxu0 %v3173
    %3197 = vmatmul.f32.gmra.mxu0 %v3123
    %v3198 = vpop.f32.mrf.mxu0
    %v3199 = vadd.f32 %v3179, %v3198
    %3200 = vdwg.mxu0
    %v3201 = vadd.f32 %v3109, %v3143
    %v3202 = vxor.u32 %v3201, 2147483648
    %v3203 = vmul.f32 %v3202, 1.442695
    %v3204 = vpow.pop %v3203
    %v3205 = vadd.f32 %v3204, 1.0
    %v3206 = vrcp.pop %v3205
    %v3207 = vmul.f32 %v3205, %v3206
    %v3208 = vsub.f32 1.0, %v3207
    %v3209 = vmul.f32 %v3206, %v3208
    %v3210 = vadd.f32 %v3206, %v3209
    %vm3211 = vweird.f32 %v3205
    %vm3212 = vweird.f32 %v3206
    %vm3213 = vmor %vm3211, %vm3212
    %v3214 = vsel %vm3213, %v3206, %v3210
    %v3215 = vand.u32 2147483647, %v3205
    %vm3216 = vcmp.eq.f32.partialorder %v3215, 8.507059e+37
    %v3217 = vand.u32 %v3205, 2147483648
    %v3218 = vor.u32 1.1754944e-38, %v3217
    %v3219 = vsel %vm3216, %v3218, %v3214
    %v3220 = vmul.f32 1.0, %v3219
    %v3221 = vadd.f32 %v3111, %v3171
    %v3222 = vxor.u32 %v3221, 2147483648
    %v3223 = vmul.f32 %v3222, 1.442695
    %v3224 = vpow.pop %v3223
    %v3225 = vadd.f32 %v3224, 1.0
    %v3226 = vrcp.pop %v3225
    %v3227 = vmul.f32 %v3225, %v3226
    %v3228 = vsub.f32 1.0, %v3227
    %v3229 = vmul.f32 %v3226, %v3228
    %v3230 = vadd.f32 %v3226, %v3229
    %vm3231 = vweird.f32 %v3225
    %vm3232 = vweird.f32 %v3226
    %vm3233 = vmor %vm3231, %vm3232
    %v3234 = vsel %vm3233, %v3226, %v3230
    %v3235 = vand.u32 2147483647, %v3225
    %vm3236 = vcmp.eq.f32.partialorder %v3235, 8.507059e+37
    %v3237 = vand.u32 %v3225, 2147483648
    %v3238 = vor.u32 1.1754944e-38, %v3237
    %v3239 = vsel %vm3236, %v3238, %v3234
    %v3240 = vmul.f32 1.0, %v3239
    %v3241 = vmul.f32 %v3220, %v3199
    %v3242 = vadd.f32 %v3113, %v3241
    %v3243 = vtanh.pop %v3242
    %v3244 = vsub.f32 1.0, %v3240
    %v3245 = vmul.f32 %v3244, %v3243
    %v3246 = vmul.f32 %v3240, %v2900
    %v3247 = vadd.f32 %v3245, %v3246
    %s3248 = scalar_lea.vmem [#allocation8], 96
    %3249 = vst.msk [vmem:[%s3248] sm:$0xff] %vm319, %v3106
    %3250 = vst.msk [vmem:[%s3248 + $0x8] sm:$0xff] %vm319, %v3107
    %s3251 = scalar_lea.vmem [#allocation9], 48
    %3252 = vst.msk [vmem:[%s3251] sm:$0xff] %vm319, %v3247
    %s3253 = scalar_lea.vmem [#allocation2], 112
    %v3254 = vld [vmem:[%s3253] sm:$0xff]
    %v3255 = vld [vmem:[%s3253 + $0x8] sm:$0xff]
    %s3256 = scalar_lea.vmem [#allocation3], 112
    %v3257 = vld [vmem:[%s3256] sm:$0xff]
    %v3258 = vld [vmem:[%s3256 + $0x8] sm:$0xff]
    %s3259 = scalar_lea.vmem [#allocation4], 112
    %v3260 = vld [vmem:[%s3259] sm:$0xff]
    %v3261 = vld [vmem:[%s3259 + $0x8] sm:$0xff]
    %v3262 = vld [vmem:[%s9] sm:$0xff]
    %v3263 = vld [vmem:[%s9 + $0x8] sm:$0xff]
    %v3264 = vld [vmem:[%s9 + $0x10] sm:$0xff]
    %v3265 = vld [vmem:[%s9 + $0x18] sm:$0xff]
    %v3266 = vld [vmem:[%s10] sm:$0x1]
    %v3268 = vperm.slane %v3266, 0
    %v3271 = vsel %vm319, %v3106, 0
    %v3274 = vsel %vm319, %v3107, 0
    %3276 = vmatpush.msra.mxu0 0.0
    %3277 = vmatpush.msra.mxu0 0.0
    %3278 = vmatpush.msra.mxu0 0.0
    %3279 = vmatpush.msra.mxu0 0.0
    %3280 = vmatpush.msra.mxu0 0.0
    %3281 = vmatpush.msra.mxu0 0.0
    %3282 = vmatpush.msra.mxu0 0.0
    %3283 = vmatpush.msra.mxu0 0.0
    %3284 = vmatpush.msra.mxu0 0.0
    %3285 = vmatpush.msra.mxu0 0.0
    %3286 = vmatpush.msra.mxu0 0.0
    %3287 = vmatpush.msra.mxu0 0.0
    %3288 = vmatpush.msra.mxu0 %v3265
    %3289 = vmatpush.msra.mxu0 %v3264
    %3290 = vmatpush.msra.mxu0 %v3263
    %3291 = vmatpush.msra.mxu0 %v3262
    %3292 = vmatmul.f32.gmra.mxu0 %v3271
    %v3293 = vpop.f32.mrf.mxu0
    %v3294 = vadd.f32 %v3268, %v3293
    %3295 = vmatmul.f32.gmra.mxu0 %v3274
    %v3296 = vpop.f32.mrf.mxu0
    %v3297 = vadd.f32 %v3268, %v3296
    %3298 = vdwg.mxu0
    %v3299 = vld [vmem:[%s870] sm:$0xff]
    %v3300 = vld [vmem:[%s870 + $0x8] sm:$0xff]
    %v3301 = vld [vmem:[%s870 + $0x10] sm:$0xff]
    %v3302 = vld [vmem:[%s870 + $0x18] sm:$0xff]
    %v3303 = vld [vmem:[%s875] sm:$0x1]
    %v3305 = vperm.slane %v3303, 0
    %3307 = vmatpush.msra.mxu0 0.0
    %3308 = vmatpush.msra.mxu0 0.0
    %3309 = vmatpush.msra.mxu0 0.0
    %3310 = vmatpush.msra.mxu0 0.0
    %3311 = vmatpush.msra.mxu0 0.0
    %3312 = vmatpush.msra.mxu0 0.0
    %3313 = vmatpush.msra.mxu0 0.0
    %3314 = vmatpush.msra.mxu0 0.0
    %3315 = vmatpush.msra.mxu0 0.0
    %3316 = vmatpush.msra.mxu0 0.0
    %3317 = vmatpush.msra.mxu0 0.0
    %3318 = vmatpush.msra.mxu0 0.0
    %3319 = vmatpush.msra.mxu0 %v3302
    %3320 = vmatpush.msra.mxu0 %v3301
    %3321 = vmatpush.msra.mxu0 %v3300
    %3322 = vmatpush.msra.mxu0 %v3299
    %3323 = vmatmul.f32.gmra.mxu0 %v3271
    %v3324 = vpop.f32.mrf.mxu0
    %v3325 = vadd.f32 %v3305, %v3324
    %3326 = vmatmul.f32.gmra.mxu0 %v3274
    %v3327 = vpop.f32.mrf.mxu0
    %v3328 = vadd.f32 %v3305, %v3327
    %3329 = vdwg.mxu0
    %v3330 = vld [vmem:[%s903] sm:$0xff]
    %v3331 = vld [vmem:[%s903 + $0x8] sm:$0xff]
    %v3332 = vld [vmem:[%s903 + $0x10] sm:$0xff]
    %v3333 = vld [vmem:[%s903 + $0x18] sm:$0xff]
    %v3334 = vld [vmem:[%s908] sm:$0x1]
    %v3336 = vperm.slane %v3334, 0
    %3338 = vmatpush.msra.mxu0 0.0
    %3339 = vmatpush.msra.mxu0 0.0
    %3340 = vmatpush.msra.mxu0 0.0
    %3341 = vmatpush.msra.mxu0 0.0
    %3342 = vmatpush.msra.mxu0 0.0
    %3343 = vmatpush.msra.mxu0 0.0
    %3344 = vmatpush.msra.mxu0 0.0
    %3345 = vmatpush.msra.mxu0 0.0
    %3346 = vmatpush.msra.mxu0 0.0
    %3347 = vmatpush.msra.mxu0 0.0
    %3348 = vmatpush.msra.mxu0 0.0
    %3349 = vmatpush.msra.mxu0 0.0
    %3350 = vmatpush.msra.mxu0 %v3333
    %3351 = vmatpush.msra.mxu0 %v3332
    %3352 = vmatpush.msra.mxu0 %v3331
    %3353 = vmatpush.msra.mxu0 %v3330
    %3354 = vmatmul.f32.gmra.mxu0 %v3271
    %v3355 = vpop.f32.mrf.mxu0
    %v3356 = vadd.f32 %v3336, %v3355
    %3357 = vmatmul.f32.gmra.mxu0 %v3274
    %v3358 = vpop.f32.mrf.mxu0
    %v3359 = vadd.f32 %v3336, %v3358
    %3360 = vdwg.mxu0
    %v3361 = vadd.f32 %v3254, %v3294
    %v3362 = vadd.f32 %v3255, %v3297
    %v3363 = vxor.u32 %v3361, 2147483648
    %v3364 = vxor.u32 %v3362, 2147483648
    %v3365 = vmul.f32 %v3363, 1.442695
    %v3366 = vpow.pop %v3365
    %v3367 = vmul.f32 %v3364, 1.442695
    %v3368 = vpow.pop %v3367
    %v3369 = vadd.f32 %v3366, 1.0
    %v3370 = vadd.f32 %v3368, 1.0
    %v3371 = vrcp.pop %v3369
    %v3372 = vmul.f32 %v3369, %v3371
    %v3373 = vsub.f32 1.0, %v3372
    %v3374 = vmul.f32 %v3371, %v3373
    %v3375 = vadd.f32 %v3371, %v3374
    %vm3376 = vweird.f32 %v3369
    %vm3377 = vweird.f32 %v3371
    %vm3378 = vmor %vm3376, %vm3377
    %v3379 = vsel %vm3378, %v3371, %v3375
    %v3380 = vand.u32 2147483647, %v3369
    %vm3381 = vcmp.eq.f32.partialorder %v3380, 8.507059e+37
    %v3382 = vand.u32 %v3369, 2147483648
    %v3383 = vor.u32 1.1754944e-38, %v3382
    %v3384 = vsel %vm3381, %v3383, %v3379
    %v3385 = vmul.f32 1.0, %v3384
    %v3386 = vrcp.pop %v3370
    %v3387 = vmul.f32 %v3370, %v3386
    %v3388 = vsub.f32 1.0, %v3387
    %v3389 = vmul.f32 %v3386, %v3388
    %v3390 = vadd.f32 %v3386, %v3389
    %vm3391 = vweird.f32 %v3370
    %vm3392 = vweird.f32 %v3386
    %vm3393 = vmor %vm3391, %vm3392
    %v3394 = vsel %vm3393, %v3386, %v3390
    %v3395 = vand.u32 2147483647, %v3370
    %vm3396 = vcmp.eq.f32.partialorder %v3395, 8.507059e+37
    %v3397 = vand.u32 %v3370, 2147483648
    %v3398 = vor.u32 1.1754944e-38, %v3397
    %v3399 = vsel %vm3396, %v3398, %v3394
    %v3400 = vmul.f32 1.0, %v3399
    %v3401 = vadd.f32 %v3257, %v3325
    %v3402 = vadd.f32 %v3258, %v3328
    %v3403 = vxor.u32 %v3401, 2147483648
    %v3404 = vxor.u32 %v3402, 2147483648
    %v3405 = vmul.f32 %v3403, 1.442695
    %v3406 = vpow.pop %v3405
    %v3407 = vmul.f32 %v3404, 1.442695
    %v3408 = vpow.pop %v3407
    %v3409 = vadd.f32 %v3406, 1.0
    %v3410 = vadd.f32 %v3408, 1.0
    %v3411 = vrcp.pop %v3409
    %v3412 = vmul.f32 %v3409, %v3411
    %v3413 = vsub.f32 1.0, %v3412
    %v3414 = vmul.f32 %v3411, %v3413
    %v3415 = vadd.f32 %v3411, %v3414
    %vm3416 = vweird.f32 %v3409
    %vm3417 = vweird.f32 %v3411
    %vm3418 = vmor %vm3416, %vm3417
    %v3419 = vsel %vm3418, %v3411, %v3415
    %v3420 = vand.u32 2147483647, %v3409
    %vm3421 = vcmp.eq.f32.partialorder %v3420, 8.507059e+37
    %v3422 = vand.u32 %v3409, 2147483648
    %v3423 = vor.u32 1.1754944e-38, %v3422
    %v3424 = vsel %vm3421, %v3423, %v3419
    %v3425 = vmul.f32 1.0, %v3424
    %v3426 = vrcp.pop %v3410
    %v3427 = vmul.f32 %v3410, %v3426
    %v3428 = vsub.f32 1.0, %v3427
    %v3429 = vmul.f32 %v3426, %v3428
    %v3430 = vadd.f32 %v3426, %v3429
    %vm3431 = vweird.f32 %v3410
    %vm3432 = vweird.f32 %v3426
    %vm3433 = vmor %vm3431, %vm3432
    %v3434 = vsel %vm3433, %v3426, %v3430
    %v3435 = vand.u32 2147483647, %v3410
    %vm3436 = vcmp.eq.f32.partialorder %v3435, 8.507059e+37
    %v3437 = vand.u32 %v3410, 2147483648
    %v3438 = vor.u32 1.1754944e-38, %v3437
    %v3439 = vsel %vm3436, %v3438, %v3434
    %v3440 = vmul.f32 1.0, %v3439
    %v3441 = vmul.f32 %v3385, %v3356
    %v3442 = vmul.f32 %v3400, %v3359
    %v3443 = vadd.f32 %v3260, %v3441
    %v3444 = vadd.f32 %v3261, %v3442
    %v3445 = vtanh.pop %v3443
    %v3446 = vtanh.pop %v3444
    %v3447 = vsub.f32 1.0, %v3425
    %v3448 = vsub.f32 1.0, %v3440
    %v3449 = vmul.f32 %v3447, %v3445
    %v3450 = vmul.f32 %v3448, %v3446
    %v3451 = vmul.f32 %v3425, %v3106
    %v3452 = vmul.f32 %v3440, %v3107
    %v3453 = vadd.f32 %v3449, %v3451
    %v3454 = vadd.f32 %v3450, %v3452
    %s3455 = scalar_lea.vmem [#allocation5], 56
    %v3456 = vld [vmem:[%s3455] sm:$0xff]
    %s3457 = scalar_lea.vmem [#allocation6], 56
    %v3458 = vld [vmem:[%s3457] sm:$0xff]
    %s3459 = scalar_lea.vmem [#allocation7], 56
    %v3460 = vld [vmem:[%s3459] sm:$0xff]
    %v3461 = vld [vmem:[%s17] sm:$0xff]
    %v3462 = vld [vmem:[%s17 + $0x8] sm:$0xff]
    %v3463 = vld [vmem:[%s17 + $0x10] sm:$0xff]
    %v3464 = vld [vmem:[%s17 + $0x18] sm:$0xff]
    %v3465 = vld [vmem:[%s18] sm:$0x1]
    %v3467 = vperm.slane %v3465, 0
    %v3470 = vsel %vm319, %v3247, 0
    %3472 = vmatpush.msra.mxu0 0.0
    %3473 = vmatpush.msra.mxu0 0.0
    %3474 = vmatpush.msra.mxu0 0.0
    %3475 = vmatpush.msra.mxu0 0.0
    %3476 = vmatpush.msra.mxu0 0.0
    %3477 = vmatpush.msra.mxu0 0.0
    %3478 = vmatpush.msra.mxu0 0.0
    %3479 = vmatpush.msra.mxu0 0.0
    %3480 = vmatpush.msra.mxu0 0.0
    %3481 = vmatpush.msra.mxu0 0.0
    %3482 = vmatpush.msra.mxu0 0.0
    %3483 = vmatpush.msra.mxu0 0.0
    %3484 = vmatpush.msra.mxu0 %v3464
    %3485 = vmatpush.msra.mxu0 %v3463
    %3486 = vmatpush.msra.mxu0 %v3462
    %3487 = vmatpush.msra.mxu0 %v3461
    %3488 = vmatmul.f32.gmra.mxu0 %v3470
    %v3489 = vpop.f32.mrf.mxu0
    %v3490 = vadd.f32 %v3467, %v3489
    %3491 = vdwg.mxu0
    %v3492 = vld [vmem:[%s1061] sm:$0xff]
    %v3493 = vld [vmem:[%s1061 + $0x8] sm:$0xff]
    %v3494 = vld [vmem:[%s1061 + $0x10] sm:$0xff]
    %v3495 = vld [vmem:[%s1061 + $0x18] sm:$0xff]
    %v3496 = vld [vmem:[%s1066] sm:$0x1]
    %v3498 = vperm.slane %v3496, 0
    %3500 = vmatpush.msra.mxu0 0.0
    %3501 = vmatpush.msra.mxu0 0.0
    %3502 = vmatpush.msra.mxu0 0.0
    %3503 = vmatpush.msra.mxu0 0.0
    %3504 = vmatpush.msra.mxu0 0.0
    %3505 = vmatpush.msra.mxu0 0.0
    %3506 = vmatpush.msra.mxu0 0.0
    %3507 = vmatpush.msra.mxu0 0.0
    %3508 = vmatpush.msra.mxu0 0.0
    %3509 = vmatpush.msra.mxu0 0.0
    %3510 = vmatpush.msra.mxu0 0.0
    %3511 = vmatpush.msra.mxu0 0.0
    %3512 = vmatpush.msra.mxu0 %v3495
    %3513 = vmatpush.msra.mxu0 %v3494
    %3514 = vmatpush.msra.mxu0 %v3493
    %3515 = vmatpush.msra.mxu0 %v3492
    %3516 = vmatmul.f32.gmra.mxu0 %v3470
    %v3517 = vpop.f32.mrf.mxu0
    %v3518 = vadd.f32 %v3498, %v3517
    %3519 = vdwg.mxu0
    %v3520 = vld [vmem:[%s1091] sm:$0xff]
    %v3521 = vld [vmem:[%s1091 + $0x8] sm:$0xff]
    %v3522 = vld [vmem:[%s1091 + $0x10] sm:$0xff]
    %v3523 = vld [vmem:[%s1091 + $0x18] sm:$0xff]
    %v3524 = vld [vmem:[%s1096] sm:$0x1]
    %v3526 = vperm.slane %v3524, 0
    %3528 = vmatpush.msra.mxu0 0.0
    %3529 = vmatpush.msra.mxu0 0.0
    %3530 = vmatpush.msra.mxu0 0.0
    %3531 = vmatpush.msra.mxu0 0.0
    %3532 = vmatpush.msra.mxu0 0.0
    %3533 = vmatpush.msra.mxu0 0.0
    %3534 = vmatpush.msra.mxu0 0.0
    %3535 = vmatpush.msra.mxu0 0.0
    %3536 = vmatpush.msra.mxu0 0.0
    %3537 = vmatpush.msra.mxu0 0.0
    %3538 = vmatpush.msra.mxu0 0.0
    %3539 = vmatpush.msra.mxu0 0.0
    %3540 = vmatpush.msra.mxu0 %v3523
    %3541 = vmatpush.msra.mxu0 %v3522
    %3542 = vmatpush.msra.mxu0 %v3521
    %3543 = vmatpush.msra.mxu0 %v3520
    %3544 = vmatmul.f32.gmra.mxu0 %v3470
    %v3545 = vpop.f32.mrf.mxu0
    %v3546 = vadd.f32 %v3526, %v3545
    %3547 = vdwg.mxu0
    %v3548 = vadd.f32 %v3456, %v3490
    %v3549 = vxor.u32 %v3548, 2147483648
    %v3550 = vmul.f32 %v3549, 1.442695
    %v3551 = vpow.pop %v3550
    %v3552 = vadd.f32 %v3551, 1.0
    %v3553 = vrcp.pop %v3552
    %v3554 = vmul.f32 %v3552, %v3553
    %v3555 = vsub.f32 1.0, %v3554
    %v3556 = vmul.f32 %v3553, %v3555
    %v3557 = vadd.f32 %v3553, %v3556
    %vm3558 = vweird.f32 %v3552
    %vm3559 = vweird.f32 %v3553
    %vm3560 = vmor %vm3558, %vm3559
    %v3561 = vsel %vm3560, %v3553, %v3557
    %v3562 = vand.u32 2147483647, %v3552
    %vm3563 = vcmp.eq.f32.partialorder %v3562, 8.507059e+37
    %v3564 = vand.u32 %v3552, 2147483648
    %v3565 = vor.u32 1.1754944e-38, %v3564
    %v3566 = vsel %vm3563, %v3565, %v3561
    %v3567 = vmul.f32 1.0, %v3566
    %v3568 = vadd.f32 %v3458, %v3518
    %v3569 = vxor.u32 %v3568, 2147483648
    %v3570 = vmul.f32 %v3569, 1.442695
    %v3571 = vpow.pop %v3570
    %v3572 = vadd.f32 %v3571, 1.0
    %v3573 = vrcp.pop %v3572
    %v3574 = vmul.f32 %v3572, %v3573
    %v3575 = vsub.f32 1.0, %v3574
    %v3576 = vmul.f32 %v3573, %v3575
    %v3577 = vadd.f32 %v3573, %v3576
    %vm3578 = vweird.f32 %v3572
    %vm3579 = vweird.f32 %v3573
    %vm3580 = vmor %vm3578, %vm3579
    %v3581 = vsel %vm3580, %v3573, %v3577
    %v3582 = vand.u32 2147483647, %v3572
    %vm3583 = vcmp.eq.f32.partialorder %v3582, 8.507059e+37
    %v3584 = vand.u32 %v3572, 2147483648
    %v3585 = vor.u32 1.1754944e-38, %v3584
    %v3586 = vsel %vm3583, %v3585, %v3581
    %v3587 = vmul.f32 1.0, %v3586
    %v3588 = vmul.f32 %v3567, %v3546
    %v3589 = vadd.f32 %v3460, %v3588
    %v3590 = vtanh.pop %v3589
    %v3591 = vsub.f32 1.0, %v3587
    %v3592 = vmul.f32 %v3591, %v3590
    %v3593 = vmul.f32 %v3587, %v3247
    %v3594 = vadd.f32 %v3592, %v3593
    %s3595 = scalar_lea.vmem [#allocation8], 112
    %3596 = vst.msk [vmem:[%s3595] sm:$0xff] %vm319, %v3453
    %3597 = vst.msk [vmem:[%s3595 + $0x8] sm:$0xff] %vm319, %v3454
    %s3598 = scalar_lea.vmem [#allocation9], 56
    %3599 = vst.msk [vmem:[%s3598] sm:$0xff] %vm319, %v3594
    %v3600 = vld [vmem:[#allocation8] sm:$0xff]
    %v3601 = vld [vmem:[#allocation8 + $0x8] sm:$0xff]
    %v3602 = vld [vmem:[#allocation8 + $0x10] sm:$0xff]
    %v3603 = vld [vmem:[#allocation8 + $0x18] sm:$0xff]
    %v3604 = vld [vmem:[#allocation8 + $0x20] sm:$0xff]
    %v3605 = vld [vmem:[#allocation8 + $0x28] sm:$0xff]
    %v3606 = vld [vmem:[#allocation8 + $0x30] sm:$0xff]
    %v3607 = vld [vmem:[#allocation8 + $0x38] sm:$0xff]
    %v3608 = vld [vmem:[#allocation8 + $0x40] sm:$0xff]
    %v3609 = vld [vmem:[#allocation8 + $0x48] sm:$0xff]
    %v3610 = vld [vmem:[#allocation8 + $0x50] sm:$0xff]
    %v3611 = vld [vmem:[#allocation8 + $0x58] sm:$0xff]
    %v3612 = vld [vmem:[#allocation8 + $0x60] sm:$0xff]
    %v3613 = vld [vmem:[#allocation8 + $0x68] sm:$0xff]
    %v3614 = vld [vmem:[#allocation8 + $0x70] sm:$0xff]
    %v3615 = vld [vmem:[#allocation8 + $0x78] sm:$0xff]
    %v3616 = vld [vmem:[%s11] sm:$0xff]
    %v3617 = vld [vmem:[%s11 + $0x8] sm:$0xff]
    %v3618 = vld [vmem:[%s11 + $0x10] sm:$0xff]
    %v3619 = vld [vmem:[%s11 + $0x18] sm:$0xff]
    %v3620 = vld [vmem:[%s12] sm:$0x1]
    %v3622 = vperm.slane %v3620, 0
    %v3625 = vsel %vm319, %v3600, 0
    %v3628 = vsel %vm319, %v3601, 0
    %v3631 = vsel %vm319, %v3602, 0
    %v3634 = vsel %vm319, %v3603, 0
    %v3637 = vsel %vm319, %v3604, 0
    %v3640 = vsel %vm319, %v3605, 0
    %v3643 = vsel %vm319, %v3606, 0
    %v3646 = vsel %vm319, %v3607, 0
    %v3649 = vsel %vm319, %v3608, 0
    %v3652 = vsel %vm319, %v3609, 0
    %v3655 = vsel %vm319, %v3610, 0
    %v3658 = vsel %vm319, %v3611, 0
    %v3661 = vsel %vm319, %v3612, 0
    %v3664 = vsel %vm319, %v3613, 0
    %v3667 = vsel %vm319, %v3614, 0
    %v3670 = vsel %vm319, %v3615, 0
    %3672 = vmatpush.msra.mxu0 0.0
    %3673 = vmatpush.msra.mxu0 0.0
    %3674 = vmatpush.msra.mxu0 0.0
    %3675 = vmatpush.msra.mxu0 0.0
    %3676 = vmatpush.msra.mxu0 0.0
    %3677 = vmatpush.msra.mxu0 0.0
    %3678 = vmatpush.msra.mxu0 0.0
    %3679 = vmatpush.msra.mxu0 0.0
    %3680 = vmatpush.msra.mxu0 0.0
    %3681 = vmatpush.msra.mxu0 0.0
    %3682 = vmatpush.msra.mxu0 0.0
    %3683 = vmatpush.msra.mxu0 0.0
    %3684 = vmatpush.msra.mxu0 %v3619
    %3685 = vmatpush.msra.mxu0 %v3618
    %3686 = vmatpush.msra.mxu0 %v3617
    %3687 = vmatpush.msra.mxu0 %v3616
    %3688 = vmatmul.f32.gmra.mxu0 %v3625
    %v3689 = vpop.f32.mrf.mxu0
    %v3690 = vadd.f32 %v3622, %v3689
    %3691 = vmatmul.f32.gmra.mxu0 %v3628
    %v3692 = vpop.f32.mrf.mxu0
    %v3693 = vadd.f32 %v3622, %v3692
    %3694 = vmatmul.f32.gmra.mxu0 %v3631
    %v3695 = vpop.f32.mrf.mxu0
    %v3696 = vadd.f32 %v3622, %v3695
    %3697 = vmatmul.f32.gmra.mxu0 %v3634
    %v3698 = vpop.f32.mrf.mxu0
    %v3699 = vadd.f32 %v3622, %v3698
    %3700 = vmatmul.f32.gmra.mxu0 %v3637
    %v3701 = vpop.f32.mrf.mxu0
    %v3702 = vadd.f32 %v3622, %v3701
    %3703 = vmatmul.f32.gmra.mxu0 %v3640
    %v3704 = vpop.f32.mrf.mxu0
    %v3705 = vadd.f32 %v3622, %v3704
    %3706 = vmatmul.f32.gmra.mxu0 %v3643
    %v3707 = vpop.f32.mrf.mxu0
    %v3708 = vadd.f32 %v3622, %v3707
    %3709 = vmatmul.f32.gmra.mxu0 %v3646
    %v3710 = vpop.f32.mrf.mxu0
    %v3711 = vadd.f32 %v3622, %v3710
    %3712 = vmatmul.f32.gmra.mxu0 %v3649
    %v3713 = vpop.f32.mrf.mxu0
    %v3714 = vadd.f32 %v3622, %v3713
    %3715 = vmatmul.f32.gmra.mxu0 %v3652
    %v3716 = vpop.f32.mrf.mxu0
    %v3717 = vadd.f32 %v3622, %v3716
    %3718 = vmatmul.f32.gmra.mxu0 %v3655
    %v3719 = vpop.f32.mrf.mxu0
    %v3720 = vadd.f32 %v3622, %v3719
    %3721 = vmatmul.f32.gmra.mxu0 %v3658
    %v3722 = vpop.f32.mrf.mxu0
    %v3723 = vadd.f32 %v3622, %v3722
    %3724 = vmatmul.f32.gmra.mxu0 %v3661
    %v3725 = vpop.f32.mrf.mxu0
    %v3726 = vadd.f32 %v3622, %v3725
    %3727 = vmatmul.f32.gmra.mxu0 %v3664
    %v3728 = vpop.f32.mrf.mxu0
    %v3729 = vadd.f32 %v3622, %v3728
    %3730 = vmatmul.f32.gmra.mxu0 %v3667
    %v3731 = vpop.f32.mrf.mxu0
    %v3732 = vadd.f32 %v3622, %v3731
    %3733 = vmatmul.f32.gmra.mxu0 %v3670
    %v3734 = vpop.f32.mrf.mxu0
    %v3735 = vadd.f32 %v3622, %v3734
    %3736 = vdwg.mxu0
    %v3737 = vld [vmem:[#allocation9] sm:$0xff]
    %v3738 = vld [vmem:[#allocation9 + $0x8] sm:$0xff]
    %v3739 = vld [vmem:[#allocation9 + $0x10] sm:$0xff]
    %v3740 = vld [vmem:[#allocation9 + $0x18] sm:$0xff]
    %v3741 = vld [vmem:[#allocation9 + $0x20] sm:$0xff]
    %v3742 = vld [vmem:[#allocation9 + $0x28] sm:$0xff]
    %v3743 = vld [vmem:[#allocation9 + $0x30] sm:$0xff]
    %v3744 = vld [vmem:[#allocation9 + $0x38] sm:$0xff]
    %v3745 = vld [vmem:[%s19] sm:$0xff]
    %v3746 = vld [vmem:[%s19 + $0x8] sm:$0xff]
    %v3747 = vld [vmem:[%s19 + $0x10] sm:$0xff]
    %v3748 = vld [vmem:[%s19 + $0x18] sm:$0xff]
    %v3749 = vld [vmem:[%s20] sm:$0x1]
    %v3751 = vperm.slane %v3749, 0
    %v3754 = vsel %vm319, %v3737, 0
    %v3757 = vsel %vm319, %v3738, 0
    %v3760 = vsel %vm319, %v3739, 0
    %v3763 = vsel %vm319, %v3740, 0
    %v3766 = vsel %vm319, %v3741, 0
    %v3769 = vsel %vm319, %v3742, 0
    %v3772 = vsel %vm319, %v3743, 0
    %v3775 = vsel %vm319, %v3744, 0
    %3777 = vmatpush.msra.mxu0 0.0
    %3778 = vmatpush.msra.mxu0 0.0
    %3779 = vmatpush.msra.mxu0 0.0
    %3780 = vmatpush.msra.mxu0 0.0
    %3781 = vmatpush.msra.mxu0 0.0
    %3782 = vmatpush.msra.mxu0 0.0
    %3783 = vmatpush.msra.mxu0 0.0
    %3784 = vmatpush.msra.mxu0 0.0
    %3785 = vmatpush.msra.mxu0 0.0
    %3786 = vmatpush.msra.mxu0 0.0
    %3787 = vmatpush.msra.mxu0 0.0
    %3788 = vmatpush.msra.mxu0 0.0
    %3789 = vmatpush.msra.mxu0 %v3748
    %3790 = vmatpush.msra.mxu0 %v3747
    %3791 = vmatpush.msra.mxu0 %v3746
    %3792 = vmatpush.msra.mxu0 %v3745
    %3793 = vmatmul.f32.gmra.mxu0 %v3754
    %v3794 = vpop.f32.mrf.mxu0
    %v3795 = vadd.f32 %v3751, %v3794
    %3796 = vmatmul.f32.gmra.mxu0 %v3757
    %v3797 = vpop.f32.mrf.mxu0
    %v3798 = vadd.f32 %v3751, %v3797
    %3799 = vmatmul.f32.gmra.mxu0 %v3760
    %v3800 = vpop.f32.mrf.mxu0
    %v3801 = vadd.f32 %v3751, %v3800
    %3802 = vmatmul.f32.gmra.mxu0 %v3763
    %v3803 = vpop.f32.mrf.mxu0
    %v3804 = vadd.f32 %v3751, %v3803
    %3805 = vmatmul.f32.gmra.mxu0 %v3766
    %v3806 = vpop.f32.mrf.mxu0
    %v3807 = vadd.f32 %v3751, %v3806
    %3808 = vmatmul.f32.gmra.mxu0 %v3769
    %v3809 = vpop.f32.mrf.mxu0
    %v3810 = vadd.f32 %v3751, %v3809
    %3811 = vmatmul.f32.gmra.mxu0 %v3772
    %v3812 = vpop.f32.mrf.mxu0
    %v3813 = vadd.f32 %v3751, %v3812
    %3814 = vmatmul.f32.gmra.mxu0 %v3775
    %v3815 = vpop.f32.mrf.mxu0
    %v3816 = vadd.f32 %v3751, %v3815
    %3817 = vdwg.mxu0
    %v3818 = vlaneseq
    %v3819 = vand.u32 %v3818, 127
    %v3820 = vld [vmem:[%s2] sm:$0xff]
    %v3821 = vperm.slane %v3820, 0
    %v3822 = vlaneseq
    %v3823 = vshrl.u32 %v3822, 7
    %3825 = vset.pattern.permute.xlu0 %v3823
    %3826 = vperm.xlu0 %3825, %v3821
    %v3827 = vpop.permute.xlu0 %3826
    %v3828 = vperm.slane %v3820, 1
    %v3829 = vlaneseq
    %v3830 = vshrl.u32 %v3829, 7
    %3832 = vset.pattern.permute.xlu0 %v3830
    %3833 = vperm.xlu0 %3832, %v3828
    %v3834 = vpop.permute.xlu0 %3833
    %v3835 = vperm.slane %v3820, 2
    %v3836 = vlaneseq
    %v3837 = vshrl.u32 %v3836, 7
    %3839 = vset.pattern.permute.xlu0 %v3837
    %3840 = vperm.xlu0 %3839, %v3835
    %v3841 = vpop.permute.xlu0 %3840
    %v3842 = vperm.slane %v3820, 3
    %v3843 = vlaneseq
    %v3844 = vshrl.u32 %v3843, 7
    %3846 = vset.pattern.permute.xlu0 %v3844
    %3847 = vperm.xlu0 %3846, %v3842
    %v3848 = vpop.permute.xlu0 %3847
    %v3849 = vperm.slane %v3820, 4
    %v3850 = vlaneseq
    %v3851 = vshrl.u32 %v3850, 7
    %3853 = vset.pattern.permute.xlu0 %v3851
    %3854 = vperm.xlu0 %3853, %v3849
    %v3855 = vpop.permute.xlu0 %3854
    %v3856 = vperm.slane %v3820, 5
    %v3857 = vlaneseq
    %v3858 = vshrl.u32 %v3857, 7
    %3860 = vset.pattern.permute.xlu0 %v3858
    %3861 = vperm.xlu0 %3860, %v3856
    %v3862 = vpop.permute.xlu0 %3861
    %v3863 = vperm.slane %v3820, 6
    %v3864 = vlaneseq
    %v3865 = vshrl.u32 %v3864, 7
    %3867 = vset.pattern.permute.xlu0 %v3865
    %3868 = vperm.xlu0 %3867, %v3863
    %v3869 = vpop.permute.xlu0 %3868
    %v3870 = vperm.slane %v3820, 7
    %v3871 = vlaneseq
    %v3872 = vshrl.u32 %v3871, 7
    %3874 = vset.pattern.permute.xlu0 %v3872
    %3875 = vperm.xlu0 %3874, %v3870
    %v3876 = vpop.permute.xlu0 %3875
    %vm3877 = vcmp.eq.s32.totalorder %v3819, %v3827
    %vm3878 = vcmp.eq.s32.totalorder %v3819, %v3834
    %vm3879 = vcmp.eq.s32.totalorder %v3819, %v3841
    %vm3880 = vcmp.eq.s32.totalorder %v3819, %v3848
    %vm3881 = vcmp.eq.s32.totalorder %v3819, %v3855
    %vm3882 = vcmp.eq.s32.totalorder %v3819, %v3862
    %vm3883 = vcmp.eq.s32.totalorder %v3819, %v3869
    %vm3884 = vcmp.eq.s32.totalorder %v3819, %v3876
    %v3885 = vsel %vm3877, %v3690, 0.0
    %v3886 = vsel %vm3878, %v3696, 0.0
    %v3887 = vsel %vm3879, %v3702, 0.0
    %v3888 = vsel %vm3880, %v3708, 0.0
    %v3889 = vsel %vm3881, %v3714, 0.0
    %v3890 = vsel %vm3882, %v3720, 0.0
    %v3891 = vsel %vm3883, %v3726, 0.0
    %v3892 = vsel %vm3884, %v3732, 0.0
    %vm3893 = vcmask 56320
    %v3894 = vsel %vm3893, %v3885, 0.0
    %3895 = vadd.xlane.f32.xlu0 %v3894
    %v3896 = vpop.xlane.xlu0 %3895
    %v3897 = vsel %vm3893, %v3886, 0.0
    %3898 = vadd.xlane.f32.xlu0 %v3897
    %v3899 = vpop.xlane.xlu0 %3898
    %v3900 = vsel %vm3893, %v3887, 0.0
    %3901 = vadd.xlane.f32.xlu0 %v3900
    %v3902 = vpop.xlane.xlu0 %3901
    %v3903 = vsel %vm3893, %v3888, 0.0
    %3904 = vadd.xlane.f32.xlu0 %v3903
    %v3905 = vpop.xlane.xlu0 %3904
    %v3906 = vsel %vm3893, %v3889, 0.0
    %3907 = vadd.xlane.f32.xlu0 %v3906
    %v3908 = vpop.xlane.xlu0 %3907
    %v3909 = vsel %vm3893, %v3890, 0.0
    %3910 = vadd.xlane.f32.xlu0 %v3909
    %v3911 = vpop.xlane.xlu0 %3910
    %v3912 = vsel %vm3893, %v3891, 0.0
    %3913 = vadd.xlane.f32.xlu0 %v3912
    %v3914 = vpop.xlane.xlu0 %3913
    %v3915 = vsel %vm3893, %v3892, 0.0
    %3916 = vadd.xlane.f32.xlu0 %v3915
    %v3917 = vpop.xlane.xlu0 %3916
    %v3918 = vld [vmem:[%s3] sm:$0xff]
    %v3919 = vld [vmem:[%s3 + $0x8] sm:$0xff]
    %v3920 = vld [vmem:[%s3 + $0x10] sm:$0xff]
    %v3921 = vld [vmem:[%s3 + $0x18] sm:$0xff]
    %v3922 = vld [vmem:[%s3 + $0x20] sm:$0xff]
    %v3923 = vld [vmem:[%s3 + $0x28] sm:$0xff]
    %v3924 = vld [vmem:[%s3 + $0x30] sm:$0xff]
    %v3925 = vld [vmem:[%s3 + $0x38] sm:$0xff]
    %vm3926 = vcmp.eq.f32.partialorder %v3918, 0.0
    %vm3927 = vcmp.eq.f32.partialorder %v3919, 0.0
    %vm3928 = vcmp.eq.f32.partialorder %v3920, 0.0
    %vm3929 = vcmp.eq.f32.partialorder %v3921, 0.0
    %vm3930 = vcmp.eq.f32.partialorder %v3922, 0.0
    %vm3931 = vcmp.eq.f32.partialorder %v3923, 0.0
    %vm3932 = vcmp.eq.f32.partialorder %v3924, 0.0
    %vm3933 = vcmp.eq.f32.partialorder %v3925, 0.0
    %v3934 = vld [vmem:[%s4] sm:$0xff]
    %v3935 = vperm.slane %v3934, 0
    %v3936 = vlaneseq
    %v3937 = vshrl.u32 %v3936, 7
    %3939 = vset.pattern.permute.xlu0 %v3937
    %3940 = vperm.xlu0 %3939, %v3935
    %v3941 = vpop.permute.xlu0 %3940
    %v3942 = vperm.slane %v3934, 1
    %v3943 = vlaneseq
    %v3944 = vshrl.u32 %v3943, 7
    %3946 = vset.pattern.permute.xlu0 %v3944
    %3947 = vperm.xlu0 %3946, %v3942
    %v3948 = vpop.permute.xlu0 %3947
    %v3949 = vperm.slane %v3934, 2
    %v3950 = vlaneseq
    %v3951 = vshrl.u32 %v3950, 7
    %3953 = vset.pattern.permute.xlu0 %v3951
    %3954 = vperm.xlu0 %3953, %v3949
    %v3955 = vpop.permute.xlu0 %3954
    %v3956 = vperm.slane %v3934, 3
    %v3957 = vlaneseq
    %v3958 = vshrl.u32 %v3957, 7
    %3960 = vset.pattern.permute.xlu0 %v3958
    %3961 = vperm.xlu0 %3960, %v3956
    %v3962 = vpop.permute.xlu0 %3961
    %v3963 = vperm.slane %v3934, 4
    %v3964 = vlaneseq
    %v3965 = vshrl.u32 %v3964, 7
    %3967 = vset.pattern.permute.xlu0 %v3965
    %3968 = vperm.xlu0 %3967, %v3963
    %v3969 = vpop.permute.xlu0 %3968
    %v3970 = vperm.slane %v3934, 5
    %v3971 = vlaneseq
    %v3972 = vshrl.u32 %v3971, 7
    %3974 = vset.pattern.permute.xlu0 %v3972
    %3975 = vperm.xlu0 %3974, %v3970
    %v3976 = vpop.permute.xlu0 %3975
    %v3977 = vperm.slane %v3934, 6
    %v3978 = vlaneseq
    %v3979 = vshrl.u32 %v3978, 7
    %3981 = vset.pattern.permute.xlu0 %v3979
    %3982 = vperm.xlu0 %3981, %v3977
    %v3983 = vpop.permute.xlu0 %3982
    %v3984 = vperm.slane %v3934, 7
    %v3985 = vlaneseq
    %v3986 = vshrl.u32 %v3985, 7
    %3988 = vset.pattern.permute.xlu0 %v3986
    %3989 = vperm.xlu0 %3988, %v3984
    %v3990 = vpop.permute.xlu0 %3989
    %vm3991 = vcmp.eq.f32.partialorder %v3941, 1.0
    %vm3992 = vcmp.eq.f32.partialorder %v3948, 1.0
    %vm3993 = vcmp.eq.f32.partialorder %v3955, 1.0
    %vm3994 = vcmp.eq.f32.partialorder %v3962, 1.0
    %vm3995 = vcmp.eq.f32.partialorder %v3969, 1.0
    %vm3996 = vcmp.eq.f32.partialorder %v3976, 1.0
    %vm3997 = vcmp.eq.f32.partialorder %v3983, 1.0
    %vm3998 = vcmp.eq.f32.partialorder %v3990, 1.0
    %v3999 = vsel %vm3991, 1, 0
    %v4000 = vsel %vm3992, 1, 0
    %v4001 = vsel %vm3993, 1, 0
    %v4002 = vsel %vm3994, 1, 0
    %v4003 = vsel %vm3995, 1, 0
    %v4004 = vsel %vm3996, 1, 0
    %v4005 = vsel %vm3997, 1, 0
    %v4006 = vsel %vm3998, 1, 0
    %vm4007 = vcmp.eq.s32.totalorder %v3999, 1
    %vm4008 = vcmp.eq.s32.totalorder %v4000, 1
    %vm4009 = vcmp.eq.s32.totalorder %v4001, 1
    %vm4010 = vcmp.eq.s32.totalorder %v4002, 1
    %vm4011 = vcmp.eq.s32.totalorder %v4003, 1
    %vm4012 = vcmp.eq.s32.totalorder %v4004, 1
    %vm4013 = vcmp.eq.s32.totalorder %v4005, 1
    %vm4014 = vcmp.eq.s32.totalorder %v4006, 1
    %vm4015 = vmand %vm3926, %vm4007
    %vm4016 = vmand %vm3927, %vm4008
    %vm4017 = vmand %vm3928, %vm4009
    %vm4018 = vmand %vm3929, %vm4010
    %vm4019 = vmand %vm3930, %vm4011
    %vm4020 = vmand %vm3931, %vm4012
    %vm4021 = vmand %vm3932, %vm4013
    %vm4022 = vmand %vm3933, %vm4014
    %v4023 = vsel %vm4015, -inf, %v3795
    %v4024 = vsel %vm4016, -inf, %v3798
    %v4025 = vsel %vm4017, -inf, %v3801
    %v4026 = vsel %vm4018, -inf, %v3804
    %v4027 = vsel %vm4019, -inf, %v3807
    %v4028 = vsel %vm4020, -inf, %v3810
    %v4029 = vsel %vm4021, -inf, %v3813
    %v4030 = vsel %vm4022, -inf, %v3816
    %v4031 = vsel %vm4015, -inf, %v3693
    %v4032 = vsel %vm4016, -inf, %v3699
    %v4033 = vsel %vm4017, -inf, %v3705
    %v4034 = vsel %vm4018, -inf, %v3711
    %v4035 = vsel %vm4019, -inf, %v3717
    %v4036 = vsel %vm4020, -inf, %v3723
    %v4037 = vsel %vm4021, -inf, %v3729
    %v4038 = vsel %vm4022, -inf, %v3735
    %v4039 = vsel %vm3893, %v4031, -inf
    %4040 = vmax.xlane.f32.xlu0 %v4039
    %v4041 = vpop.xlane.xlu0 %4040
    %v4042 = vsel %vm3893, %v4032, -inf
    %4043 = vmax.xlane.f32.xlu0 %v4042
    %v4044 = vpop.xlane.xlu0 %4043
    %v4045 = vsel %vm3893, %v4033, -inf
    %4046 = vmax.xlane.f32.xlu0 %v4045
    %v4047 = vpop.xlane.xlu0 %4046
    %v4048 = vsel %vm3893, %v4034, -inf
    %4049 = vmax.xlane.f32.xlu0 %v4048
    %v4050 = vpop.xlane.xlu0 %4049
    %v4051 = vsel %vm3893, %v4035, -inf
    %4052 = vmax.xlane.f32.xlu0 %v4051
    %v4053 = vpop.xlane.xlu0 %4052
    %v4054 = vsel %vm3893, %v4036, -inf
    %4055 = vmax.xlane.f32.xlu0 %v4054
    %v4056 = vpop.xlane.xlu0 %4055
    %v4057 = vsel %vm3893, %v4037, -inf
    %4058 = vmax.xlane.f32.xlu0 %v4057
    %v4059 = vpop.xlane.xlu0 %4058
    %v4060 = vsel %vm3893, %v4038, -inf
    %4061 = vmax.xlane.f32.xlu0 %v4060
    %v4062 = vpop.xlane.xlu0 %4061
    %vm4063 = vcmp.eq.f32.partialorder %v4031, %v4041
    %vm4064 = vcmp.eq.f32.partialorder %v4032, %v4044
    %vm4065 = vcmp.eq.f32.partialorder %v4033, %v4047
    %vm4066 = vcmp.eq.f32.partialorder %v4034, %v4050
    %vm4067 = vcmp.eq.f32.partialorder %v4035, %v4053
    %vm4068 = vcmp.eq.f32.partialorder %v4036, %v4056
    %vm4069 = vcmp.eq.f32.partialorder %v4037, %v4059
    %vm4070 = vcmp.eq.f32.partialorder %v4038, %v4062
    %v4071 = vsel %vm4063, %v3819, 7
    %v4072 = vsel %vm4064, %v3819, 7
    %v4073 = vsel %vm4065, %v3819, 7
    %v4074 = vsel %vm4066, %v3819, 7
    %v4075 = vsel %vm4067, %v3819, 7
    %v4076 = vsel %vm4068, %v3819, 7
    %v4077 = vsel %vm4069, %v3819, 7
    %v4078 = vsel %vm4070, %v3819, 7
    %v4079 = vsel %vm3893, %v4071, 2147483647
    %v4080 = vand.u32 %v4079, 65535
    %v4081 = vshra.s32 %v4079, 16
    %v4082 = vcvt.s32.f32 %v4080
    %v4083 = vcvt.s32.f32 %v4081
    %4084 = vmin.xlane.f32.xlu0 %v4083
    %v4085 = vpop.xlane.xlu0 %4084
    %vm4086 = vcmp.eq.f32.partialorder %v4083, %v4085
    %v4087 = vsel %vm4086, %v4082, inf
    %4088 = vmin.xlane.f32.xlu0 %v4087
    %v4089 = vpop.xlane.xlu0 %4088
    %v4090 = vcvt.f32.s32 %v4089
    %v4091 = vcvt.f32.s32 %v4085
    %v4092 = vshll.u32 %v4091, 16
    %v4093 = vadd.s32 %v4092, %v4090
    %v4094 = vsel %vm3893, %v4072, 2147483647
    %v4095 = vand.u32 %v4094, 65535
    %v4096 = vshra.s32 %v4094, 16
    %v4097 = vcvt.s32.f32 %v4095
    %v4098 = vcvt.s32.f32 %v4096
    %4099 = vmin.xlane.f32.xlu0 %v4098
    %v4100 = vpop.xlane.xlu0 %4099
    %vm4101 = vcmp.eq.f32.partialorder %v4098, %v4100
    %v4102 = vsel %vm4101, %v4097, inf
    %4103 = vmin.xlane.f32.xlu0 %v4102
    %v4104 = vpop.xlane.xlu0 %4103
    %v4105 = vcvt.f32.s32 %v4104
    %v4106 = vcvt.f32.s32 %v4100
    %v4107 = vshll.u32 %v4106, 16
    %v4108 = vadd.s32 %v4107, %v4105
    %v4109 = vsel %vm3893, %v4073, 2147483647
    %v4110 = vand.u32 %v4109, 65535
    %v4111 = vshra.s32 %v4109, 16
    %v4112 = vcvt.s32.f32 %v4110
    %v4113 = vcvt.s32.f32 %v4111
    %4114 = vmin.xlane.f32.xlu0 %v4113
    %v4115 = vpop.xlane.xlu0 %4114
    %vm4116 = vcmp.eq.f32.partialorder %v4113, %v4115
    %v4117 = vsel %vm4116, %v4112, inf
    %4118 = vmin.xlane.f32.xlu0 %v4117
    %v4119 = vpop.xlane.xlu0 %4118
    %v4120 = vcvt.f32.s32 %v4119
    %v4121 = vcvt.f32.s32 %v4115
    %v4122 = vshll.u32 %v4121, 16
    %v4123 = vadd.s32 %v4122, %v4120
    %v4124 = vsel %vm3893, %v4074, 2147483647
    %v4125 = vand.u32 %v4124, 65535
    %v4126 = vshra.s32 %v4124, 16
    %v4127 = vcvt.s32.f32 %v4125
    %v4128 = vcvt.s32.f32 %v4126
    %4129 = vmin.xlane.f32.xlu0 %v4128
    %v4130 = vpop.xlane.xlu0 %4129
    %vm4131 = vcmp.eq.f32.partialorder %v4128, %v4130
    %v4132 = vsel %vm4131, %v4127, inf
    %4133 = vmin.xlane.f32.xlu0 %v4132
    %v4134 = vpop.xlane.xlu0 %4133
    %v4135 = vcvt.f32.s32 %v4134
    %v4136 = vcvt.f32.s32 %v4130
    %v4137 = vshll.u32 %v4136, 16
    %v4138 = vadd.s32 %v4137, %v4135
    %v4139 = vsel %vm3893, %v4075, 2147483647
    %v4140 = vand.u32 %v4139, 65535
    %v4141 = vshra.s32 %v4139, 16
    %v4142 = vcvt.s32.f32 %v4140
    %v4143 = vcvt.s32.f32 %v4141
    %4144 = vmin.xlane.f32.xlu0 %v4143
    %v4145 = vpop.xlane.xlu0 %4144
    %vm4146 = vcmp.eq.f32.partialorder %v4143, %v4145
    %v4147 = vsel %vm4146, %v4142, inf
    %4148 = vmin.xlane.f32.xlu0 %v4147
    %v4149 = vpop.xlane.xlu0 %4148
    %v4150 = vcvt.f32.s32 %v4149
    %v4151 = vcvt.f32.s32 %v4145
    %v4152 = vshll.u32 %v4151, 16
    %v4153 = vadd.s32 %v4152, %v4150
    %v4154 = vsel %vm3893, %v4076, 2147483647
    %v4155 = vand.u32 %v4154, 65535
    %v4156 = vshra.s32 %v4154, 16
    %v4157 = vcvt.s32.f32 %v4155
    %v4158 = vcvt.s32.f32 %v4156
    %4159 = vmin.xlane.f32.xlu0 %v4158
    %v4160 = vpop.xlane.xlu0 %4159
    %vm4161 = vcmp.eq.f32.partialorder %v4158, %v4160
    %v4162 = vsel %vm4161, %v4157, inf
    %4163 = vmin.xlane.f32.xlu0 %v4162
    %v4164 = vpop.xlane.xlu0 %4163
    %v4165 = vcvt.f32.s32 %v4164
    %v4166 = vcvt.f32.s32 %v4160
    %v4167 = vshll.u32 %v4166, 16
    %v4168 = vadd.s32 %v4167, %v4165
    %v4169 = vsel %vm3893, %v4077, 2147483647
    %v4170 = vand.u32 %v4169, 65535
    %v4171 = vshra.s32 %v4169, 16
    %v4172 = vcvt.s32.f32 %v4170
    %v4173 = vcvt.s32.f32 %v4171
    %4174 = vmin.xlane.f32.xlu0 %v4173
    %v4175 = vpop.xlane.xlu0 %4174
    %vm4176 = vcmp.eq.f32.partialorder %v4173, %v4175
    %v4177 = vsel %vm4176, %v4172, inf
    %4178 = vmin.xlane.f32.xlu0 %v4177
    %v4179 = vpop.xlane.xlu0 %4178
    %v4180 = vcvt.f32.s32 %v4179
    %v4181 = vcvt.f32.s32 %v4175
    %v4182 = vshll.u32 %v4181, 16
    %v4183 = vadd.s32 %v4182, %v4180
    %v4184 = vsel %vm3893, %v4078, 2147483647
    %v4185 = vand.u32 %v4184, 65535
    %v4186 = vshra.s32 %v4184, 16
    %v4187 = vcvt.s32.f32 %v4185
    %v4188 = vcvt.s32.f32 %v4186
    %4189 = vmin.xlane.f32.xlu0 %v4188
    %v4190 = vpop.xlane.xlu0 %4189
    %vm4191 = vcmp.eq.f32.partialorder %v4188, %v4190
    %v4192 = vsel %vm4191, %v4187, inf
    %4193 = vmin.xlane.f32.xlu0 %v4192
    %v4194 = vpop.xlane.xlu0 %4193
    %v4195 = vcvt.f32.s32 %v4194
    %v4196 = vcvt.f32.s32 %v4190
    %v4197 = vshll.u32 %v4196, 16
    %v4198 = vadd.s32 %v4197, %v4195
    %vm4199 = vcmp.eq.s32.totalorder %v3819, %v4093
    %vm4200 = vcmp.eq.s32.totalorder %v3819, %v4108
    %vm4201 = vcmp.eq.s32.totalorder %v3819, %v4123
    %vm4202 = vcmp.eq.s32.totalorder %v3819, %v4138
    %vm4203 = vcmp.eq.s32.totalorder %v3819, %v4153
    %vm4204 = vcmp.eq.s32.totalorder %v3819, %v4168
    %vm4205 = vcmp.eq.s32.totalorder %v3819, %v4183
    %vm4206 = vcmp.eq.s32.totalorder %v3819, %v4198
    %v4207 = vsel %vm4199, %v4023, 0.0
    %v4208 = vsel %vm4200, %v4024, 0.0
    %v4209 = vsel %vm4201, %v4025, 0.0
    %v4210 = vsel %vm4202, %v4026, 0.0
    %v4211 = vsel %vm4203, %v4027, 0.0
    %v4212 = vsel %vm4204, %v4028, 0.0
    %v4213 = vsel %vm4205, %v4029, 0.0
    %v4214 = vsel %vm4206, %v4030, 0.0
    %v4215 = vsel %vm3893, %v4207, 0.0
    %4216 = vadd.xlane.f32.xlu0 %v4215
    %v4217 = vpop.xlane.xlu0 %4216
    %v4218 = vsel %vm3893, %v4208, 0.0
    %4219 = vadd.xlane.f32.xlu0 %v4218
    %v4220 = vpop.xlane.xlu0 %4219
    %v4221 = vsel %vm3893, %v4209, 0.0
    %4222 = vadd.xlane.f32.xlu0 %v4221
    %v4223 = vpop.xlane.xlu0 %4222
    %v4224 = vsel %vm3893, %v4210, 0.0
    %4225 = vadd.xlane.f32.xlu0 %v4224
    %v4226 = vpop.xlane.xlu0 %4225
    %v4227 = vsel %vm3893, %v4211, 0.0
    %4228 = vadd.xlane.f32.xlu0 %v4227
    %v4229 = vpop.xlane.xlu0 %4228
    %v4230 = vsel %vm3893, %v4212, 0.0
    %4231 = vadd.xlane.f32.xlu0 %v4230
    %v4232 = vpop.xlane.xlu0 %4231
    %v4233 = vsel %vm3893, %v4213, 0.0
    %4234 = vadd.xlane.f32.xlu0 %v4233
    %v4235 = vpop.xlane.xlu0 %4234
    %v4236 = vsel %vm3893, %v4214, 0.0
    %4237 = vadd.xlane.f32.xlu0 %v4236
    %v4238 = vpop.xlane.xlu0 %4237
    %v4247 = vperm.slane %v3896, %v3819
    %v4248 = vperm.slane %v3899, %v3819
    %v4249 = vperm.slane %v3902, %v3819
    %v4250 = vperm.slane %v3905, %v3819
    %v4251 = vperm.slane %v3908, %v3819
    %v4252 = vperm.slane %v3911, %v3819
    %v4253 = vperm.slane %v3914, %v3819
    %v4254 = vperm.slane %v3917, %v3819
    %vm4255 = vcmask 1041409
    %v4256 = vsel %vm4255, %v4248, %v4247
    %vm4257 = vcmask 1042434
    %v4258 = vsel %vm4257, %v4249, %v4256
    %vm4259 = vcmask 1043459
    %v4260 = vsel %vm4259, %v4250, %v4258
    %vm4261 = vcmask 1044484
    %v4262 = vsel %vm4261, %v4251, %v4260
    %vm4263 = vcmask 1045509
    %v4264 = vsel %vm4263, %v4252, %v4262
    %vm4265 = vcmask 1046534
    %v4266 = vsel %vm4265, %v4253, %v4264
    %vm4267 = vcmask 1047559
    %v4268 = vsel %vm4267, %v4254, %v4266
    %vm4270 = vcmask 64512
    %4271 = vst.msk [vmem:[%s21] sm:$0xff] %vm4270, %v4268
    %v4280 = vperm.slane %v4217, %v3819
    %v4281 = vperm.slane %v4220, %v3819
    %v4282 = vperm.slane %v4223, %v3819
    %v4283 = vperm.slane %v4226, %v3819
    %v4284 = vperm.slane %v4229, %v3819
    %v4285 = vperm.slane %v4232, %v3819
    %v4286 = vperm.slane %v4235, %v3819
    %v4287 = vperm.slane %v4238, %v3819
    %v4288 = vsel %vm4255, %v4281, %v4280
    %v4289 = vsel %vm4257, %v4282, %v4288
    %v4290 = vsel %vm4259, %v4283, %v4289
    %v4291 = vsel %vm4261, %v4284, %v4290
    %v4292 = vsel %vm4263, %v4285, %v4291
    %v4293 = vsel %vm4265, %v4286, %v4292
    %v4294 = vsel %vm4267, %v4287, %v4293
    %4296 = vst.msk [vmem:[%s22] sm:$0xff] %vm4270, %v4294
    %v4297 = vmin.f32 %v4217, %v4229
    %v4298 = vmin.f32 %v4220, %v4232
    %v4299 = vmin.f32 %v4223, %v4235
    %v4300 = vmin.f32 %v4226, %v4238
    %v4301 = vmin.f32 %v4297, %v4298
    %v4302 = vmin.f32 %v4299, %v4300
    %v4303 = vmin.f32 %v4301, %v4302
    %v4304 = vrot.slane %v4303, 4
    %v4305 = vmin.f32 %v4303, %v4304
    %v4306 = vrot.slane %v4305, 2
    %v4307 = vmin.f32 %v4305, %v4306
    %v4308 = vrot.slane %v4307, 1
    %v4309 = vmin.f32 %v4307, %v4308
    %s4310 = vtos %v4309
    %v4311 = vstv %s4310
    %vm4312 = vcmask 0
    %4313 = vst.msk [vmem:[#allocation10] sm:$0x1] %vm4312, %v4311
    // Predicated region
    $region86: #{qmix_loss_forward.2} parent=1 // pred_check
      _
    $region87: #{qmix_loss_forward.2} parent=1 // pred_check_branch
      %4315 = sbr.rel (0) target = $region89
    $region88: #{qmix_loss_forward.2} parent=1 // pred_region
      _
    $region89: #{qmix_loss_forward.2} parent=1 // pred_fallthru
      _
    // Predicated region
    $region90: #{qmix_loss_forward.2} parent=1 // pred_check
      _
    $region91: #{qmix_loss_forward.2} parent=1 // pred_check_branch
      %4317 = sbr.rel (0) target = $region93
    $region92: #{qmix_loss_forward.2} parent=1 // pred_region
      _
    $region93: #{qmix_loss_forward.2} parent=1 // pred_fallthru
      _
    // Predicated region
    $region94: #{qmix_loss_forward.2} parent=1 // pred_check
      _
    $region95: #{qmix_loss_forward.2} parent=1 // pred_check_branch
      %4319 = sbr.rel (0) target = $region97
    $region96: #{qmix_loss_forward.2} parent=1 // pred_region
      %4321 = vsyncadd [#allocation11], 0
      %s4323 = sshll.u32 [#allocation10], 4
      %s4324 = int_to_ptr.vmem [resolvable:$true] %s4323
      %s4325 = sshll.u32 %s23, 4
      %s4326 = int_to_ptr.hbm [resolvable:$true] %s4325
      %4328 = dma.vmem_to_hbm [thread:$0]  %s4324, 16, %s4326, [#allocation11]
    $region97: #{qmix_loss_forward.2} parent=1 // pred_fallthru
      _
    // Predicated region
    $region98: #{qmix_loss_forward.2} parent=1 // pred_check
      _
    $region99: #{qmix_loss_forward.2} parent=1 // pred_check_branch
      %4330 = sbr.rel (0) target = $region101
    $region100: #{qmix_loss_forward.2} parent=1 // pred_region
      _
    $region101: #{qmix_loss_forward.2} parent=1 // pred_fallthru
      _
    // Predicated region
    $region102: #{qmix_loss_forward.2} parent=1 // pred_check
      _
    $region103: #{qmix_loss_forward.2} parent=1 // pred_check_branch
      %4332 = sbr.rel (0) target = $region105
    $region104: #{qmix_loss_forward.2} parent=1 // pred_region
      _
    $region105: #{qmix_loss_forward.2} parent=1 // pred_fallthru
      _
    // Predicated region
    $region106: #{qmix_loss_forward.2} parent=1 // pred_check
      _
    $region107: #{qmix_loss_forward.2} parent=1 // pred_check_branch
      %4334 = sbr.rel (0) target = $region109
    $region108: #{qmix_loss_forward.2} parent=1 // pred_region
      %4336 = dma.done [#allocation11], 16
    $region109: #{qmix_loss_forward.2} parent=1 // pred_fallthru
      _
    %4337 = vsyncpa [#allocation11], 1

</llo_original>
